<compile_context>
chip_gen: v5e
topology: v5e:2x2
jax: 0.10.0
libtpu: 0.0.40
codegen_flags: <defaults>
</compile_context>

<pallas_src>
import numpy as np
import jax
import jax.numpy as jnp
from jax import lax
from jax.experimental import pallas as pl
from jax.experimental.pallas import tpu as pltpu

# ------------------------------------------------------------------------ config
NUM_CLASSES = 3
NUM_ANCHORS = 3
NUM_PRED = NUM_CLASSES + 5                 # (tx, ty, tw, th, conf) + classes
PRED_COUT = NUM_ANCHORS * NUM_PRED         # 24
# processing order = deepest feature map first (matches anchors[::-1] / strides[::-1])
ANCHORS = [
    np.array([[10.0, 13.0], [16.0, 30.0], [33.0, 23.0]], np.float32),
    np.array([[5.0, 7.0], [8.0, 6.0], [9.0, 11.0]], np.float32),
    np.array([[2.0, 3.0], [4.0, 2.0], [3.0, 5.0]], np.float32),
]
STRIDES = [8, 4, 2]                        # deepest first (16x16 input -> 2x2, 4x4, 8x8)
STAGE_CH = [8, 16, 32]                     # synthetic backbone stage output channels
BLOCK_CH = [16, 8, 4]                      # YOLODetectionBlockV3 internal channels
NMS_THRESH = 0.45
NMS_VALID = 0.01
NMS_TOPK = 400
POST_NMS = 100
WPAD = 32                                  # every conv tap matrix zero-padded to (32, 32)


# ---------------------------------------------------------------- static layer plan
def _build_plan():
    """Static architecture description with slab indices (shared by init & forward)."""
    state = {"w": 0, "b": 0}

    def reg(cin, cout, k):
        e = dict(cin=cin, cout=cout, k=k, w0=state["w"], b=state["b"])
        state["w"] += k * k
        state["b"] += 1
        return e

    plan = {"stages": [], "blocks": [], "transitions": []}
    stage_in = [4] + STAGE_CH[:-1]
    for i in range(3):
        plan["stages"].append(reg(stage_in[i], STAGE_CH[i], 3))
    block_in = [STAGE_CH[2],
                BLOCK_CH[0] // 2 + STAGE_CH[1],
                BLOCK_CH[1] // 2 + STAGE_CH[0]]
    for i in range(3):
        cin, c = block_in[i], BLOCK_CH[i]
        body = [reg(cin, c, 1), reg(c, 2 * c, 3), reg(2 * c, c, 1),
                reg(c, 2 * c, 3), reg(2 * c, c, 1)]
        if i > 0:
            body[0]["ca"] = BLOCK_CH[i - 1] // 2   # upsample-path channels of the folded concat
        tip = reg(c, 2 * c, 3)
        pred = reg(2 * c, PRED_COUT, 1)
        plan["blocks"].append(dict(body=body, tip=tip, pred=pred))
        if i < 2:
            plan["transitions"].append(reg(BLOCK_CH[i], BLOCK_CH[i] // 2, 1))
    plan["n_w"] = state["w"]
    plan["n_b"] = state["b"]
    return plan


PLAN = _build_plan()


# ----------------------------------------------- static conv-tap / upsample matrices
def _conv_shift_cat(H, W, k, stride, pad):
    """Concatenated per-tap 0/1 gather matrix (H*W, k*k*Ho*Wo) for a kxk conv."""
    Ho = (H + 2 * pad - k) // stride + 1
    Wo = (W + 2 * pad - k) // stride + 1
    S = np.zeros((k * k, H * W, Ho * Wo), np.float32)
    for i in range(k):
        for j in range(k):
            kk = i * k + j
            for yo in range(Ho):
                yi = yo * stride + i - pad
                if yi < 0 or yi >= H:
                    continue
                for xo in range(Wo):
                    xi = xo * stride + j - pad
                    if 0 <= xi < W:
                        S[kk, yi * W + xi, yo * Wo + xo] = 1.0
    return np.concatenate([S[t] for t in range(k * k)], axis=1), Ho, Wo


def _upsample_mat(hs, ws, hb, wb):
    """Nearest x2 upsample (+ crop to (hb, wb)) as a (hs*ws, hb*wb) 0/1 matrix."""
    U = np.zeros((hs * ws, hb * wb), np.float32)
    for yb in range(hb):
        for xb in range(wb):
            U[(yb // 2) * ws + (xb // 2), yb * wb + xb] = 1.0
    return U


# -------------------------------------------------------------------------- params
def init_params(key):
    keys = jax.random.split(key, 512)
    it = iter(keys)
    w_taps, b_rows = [], []
    state = {"w": 0, "b": 0}
    A, C, P = NUM_ANCHORS, NUM_CLASSES, NUM_PRED

    def add_conv(e, bn=True, pred_scale=None):
        cin, cout, k = e["cin"], e["cout"], e["k"]
        assert state["w"] == e["w0"] and state["b"] == e["b"]
        w = jax.random.normal(next(it), (cout, cin, k, k), jnp.float32) / np.sqrt(cin * k * k)
        if bn:
            gamma = jax.random.uniform(next(it), (cout,), jnp.float32, 0.8, 1.2)
            beta = 0.1 * jax.random.normal(next(it), (cout,), jnp.float32)
            mean = 0.1 * jax.random.normal(next(it), (cout,), jnp.float32)
            var = jax.random.uniform(next(it), (cout,), jnp.float32, 0.5, 1.5)
            scale = gamma / jnp.sqrt(var + 1e-5)
            bias = beta - mean * scale
            w = w * scale[:, None, None, None]        # fold eval-mode BN scale into weights
        else:
            bias = 0.1 * jax.random.normal(next(it), (cout,), jnp.float32)
        if pred_scale is not None:
            # permute rows to field-major: tx*A, ty*A, tw*A, th*A, conf*A, classes (anchor-major)
            perm = np.array([a * P + 0 for a in range(A)] + [a * P + 1 for a in range(A)] +
                            [a * P + 2 for a in range(A)] + [a * P + 3 for a in range(A)] +
                            [a * P + 4 for a in range(A)] +
                            [a * P + 5 + c for a in range(A) for c in range(C)], np.int32)
            w = w[perm]
            bias = bias[perm]
            anc = ANCHORS[pred_scale]
            bias = bias.at[2 * A:3 * A].add(jnp.log(0.5 * jnp.asarray(anc[:, 0])))
            bias = bias.at[3 * A:4 * A].add(jnp.log(0.5 * jnp.asarray(anc[:, 1])))
        wt = jnp.transpose(w, (2, 3, 0, 1)).reshape(k * k, cout, cin)
        w_taps.append(jnp.zeros((k * k, WPAD, WPAD), jnp.float32).at[:, :cout, :cin].set(wt))
        b_rows.append(jnp.zeros((WPAD, 1), jnp.float32).at[:cout, 0].set(bias))
        state["w"] += k * k
        state["b"] += 1

    for e in PLAN["stages"]:
        add_conv(e)
    for i in range(3):
        blk = PLAN["blocks"][i]
        for e in blk["body"]:
            add_conv(e)
        add_conv(blk["tip"])
        add_conv(blk["pred"], bn=False, pred_scale=i)
        if i < 2:
            add_conv(PLAN["transitions"][i])

    return dict(wslab=jnp.concatenate(w_taps, axis=0).astype(jnp.bfloat16),   # (n_w, 32, 32)
                bslab=jnp.stack(b_rows, axis=0))                              # (n_b, 32, 1) f32


# --------------------------------------------------------------------------- box_nms
def _nms_prep(dets, T, T8, TL, overlap, valid_thresh):
    """Per-image sort + pairwise IoU / same-class suppression matrix (XLA glue)."""
    order = jnp.argsort(-dets[:, 1])[:T]
    d = dets[order]
    valid = (d[:, 1] >= valid_thresh).astype(jnp.float32)
    bx = d[:, 2:6]
    area = jnp.maximum(bx[:, 2] - bx[:, 0], 0.0) * jnp.maximum(bx[:, 3] - bx[:, 1], 0.0)
    xx1 = jnp.maximum(bx[:, None, 0], bx[None, :, 0])
    yy1 = jnp.maximum(bx[:, None, 1], bx[None, :, 1])
    xx2 = jnp.minimum(bx[:, None, 2], bx[None, :, 2])
    yy2 = jnp.minimum(bx[:, None, 3], bx[None, :, 3])
    inter = jnp.maximum(xx2 - xx1, 0.0) * jnp.maximum(yy2 - yy1, 0.0)
    iou = inter / jnp.maximum(area[:, None] + area[None, :] - inter, 1e-12)
    same = d[:, None, 0] == d[None, :, 0]                 # force_suppress=False -> class aware
    idx = jnp.arange(T)
    later = idx[None, :] > idx[:, None]
    sup = ((iou > overlap) & same & later).astype(jnp.float32)
    sup_p = jnp.zeros((T8, TL), jnp.float32).at[:T, :T].set(sup)
    keep0 = jnp.zeros((1, TL), jnp.float32).at[0, :T].set(valid)
    return d, sup_p, keep0


def _box_nms(result, overlap, valid_thresh, topk, post_nms):
    """mxnet-style box_nms; the serial greedy sweep runs inside a Pallas kernel."""
    B, N, _ = result.shape
    T = min(topk, N) if topk > 0 else N
    T8 = ((T + 7) // 8) * 8
    TL = ((T + 127) // 128) * 128
    d, sup, keep0 = jax.vmap(
        lambda dd: _nms_prep(dd, T, T8, TL, overlap, valid_thresh))(result)

    def nms_kernel(sup_ref, keep0_ref, keep_ref):
        lane = lax.broadcasted_iota(jnp.int32, (1, TL), 1)

        def body(i, keep):
            e = (lane == i).astype(jnp.float32)
            k_i = jnp.sum(keep * e, axis=1, keepdims=True)   # keep[i] extracted as (1, 1)
            row = sup_ref[0, pl.ds(i, 1), :]                 # (1, TL): who i suppresses
            return keep * (1.0 - row * k_i)

        keep_ref[0] = lax.fori_loop(0, T, body, keep0_ref[0])

    keepv = pl.pallas_call(
        nms_kernel,
        out_shape=jax.ShapeDtypeStruct((B, 1, TL), jnp.float32),
        grid=(B,),
        in_specs=[pl.BlockSpec((1, T8, TL), lambda b: (b, 0, 0)),
                  pl.BlockSpec((1, 1, TL), lambda b: (b, 0, 0))],
        out_specs=pl.BlockSpec((1, 1, TL), lambda b: (b, 0, 0)),
        compiler_params=pltpu.CompilerParams(dimension_semantics=("parallel",)),
    )(sup, keep0)

    keep = keepv[:, 0, :T] > 0.5
    d = jnp.where(keep[..., None], d, -jnp.ones_like(d))
    if 0 < post_nms < T:
        order2 = jnp.argsort(-d[..., 1], axis=1)[:, :post_nms]
        d = jnp.take_along_axis(d, order2[..., None], axis=1)
    if d.shape[1] < post_nms:
        pad = -jnp.ones((B, post_nms - d.shape[1], 6), d.dtype)
        d = jnp.concatenate([d, pad], axis=1)
    return d


# --------------------------------------------------------------------------- forward
def yolov3_forward(params, x):
    B, cin0, H, W = x.shape
    A, C = NUM_ANCHORS, NUM_CLASSES

    # --- static spatial plumbing (trace-time numpy; free under jit) ---
    stage_S, stage_hw, stage_mo = [], [], []
    h, w = H, W
    for _ in range(3):
        s_cat, h, w = _conv_shift_cat(h, w, 3, 2, 1)         # stride-2 backbone stage
        stage_S.append(jnp.asarray(s_cat, jnp.bfloat16))
        stage_hw.append((h, w))
        stage_mo.append(h * w)
    block_hw = [stage_hw[2], stage_hw[1], stage_hw[0]]       # deepest first
    Ms = [hh * ww for hh, ww in block_hw]

    n_rows = 4 * A + A * C                                   # 21 packed decode rows per scale
    ROWS = ((n_rows + 7) // 8) * 8                           # 24 (sublane aligned)
    LANES = max(128, ((max(Ms) + 127) // 128) * 128)         # lane-dense output width

    block_S = []
    for fh, fw in block_hw:
        s_cat, _, _ = _conv_shift_cat(fh, fw, 3, 1, 1)       # stride-1 block convs
        block_S.append(jnp.asarray(s_cat, jnp.bfloat16))
    U = []
    for i in range(2):
        hs, ws = block_hw[i]
        hb, wb = block_hw[i + 1]
        U.append(jnp.asarray(_upsample_mat(hs, ws, hb, wb), jnp.bfloat16))
    offs_np = np.zeros((8, LANES), np.float32)               # grid offsets * stride, one slab
    for i, (fh, fw) in enumerate(block_hw):
        offs_np[2 * i, :fh * fw] = np.tile(np.arange(fw, dtype=np.float32), fh) * STRIDES[i]
        offs_np[2 * i + 1, :fh * fw] = np.repeat(np.arange(fh, dtype=np.float32), fw) * STRIDES[i]
    offs = jnp.asarray(offs_np)

    wslab, bslab = params["wslab"], params["bslab"]
    x3 = x.reshape(B, cin0, H * W).astype(jnp.bfloat16)

    # ------------------------------------------------------------------ fused kernel
    def kernel(x_ref, w_ref, b_ref, ss0, ss1, ss2, sb0, sb1, sb2, u0, u1, offs_ref, out_ref):
        s_stage = [ss0, ss1, ss2]
        s_block = [sb0, sb1, sb2]
        u_refs = [u0, u1]

        def sig(v):                                          # sigmoid via EUP tanh
            return 0.5 * (jnp.tanh(0.5 * v) + 1.0)

        def conv(a, e, s_ref=None, mo=None, leaky=True, to_bf16=True):
            """Conv (+ folded-BN bias) + optional LeakyReLU on (Cin, M) activations."""
            cout, cin_, w0, bi = e["cout"], e["cin"], e["w0"], e["b"]
            if e["k"] == 1:
                acc = jnp.dot(w_ref[w0, :cout, :cin_], a, preferred_element_type=jnp.float32)
            else:
                # one concatenated gather matmul, then 9 small weight matmuls
                tap = jnp.dot(a, s_ref[...],
                              preferred_element_type=jnp.float32).astype(jnp.bfloat16)
                acc = jnp.dot(w_ref[w0, :cout, :cin_], tap[:, 0:mo],
                              preferred_element_type=jnp.float32)
                for t in range(1, 9):
                    acc = acc + jnp.dot(w_ref[w0 + t, :cout, :cin_],
                                        tap[:, t * mo:(t + 1) * mo],
                                        preferred_element_type=jnp.float32)
            y = acc + b_ref[bi, :cout, :]
            if leaky:
                y = jnp.where(y > 0.0, y, 0.1 * y)
            return y.astype(jnp.bfloat16) if to_bf16 else y

        def conv_pair(a_up, a_skip, e):
            """First 1x1 conv of upper blocks: channel concat folded into a split weight."""
            cout, cin_, ca, w0, bi = e["cout"], e["cin"], e["ca"], e["w0"], e["b"]
            acc = jnp.dot(w_ref[w0, :cout, :ca], a_up, preferred_element_type=jnp.float32)
            acc = acc + jnp.dot(w_ref[w0, :cout, ca:cin_], a_skip,
                                preferred_element_type=jnp.float32)
            y = acc + b_ref[bi, :cout, :]
            y = jnp.where(y > 0.0, y, 0.1 * y)
            return y.astype(jnp.bfloat16)

        # backbone
        act = x_ref[0]                                       # (Cin, H*W) bf16
        routes = []
        for si in range(3):
            act = conv(act, PLAN["stages"][si], s_ref=s_stage[si], mo=stage_mo[si])
            routes.append(act)

        up = None
        skip = None
        cur = routes[2]
        for i in range(3):
            M = Ms[i]
            blk = PLAN["blocks"][i]
            body = blk["body"]
            h_act = conv(cur, body[0]) if i == 0 else conv_pair(up, skip, body[0])
            h_act = conv(h_act, body[1], s_ref=s_block[i], mo=M)
            h_act = conv(h_act, body[2])
            h_act = conv(h_act, body[3], s_ref=s_block[i], mo=M)
            h_act = conv(h_act, body[4])
            route = h_act
            tip = conv(route, blk["tip"], s_ref=s_block[i], mo=M)
            raw = conv(tip, blk["pred"], leaky=False, to_bf16=False)       # (24, M) f32

            # anchor-vectorized decode (anchor half-sizes already folded into tw/th bias)
            stride = float(STRIDES[i])
            gx = offs_ref[2 * i:2 * i + 1, :M]
            gy = offs_ref[2 * i + 1:2 * i + 2, :M]
            sxy = sig(raw[0:2 * A, :])
            cx = sxy[0:A] * stride + gx
            cy = sxy[A:2 * A] * stride + gy
            hwe = jnp.exp(raw[2 * A:4 * A, :])
            hw_w = hwe[0:A]
            hw_h = hwe[A:2 * A]
            conf = sig(raw[4 * A:5 * A, :])
            cls_sig = sig(raw[5 * A:5 * A + A * C, :])
            cls = jnp.concatenate(
                [cls_sig[a * C:(a + 1) * C] * conf[a:a + 1] for a in range(A)], axis=0)
            rows21 = jnp.concatenate(
                [cx - hw_w, cy - hw_h, cx + hw_w, cy + hw_h, cls], axis=0)   # (21, M)
            rows_p = jnp.concatenate(
                [rows21, jnp.zeros((ROWS - n_rows, M), jnp.float32)], axis=0)
            full = jnp.concatenate(
                [rows_p, jnp.zeros((ROWS, LANES - M), jnp.float32)], axis=1)
            out_ref[0, i * ROWS:(i + 1) * ROWS, :] = full                    # dense (24,128) store

            if i < 2:
                t = conv(route, PLAN["transitions"][i])                      # 1x1 transition
                up = jnp.dot(t, u_refs[i][...],
                             preferred_element_type=jnp.float32).astype(jnp.bfloat16)
                skip = routes[1 - i]

    conv_inputs = [x3, wslab, bslab] + stage_S + block_S + U + [offs]
    in_specs = [pl.BlockSpec((1, cin0, H * W), lambda b: (b, 0, 0))]
    for arr in conv_inputs[1:]:
        in_specs.append(pl.BlockSpec(tuple(arr.shape), lambda b, _n=arr.ndim: (0,) * _n))

    packed = pl.pallas_call(
        kernel,
        out_shape=jax.ShapeDtypeStruct((B, 3 * ROWS, LANES), jnp.float32),
        grid=(B,),
        in_specs=in_specs,
        out_specs=pl.BlockSpec((1, 3 * ROWS, LANES), lambda b: (b, 0, 0)),
        compiler_params=pltpu.CompilerParams(dimension_semantics=("parallel",)),
    )(*conv_inputs)

    # ---------------------------------------------- assemble detections (plain JAX glue)
    dets_all = []
    for i, M in enumerate(Ms):
        base = i * ROWS
        blkrows = packed[:, base:base + n_rows, :M]                              # (B, 21, M)
        bbox = blkrows[:, :4 * A, :].reshape(B, 4, A, M).transpose(0, 3, 2, 1)   # (B, M, A, 4)
        cls = blkrows[:, 4 * A:, :].reshape(B, A, C, M).transpose(0, 3, 1, 2)    # (B, M, A, C)
        scores_c = jnp.transpose(cls, (3, 0, 1, 2))[..., None]                   # (C, B, M, A, 1)
        ids_c = jnp.broadcast_to(
            jnp.arange(C, dtype=jnp.float32).reshape(C, 1, 1, 1, 1), scores_c.shape)
        bbox_c = jnp.broadcast_to(bbox[None], (C, B, M, A, 4))
        dets = jnp.concatenate([ids_c, scores_c, bbox_c], axis=-1)
        dets_all.append(jnp.transpose(dets, (1, 0, 2, 3, 4)).reshape(B, -1, 6))  # class-major
    result = jnp.concatenate(dets_all, axis=1)                                   # (B, N, 6)

    result = _box_nms(result, NMS_THRESH, NMS_VALID, NMS_TOPK, POST_NMS)
    ids = result[..., 0:1]
    scores = result[..., 1:2]
    bboxes = result[..., 2:6]
    return ids, scores, bboxes
    # TODO(synk): training branch (YOLOV3TargetMerger / YOLOV3Loss) not implemented; inference only.


# ------------------------------------------------------------------------------ main
if __name__ == "__main__":
    key = jax.random.PRNGKey(0)
    pkey, xkey = jax.random.split(key)
    params = init_params(pkey)
    x = jax.random.normal(xkey, (2, 4, 16, 16), jnp.float32)   # NCHW, like PyTorch

    fwd = jax.jit(yolov3_forward)
    ids, scores, bboxes = fwd(params, x)
    jax.block_until_ready((ids, scores, bboxes))

    assert ids.shape == (2, POST_NMS, 1)
    assert scores.shape == (2, POST_NMS, 1)
    assert bboxes.shape == (2, POST_NMS, 4)
    print("KERNEL_OK")
</pallas_src>

<mosaic_0001>
module attributes {stable_mosaic.version = 11 : i64} {
  func.func @kernel(%arg0: i32, %arg1: memref<1x4x256xbf16, #tpu.memory_space<vmem>>, %arg2: memref<122x32x32xbf16, #tpu.memory_space<vmem>>, %arg3: memref<26x32x1xf32, #tpu.memory_space<vmem>>, %arg4: memref<256x576xbf16, #tpu.memory_space<vmem>>, %arg5: memref<64x144xbf16, #tpu.memory_space<vmem>>, %arg6: memref<16x36xbf16, #tpu.memory_space<vmem>>, %arg7: memref<4x36xbf16, #tpu.memory_space<vmem>>, %arg8: memref<16x144xbf16, #tpu.memory_space<vmem>>, %arg9: memref<64x576xbf16, #tpu.memory_space<vmem>>, %arg10: memref<4x16xbf16, #tpu.memory_space<vmem>>, %arg11: memref<16x64xbf16, #tpu.memory_space<vmem>>, %arg12: memref<8x128xf32, #tpu.memory_space<vmem>>, %arg13: memref<1x72x128xf32, #tpu.memory_space<vmem>>) attributes {dimension_semantics = [#tpu.dimension_semantics<parallel>], iteration_bounds = array<i64: 2>, scalar_prefetch = 0 : i64, scratch_operands = 0 : i64, tpu.core_type = #tpu.core_type<tc>, window_params = [{transform_indices = @transform_0, window_bounds = array<i64: 1, 4, 256>}, {pipeline_mode = #tpu.pipeline_mode<synchronous>, transform_indices = @transform_1, window_bounds = array<i64: 122, 32, 32>}, {pipeline_mode = #tpu.pipeline_mode<synchronous>, transform_indices = @transform_2, window_bounds = array<i64: 26, 32, 1>}, {pipeline_mode = #tpu.pipeline_mode<synchronous>, transform_indices = @transform_3, window_bounds = array<i64: 256, 576>}, {pipeline_mode = #tpu.pipeline_mode<synchronous>, transform_indices = @transform_4, window_bounds = array<i64: 64, 144>}, {pipeline_mode = #tpu.pipeline_mode<synchronous>, transform_indices = @transform_5, window_bounds = array<i64: 16, 36>}, {pipeline_mode = #tpu.pipeline_mode<synchronous>, transform_indices = @transform_6, window_bounds = array<i64: 4, 36>}, {pipeline_mode = #tpu.pipeline_mode<synchronous>, transform_indices = @transform_7, window_bounds = array<i64: 16, 144>}, {pipeline_mode = #tpu.pipeline_mode<synchronous>, transform_indices = @transform_8, window_bounds = array<i64: 64, 576>}, {pipeline_mode = #tpu.pipeline_mode<synchronous>, transform_indices = @transform_9, window_bounds = array<i64: 4, 16>}, {pipeline_mode = #tpu.pipeline_mode<synchronous>, transform_indices = @transform_10, window_bounds = array<i64: 16, 64>}, {pipeline_mode = #tpu.pipeline_mode<synchronous>, transform_indices = @transform_11, window_bounds = array<i64: 8, 128>}, {transform_indices = @transform_12, window_bounds = array<i64: 1, 72, 128>}]} {
    %c0 = arith.constant 0 : index
    %c0_0 = arith.constant 0 : index
    %c0_1 = arith.constant 0 : index
    %0 = vector.load %arg1[%c0, %c0_0, %c0_1] : memref<1x4x256xbf16, #tpu.memory_space<vmem>>, vector<1x4x256xbf16>
    %1 = vector.shape_cast %0 : vector<1x4x256xbf16> to vector<4x256xbf16>
    %c0_2 = arith.constant 0 : index
    %c0_3 = arith.constant 0 : index
    %2 = vector.load %arg4[%c0_2, %c0_3] : memref<256x576xbf16, #tpu.memory_space<vmem>>, vector<256x576xbf16>
    %cst = arith.constant dense<0.000000e+00> : vector<4x576xf32>
    %3 = tpu.matmul %1, %2, %cst {dimension_numbers = #tpu.dot_dimension_numbers<[1], [0], [0], [1], [0, 0, 1, 1], [], []>} : vector<4x256xbf16>, vector<256x576xbf16>, vector<4x576xf32> -> vector<4x576xf32>
    %4 = arith.truncf %3 : vector<4x576xf32> to vector<4x576xbf16>
    %c0_4 = arith.constant 0 : index
    %c0_5 = arith.constant 0 : index
    %c0_6 = arith.constant 0 : index
    %5 = vector.load %arg2[%c0_4, %c0_5, %c0_6] : memref<122x32x32xbf16, #tpu.memory_space<vmem>>, vector<1x8x4xbf16>
    %6 = vector.shape_cast %5 : vector<1x8x4xbf16> to vector<8x4xbf16>
    %7 = vector.extract_strided_slice %4 {offsets = [0, 0], sizes = [4, 64], strides = [1, 1]} : vector<4x576xbf16> to vector<4x64xbf16>
    %cst_7 = arith.constant dense<0.000000e+00> : vector<8x64xf32>
    %8 = tpu.matmul %6, %7, %cst_7 {dimension_numbers = #tpu.dot_dimension_numbers<[1], [0], [0], [1], [0, 0, 1, 1], [], []>} : vector<8x4xbf16>, vector<4x64xbf16>, vector<8x64xf32> -> vector<8x64xf32>
    %c1 = arith.constant 1 : index
    %c0_8 = arith.constant 0 : index
    %c0_9 = arith.constant 0 : index
    %9 = vector.load %arg2[%c1, %c0_8, %c0_9] : memref<122x32x32xbf16, #tpu.memory_space<vmem>>, vector<1x8x4xbf16>
    %10 = vector.shape_cast %9 : vector<1x8x4xbf16> to vector<8x4xbf16>
    %11 = vector.extract_strided_slice %4 {offsets = [0, 64], sizes = [4, 64], strides = [1, 1]} : vector<4x576xbf16> to vector<4x64xbf16>
    %cst_10 = arith.constant dense<0.000000e+00> : vector<8x64xf32>
    %12 = tpu.matmul %10, %11, %cst_10 {dimension_numbers = #tpu.dot_dimension_numbers<[1], [0], [0], [1], [0, 0, 1, 1], [], []>} : vector<8x4xbf16>, vector<4x64xbf16>, vector<8x64xf32> -> vector<8x64xf32>
    %13 = arith.addf %8, %12 : vector<8x64xf32>
    %c2 = arith.constant 2 : index
    %c0_11 = arith.constant 0 : index
    %c0_12 = arith.constant 0 : index
    %14 = vector.load %arg2[%c2, %c0_11, %c0_12] : memref<122x32x32xbf16, #tpu.memory_space<vmem>>, vector<1x8x4xbf16>
    %15 = vector.shape_cast %14 : vector<1x8x4xbf16> to vector<8x4xbf16>
    %16 = vector.extract_strided_slice %4 {offsets = [0, 128], sizes = [4, 64], strides = [1, 1]} : vector<4x576xbf16> to vector<4x64xbf16>
    %cst_13 = arith.constant dense<0.000000e+00> : vector<8x64xf32>
    %17 = tpu.matmul %15, %16, %cst_13 {dimension_numbers = #tpu.dot_dimension_numbers<[1], [0], [0], [1], [0, 0, 1, 1], [], []>} : vector<8x4xbf16>, vector<4x64xbf16>, vector<8x64xf32> -> vector<8x64xf32>
    %18 = arith.addf %13, %17 : vector<8x64xf32>
    %c3 = arith.constant 3 : index
    %c0_14 = arith.constant 0 : index
    %c0_15 = arith.constant 0 : index
    %19 = vector.load %arg2[%c3, %c0_14, %c0_15] : memref<122x32x32xbf16, #tpu.memory_space<vmem>>, vector<1x8x4xbf16>
    %20 = vector.shape_cast %19 : vector<1x8x4xbf16> to vector<8x4xbf16>
    %21 = vector.extract_strided_slice %4 {offsets = [0, 192], sizes = [4, 64], strides = [1, 1]} : vector<4x576xbf16> to vector<4x64xbf16>
    %cst_16 = arith.constant dense<0.000000e+00> : vector<8x64xf32>
    %22 = tpu.matmul %20, %21, %cst_16 {dimension_numbers = #tpu.dot_dimension_numbers<[1], [0], [0], [1], [0, 0, 1, 1], [], []>} : vector<8x4xbf16>, vector<4x64xbf16>, vector<8x64xf32> -> vector<8x64xf32>
    %23 = arith.addf %18, %22 : vector<8x64xf32>
    %c4 = arith.constant 4 : index
    %c0_17 = arith.constant 0 : index
    %c0_18 = arith.constant 0 : index
    %24 = vector.load %arg2[%c4, %c0_17, %c0_18] : memref<122x32x32xbf16, #tpu.memory_space<vmem>>, vector<1x8x4xbf16>
    %25 = vector.shape_cast %24 : vector<1x8x4xbf16> to vector<8x4xbf16>
    %26 = vector.extract_strided_slice %4 {offsets = [0, 256], sizes = [4, 64], strides = [1, 1]} : vector<4x576xbf16> to vector<4x64xbf16>
    %cst_19 = arith.constant dense<0.000000e+00> : vector<8x64xf32>
    %27 = tpu.matmul %25, %26, %cst_19 {dimension_numbers = #tpu.dot_dimension_numbers<[1], [0], [0], [1], [0, 0, 1, 1], [], []>} : vector<8x4xbf16>, vector<4x64xbf16>, vector<8x64xf32> -> vector<8x64xf32>
    %28 = arith.addf %23, %27 : vector<8x64xf32>
    %c5 = arith.constant 5 : index
    %c0_20 = arith.constant 0 : index
    %c0_21 = arith.constant 0 : index
    %29 = vector.load %arg2[%c5, %c0_20, %c0_21] : memref<122x32x32xbf16, #tpu.memory_space<vmem>>, vector<1x8x4xbf16>
    %30 = vector.shape_cast %29 : vector<1x8x4xbf16> to vector<8x4xbf16>
    %31 = vector.extract_strided_slice %4 {offsets = [0, 320], sizes = [4, 64], strides = [1, 1]} : vector<4x576xbf16> to vector<4x64xbf16>
    %cst_22 = arith.constant dense<0.000000e+00> : vector<8x64xf32>
    %32 = tpu.matmul %30, %31, %cst_22 {dimension_numbers = #tpu.dot_dimension_numbers<[1], [0], [0], [1], [0, 0, 1, 1], [], []>} : vector<8x4xbf16>, vector<4x64xbf16>, vector<8x64xf32> -> vector<8x64xf32>
    %33 = arith.addf %28, %32 : vector<8x64xf32>
    %c6 = arith.constant 6 : index
    %c0_23 = arith.constant 0 : index
    %c0_24 = arith.constant 0 : index
    %34 = vector.load %arg2[%c6, %c0_23, %c0_24] : memref<122x32x32xbf16, #tpu.memory_space<vmem>>, vector<1x8x4xbf16>
    %35 = vector.shape_cast %34 : vector<1x8x4xbf16> to vector<8x4xbf16>
    %36 = vector.extract_strided_slice %4 {offsets = [0, 384], sizes = [4, 64], strides = [1, 1]} : vector<4x576xbf16> to vector<4x64xbf16>
    %cst_25 = arith.constant dense<0.000000e+00> : vector<8x64xf32>
    %37 = tpu.matmul %35, %36, %cst_25 {dimension_numbers = #tpu.dot_dimension_numbers<[1], [0], [0], [1], [0, 0, 1, 1], [], []>} : vector<8x4xbf16>, vector<4x64xbf16>, vector<8x64xf32> -> vector<8x64xf32>
    %38 = arith.addf %33, %37 : vector<8x64xf32>
    %c7 = arith.constant 7 : index
    %c0_26 = arith.constant 0 : index
    %c0_27 = arith.constant 0 : index
    %39 = vector.load %arg2[%c7, %c0_26, %c0_27] : memref<122x32x32xbf16, #tpu.memory_space<vmem>>, vector<1x8x4xbf16>
    %40 = vector.shape_cast %39 : vector<1x8x4xbf16> to vector<8x4xbf16>
    %41 = vector.extract_strided_slice %4 {offsets = [0, 448], sizes = [4, 64], strides = [1, 1]} : vector<4x576xbf16> to vector<4x64xbf16>
    %cst_28 = arith.constant dense<0.000000e+00> : vector<8x64xf32>
    %42 = tpu.matmul %40, %41, %cst_28 {dimension_numbers = #tpu.dot_dimension_numbers<[1], [0], [0], [1], [0, 0, 1, 1], [], []>} : vector<8x4xbf16>, vector<4x64xbf16>, vector<8x64xf32> -> vector<8x64xf32>
    %43 = arith.addf %38, %42 : vector<8x64xf32>
    %c8 = arith.constant 8 : index
    %c0_29 = arith.constant 0 : index
    %c0_30 = arith.constant 0 : index
    %44 = vector.load %arg2[%c8, %c0_29, %c0_30] : memref<122x32x32xbf16, #tpu.memory_space<vmem>>, vector<1x8x4xbf16>
    %45 = vector.shape_cast %44 : vector<1x8x4xbf16> to vector<8x4xbf16>
    %46 = vector.extract_strided_slice %4 {offsets = [0, 512], sizes = [4, 64], strides = [1, 1]} : vector<4x576xbf16> to vector<4x64xbf16>
    %cst_31 = arith.constant dense<0.000000e+00> : vector<8x64xf32>
    %47 = tpu.matmul %45, %46, %cst_31 {dimension_numbers = #tpu.dot_dimension_numbers<[1], [0], [0], [1], [0, 0, 1, 1], [], []>} : vector<8x4xbf16>, vector<4x64xbf16>, vector<8x64xf32> -> vector<8x64xf32>
    %48 = arith.addf %43, %47 : vector<8x64xf32>
    %c0_32 = arith.constant 0 : index
    %c0_33 = arith.constant 0 : index
    %c0_34 = arith.constant 0 : index
    %49 = vector.load %arg3[%c0_32, %c0_33, %c0_34] : memref<26x32x1xf32, #tpu.memory_space<vmem>>, vector<1x8x1xf32>
    %50 = vector.shape_cast %49 : vector<1x8x1xf32> to vector<8x1xf32>
    %51 = vector.broadcast %50 : vector<8x1xf32> to vector<8x64xf32>
    %52 = arith.addf %48, %51 : vector<8x64xf32>
    %cst_35 = arith.constant 0.000000e+00 : f32
    %53 = vector.broadcast %cst_35 : f32 to vector<8x64xf32>
    %54 = arith.cmpf ogt, %52, %53 : vector<8x64xf32>
    %cst_36 = arith.constant 1.000000e-01 : f32
    %55 = vector.broadcast %cst_36 : f32 to vector<8x64xf32>
    %56 = arith.mulf %55, %52 : vector<8x64xf32>
    %57 = arith.select %54, %52, %56 : vector<8x64xi1>, vector<8x64xf32>
    %58 = arith.truncf %57 : vector<8x64xf32> to vector<8x64xbf16>
    %c0_37 = arith.constant 0 : index
    %c0_38 = arith.constant 0 : index
    %59 = vector.load %arg5[%c0_37, %c0_38] : memref<64x144xbf16, #tpu.memory_space<vmem>>, vector<64x144xbf16>
    %cst_39 = arith.constant dense<0.000000e+00> : vector<8x144xf32>
    %60 = tpu.matmul %58, %59, %cst_39 {dimension_numbers = #tpu.dot_dimension_numbers<[1], [0], [0], [1], [0, 0, 1, 1], [], []>} : vector<8x64xbf16>, vector<64x144xbf16>, vector<8x144xf32> -> vector<8x144xf32>
    %61 = arith.truncf %60 : vector<8x144xf32> to vector<8x144xbf16>
    %c9 = arith.constant 9 : index
    %c0_40 = arith.constant 0 : index
    %c0_41 = arith.constant 0 : index
    %62 = vector.load %arg2[%c9, %c0_40, %c0_41] : memref<122x32x32xbf16, #tpu.memory_space<vmem>>, vector<1x16x8xbf16>
    %63 = vector.shape_cast %62 : vector<1x16x8xbf16> to vector<16x8xbf16>
    %64 = vector.extract_strided_slice %61 {offsets = [0, 0], sizes = [8, 16], strides = [1, 1]} : vector<8x144xbf16> to vector<8x16xbf16>
    %cst_42 = arith.constant dense<0.000000e+00> : vector<16x16xf32>
    %65 = tpu.matmul %63, %64, %cst_42 {dimension_numbers = #tpu.dot_dimension_numbers<[1], [0], [0], [1], [0, 0, 1, 1], [], []>} : vector<16x8xbf16>, vector<8x16xbf16>, vector<16x16xf32> -> vector<16x16xf32>
    %c10 = arith.constant 10 : index
    %c0_43 = arith.constant 0 : index
    %c0_44 = arith.constant 0 : index
    %66 = vector.load %arg2[%c10, %c0_43, %c0_44] : memref<122x32x32xbf16, #tpu.memory_space<vmem>>, vector<1x16x8xbf16>
    %67 = vector.shape_cast %66 : vector<1x16x8xbf16> to vector<16x8xbf16>
    %68 = vector.extract_strided_slice %61 {offsets = [0, 16], sizes = [8, 16], strides = [1, 1]} : vector<8x144xbf16> to vector<8x16xbf16>
    %cst_45 = arith.constant dense<0.000000e+00> : vector<16x16xf32>
    %69 = tpu.matmul %67, %68, %cst_45 {dimension_numbers = #tpu.dot_dimension_numbers<[1], [0], [0], [1], [0, 0, 1, 1], [], []>} : vector<16x8xbf16>, vector<8x16xbf16>, vector<16x16xf32> -> vector<16x16xf32>
    %70 = arith.addf %65, %69 : vector<16x16xf32>
    %c11 = arith.constant 11 : index
    %c0_46 = arith.constant 0 : index
    %c0_47 = arith.constant 0 : index
    %71 = vector.load %arg2[%c11, %c0_46, %c0_47] : memref<122x32x32xbf16, #tpu.memory_space<vmem>>, vector<1x16x8xbf16>
    %72 = vector.shape_cast %71 : vector<1x16x8xbf16> to vector<16x8xbf16>
    %73 = vector.extract_strided_slice %61 {offsets = [0, 32], sizes = [8, 16], strides = [1, 1]} : vector<8x144xbf16> to vector<8x16xbf16>
    %cst_48 = arith.constant dense<0.000000e+00> : vector<16x16xf32>
    %74 = tpu.matmul %72, %73, %cst_48 {dimension_numbers = #tpu.dot_dimension_numbers<[1], [0], [0], [1], [0, 0, 1, 1], [], []>} : vector<16x8xbf16>, vector<8x16xbf16>, vector<16x16xf32> -> vector<16x16xf32>
    %75 = arith.addf %70, %74 : vector<16x16xf32>
    %c12 = arith.constant 12 : index
    %c0_49 = arith.constant 0 : index
    %c0_50 = arith.constant 0 : index
    %76 = vector.load %arg2[%c12, %c0_49, %c0_50] : memref<122x32x32xbf16, #tpu.memory_space<vmem>>, vector<1x16x8xbf16>
    %77 = vector.shape_cast %76 : vector<1x16x8xbf16> to vector<16x8xbf16>
    %78 = vector.extract_strided_slice %61 {offsets = [0, 48], sizes = [8, 16], strides = [1, 1]} : vector<8x144xbf16> to vector<8x16xbf16>
    %cst_51 = arith.constant dense<0.000000e+00> : vector<16x16xf32>
    %79 = tpu.matmul %77, %78, %cst_51 {dimension_numbers = #tpu.dot_dimension_numbers<[1], [0], [0], [1], [0, 0, 1, 1], [], []>} : vector<16x8xbf16>, vector<8x16xbf16>, vector<16x16xf32> -> vector<16x16xf32>
    %80 = arith.addf %75, %79 : vector<16x16xf32>
    %c13 = arith.constant 13 : index
    %c0_52 = arith.constant 0 : index
    %c0_53 = arith.constant 0 : index
    %81 = vector.load %arg2[%c13, %c0_52, %c0_53] : memref<122x32x32xbf16, #tpu.memory_space<vmem>>, vector<1x16x8xbf16>
    %82 = vector.shape_cast %81 : vector<1x16x8xbf16> to vector<16x8xbf16>
    %83 = vector.extract_strided_slice %61 {offsets = [0, 64], sizes = [8, 16], strides = [1, 1]} : vector<8x144xbf16> to vector<8x16xbf16>
    %cst_54 = arith.constant dense<0.000000e+00> : vector<16x16xf32>
    %84 = tpu.matmul %82, %83, %cst_54 {dimension_numbers = #tpu.dot_dimension_numbers<[1], [0], [0], [1], [0, 0, 1, 1], [], []>} : vector<16x8xbf16>, vector<8x16xbf16>, vector<16x16xf32> -> vector<16x16xf32>
    %85 = arith.addf %80, %84 : vector<16x16xf32>
    %c14 = arith.constant 14 : index
    %c0_55 = arith.constant 0 : index
    %c0_56 = arith.constant 0 : index
    %86 = vector.load %arg2[%c14, %c0_55, %c0_56] : memref<122x32x32xbf16, #tpu.memory_space<vmem>>, vector<1x16x8xbf16>
    %87 = vector.shape_cast %86 : vector<1x16x8xbf16> to vector<16x8xbf16>
    %88 = vector.extract_strided_slice %61 {offsets = [0, 80], sizes = [8, 16], strides = [1, 1]} : vector<8x144xbf16> to vector<8x16xbf16>
    %cst_57 = arith.constant dense<0.000000e+00> : vector<16x16xf32>
    %89 = tpu.matmul %87, %88, %cst_57 {dimension_numbers = #tpu.dot_dimension_numbers<[1], [0], [0], [1], [0, 0, 1, 1], [], []>} : vector<16x8xbf16>, vector<8x16xbf16>, vector<16x16xf32> -> vector<16x16xf32>
    %90 = arith.addf %85, %89 : vector<16x16xf32>
    %c15 = arith.constant 15 : index
    %c0_58 = arith.constant 0 : index
    %c0_59 = arith.constant 0 : index
    %91 = vector.load %arg2[%c15, %c0_58, %c0_59] : memref<122x32x32xbf16, #tpu.memory_space<vmem>>, vector<1x16x8xbf16>
    %92 = vector.shape_cast %91 : vector<1x16x8xbf16> to vector<16x8xbf16>
    %93 = vector.extract_strided_slice %61 {offsets = [0, 96], sizes = [8, 16], strides = [1, 1]} : vector<8x144xbf16> to vector<8x16xbf16>
    %cst_60 = arith.constant dense<0.000000e+00> : vector<16x16xf32>
    %94 = tpu.matmul %92, %93, %cst_60 {dimension_numbers = #tpu.dot_dimension_numbers<[1], [0], [0], [1], [0, 0, 1, 1], [], []>} : vector<16x8xbf16>, vector<8x16xbf16>, vector<16x16xf32> -> vector<16x16xf32>
    %95 = arith.addf %90, %94 : vector<16x16xf32>
    %c16 = arith.constant 16 : index
    %c0_61 = arith.constant 0 : index
    %c0_62 = arith.constant 0 : index
    %96 = vector.load %arg2[%c16, %c0_61, %c0_62] : memref<122x32x32xbf16, #tpu.memory_space<vmem>>, vector<1x16x8xbf16>
    %97 = vector.shape_cast %96 : vector<1x16x8xbf16> to vector<16x8xbf16>
    %98 = vector.extract_strided_slice %61 {offsets = [0, 112], sizes = [8, 16], strides = [1, 1]} : vector<8x144xbf16> to vector<8x16xbf16>
    %cst_63 = arith.constant dense<0.000000e+00> : vector<16x16xf32>
    %99 = tpu.matmul %97, %98, %cst_63 {dimension_numbers = #tpu.dot_dimension_numbers<[1], [0], [0], [1], [0, 0, 1, 1], [], []>} : vector<16x8xbf16>, vector<8x16xbf16>, vector<16x16xf32> -> vector<16x16xf32>
    %100 = arith.addf %95, %99 : vector<16x16xf32>
    %c17 = arith.constant 17 : index
    %c0_64 = arith.constant 0 : index
    %c0_65 = arith.constant 0 : index
    %101 = vector.load %arg2[%c17, %c0_64, %c0_65] : memref<122x32x32xbf16, #tpu.memory_space<vmem>>, vector<1x16x8xbf16>
    %102 = vector.shape_cast %101 : vector<1x16x8xbf16> to vector<16x8xbf16>
    %103 = vector.extract_strided_slice %61 {offsets = [0, 128], sizes = [8, 16], strides = [1, 1]} : vector<8x144xbf16> to vector<8x16xbf16>
    %cst_66 = arith.constant dense<0.000000e+00> : vector<16x16xf32>
    %104 = tpu.matmul %102, %103, %cst_66 {dimension_numbers = #tpu.dot_dimension_numbers<[1], [0], [0], [1], [0, 0, 1, 1], [], []>} : vector<16x8xbf16>, vector<8x16xbf16>, vector<16x16xf32> -> vector<16x16xf32>
    %105 = arith.addf %100, %104 : vector<16x16xf32>
    %c1_67 = arith.constant 1 : index
    %c0_68 = arith.constant 0 : index
    %c0_69 = arith.constant 0 : index
    %106 = vector.load %arg3[%c1_67, %c0_68, %c0_69] : memref<26x32x1xf32, #tpu.memory_space<vmem>>, vector<1x16x1xf32>
    %107 = vector.shape_cast %106 : vector<1x16x1xf32> to vector<16x1xf32>
    %108 = vector.broadcast %107 : vector<16x1xf32> to vector<16x16xf32>
    %109 = arith.addf %105, %108 : vector<16x16xf32>
    %cst_70 = arith.constant 0.000000e+00 : f32
    %110 = vector.broadcast %cst_70 : f32 to vector<16x16xf32>
    %111 = arith.cmpf ogt, %109, %110 : vector<16x16xf32>
    %cst_71 = arith.constant 1.000000e-01 : f32
    %112 = vector.broadcast %cst_71 : f32 to vector<16x16xf32>
    %113 = arith.mulf %112, %109 : vector<16x16xf32>
    %114 = arith.select %111, %109, %113 : vector<16x16xi1>, vector<16x16xf32>
    %115 = arith.truncf %114 : vector<16x16xf32> to vector<16x16xbf16>
    %c0_72 = arith.constant 0 : index
    %c0_73 = arith.constant 0 : index
    %116 = vector.load %arg6[%c0_72, %c0_73] : memref<16x36xbf16, #tpu.memory_space<vmem>>, vector<16x36xbf16>
    %cst_74 = arith.constant dense<0.000000e+00> : vector<16x36xf32>
    %117 = tpu.matmul %115, %116, %cst_74 {dimension_numbers = #tpu.dot_dimension_numbers<[1], [0], [0], [1], [0, 0, 1, 1], [], []>} : vector<16x16xbf16>, vector<16x36xbf16>, vector<16x36xf32> -> vector<16x36xf32>
    %118 = arith.truncf %117 : vector<16x36xf32> to vector<16x36xbf16>
    %c18 = arith.constant 18 : index
    %c0_75 = arith.constant 0 : index
    %c0_76 = arith.constant 0 : index
    %119 = vector.load %arg2[%c18, %c0_75, %c0_76] : memref<122x32x32xbf16, #tpu.memory_space<vmem>>, vector<1x32x16xbf16>
    %120 = vector.shape_cast %119 : vector<1x32x16xbf16> to vector<32x16xbf16>
    %121 = vector.extract_strided_slice %118 {offsets = [0, 0], sizes = [16, 4], strides = [1, 1]} : vector<16x36xbf16> to vector<16x4xbf16>
    %cst_77 = arith.constant dense<0.000000e+00> : vector<32x4xf32>
    %122 = tpu.matmul %120, %121, %cst_77 {dimension_numbers = #tpu.dot_dimension_numbers<[1], [0], [0], [1], [0, 0, 1, 1], [], []>} : vector<32x16xbf16>, vector<16x4xbf16>, vector<32x4xf32> -> vector<32x4xf32>
    %c19 = arith.constant 19 : index
    %c0_78 = arith.constant 0 : index
    %c0_79 = arith.constant 0 : index
    %123 = vector.load %arg2[%c19, %c0_78, %c0_79] : memref<122x32x32xbf16, #tpu.memory_space<vmem>>, vector<1x32x16xbf16>
    %124 = vector.shape_cast %123 : vector<1x32x16xbf16> to vector<32x16xbf16>
    %125 = vector.extract_strided_slice %118 {offsets = [0, 4], sizes = [16, 4], strides = [1, 1]} : vector<16x36xbf16> to vector<16x4xbf16>
    %cst_80 = arith.constant dense<0.000000e+00> : vector<32x4xf32>
    %126 = tpu.matmul %124, %125, %cst_80 {dimension_numbers = #tpu.dot_dimension_numbers<[1], [0], [0], [1], [0, 0, 1, 1], [], []>} : vector<32x16xbf16>, vector<16x4xbf16>, vector<32x4xf32> -> vector<32x4xf32>
    %127 = arith.addf %122, %126 : vector<32x4xf32>
    %c20 = arith.constant 20 : index
    %c0_81 = arith.constant 0 : index
    %c0_82 = arith.constant 0 : index
    %128 = vector.load %arg2[%c20, %c0_81, %c0_82] : memref<122x32x32xbf16, #tpu.memory_space<vmem>>, vector<1x32x16xbf16>
    %129 = vector.shape_cast %128 : vector<1x32x16xbf16> to vector<32x16xbf16>
    %130 = vector.extract_strided_slice %118 {offsets = [0, 8], sizes = [16, 4], strides = [1, 1]} : vector<16x36xbf16> to vector<16x4xbf16>
    %cst_83 = arith.constant dense<0.000000e+00> : vector<32x4xf32>
    %131 = tpu.matmul %129, %130, %cst_83 {dimension_numbers = #tpu.dot_dimension_numbers<[1], [0], [0], [1], [0, 0, 1, 1], [], []>} : vector<32x16xbf16>, vector<16x4xbf16>, vector<32x4xf32> -> vector<32x4xf32>
    %132 = arith.addf %127, %131 : vector<32x4xf32>
    %c21 = arith.constant 21 : index
    %c0_84 = arith.constant 0 : index
    %c0_85 = arith.constant 0 : index
    %133 = vector.load %arg2[%c21, %c0_84, %c0_85] : memref<122x32x32xbf16, #tpu.memory_space<vmem>>, vector<1x32x16xbf16>
    %134 = vector.shape_cast %133 : vector<1x32x16xbf16> to vector<32x16xbf16>
    %135 = vector.extract_strided_slice %118 {offsets = [0, 12], sizes = [16, 4], strides = [1, 1]} : vector<16x36xbf16> to vector<16x4xbf16>
    %cst_86 = arith.constant dense<0.000000e+00> : vector<32x4xf32>
    %136 = tpu.matmul %134, %135, %cst_86 {dimension_numbers = #tpu.dot_dimension_numbers<[1], [0], [0], [1], [0, 0, 1, 1], [], []>} : vector<32x16xbf16>, vector<16x4xbf16>, vector<32x4xf32> -> vector<32x4xf32>
    %137 = arith.addf %132, %136 : vector<32x4xf32>
    %c22 = arith.constant 22 : index
    %c0_87 = arith.constant 0 : index
    %c0_88 = arith.constant 0 : index
    %138 = vector.load %arg2[%c22, %c0_87, %c0_88] : memref<122x32x32xbf16, #tpu.memory_space<vmem>>, vector<1x32x16xbf16>
    %139 = vector.shape_cast %138 : vector<1x32x16xbf16> to vector<32x16xbf16>
    %140 = vector.extract_strided_slice %118 {offsets = [0, 16], sizes = [16, 4], strides = [1, 1]} : vector<16x36xbf16> to vector<16x4xbf16>
    %cst_89 = arith.constant dense<0.000000e+00> : vector<32x4xf32>
    %141 = tpu.matmul %139, %140, %cst_89 {dimension_numbers = #tpu.dot_dimension_numbers<[1], [0], [0], [1], [0, 0, 1, 1], [], []>} : vector<32x16xbf16>, vector<16x4xbf16>, vector<32x4xf32> -> vector<32x4xf32>
    %142 = arith.addf %137, %141 : vector<32x4xf32>
    %c23 = arith.constant 23 : index
    %c0_90 = arith.constant 0 : index
    %c0_91 = arith.constant 0 : index
    %143 = vector.load %arg2[%c23, %c0_90, %c0_91] : memref<122x32x32xbf16, #tpu.memory_space<vmem>>, vector<1x32x16xbf16>
    %144 = vector.shape_cast %143 : vector<1x32x16xbf16> to vector<32x16xbf16>
    %145 = vector.extract_strided_slice %118 {offsets = [0, 20], sizes = [16, 4], strides = [1, 1]} : vector<16x36xbf16> to vector<16x4xbf16>
    %cst_92 = arith.constant dense<0.000000e+00> : vector<32x4xf32>
    %146 = tpu.matmul %144, %145, %cst_92 {dimension_numbers = #tpu.dot_dimension_numbers<[1], [0], [0], [1], [0, 0, 1, 1], [], []>} : vector<32x16xbf16>, vector<16x4xbf16>, vector<32x4xf32> -> vector<32x4xf32>
    %147 = arith.addf %142, %146 : vector<32x4xf32>
    %c24 = arith.constant 24 : index
    %c0_93 = arith.constant 0 : index
    %c0_94 = arith.constant 0 : index
    %148 = vector.load %arg2[%c24, %c0_93, %c0_94] : memref<122x32x32xbf16, #tpu.memory_space<vmem>>, vector<1x32x16xbf16>
    %149 = vector.shape_cast %148 : vector<1x32x16xbf16> to vector<32x16xbf16>
    %150 = vector.extract_strided_slice %118 {offsets = [0, 24], sizes = [16, 4], strides = [1, 1]} : vector<16x36xbf16> to vector<16x4xbf16>
    %cst_95 = arith.constant dense<0.000000e+00> : vector<32x4xf32>
    %151 = tpu.matmul %149, %150, %cst_95 {dimension_numbers = #tpu.dot_dimension_numbers<[1], [0], [0], [1], [0, 0, 1, 1], [], []>} : vector<32x16xbf16>, vector<16x4xbf16>, vector<32x4xf32> -> vector<32x4xf32>
    %152 = arith.addf %147, %151 : vector<32x4xf32>
    %c25 = arith.constant 25 : index
    %c0_96 = arith.constant 0 : index
    %c0_97 = arith.constant 0 : index
    %153 = vector.load %arg2[%c25, %c0_96, %c0_97] : memref<122x32x32xbf16, #tpu.memory_space<vmem>>, vector<1x32x16xbf16>
    %154 = vector.shape_cast %153 : vector<1x32x16xbf16> to vector<32x16xbf16>
    %155 = vector.extract_strided_slice %118 {offsets = [0, 28], sizes = [16, 4], strides = [1, 1]} : vector<16x36xbf16> to vector<16x4xbf16>
    %cst_98 = arith.constant dense<0.000000e+00> : vector<32x4xf32>
    %156 = tpu.matmul %154, %155, %cst_98 {dimension_numbers = #tpu.dot_dimension_numbers<[1], [0], [0], [1], [0, 0, 1, 1], [], []>} : vector<32x16xbf16>, vector<16x4xbf16>, vector<32x4xf32> -> vector<32x4xf32>
    %157 = arith.addf %152, %156 : vector<32x4xf32>
    %c26 = arith.constant 26 : index
    %c0_99 = arith.constant 0 : index
    %c0_100 = arith.constant 0 : index
    %158 = vector.load %arg2[%c26, %c0_99, %c0_100] : memref<122x32x32xbf16, #tpu.memory_space<vmem>>, vector<1x32x16xbf16>
    %159 = vector.shape_cast %158 : vector<1x32x16xbf16> to vector<32x16xbf16>
    %160 = vector.extract_strided_slice %118 {offsets = [0, 32], sizes = [16, 4], strides = [1, 1]} : vector<16x36xbf16> to vector<16x4xbf16>
    %cst_101 = arith.constant dense<0.000000e+00> : vector<32x4xf32>
    %161 = tpu.matmul %159, %160, %cst_101 {dimension_numbers = #tpu.dot_dimension_numbers<[1], [0], [0], [1], [0, 0, 1, 1], [], []>} : vector<32x16xbf16>, vector<16x4xbf16>, vector<32x4xf32> -> vector<32x4xf32>
    %162 = arith.addf %157, %161 : vector<32x4xf32>
    %c2_102 = arith.constant 2 : index
    %c0_103 = arith.constant 0 : index
    %c0_104 = arith.constant 0 : index
    %163 = vector.load %arg3[%c2_102, %c0_103, %c0_104] : memref<26x32x1xf32, #tpu.memory_space<vmem>>, vector<1x32x1xf32>
    %164 = vector.shape_cast %163 : vector<1x32x1xf32> to vector<32x1xf32>
    %165 = vector.broadcast %164 : vector<32x1xf32> to vector<32x4xf32>
    %166 = arith.addf %162, %165 : vector<32x4xf32>
    %cst_105 = arith.constant 0.000000e+00 : f32
    %167 = vector.broadcast %cst_105 : f32 to vector<32x4xf32>
    %168 = arith.cmpf ogt, %166, %167 : vector<32x4xf32>
    %cst_106 = arith.constant 1.000000e-01 : f32
    %169 = vector.broadcast %cst_106 : f32 to vector<32x4xf32>
    %170 = arith.mulf %169, %166 : vector<32x4xf32>
    %171 = arith.select %168, %166, %170 : vector<32x4xi1>, vector<32x4xf32>
    %172 = arith.truncf %171 : vector<32x4xf32> to vector<32x4xbf16>
    %c27 = arith.constant 27 : index
    %c0_107 = arith.constant 0 : index
    %c0_108 = arith.constant 0 : index
    %173 = vector.load %arg2[%c27, %c0_107, %c0_108] : memref<122x32x32xbf16, #tpu.memory_space<vmem>>, vector<1x16x32xbf16>
    %174 = vector.shape_cast %173 : vector<1x16x32xbf16> to vector<16x32xbf16>
    %cst_109 = arith.constant dense<0.000000e+00> : vector<16x4xf32>
    %175 = tpu.matmul %174, %172, %cst_109 {dimension_numbers = #tpu.dot_dimension_numbers<[1], [0], [0], [1], [0, 0, 1, 1], [], []>} : vector<16x32xbf16>, vector<32x4xbf16>, vector<16x4xf32> -> vector<16x4xf32>
    %c3_110 = arith.constant 3 : index
    %c0_111 = arith.constant 0 : index
    %c0_112 = arith.constant 0 : index
    %176 = vector.load %arg3[%c3_110, %c0_111, %c0_112] : memref<26x32x1xf32, #tpu.memory_space<vmem>>, vector<1x16x1xf32>
    %177 = vector.shape_cast %176 : vector<1x16x1xf32> to vector<16x1xf32>
    %178 = vector.broadcast %177 : vector<16x1xf32> to vector<16x4xf32>
    %179 = arith.addf %175, %178 : vector<16x4xf32>
    %cst_113 = arith.constant 0.000000e+00 : f32
    %180 = vector.broadcast %cst_113 : f32 to vector<16x4xf32>
    %181 = arith.cmpf ogt, %179, %180 : vector<16x4xf32>
    %cst_114 = arith.constant 1.000000e-01 : f32
    %182 = vector.broadcast %cst_114 : f32 to vector<16x4xf32>
    %183 = arith.mulf %182, %179 : vector<16x4xf32>
    %184 = arith.select %181, %179, %183 : vector<16x4xi1>, vector<16x4xf32>
    %185 = arith.truncf %184 : vector<16x4xf32> to vector<16x4xbf16>
    %c0_115 = arith.constant 0 : index
    %c0_116 = arith.constant 0 : index
    %186 = vector.load %arg7[%c0_115, %c0_116] : memref<4x36xbf16, #tpu.memory_space<vmem>>, vector<4x36xbf16>
    %cst_117 = arith.constant dense<0.000000e+00> : vector<16x36xf32>
    %187 = tpu.matmul %185, %186, %cst_117 {dimension_numbers = #tpu.dot_dimension_numbers<[1], [0], [0], [1], [0, 0, 1, 1], [], []>} : vector<16x4xbf16>, vector<4x36xbf16>, vector<16x36xf32> -> vector<16x36xf32>
    %188 = arith.truncf %187 : vector<16x36xf32> to vector<16x36xbf16>
    %c28 = arith.constant 28 : index
    %c0_118 = arith.constant 0 : index
    %c0_119 = arith.constant 0 : index
    %189 = vector.load %arg2[%c28, %c0_118, %c0_119] : memref<122x32x32xbf16, #tpu.memory_space<vmem>>, vector<1x32x16xbf16>
    %190 = vector.shape_cast %189 : vector<1x32x16xbf16> to vector<32x16xbf16>
    %191 = vector.extract_strided_slice %188 {offsets = [0, 0], sizes = [16, 4], strides = [1, 1]} : vector<16x36xbf16> to vector<16x4xbf16>
    %cst_120 = arith.constant dense<0.000000e+00> : vector<32x4xf32>
    %192 = tpu.matmul %190, %191, %cst_120 {dimension_numbers = #tpu.dot_dimension_numbers<[1], [0], [0], [1], [0, 0, 1, 1], [], []>} : vector<32x16xbf16>, vector<16x4xbf16>, vector<32x4xf32> -> vector<32x4xf32>
    %c29 = arith.constant 29 : index
    %c0_121 = arith.constant 0 : index
    %c0_122 = arith.constant 0 : index
    %193 = vector.load %arg2[%c29, %c0_121, %c0_122] : memref<122x32x32xbf16, #tpu.memory_space<vmem>>, vector<1x32x16xbf16>
    %194 = vector.shape_cast %193 : vector<1x32x16xbf16> to vector<32x16xbf16>
    %195 = vector.extract_strided_slice %188 {offsets = [0, 4], sizes = [16, 4], strides = [1, 1]} : vector<16x36xbf16> to vector<16x4xbf16>
    %cst_123 = arith.constant dense<0.000000e+00> : vector<32x4xf32>
    %196 = tpu.matmul %194, %195, %cst_123 {dimension_numbers = #tpu.dot_dimension_numbers<[1], [0], [0], [1], [0, 0, 1, 1], [], []>} : vector<32x16xbf16>, vector<16x4xbf16>, vector<32x4xf32> -> vector<32x4xf32>
    %197 = arith.addf %192, %196 : vector<32x4xf32>
    %c30 = arith.constant 30 : index
    %c0_124 = arith.constant 0 : index
    %c0_125 = arith.constant 0 : index
    %198 = vector.load %arg2[%c30, %c0_124, %c0_125] : memref<122x32x32xbf16, #tpu.memory_space<vmem>>, vector<1x32x16xbf16>
    %199 = vector.shape_cast %198 : vector<1x32x16xbf16> to vector<32x16xbf16>
    %200 = vector.extract_strided_slice %188 {offsets = [0, 8], sizes = [16, 4], strides = [1, 1]} : vector<16x36xbf16> to vector<16x4xbf16>
    %cst_126 = arith.constant dense<0.000000e+00> : vector<32x4xf32>
    %201 = tpu.matmul %199, %200, %cst_126 {dimension_numbers = #tpu.dot_dimension_numbers<[1], [0], [0], [1], [0, 0, 1, 1], [], []>} : vector<32x16xbf16>, vector<16x4xbf16>, vector<32x4xf32> -> vector<32x4xf32>
    %202 = arith.addf %197, %201 : vector<32x4xf32>
    %c31 = arith.constant 31 : index
    %c0_127 = arith.constant 0 : index
    %c0_128 = arith.constant 0 : index
    %203 = vector.load %arg2[%c31, %c0_127, %c0_128] : memref<122x32x32xbf16, #tpu.memory_space<vmem>>, vector<1x32x16xbf16>
    %204 = vector.shape_cast %203 : vector<1x32x16xbf16> to vector<32x16xbf16>
    %205 = vector.extract_strided_slice %188 {offsets = [0, 12], sizes = [16, 4], strides = [1, 1]} : vector<16x36xbf16> to vector<16x4xbf16>
    %cst_129 = arith.constant dense<0.000000e+00> : vector<32x4xf32>
    %206 = tpu.matmul %204, %205, %cst_129 {dimension_numbers = #tpu.dot_dimension_numbers<[1], [0], [0], [1], [0, 0, 1, 1], [], []>} : vector<32x16xbf16>, vector<16x4xbf16>, vector<32x4xf32> -> vector<32x4xf32>
    %207 = arith.addf %202, %206 : vector<32x4xf32>
    %c32 = arith.constant 32 : index
    %c0_130 = arith.constant 0 : index
    %c0_131 = arith.constant 0 : index
    %208 = vector.load %arg2[%c32, %c0_130, %c0_131] : memref<122x32x32xbf16, #tpu.memory_space<vmem>>, vector<1x32x16xbf16>
    %209 = vector.shape_cast %208 : vector<1x32x16xbf16> to vector<32x16xbf16>
    %210 = vector.extract_strided_slice %188 {offsets = [0, 16], sizes = [16, 4], strides = [1, 1]} : vector<16x36xbf16> to vector<16x4xbf16>
    %cst_132 = arith.constant dense<0.000000e+00> : vector<32x4xf32>
    %211 = tpu.matmul %209, %210, %cst_132 {dimension_numbers = #tpu.dot_dimension_numbers<[1], [0], [0], [1], [0, 0, 1, 1], [], []>} : vector<32x16xbf16>, vector<16x4xbf16>, vector<32x4xf32> -> vector<32x4xf32>
    %212 = arith.addf %207, %211 : vector<32x4xf32>
    %c33 = arith.constant 33 : index
    %c0_133 = arith.constant 0 : index
    %c0_134 = arith.constant 0 : index
    %213 = vector.load %arg2[%c33, %c0_133, %c0_134] : memref<122x32x32xbf16, #tpu.memory_space<vmem>>, vector<1x32x16xbf16>
    %214 = vector.shape_cast %213 : vector<1x32x16xbf16> to vector<32x16xbf16>
    %215 = vector.extract_strided_slice %188 {offsets = [0, 20], sizes = [16, 4], strides = [1, 1]} : vector<16x36xbf16> to vector<16x4xbf16>
    %cst_135 = arith.constant dense<0.000000e+00> : vector<32x4xf32>
    %216 = tpu.matmul %214, %215, %cst_135 {dimension_numbers = #tpu.dot_dimension_numbers<[1], [0], [0], [1], [0, 0, 1, 1], [], []>} : vector<32x16xbf16>, vector<16x4xbf16>, vector<32x4xf32> -> vector<32x4xf32>
    %217 = arith.addf %212, %216 : vector<32x4xf32>
    %c34 = arith.constant 34 : index
    %c0_136 = arith.constant 0 : index
    %c0_137 = arith.constant 0 : index
    %218 = vector.load %arg2[%c34, %c0_136, %c0_137] : memref<122x32x32xbf16, #tpu.memory_space<vmem>>, vector<1x32x16xbf16>
    %219 = vector.shape_cast %218 : vector<1x32x16xbf16> to vector<32x16xbf16>
    %220 = vector.extract_strided_slice %188 {offsets = [0, 24], sizes = [16, 4], strides = [1, 1]} : vector<16x36xbf16> to vector<16x4xbf16>
    %cst_138 = arith.constant dense<0.000000e+00> : vector<32x4xf32>
    %221 = tpu.matmul %219, %220, %cst_138 {dimension_numbers = #tpu.dot_dimension_numbers<[1], [0], [0], [1], [0, 0, 1, 1], [], []>} : vector<32x16xbf16>, vector<16x4xbf16>, vector<32x4xf32> -> vector<32x4xf32>
    %222 = arith.addf %217, %221 : vector<32x4xf32>
    %c35 = arith.constant 35 : index
    %c0_139 = arith.constant 0 : index
    %c0_140 = arith.constant 0 : index
    %223 = vector.load %arg2[%c35, %c0_139, %c0_140] : memref<122x32x32xbf16, #tpu.memory_space<vmem>>, vector<1x32x16xbf16>
    %224 = vector.shape_cast %223 : vector<1x32x16xbf16> to vector<32x16xbf16>
    %225 = vector.extract_strided_slice %188 {offsets = [0, 28], sizes = [16, 4], strides = [1, 1]} : vector<16x36xbf16> to vector<16x4xbf16>
    %cst_141 = arith.constant dense<0.000000e+00> : vector<32x4xf32>
    %226 = tpu.matmul %224, %225, %cst_141 {dimension_numbers = #tpu.dot_dimension_numbers<[1], [0], [0], [1], [0, 0, 1, 1], [], []>} : vector<32x16xbf16>, vector<16x4xbf16>, vector<32x4xf32> -> vector<32x4xf32>
    %227 = arith.addf %222, %226 : vector<32x4xf32>
    %c36 = arith.constant 36 : index
    %c0_142 = arith.constant 0 : index
    %c0_143 = arith.constant 0 : index
    %228 = vector.load %arg2[%c36, %c0_142, %c0_143] : memref<122x32x32xbf16, #tpu.memory_space<vmem>>, vector<1x32x16xbf16>
    %229 = vector.shape_cast %228 : vector<1x32x16xbf16> to vector<32x16xbf16>
    %230 = vector.extract_strided_slice %188 {offsets = [0, 32], sizes = [16, 4], strides = [1, 1]} : vector<16x36xbf16> to vector<16x4xbf16>
    %cst_144 = arith.constant dense<0.000000e+00> : vector<32x4xf32>
    %231 = tpu.matmul %229, %230, %cst_144 {dimension_numbers = #tpu.dot_dimension_numbers<[1], [0], [0], [1], [0, 0, 1, 1], [], []>} : vector<32x16xbf16>, vector<16x4xbf16>, vector<32x4xf32> -> vector<32x4xf32>
    %232 = arith.addf %227, %231 : vector<32x4xf32>
    %c4_145 = arith.constant 4 : index
    %c0_146 = arith.constant 0 : index
    %c0_147 = arith.constant 0 : index
    %233 = vector.load %arg3[%c4_145, %c0_146, %c0_147] : memref<26x32x1xf32, #tpu.memory_space<vmem>>, vector<1x32x1xf32>
    %234 = vector.shape_cast %233 : vector<1x32x1xf32> to vector<32x1xf32>
    %235 = vector.broadcast %234 : vector<32x1xf32> to vector<32x4xf32>
    %236 = arith.addf %232, %235 : vector<32x4xf32>
    %cst_148 = arith.constant 0.000000e+00 : f32
    %237 = vector.broadcast %cst_148 : f32 to vector<32x4xf32>
    %238 = arith.cmpf ogt, %236, %237 : vector<32x4xf32>
    %cst_149 = arith.constant 1.000000e-01 : f32
    %239 = vector.broadcast %cst_149 : f32 to vector<32x4xf32>
    %240 = arith.mulf %239, %236 : vector<32x4xf32>
    %241 = arith.select %238, %236, %240 : vector<32x4xi1>, vector<32x4xf32>
    %242 = arith.truncf %241 : vector<32x4xf32> to vector<32x4xbf16>
    %c37 = arith.constant 37 : index
    %c0_150 = arith.constant 0 : index
    %c0_151 = arith.constant 0 : index
    %243 = vector.load %arg2[%c37, %c0_150, %c0_151] : memref<122x32x32xbf16, #tpu.memory_space<vmem>>, vector<1x16x32xbf16>
    %244 = vector.shape_cast %243 : vector<1x16x32xbf16> to vector<16x32xbf16>
    %cst_152 = arith.constant dense<0.000000e+00> : vector<16x4xf32>
    %245 = tpu.matmul %244, %242, %cst_152 {dimension_numbers = #tpu.dot_dimension_numbers<[1], [0], [0], [1], [0, 0, 1, 1], [], []>} : vector<16x32xbf16>, vector<32x4xbf16>, vector<16x4xf32> -> vector<16x4xf32>
    %c5_153 = arith.constant 5 : index
    %c0_154 = arith.constant 0 : index
    %c0_155 = arith.constant 0 : index
    %246 = vector.load %arg3[%c5_153, %c0_154, %c0_155] : memref<26x32x1xf32, #tpu.memory_space<vmem>>, vector<1x16x1xf32>
    %247 = vector.shape_cast %246 : vector<1x16x1xf32> to vector<16x1xf32>
    %248 = vector.broadcast %247 : vector<16x1xf32> to vector<16x4xf32>
    %249 = arith.addf %245, %248 : vector<16x4xf32>
    %cst_156 = arith.constant 0.000000e+00 : f32
    %250 = vector.broadcast %cst_156 : f32 to vector<16x4xf32>
    %251 = arith.cmpf ogt, %249, %250 : vector<16x4xf32>
    %cst_157 = arith.constant 1.000000e-01 : f32
    %252 = vector.broadcast %cst_157 : f32 to vector<16x4xf32>
    %253 = arith.mulf %252, %249 : vector<16x4xf32>
    %254 = arith.select %251, %249, %253 : vector<16x4xi1>, vector<16x4xf32>
    %255 = arith.truncf %254 : vector<16x4xf32> to vector<16x4xbf16>
    %c0_158 = arith.constant 0 : index
    %c0_159 = arith.constant 0 : index
    %256 = vector.load %arg7[%c0_158, %c0_159] : memref<4x36xbf16, #tpu.memory_space<vmem>>, vector<4x36xbf16>
    %cst_160 = arith.constant dense<0.000000e+00> : vector<16x36xf32>
    %257 = tpu.matmul %255, %256, %cst_160 {dimension_numbers = #tpu.dot_dimension_numbers<[1], [0], [0], [1], [0, 0, 1, 1], [], []>} : vector<16x4xbf16>, vector<4x36xbf16>, vector<16x36xf32> -> vector<16x36xf32>
    %258 = arith.truncf %257 : vector<16x36xf32> to vector<16x36xbf16>
    %c38 = arith.constant 38 : index
    %c0_161 = arith.constant 0 : index
    %c0_162 = arith.constant 0 : index
    %259 = vector.load %arg2[%c38, %c0_161, %c0_162] : memref<122x32x32xbf16, #tpu.memory_space<vmem>>, vector<1x32x16xbf16>
    %260 = vector.shape_cast %259 : vector<1x32x16xbf16> to vector<32x16xbf16>
    %261 = vector.extract_strided_slice %258 {offsets = [0, 0], sizes = [16, 4], strides = [1, 1]} : vector<16x36xbf16> to vector<16x4xbf16>
    %cst_163 = arith.constant dense<0.000000e+00> : vector<32x4xf32>
    %262 = tpu.matmul %260, %261, %cst_163 {dimension_numbers = #tpu.dot_dimension_numbers<[1], [0], [0], [1], [0, 0, 1, 1], [], []>} : vector<32x16xbf16>, vector<16x4xbf16>, vector<32x4xf32> -> vector<32x4xf32>
    %c39 = arith.constant 39 : index
    %c0_164 = arith.constant 0 : index
    %c0_165 = arith.constant 0 : index
    %263 = vector.load %arg2[%c39, %c0_164, %c0_165] : memref<122x32x32xbf16, #tpu.memory_space<vmem>>, vector<1x32x16xbf16>
    %264 = vector.shape_cast %263 : vector<1x32x16xbf16> to vector<32x16xbf16>
    %265 = vector.extract_strided_slice %258 {offsets = [0, 4], sizes = [16, 4], strides = [1, 1]} : vector<16x36xbf16> to vector<16x4xbf16>
    %cst_166 = arith.constant dense<0.000000e+00> : vector<32x4xf32>
    %266 = tpu.matmul %264, %265, %cst_166 {dimension_numbers = #tpu.dot_dimension_numbers<[1], [0], [0], [1], [0, 0, 1, 1], [], []>} : vector<32x16xbf16>, vector<16x4xbf16>, vector<32x4xf32> -> vector<32x4xf32>
    %267 = arith.addf %262, %266 : vector<32x4xf32>
    %c40 = arith.constant 40 : index
    %c0_167 = arith.constant 0 : index
    %c0_168 = arith.constant 0 : index
    %268 = vector.load %arg2[%c40, %c0_167, %c0_168] : memref<122x32x32xbf16, #tpu.memory_space<vmem>>, vector<1x32x16xbf16>
    %269 = vector.shape_cast %268 : vector<1x32x16xbf16> to vector<32x16xbf16>
    %270 = vector.extract_strided_slice %258 {offsets = [0, 8], sizes = [16, 4], strides = [1, 1]} : vector<16x36xbf16> to vector<16x4xbf16>
    %cst_169 = arith.constant dense<0.000000e+00> : vector<32x4xf32>
    %271 = tpu.matmul %269, %270, %cst_169 {dimension_numbers = #tpu.dot_dimension_numbers<[1], [0], [0], [1], [0, 0, 1, 1], [], []>} : vector<32x16xbf16>, vector<16x4xbf16>, vector<32x4xf32> -> vector<32x4xf32>
    %272 = arith.addf %267, %271 : vector<32x4xf32>
    %c41 = arith.constant 41 : index
    %c0_170 = arith.constant 0 : index
    %c0_171 = arith.constant 0 : index
    %273 = vector.load %arg2[%c41, %c0_170, %c0_171] : memref<122x32x32xbf16, #tpu.memory_space<vmem>>, vector<1x32x16xbf16>
    %274 = vector.shape_cast %273 : vector<1x32x16xbf16> to vector<32x16xbf16>
    %275 = vector.extract_strided_slice %258 {offsets = [0, 12], sizes = [16, 4], strides = [1, 1]} : vector<16x36xbf16> to vector<16x4xbf16>
    %cst_172 = arith.constant dense<0.000000e+00> : vector<32x4xf32>
    %276 = tpu.matmul %274, %275, %cst_172 {dimension_numbers = #tpu.dot_dimension_numbers<[1], [0], [0], [1], [0, 0, 1, 1], [], []>} : vector<32x16xbf16>, vector<16x4xbf16>, vector<32x4xf32> -> vector<32x4xf32>
    %277 = arith.addf %272, %276 : vector<32x4xf32>
    %c42 = arith.constant 42 : index
    %c0_173 = arith.constant 0 : index
    %c0_174 = arith.constant 0 : index
    %278 = vector.load %arg2[%c42, %c0_173, %c0_174] : memref<122x32x32xbf16, #tpu.memory_space<vmem>>, vector<1x32x16xbf16>
    %279 = vector.shape_cast %278 : vector<1x32x16xbf16> to vector<32x16xbf16>
    %280 = vector.extract_strided_slice %258 {offsets = [0, 16], sizes = [16, 4], strides = [1, 1]} : vector<16x36xbf16> to vector<16x4xbf16>
    %cst_175 = arith.constant dense<0.000000e+00> : vector<32x4xf32>
    %281 = tpu.matmul %279, %280, %cst_175 {dimension_numbers = #tpu.dot_dimension_numbers<[1], [0], [0], [1], [0, 0, 1, 1], [], []>} : vector<32x16xbf16>, vector<16x4xbf16>, vector<32x4xf32> -> vector<32x4xf32>
    %282 = arith.addf %277, %281 : vector<32x4xf32>
    %c43 = arith.constant 43 : index
    %c0_176 = arith.constant 0 : index
    %c0_177 = arith.constant 0 : index
    %283 = vector.load %arg2[%c43, %c0_176, %c0_177] : memref<122x32x32xbf16, #tpu.memory_space<vmem>>, vector<1x32x16xbf16>
    %284 = vector.shape_cast %283 : vector<1x32x16xbf16> to vector<32x16xbf16>
    %285 = vector.extract_strided_slice %258 {offsets = [0, 20], sizes = [16, 4], strides = [1, 1]} : vector<16x36xbf16> to vector<16x4xbf16>
    %cst_178 = arith.constant dense<0.000000e+00> : vector<32x4xf32>
    %286 = tpu.matmul %284, %285, %cst_178 {dimension_numbers = #tpu.dot_dimension_numbers<[1], [0], [0], [1], [0, 0, 1, 1], [], []>} : vector<32x16xbf16>, vector<16x4xbf16>, vector<32x4xf32> -> vector<32x4xf32>
    %287 = arith.addf %282, %286 : vector<32x4xf32>
    %c44 = arith.constant 44 : index
    %c0_179 = arith.constant 0 : index
    %c0_180 = arith.constant 0 : index
    %288 = vector.load %arg2[%c44, %c0_179, %c0_180] : memref<122x32x32xbf16, #tpu.memory_space<vmem>>, vector<1x32x16xbf16>
    %289 = vector.shape_cast %288 : vector<1x32x16xbf16> to vector<32x16xbf16>
    %290 = vector.extract_strided_slice %258 {offsets = [0, 24], sizes = [16, 4], strides = [1, 1]} : vector<16x36xbf16> to vector<16x4xbf16>
    %cst_181 = arith.constant dense<0.000000e+00> : vector<32x4xf32>
    %291 = tpu.matmul %289, %290, %cst_181 {dimension_numbers = #tpu.dot_dimension_numbers<[1], [0], [0], [1], [0, 0, 1, 1], [], []>} : vector<32x16xbf16>, vector<16x4xbf16>, vector<32x4xf32> -> vector<32x4xf32>
    %292 = arith.addf %287, %291 : vector<32x4xf32>
    %c45 = arith.constant 45 : index
    %c0_182 = arith.constant 0 : index
    %c0_183 = arith.constant 0 : index
    %293 = vector.load %arg2[%c45, %c0_182, %c0_183] : memref<122x32x32xbf16, #tpu.memory_space<vmem>>, vector<1x32x16xbf16>
    %294 = vector.shape_cast %293 : vector<1x32x16xbf16> to vector<32x16xbf16>
    %295 = vector.extract_strided_slice %258 {offsets = [0, 28], sizes = [16, 4], strides = [1, 1]} : vector<16x36xbf16> to vector<16x4xbf16>
    %cst_184 = arith.constant dense<0.000000e+00> : vector<32x4xf32>
    %296 = tpu.matmul %294, %295, %cst_184 {dimension_numbers = #tpu.dot_dimension_numbers<[1], [0], [0], [1], [0, 0, 1, 1], [], []>} : vector<32x16xbf16>, vector<16x4xbf16>, vector<32x4xf32> -> vector<32x4xf32>
    %297 = arith.addf %292, %296 : vector<32x4xf32>
    %c46 = arith.constant 46 : index
    %c0_185 = arith.constant 0 : index
    %c0_186 = arith.constant 0 : index
    %298 = vector.load %arg2[%c46, %c0_185, %c0_186] : memref<122x32x32xbf16, #tpu.memory_space<vmem>>, vector<1x32x16xbf16>
    %299 = vector.shape_cast %298 : vector<1x32x16xbf16> to vector<32x16xbf16>
    %300 = vector.extract_strided_slice %258 {offsets = [0, 32], sizes = [16, 4], strides = [1, 1]} : vector<16x36xbf16> to vector<16x4xbf16>
    %cst_187 = arith.constant dense<0.000000e+00> : vector<32x4xf32>
    %301 = tpu.matmul %299, %300, %cst_187 {dimension_numbers = #tpu.dot_dimension_numbers<[1], [0], [0], [1], [0, 0, 1, 1], [], []>} : vector<32x16xbf16>, vector<16x4xbf16>, vector<32x4xf32> -> vector<32x4xf32>
    %302 = arith.addf %297, %301 : vector<32x4xf32>
    %c6_188 = arith.constant 6 : index
    %c0_189 = arith.constant 0 : index
    %c0_190 = arith.constant 0 : index
    %303 = vector.load %arg3[%c6_188, %c0_189, %c0_190] : memref<26x32x1xf32, #tpu.memory_space<vmem>>, vector<1x32x1xf32>
    %304 = vector.shape_cast %303 : vector<1x32x1xf32> to vector<32x1xf32>
    %305 = vector.broadcast %304 : vector<32x1xf32> to vector<32x4xf32>
    %306 = arith.addf %302, %305 : vector<32x4xf32>
    %cst_191 = arith.constant 0.000000e+00 : f32
    %307 = vector.broadcast %cst_191 : f32 to vector<32x4xf32>
    %308 = arith.cmpf ogt, %306, %307 : vector<32x4xf32>
    %cst_192 = arith.constant 1.000000e-01 : f32
    %309 = vector.broadcast %cst_192 : f32 to vector<32x4xf32>
    %310 = arith.mulf %309, %306 : vector<32x4xf32>
    %311 = arith.select %308, %306, %310 : vector<32x4xi1>, vector<32x4xf32>
    %312 = arith.truncf %311 : vector<32x4xf32> to vector<32x4xbf16>
    %c47 = arith.constant 47 : index
    %c0_193 = arith.constant 0 : index
    %c0_194 = arith.constant 0 : index
    %313 = vector.load %arg2[%c47, %c0_193, %c0_194] : memref<122x32x32xbf16, #tpu.memory_space<vmem>>, vector<1x16x32xbf16>
    %314 = vector.shape_cast %313 : vector<1x16x32xbf16> to vector<16x32xbf16>
    %cst_195 = arith.constant dense<0.000000e+00> : vector<16x4xf32>
    %315 = tpu.matmul %314, %312, %cst_195 {dimension_numbers = #tpu.dot_dimension_numbers<[1], [0], [0], [1], [0, 0, 1, 1], [], []>} : vector<16x32xbf16>, vector<32x4xbf16>, vector<16x4xf32> -> vector<16x4xf32>
    %c7_196 = arith.constant 7 : index
    %c0_197 = arith.constant 0 : index
    %c0_198 = arith.constant 0 : index
    %316 = vector.load %arg3[%c7_196, %c0_197, %c0_198] : memref<26x32x1xf32, #tpu.memory_space<vmem>>, vector<1x16x1xf32>
    %317 = vector.shape_cast %316 : vector<1x16x1xf32> to vector<16x1xf32>
    %318 = vector.broadcast %317 : vector<16x1xf32> to vector<16x4xf32>
    %319 = arith.addf %315, %318 : vector<16x4xf32>
    %cst_199 = arith.constant 0.000000e+00 : f32
    %320 = vector.broadcast %cst_199 : f32 to vector<16x4xf32>
    %321 = arith.cmpf ogt, %319, %320 : vector<16x4xf32>
    %cst_200 = arith.constant 1.000000e-01 : f32
    %322 = vector.broadcast %cst_200 : f32 to vector<16x4xf32>
    %323 = arith.mulf %322, %319 : vector<16x4xf32>
    %324 = arith.select %321, %319, %323 : vector<16x4xi1>, vector<16x4xf32>
    %325 = arith.truncf %324 : vector<16x4xf32> to vector<16x4xbf16>
    %c0_201 = arith.constant 0 : index
    %c0_202 = arith.constant 0 : index
    %326 = vector.load %arg7[%c0_201, %c0_202] : memref<4x36xbf16, #tpu.memory_space<vmem>>, vector<4x36xbf16>
    %cst_203 = arith.constant dense<0.000000e+00> : vector<16x36xf32>
    %327 = tpu.matmul %325, %326, %cst_203 {dimension_numbers = #tpu.dot_dimension_numbers<[1], [0], [0], [1], [0, 0, 1, 1], [], []>} : vector<16x4xbf16>, vector<4x36xbf16>, vector<16x36xf32> -> vector<16x36xf32>
    %328 = arith.truncf %327 : vector<16x36xf32> to vector<16x36xbf16>
    %c48 = arith.constant 48 : index
    %c0_204 = arith.constant 0 : index
    %c0_205 = arith.constant 0 : index
    %329 = vector.load %arg2[%c48, %c0_204, %c0_205] : memref<122x32x32xbf16, #tpu.memory_space<vmem>>, vector<1x32x16xbf16>
    %330 = vector.shape_cast %329 : vector<1x32x16xbf16> to vector<32x16xbf16>
    %331 = vector.extract_strided_slice %328 {offsets = [0, 0], sizes = [16, 4], strides = [1, 1]} : vector<16x36xbf16> to vector<16x4xbf16>
    %cst_206 = arith.constant dense<0.000000e+00> : vector<32x4xf32>
    %332 = tpu.matmul %330, %331, %cst_206 {dimension_numbers = #tpu.dot_dimension_numbers<[1], [0], [0], [1], [0, 0, 1, 1], [], []>} : vector<32x16xbf16>, vector<16x4xbf16>, vector<32x4xf32> -> vector<32x4xf32>
    %c49 = arith.constant 49 : index
    %c0_207 = arith.constant 0 : index
    %c0_208 = arith.constant 0 : index
    %333 = vector.load %arg2[%c49, %c0_207, %c0_208] : memref<122x32x32xbf16, #tpu.memory_space<vmem>>, vector<1x32x16xbf16>
    %334 = vector.shape_cast %333 : vector<1x32x16xbf16> to vector<32x16xbf16>
    %335 = vector.extract_strided_slice %328 {offsets = [0, 4], sizes = [16, 4], strides = [1, 1]} : vector<16x36xbf16> to vector<16x4xbf16>
    %cst_209 = arith.constant dense<0.000000e+00> : vector<32x4xf32>
    %336 = tpu.matmul %334, %335, %cst_209 {dimension_numbers = #tpu.dot_dimension_numbers<[1], [0], [0], [1], [0, 0, 1, 1], [], []>} : vector<32x16xbf16>, vector<16x4xbf16>, vector<32x4xf32> -> vector<32x4xf32>
    %337 = arith.addf %332, %336 : vector<32x4xf32>
    %c50 = arith.constant 50 : index
    %c0_210 = arith.constant 0 : index
    %c0_211 = arith.constant 0 : index
    %338 = vector.load %arg2[%c50, %c0_210, %c0_211] : memref<122x32x32xbf16, #tpu.memory_space<vmem>>, vector<1x32x16xbf16>
    %339 = vector.shape_cast %338 : vector<1x32x16xbf16> to vector<32x16xbf16>
    %340 = vector.extract_strided_slice %328 {offsets = [0, 8], sizes = [16, 4], strides = [1, 1]} : vector<16x36xbf16> to vector<16x4xbf16>
    %cst_212 = arith.constant dense<0.000000e+00> : vector<32x4xf32>
    %341 = tpu.matmul %339, %340, %cst_212 {dimension_numbers = #tpu.dot_dimension_numbers<[1], [0], [0], [1], [0, 0, 1, 1], [], []>} : vector<32x16xbf16>, vector<16x4xbf16>, vector<32x4xf32> -> vector<32x4xf32>
    %342 = arith.addf %337, %341 : vector<32x4xf32>
    %c51 = arith.constant 51 : index
    %c0_213 = arith.constant 0 : index
    %c0_214 = arith.constant 0 : index
    %343 = vector.load %arg2[%c51, %c0_213, %c0_214] : memref<122x32x32xbf16, #tpu.memory_space<vmem>>, vector<1x32x16xbf16>
    %344 = vector.shape_cast %343 : vector<1x32x16xbf16> to vector<32x16xbf16>
    %345 = vector.extract_strided_slice %328 {offsets = [0, 12], sizes = [16, 4], strides = [1, 1]} : vector<16x36xbf16> to vector<16x4xbf16>
    %cst_215 = arith.constant dense<0.000000e+00> : vector<32x4xf32>
    %346 = tpu.matmul %344, %345, %cst_215 {dimension_numbers = #tpu.dot_dimension_numbers<[1], [0], [0], [1], [0, 0, 1, 1], [], []>} : vector<32x16xbf16>, vector<16x4xbf16>, vector<32x4xf32> -> vector<32x4xf32>
    %347 = arith.addf %342, %346 : vector<32x4xf32>
    %c52 = arith.constant 52 : index
    %c0_216 = arith.constant 0 : index
    %c0_217 = arith.constant 0 : index
    %348 = vector.load %arg2[%c52, %c0_216, %c0_217] : memref<122x32x32xbf16, #tpu.memory_space<vmem>>, vector<1x32x16xbf16>
    %349 = vector.shape_cast %348 : vector<1x32x16xbf16> to vector<32x16xbf16>
    %350 = vector.extract_strided_slice %328 {offsets = [0, 16], sizes = [16, 4], strides = [1, 1]} : vector<16x36xbf16> to vector<16x4xbf16>
    %cst_218 = arith.constant dense<0.000000e+00> : vector<32x4xf32>
    %351 = tpu.matmul %349, %350, %cst_218 {dimension_numbers = #tpu.dot_dimension_numbers<[1], [0], [0], [1], [0, 0, 1, 1], [], []>} : vector<32x16xbf16>, vector<16x4xbf16>, vector<32x4xf32> -> vector<32x4xf32>
    %352 = arith.addf %347, %351 : vector<32x4xf32>
    %c53 = arith.constant 53 : index
    %c0_219 = arith.constant 0 : index
    %c0_220 = arith.constant 0 : index
    %353 = vector.load %arg2[%c53, %c0_219, %c0_220] : memref<122x32x32xbf16, #tpu.memory_space<vmem>>, vector<1x32x16xbf16>
    %354 = vector.shape_cast %353 : vector<1x32x16xbf16> to vector<32x16xbf16>
    %355 = vector.extract_strided_slice %328 {offsets = [0, 20], sizes = [16, 4], strides = [1, 1]} : vector<16x36xbf16> to vector<16x4xbf16>
    %cst_221 = arith.constant dense<0.000000e+00> : vector<32x4xf32>
    %356 = tpu.matmul %354, %355, %cst_221 {dimension_numbers = #tpu.dot_dimension_numbers<[1], [0], [0], [1], [0, 0, 1, 1], [], []>} : vector<32x16xbf16>, vector<16x4xbf16>, vector<32x4xf32> -> vector<32x4xf32>
    %357 = arith.addf %352, %356 : vector<32x4xf32>
    %c54 = arith.constant 54 : index
    %c0_222 = arith.constant 0 : index
    %c0_223 = arith.constant 0 : index
    %358 = vector.load %arg2[%c54, %c0_222, %c0_223] : memref<122x32x32xbf16, #tpu.memory_space<vmem>>, vector<1x32x16xbf16>
    %359 = vector.shape_cast %358 : vector<1x32x16xbf16> to vector<32x16xbf16>
    %360 = vector.extract_strided_slice %328 {offsets = [0, 24], sizes = [16, 4], strides = [1, 1]} : vector<16x36xbf16> to vector<16x4xbf16>
    %cst_224 = arith.constant dense<0.000000e+00> : vector<32x4xf32>
    %361 = tpu.matmul %359, %360, %cst_224 {dimension_numbers = #tpu.dot_dimension_numbers<[1], [0], [0], [1], [0, 0, 1, 1], [], []>} : vector<32x16xbf16>, vector<16x4xbf16>, vector<32x4xf32> -> vector<32x4xf32>
    %362 = arith.addf %357, %361 : vector<32x4xf32>
    %c55 = arith.constant 55 : index
    %c0_225 = arith.constant 0 : index
    %c0_226 = arith.constant 0 : index
    %363 = vector.load %arg2[%c55, %c0_225, %c0_226] : memref<122x32x32xbf16, #tpu.memory_space<vmem>>, vector<1x32x16xbf16>
    %364 = vector.shape_cast %363 : vector<1x32x16xbf16> to vector<32x16xbf16>
    %365 = vector.extract_strided_slice %328 {offsets = [0, 28], sizes = [16, 4], strides = [1, 1]} : vector<16x36xbf16> to vector<16x4xbf16>
    %cst_227 = arith.constant dense<0.000000e+00> : vector<32x4xf32>
    %366 = tpu.matmul %364, %365, %cst_227 {dimension_numbers = #tpu.dot_dimension_numbers<[1], [0], [0], [1], [0, 0, 1, 1], [], []>} : vector<32x16xbf16>, vector<16x4xbf16>, vector<32x4xf32> -> vector<32x4xf32>
    %367 = arith.addf %362, %366 : vector<32x4xf32>
    %c56 = arith.constant 56 : index
    %c0_228 = arith.constant 0 : index
    %c0_229 = arith.constant 0 : index
    %368 = vector.load %arg2[%c56, %c0_228, %c0_229] : memref<122x32x32xbf16, #tpu.memory_space<vmem>>, vector<1x32x16xbf16>
    %369 = vector.shape_cast %368 : vector<1x32x16xbf16> to vector<32x16xbf16>
    %370 = vector.extract_strided_slice %328 {offsets = [0, 32], sizes = [16, 4], strides = [1, 1]} : vector<16x36xbf16> to vector<16x4xbf16>
    %cst_230 = arith.constant dense<0.000000e+00> : vector<32x4xf32>
    %371 = tpu.matmul %369, %370, %cst_230 {dimension_numbers = #tpu.dot_dimension_numbers<[1], [0], [0], [1], [0, 0, 1, 1], [], []>} : vector<32x16xbf16>, vector<16x4xbf16>, vector<32x4xf32> -> vector<32x4xf32>
    %372 = arith.addf %367, %371 : vector<32x4xf32>
    %c8_231 = arith.constant 8 : index
    %c0_232 = arith.constant 0 : index
    %c0_233 = arith.constant 0 : index
    %373 = vector.load %arg3[%c8_231, %c0_232, %c0_233] : memref<26x32x1xf32, #tpu.memory_space<vmem>>, vector<1x32x1xf32>
    %374 = vector.shape_cast %373 : vector<1x32x1xf32> to vector<32x1xf32>
    %375 = vector.broadcast %374 : vector<32x1xf32> to vector<32x4xf32>
    %376 = arith.addf %372, %375 : vector<32x4xf32>
    %cst_234 = arith.constant 0.000000e+00 : f32
    %377 = vector.broadcast %cst_234 : f32 to vector<32x4xf32>
    %378 = arith.cmpf ogt, %376, %377 : vector<32x4xf32>
    %cst_235 = arith.constant 1.000000e-01 : f32
    %379 = vector.broadcast %cst_235 : f32 to vector<32x4xf32>
    %380 = arith.mulf %379, %376 : vector<32x4xf32>
    %381 = arith.select %378, %376, %380 : vector<32x4xi1>, vector<32x4xf32>
    %382 = arith.truncf %381 : vector<32x4xf32> to vector<32x4xbf16>
    %c57 = arith.constant 57 : index
    %c0_236 = arith.constant 0 : index
    %c0_237 = arith.constant 0 : index
    %383 = vector.load %arg2[%c57, %c0_236, %c0_237] : memref<122x32x32xbf16, #tpu.memory_space<vmem>>, vector<1x24x32xbf16>
    %384 = vector.shape_cast %383 : vector<1x24x32xbf16> to vector<24x32xbf16>
    %cst_238 = arith.constant dense<0.000000e+00> : vector<24x4xf32>
    %385 = tpu.matmul %384, %382, %cst_238 {dimension_numbers = #tpu.dot_dimension_numbers<[1], [0], [0], [1], [0, 0, 1, 1], [], []>} : vector<24x32xbf16>, vector<32x4xbf16>, vector<24x4xf32> -> vector<24x4xf32>
    %c9_239 = arith.constant 9 : index
    %c0_240 = arith.constant 0 : index
    %c0_241 = arith.constant 0 : index
    %386 = vector.load %arg3[%c9_239, %c0_240, %c0_241] : memref<26x32x1xf32, #tpu.memory_space<vmem>>, vector<1x24x1xf32>
    %387 = vector.shape_cast %386 : vector<1x24x1xf32> to vector<24x1xf32>
    %388 = vector.broadcast %387 : vector<24x1xf32> to vector<24x4xf32>
    %389 = arith.addf %385, %388 : vector<24x4xf32>
    %c0_242 = arith.constant 0 : index
    %c0_243 = arith.constant 0 : index
    %390 = vector.load %arg12[%c0_242, %c0_243] : memref<8x128xf32, #tpu.memory_space<vmem>>, vector<1x4xf32>
    %c1_244 = arith.constant 1 : index
    %c0_245 = arith.constant 0 : index
    %391 = vector.load %arg12[%c1_244, %c0_245] : memref<8x128xf32, #tpu.memory_space<vmem>>, vector<1x4xf32>
    %392 = vector.extract_strided_slice %389 {offsets = [0, 0], sizes = [6, 4], strides = [1, 1]} : vector<24x4xf32> to vector<6x4xf32>
    %cst_246 = arith.constant 5.000000e-01 : f32
    %393 = vector.broadcast %cst_246 : f32 to vector<6x4xf32>
    %394 = arith.mulf %393, %392 : vector<6x4xf32>
    %395 = math.tanh %394 : vector<6x4xf32>
    %cst_247 = arith.constant 1.000000e+00 : f32
    %396 = vector.broadcast %cst_247 : f32 to vector<6x4xf32>
    %397 = arith.addf %395, %396 : vector<6x4xf32>
    %cst_248 = arith.constant 5.000000e-01 : f32
    %398 = vector.broadcast %cst_248 : f32 to vector<6x4xf32>
    %399 = arith.mulf %398, %397 : vector<6x4xf32>
    %400 = vector.extract_strided_slice %399 {offsets = [0, 0], sizes = [3, 4], strides = [1, 1]} : vector<6x4xf32> to vector<3x4xf32>
    %cst_249 = arith.constant 8.000000e+00 : f32
    %401 = vector.broadcast %cst_249 : f32 to vector<3x4xf32>
    %402 = arith.mulf %400, %401 : vector<3x4xf32>
    %403 = vector.broadcast %390 : vector<1x4xf32> to vector<3x4xf32>
    %404 = arith.addf %402, %403 : vector<3x4xf32>
    %405 = vector.extract_strided_slice %399 {offsets = [3, 0], sizes = [3, 4], strides = [1, 1]} : vector<6x4xf32> to vector<3x4xf32>
    %cst_250 = arith.constant 8.000000e+00 : f32
    %406 = vector.broadcast %cst_250 : f32 to vector<3x4xf32>
    %407 = arith.mulf %405, %406 : vector<3x4xf32>
    %408 = vector.broadcast %391 : vector<1x4xf32> to vector<3x4xf32>
    %409 = arith.addf %407, %408 : vector<3x4xf32>
    %410 = vector.extract_strided_slice %389 {offsets = [6, 0], sizes = [6, 4], strides = [1, 1]} : vector<24x4xf32> to vector<6x4xf32>
    %411 = math.exp %410 : vector<6x4xf32>
    %412 = vector.extract_strided_slice %411 {offsets = [0, 0], sizes = [3, 4], strides = [1, 1]} : vector<6x4xf32> to vector<3x4xf32>
    %413 = vector.extract_strided_slice %411 {offsets = [3, 0], sizes = [3, 4], strides = [1, 1]} : vector<6x4xf32> to vector<3x4xf32>
    %414 = vector.extract_strided_slice %389 {offsets = [12, 0], sizes = [3, 4], strides = [1, 1]} : vector<24x4xf32> to vector<3x4xf32>
    %cst_251 = arith.constant 5.000000e-01 : f32
    %415 = vector.broadcast %cst_251 : f32 to vector<3x4xf32>
    %416 = arith.mulf %415, %414 : vector<3x4xf32>
    %417 = math.tanh %416 : vector<3x4xf32>
    %cst_252 = arith.constant 1.000000e+00 : f32
    %418 = vector.broadcast %cst_252 : f32 to vector<3x4xf32>
    %419 = arith.addf %417, %418 : vector<3x4xf32>
    %cst_253 = arith.constant 5.000000e-01 : f32
    %420 = vector.broadcast %cst_253 : f32 to vector<3x4xf32>
    %421 = arith.mulf %420, %419 : vector<3x4xf32>
    %422 = vector.extract_strided_slice %389 {offsets = [15, 0], sizes = [9, 4], strides = [1, 1]} : vector<24x4xf32> to vector<9x4xf32>
    %cst_254 = arith.constant 5.000000e-01 : f32
    %423 = vector.broadcast %cst_254 : f32 to vector<9x4xf32>
    %424 = arith.mulf %423, %422 : vector<9x4xf32>
    %425 = math.tanh %424 : vector<9x4xf32>
    %cst_255 = arith.constant 1.000000e+00 : f32
    %426 = vector.broadcast %cst_255 : f32 to vector<9x4xf32>
    %427 = arith.addf %425, %426 : vector<9x4xf32>
    %cst_256 = arith.constant 5.000000e-01 : f32
    %428 = vector.broadcast %cst_256 : f32 to vector<9x4xf32>
    %429 = arith.mulf %428, %427 : vector<9x4xf32>
    %430 = vector.extract_strided_slice %429 {offsets = [0, 0], sizes = [3, 4], strides = [1, 1]} : vector<9x4xf32> to vector<3x4xf32>
    %431 = vector.extract_strided_slice %421 {offsets = [0, 0], sizes = [1, 4], strides = [1, 1]} : vector<3x4xf32> to vector<1x4xf32>
    %432 = vector.broadcast %431 : vector<1x4xf32> to vector<3x4xf32>
    %433 = arith.mulf %430, %432 : vector<3x4xf32>
    %434 = vector.extract_strided_slice %429 {offsets = [3, 0], sizes = [3, 4], strides = [1, 1]} : vector<9x4xf32> to vector<3x4xf32>
    %435 = vector.extract_strided_slice %421 {offsets = [1, 0], sizes = [1, 4], strides = [1, 1]} : vector<3x4xf32> to vector<1x4xf32>
    %436 = vector.broadcast %435 : vector<1x4xf32> to vector<3x4xf32>
    %437 = arith.mulf %434, %436 : vector<3x4xf32>
    %438 = vector.extract_strided_slice %429 {offsets = [6, 0], sizes = [3, 4], strides = [1, 1]} : vector<9x4xf32> to vector<3x4xf32>
    %439 = vector.extract_strided_slice %421 {offsets = [2, 0], sizes = [1, 4], strides = [1, 1]} : vector<3x4xf32> to vector<1x4xf32>
    %440 = vector.broadcast %439 : vector<1x4xf32> to vector<3x4xf32>
    %441 = arith.mulf %438, %440 : vector<3x4xf32>
    %442 = tpu.concatenate %433, %437, %441 in 0 : vector<3x4xf32>, vector<3x4xf32>, vector<3x4xf32> -> vector<9x4xf32>
    %443 = arith.subf %404, %412 : vector<3x4xf32>
    %444 = arith.subf %409, %413 : vector<3x4xf32>
    %445 = arith.addf %404, %412 : vector<3x4xf32>
    %446 = arith.addf %409, %413 : vector<3x4xf32>
    %447 = tpu.concatenate %443, %444, %445, %446, %442 in 0 : vector<3x4xf32>, vector<3x4xf32>, vector<3x4xf32>, vector<3x4xf32>, vector<9x4xf32> -> vector<21x4xf32>
    %cst_257 = arith.constant 0.000000e+00 : f32
    %448 = vector.broadcast %cst_257 : f32 to vector<3x4xf32>
    %449 = tpu.concatenate %447, %448 in 0 : vector<21x4xf32>, vector<3x4xf32> -> vector<24x4xf32>
    %cst_258 = arith.constant 0.000000e+00 : f32
    %450 = vector.broadcast %cst_258 : f32 to vector<24x124xf32>
    %451 = tpu.concatenate %449, %450 in 1 : vector<24x4xf32>, vector<24x124xf32> -> vector<24x128xf32>
    %c0_259 = arith.constant 0 : index
    %c0_260 = arith.constant 0 : index
    %c0_261 = arith.constant 0 : index
    %452 = vector.load %arg13[%c0_259, %c0_260, %c0_261] : memref<1x72x128xf32, #tpu.memory_space<vmem>>, vector<1x24x128xf32>
    %453 = vector.shape_cast %452 : vector<1x24x128xf32> to vector<24x128xf32>
    %454 = vector.shape_cast %451 : vector<24x128xf32> to vector<1x24x128xf32>
    tpu.vector_store %arg13[%c0_259, %c0_260, %c0_261], %454 {strides = array<i32>} : memref<1x72x128xf32, #tpu.memory_space<vmem>>, vector<1x24x128xf32>,
    %c58 = arith.constant 58 : index
    %c0_262 = arith.constant 0 : index
    %c0_263 = arith.constant 0 : index
    %455 = vector.load %arg2[%c58, %c0_262, %c0_263] : memref<122x32x32xbf16, #tpu.memory_space<vmem>>, vector<1x8x16xbf16>
    %456 = vector.shape_cast %455 : vector<1x8x16xbf16> to vector<8x16xbf16>
    %cst_264 = arith.constant dense<0.000000e+00> : vector<8x4xf32>
    %457 = tpu.matmul %456, %325, %cst_264 {dimension_numbers = #tpu.dot_dimension_numbers<[1], [0], [0], [1], [0, 0, 1, 1], [], []>} : vector<8x16xbf16>, vector<16x4xbf16>, vector<8x4xf32> -> vector<8x4xf32>
    %c10_265 = arith.constant 10 : index
    %c0_266 = arith.constant 0 : index
    %c0_267 = arith.constant 0 : index
    %458 = vector.load %arg3[%c10_265, %c0_266, %c0_267] : memref<26x32x1xf32, #tpu.memory_space<vmem>>, vector<1x8x1xf32>
    %459 = vector.shape_cast %458 : vector<1x8x1xf32> to vector<8x1xf32>
    %460 = vector.broadcast %459 : vector<8x1xf32> to vector<8x4xf32>
    %461 = arith.addf %457, %460 : vector<8x4xf32>
    %cst_268 = arith.constant 0.000000e+00 : f32
    %462 = vector.broadcast %cst_268 : f32 to vector<8x4xf32>
    %463 = arith.cmpf ogt, %461, %462 : vector<8x4xf32>
    %cst_269 = arith.constant 1.000000e-01 : f32
    %464 = vector.broadcast %cst_269 : f32 to vector<8x4xf32>
    %465 = arith.mulf %464, %461 : vector<8x4xf32>
    %466 = arith.select %463, %461, %465 : vector<8x4xi1>, vector<8x4xf32>
    %467 = arith.truncf %466 : vector<8x4xf32> to vector<8x4xbf16>
    %c0_270 = arith.constant 0 : index
    %c0_271 = arith.constant 0 : index
    %468 = vector.load %arg10[%c0_270, %c0_271] : memref<4x16xbf16, #tpu.memory_space<vmem>>, vector<4x16xbf16>
    %cst_272 = arith.constant dense<0.000000e+00> : vector<8x16xf32>
    %469 = tpu.matmul %467, %468, %cst_272 {dimension_numbers = #tpu.dot_dimension_numbers<[1], [0], [0], [1], [0, 0, 1, 1], [], []>} : vector<8x4xbf16>, vector<4x16xbf16>, vector<8x16xf32> -> vector<8x16xf32>
    %470 = arith.truncf %469 : vector<8x16xf32> to vector<8x16xbf16>
    %c59 = arith.constant 59 : index
    %c0_273 = arith.constant 0 : index
    %c0_274 = arith.constant 0 : index
    %471 = vector.load %arg2[%c59, %c0_273, %c0_274] : memref<122x32x32xbf16, #tpu.memory_space<vmem>>, vector<1x8x8xbf16>
    %472 = vector.shape_cast %471 : vector<1x8x8xbf16> to vector<8x8xbf16>
    %cst_275 = arith.constant dense<0.000000e+00> : vector<8x16xf32>
    %473 = tpu.matmul %472, %470, %cst_275 {dimension_numbers = #tpu.dot_dimension_numbers<[1], [0], [0], [1], [0, 0, 1, 1], [], []>} : vector<8x8xbf16>, vector<8x16xbf16>, vector<8x16xf32> -> vector<8x16xf32>
    %c59_276 = arith.constant 59 : index
    %c0_277 = arith.constant 0 : index
    %c8_278 = arith.constant 8 : index
    %474 = vector.load %arg2[%c59_276, %c0_277, %c8_278] : memref<122x32x32xbf16, #tpu.memory_space<vmem>>, vector<1x8x16xbf16>
    %475 = vector.shape_cast %474 : vector<1x8x16xbf16> to vector<8x16xbf16>
    %cst_279 = arith.constant dense<0.000000e+00> : vector<8x16xf32>
    %476 = tpu.matmul %475, %115, %cst_279 {dimension_numbers = #tpu.dot_dimension_numbers<[1], [0], [0], [1], [0, 0, 1, 1], [], []>} : vector<8x16xbf16>, vector<16x16xbf16>, vector<8x16xf32> -> vector<8x16xf32>
    %477 = arith.addf %473, %476 : vector<8x16xf32>
    %c11_280 = arith.constant 11 : index
    %c0_281 = arith.constant 0 : index
    %c0_282 = arith.constant 0 : index
    %478 = vector.load %arg3[%c11_280, %c0_281, %c0_282] : memref<26x32x1xf32, #tpu.memory_space<vmem>>, vector<1x8x1xf32>
    %479 = vector.shape_cast %478 : vector<1x8x1xf32> to vector<8x1xf32>
    %480 = vector.broadcast %479 : vector<8x1xf32> to vector<8x16xf32>
    %481 = arith.addf %477, %480 : vector<8x16xf32>
    %cst_283 = arith.constant 0.000000e+00 : f32
    %482 = vector.broadcast %cst_283 : f32 to vector<8x16xf32>
    %483 = arith.cmpf ogt, %481, %482 : vector<8x16xf32>
    %cst_284 = arith.constant 1.000000e-01 : f32
    %484 = vector.broadcast %cst_284 : f32 to vector<8x16xf32>
    %485 = arith.mulf %484, %481 : vector<8x16xf32>
    %486 = arith.select %483, %481, %485 : vector<8x16xi1>, vector<8x16xf32>
    %487 = arith.truncf %486 : vector<8x16xf32> to vector<8x16xbf16>
    %c0_285 = arith.constant 0 : index
    %c0_286 = arith.constant 0 : index
    %488 = vector.load %arg8[%c0_285, %c0_286] : memref<16x144xbf16, #tpu.memory_space<vmem>>, vector<16x144xbf16>
    %cst_287 = arith.constant dense<0.000000e+00> : vector<8x144xf32>
    %489 = tpu.matmul %487, %488, %cst_287 {dimension_numbers = #tpu.dot_dimension_numbers<[1], [0], [0], [1], [0, 0, 1, 1], [], []>} : vector<8x16xbf16>, vector<16x144xbf16>, vector<8x144xf32> -> vector<8x144xf32>
    %490 = arith.truncf %489 : vector<8x144xf32> to vector<8x144xbf16>
    %c60 = arith.constant 60 : index
    %c0_288 = arith.constant 0 : index
    %c0_289 = arith.constant 0 : index
    %491 = vector.load %arg2[%c60, %c0_288, %c0_289] : memref<122x32x32xbf16, #tpu.memory_space<vmem>>, vector<1x16x8xbf16>
    %492 = vector.shape_cast %491 : vector<1x16x8xbf16> to vector<16x8xbf16>
    %493 = vector.extract_strided_slice %490 {offsets = [0, 0], sizes = [8, 16], strides = [1, 1]} : vector<8x144xbf16> to vector<8x16xbf16>
    %cst_290 = arith.constant dense<0.000000e+00> : vector<16x16xf32>
    %494 = tpu.matmul %492, %493, %cst_290 {dimension_numbers = #tpu.dot_dimension_numbers<[1], [0], [0], [1], [0, 0, 1, 1], [], []>} : vector<16x8xbf16>, vector<8x16xbf16>, vector<16x16xf32> -> vector<16x16xf32>
    %c61 = arith.constant 61 : index
    %c0_291 = arith.constant 0 : index
    %c0_292 = arith.constant 0 : index
    %495 = vector.load %arg2[%c61, %c0_291, %c0_292] : memref<122x32x32xbf16, #tpu.memory_space<vmem>>, vector<1x16x8xbf16>
    %496 = vector.shape_cast %495 : vector<1x16x8xbf16> to vector<16x8xbf16>
    %497 = vector.extract_strided_slice %490 {offsets = [0, 16], sizes = [8, 16], strides = [1, 1]} : vector<8x144xbf16> to vector<8x16xbf16>
    %cst_293 = arith.constant dense<0.000000e+00> : vector<16x16xf32>
    %498 = tpu.matmul %496, %497, %cst_293 {dimension_numbers = #tpu.dot_dimension_numbers<[1], [0], [0], [1], [0, 0, 1, 1], [], []>} : vector<16x8xbf16>, vector<8x16xbf16>, vector<16x16xf32> -> vector<16x16xf32>
    %499 = arith.addf %494, %498 : vector<16x16xf32>
    %c62 = arith.constant 62 : index
    %c0_294 = arith.constant 0 : index
    %c0_295 = arith.constant 0 : index
    %500 = vector.load %arg2[%c62, %c0_294, %c0_295] : memref<122x32x32xbf16, #tpu.memory_space<vmem>>, vector<1x16x8xbf16>
    %501 = vector.shape_cast %500 : vector<1x16x8xbf16> to vector<16x8xbf16>
    %502 = vector.extract_strided_slice %490 {offsets = [0, 32], sizes = [8, 16], strides = [1, 1]} : vector<8x144xbf16> to vector<8x16xbf16>
    %cst_296 = arith.constant dense<0.000000e+00> : vector<16x16xf32>
    %503 = tpu.matmul %501, %502, %cst_296 {dimension_numbers = #tpu.dot_dimension_numbers<[1], [0], [0], [1], [0, 0, 1, 1], [], []>} : vector<16x8xbf16>, vector<8x16xbf16>, vector<16x16xf32> -> vector<16x16xf32>
    %504 = arith.addf %499, %503 : vector<16x16xf32>
    %c63 = arith.constant 63 : index
    %c0_297 = arith.constant 0 : index
    %c0_298 = arith.constant 0 : index
    %505 = vector.load %arg2[%c63, %c0_297, %c0_298] : memref<122x32x32xbf16, #tpu.memory_space<vmem>>, vector<1x16x8xbf16>
    %506 = vector.shape_cast %505 : vector<1x16x8xbf16> to vector<16x8xbf16>
    %507 = vector.extract_strided_slice %490 {offsets = [0, 48], sizes = [8, 16], strides = [1, 1]} : vector<8x144xbf16> to vector<8x16xbf16>
    %cst_299 = arith.constant dense<0.000000e+00> : vector<16x16xf32>
    %508 = tpu.matmul %506, %507, %cst_299 {dimension_numbers = #tpu.dot_dimension_numbers<[1], [0], [0], [1], [0, 0, 1, 1], [], []>} : vector<16x8xbf16>, vector<8x16xbf16>, vector<16x16xf32> -> vector<16x16xf32>
    %509 = arith.addf %504, %508 : vector<16x16xf32>
    %c64 = arith.constant 64 : index
    %c0_300 = arith.constant 0 : index
    %c0_301 = arith.constant 0 : index
    %510 = vector.load %arg2[%c64, %c0_300, %c0_301] : memref<122x32x32xbf16, #tpu.memory_space<vmem>>, vector<1x16x8xbf16>
    %511 = vector.shape_cast %510 : vector<1x16x8xbf16> to vector<16x8xbf16>
    %512 = vector.extract_strided_slice %490 {offsets = [0, 64], sizes = [8, 16], strides = [1, 1]} : vector<8x144xbf16> to vector<8x16xbf16>
    %cst_302 = arith.constant dense<0.000000e+00> : vector<16x16xf32>
    %513 = tpu.matmul %511, %512, %cst_302 {dimension_numbers = #tpu.dot_dimension_numbers<[1], [0], [0], [1], [0, 0, 1, 1], [], []>} : vector<16x8xbf16>, vector<8x16xbf16>, vector<16x16xf32> -> vector<16x16xf32>
    %514 = arith.addf %509, %513 : vector<16x16xf32>
    %c65 = arith.constant 65 : index
    %c0_303 = arith.constant 0 : index
    %c0_304 = arith.constant 0 : index
    %515 = vector.load %arg2[%c65, %c0_303, %c0_304] : memref<122x32x32xbf16, #tpu.memory_space<vmem>>, vector<1x16x8xbf16>
    %516 = vector.shape_cast %515 : vector<1x16x8xbf16> to vector<16x8xbf16>
    %517 = vector.extract_strided_slice %490 {offsets = [0, 80], sizes = [8, 16], strides = [1, 1]} : vector<8x144xbf16> to vector<8x16xbf16>
    %cst_305 = arith.constant dense<0.000000e+00> : vector<16x16xf32>
    %518 = tpu.matmul %516, %517, %cst_305 {dimension_numbers = #tpu.dot_dimension_numbers<[1], [0], [0], [1], [0, 0, 1, 1], [], []>} : vector<16x8xbf16>, vector<8x16xbf16>, vector<16x16xf32> -> vector<16x16xf32>
    %519 = arith.addf %514, %518 : vector<16x16xf32>
    %c66 = arith.constant 66 : index
    %c0_306 = arith.constant 0 : index
    %c0_307 = arith.constant 0 : index
    %520 = vector.load %arg2[%c66, %c0_306, %c0_307] : memref<122x32x32xbf16, #tpu.memory_space<vmem>>, vector<1x16x8xbf16>
    %521 = vector.shape_cast %520 : vector<1x16x8xbf16> to vector<16x8xbf16>
    %522 = vector.extract_strided_slice %490 {offsets = [0, 96], sizes = [8, 16], strides = [1, 1]} : vector<8x144xbf16> to vector<8x16xbf16>
    %cst_308 = arith.constant dense<0.000000e+00> : vector<16x16xf32>
    %523 = tpu.matmul %521, %522, %cst_308 {dimension_numbers = #tpu.dot_dimension_numbers<[1], [0], [0], [1], [0, 0, 1, 1], [], []>} : vector<16x8xbf16>, vector<8x16xbf16>, vector<16x16xf32> -> vector<16x16xf32>
    %524 = arith.addf %519, %523 : vector<16x16xf32>
    %c67 = arith.constant 67 : index
    %c0_309 = arith.constant 0 : index
    %c0_310 = arith.constant 0 : index
    %525 = vector.load %arg2[%c67, %c0_309, %c0_310] : memref<122x32x32xbf16, #tpu.memory_space<vmem>>, vector<1x16x8xbf16>
    %526 = vector.shape_cast %525 : vector<1x16x8xbf16> to vector<16x8xbf16>
    %527 = vector.extract_strided_slice %490 {offsets = [0, 112], sizes = [8, 16], strides = [1, 1]} : vector<8x144xbf16> to vector<8x16xbf16>
    %cst_311 = arith.constant dense<0.000000e+00> : vector<16x16xf32>
    %528 = tpu.matmul %526, %527, %cst_311 {dimension_numbers = #tpu.dot_dimension_numbers<[1], [0], [0], [1], [0, 0, 1, 1], [], []>} : vector<16x8xbf16>, vector<8x16xbf16>, vector<16x16xf32> -> vector<16x16xf32>
    %529 = arith.addf %524, %528 : vector<16x16xf32>
    %c68 = arith.constant 68 : index
    %c0_312 = arith.constant 0 : index
    %c0_313 = arith.constant 0 : index
    %530 = vector.load %arg2[%c68, %c0_312, %c0_313] : memref<122x32x32xbf16, #tpu.memory_space<vmem>>, vector<1x16x8xbf16>
    %531 = vector.shape_cast %530 : vector<1x16x8xbf16> to vector<16x8xbf16>
    %532 = vector.extract_strided_slice %490 {offsets = [0, 128], sizes = [8, 16], strides = [1, 1]} : vector<8x144xbf16> to vector<8x16xbf16>
    %cst_314 = arith.constant dense<0.000000e+00> : vector<16x16xf32>
    %533 = tpu.matmul %531, %532, %cst_314 {dimension_numbers = #tpu.dot_dimension_numbers<[1], [0], [0], [1], [0, 0, 1, 1], [], []>} : vector<16x8xbf16>, vector<8x16xbf16>, vector<16x16xf32> -> vector<16x16xf32>
    %534 = arith.addf %529, %533 : vector<16x16xf32>
    %c12_315 = arith.constant 12 : index
    %c0_316 = arith.constant 0 : index
    %c0_317 = arith.constant 0 : index
    %535 = vector.load %arg3[%c12_315, %c0_316, %c0_317] : memref<26x32x1xf32, #tpu.memory_space<vmem>>, vector<1x16x1xf32>
    %536 = vector.shape_cast %535 : vector<1x16x1xf32> to vector<16x1xf32>
    %537 = vector.broadcast %536 : vector<16x1xf32> to vector<16x16xf32>
    %538 = arith.addf %534, %537 : vector<16x16xf32>
    %cst_318 = arith.constant 0.000000e+00 : f32
    %539 = vector.broadcast %cst_318 : f32 to vector<16x16xf32>
    %540 = arith.cmpf ogt, %538, %539 : vector<16x16xf32>
    %cst_319 = arith.constant 1.000000e-01 : f32
    %541 = vector.broadcast %cst_319 : f32 to vector<16x16xf32>
    %542 = arith.mulf %541, %538 : vector<16x16xf32>
    %543 = arith.select %540, %538, %542 : vector<16x16xi1>, vector<16x16xf32>
    %544 = arith.truncf %543 : vector<16x16xf32> to vector<16x16xbf16>
    %c69 = arith.constant 69 : index
    %c0_320 = arith.constant 0 : index
    %c0_321 = arith.constant 0 : index
    %545 = vector.load %arg2[%c69, %c0_320, %c0_321] : memref<122x32x32xbf16, #tpu.memory_space<vmem>>, vector<1x8x16xbf16>
    %546 = vector.shape_cast %545 : vector<1x8x16xbf16> to vector<8x16xbf16>
    %cst_322 = arith.constant dense<0.000000e+00> : vector<8x16xf32>
    %547 = tpu.matmul %546, %544, %cst_322 {dimension_numbers = #tpu.dot_dimension_numbers<[1], [0], [0], [1], [0, 0, 1, 1], [], []>} : vector<8x16xbf16>, vector<16x16xbf16>, vector<8x16xf32> -> vector<8x16xf32>
    %c13_323 = arith.constant 13 : index
    %c0_324 = arith.constant 0 : index
    %c0_325 = arith.constant 0 : index
    %548 = vector.load %arg3[%c13_323, %c0_324, %c0_325] : memref<26x32x1xf32, #tpu.memory_space<vmem>>, vector<1x8x1xf32>
    %549 = vector.shape_cast %548 : vector<1x8x1xf32> to vector<8x1xf32>
    %550 = vector.broadcast %549 : vector<8x1xf32> to vector<8x16xf32>
    %551 = arith.addf %547, %550 : vector<8x16xf32>
    %cst_326 = arith.constant 0.000000e+00 : f32
    %552 = vector.broadcast %cst_326 : f32 to vector<8x16xf32>
    %553 = arith.cmpf ogt, %551, %552 : vector<8x16xf32>
    %cst_327 = arith.constant 1.000000e-01 : f32
    %554 = vector.broadcast %cst_327 : f32 to vector<8x16xf32>
    %555 = arith.mulf %554, %551 : vector<8x16xf32>
    %556 = arith.select %553, %551, %555 : vector<8x16xi1>, vector<8x16xf32>
    %557 = arith.truncf %556 : vector<8x16xf32> to vector<8x16xbf16>
    %c0_328 = arith.constant 0 : index
    %c0_329 = arith.constant 0 : index
    %558 = vector.load %arg8[%c0_328, %c0_329] : memref<16x144xbf16, #tpu.memory_space<vmem>>, vector<16x144xbf16>
    %cst_330 = arith.constant dense<0.000000e+00> : vector<8x144xf32>
    %559 = tpu.matmul %557, %558, %cst_330 {dimension_numbers = #tpu.dot_dimension_numbers<[1], [0], [0], [1], [0, 0, 1, 1], [], []>} : vector<8x16xbf16>, vector<16x144xbf16>, vector<8x144xf32> -> vector<8x144xf32>
    %560 = arith.truncf %559 : vector<8x144xf32> to vector<8x144xbf16>
    %c70 = arith.constant 70 : index
    %c0_331 = arith.constant 0 : index
    %c0_332 = arith.constant 0 : index
    %561 = vector.load %arg2[%c70, %c0_331, %c0_332] : memref<122x32x32xbf16, #tpu.memory_space<vmem>>, vector<1x16x8xbf16>
    %562 = vector.shape_cast %561 : vector<1x16x8xbf16> to vector<16x8xbf16>
    %563 = vector.extract_strided_slice %560 {offsets = [0, 0], sizes = [8, 16], strides = [1, 1]} : vector<8x144xbf16> to vector<8x16xbf16>
    %cst_333 = arith.constant dense<0.000000e+00> : vector<16x16xf32>
    %564 = tpu.matmul %562, %563, %cst_333 {dimension_numbers = #tpu.dot_dimension_numbers<[1], [0], [0], [1], [0, 0, 1, 1], [], []>} : vector<16x8xbf16>, vector<8x16xbf16>, vector<16x16xf32> -> vector<16x16xf32>
    %c71 = arith.constant 71 : index
    %c0_334 = arith.constant 0 : index
    %c0_335 = arith.constant 0 : index
    %565 = vector.load %arg2[%c71, %c0_334, %c0_335] : memref<122x32x32xbf16, #tpu.memory_space<vmem>>, vector<1x16x8xbf16>
    %566 = vector.shape_cast %565 : vector<1x16x8xbf16> to vector<16x8xbf16>
    %567 = vector.extract_strided_slice %560 {offsets = [0, 16], sizes = [8, 16], strides = [1, 1]} : vector<8x144xbf16> to vector<8x16xbf16>
    %cst_336 = arith.constant dense<0.000000e+00> : vector<16x16xf32>
    %568 = tpu.matmul %566, %567, %cst_336 {dimension_numbers = #tpu.dot_dimension_numbers<[1], [0], [0], [1], [0, 0, 1, 1], [], []>} : vector<16x8xbf16>, vector<8x16xbf16>, vector<16x16xf32> -> vector<16x16xf32>
    %569 = arith.addf %564, %568 : vector<16x16xf32>
    %c72 = arith.constant 72 : index
    %c0_337 = arith.constant 0 : index
    %c0_338 = arith.constant 0 : index
    %570 = vector.load %arg2[%c72, %c0_337, %c0_338] : memref<122x32x32xbf16, #tpu.memory_space<vmem>>, vector<1x16x8xbf16>
    %571 = vector.shape_cast %570 : vector<1x16x8xbf16> to vector<16x8xbf16>
    %572 = vector.extract_strided_slice %560 {offsets = [0, 32], sizes = [8, 16], strides = [1, 1]} : vector<8x144xbf16> to vector<8x16xbf16>
    %cst_339 = arith.constant dense<0.000000e+00> : vector<16x16xf32>
    %573 = tpu.matmul %571, %572, %cst_339 {dimension_numbers = #tpu.dot_dimension_numbers<[1], [0], [0], [1], [0, 0, 1, 1], [], []>} : vector<16x8xbf16>, vector<8x16xbf16>, vector<16x16xf32> -> vector<16x16xf32>
    %574 = arith.addf %569, %573 : vector<16x16xf32>
    %c73 = arith.constant 73 : index
    %c0_340 = arith.constant 0 : index
    %c0_341 = arith.constant 0 : index
    %575 = vector.load %arg2[%c73, %c0_340, %c0_341] : memref<122x32x32xbf16, #tpu.memory_space<vmem>>, vector<1x16x8xbf16>
    %576 = vector.shape_cast %575 : vector<1x16x8xbf16> to vector<16x8xbf16>
    %577 = vector.extract_strided_slice %560 {offsets = [0, 48], sizes = [8, 16], strides = [1, 1]} : vector<8x144xbf16> to vector<8x16xbf16>
    %cst_342 = arith.constant dense<0.000000e+00> : vector<16x16xf32>
    %578 = tpu.matmul %576, %577, %cst_342 {dimension_numbers = #tpu.dot_dimension_numbers<[1], [0], [0], [1], [0, 0, 1, 1], [], []>} : vector<16x8xbf16>, vector<8x16xbf16>, vector<16x16xf32> -> vector<16x16xf32>
    %579 = arith.addf %574, %578 : vector<16x16xf32>
    %c74 = arith.constant 74 : index
    %c0_343 = arith.constant 0 : index
    %c0_344 = arith.constant 0 : index
    %580 = vector.load %arg2[%c74, %c0_343, %c0_344] : memref<122x32x32xbf16, #tpu.memory_space<vmem>>, vector<1x16x8xbf16>
    %581 = vector.shape_cast %580 : vector<1x16x8xbf16> to vector<16x8xbf16>
    %582 = vector.extract_strided_slice %560 {offsets = [0, 64], sizes = [8, 16], strides = [1, 1]} : vector<8x144xbf16> to vector<8x16xbf16>
    %cst_345 = arith.constant dense<0.000000e+00> : vector<16x16xf32>
    %583 = tpu.matmul %581, %582, %cst_345 {dimension_numbers = #tpu.dot_dimension_numbers<[1], [0], [0], [1], [0, 0, 1, 1], [], []>} : vector<16x8xbf16>, vector<8x16xbf16>, vector<16x16xf32> -> vector<16x16xf32>
    %584 = arith.addf %579, %583 : vector<16x16xf32>
    %c75 = arith.constant 75 : index
    %c0_346 = arith.constant 0 : index
    %c0_347 = arith.constant 0 : index
    %585 = vector.load %arg2[%c75, %c0_346, %c0_347] : memref<122x32x32xbf16, #tpu.memory_space<vmem>>, vector<1x16x8xbf16>
    %586 = vector.shape_cast %585 : vector<1x16x8xbf16> to vector<16x8xbf16>
    %587 = vector.extract_strided_slice %560 {offsets = [0, 80], sizes = [8, 16], strides = [1, 1]} : vector<8x144xbf16> to vector<8x16xbf16>
    %cst_348 = arith.constant dense<0.000000e+00> : vector<16x16xf32>
    %588 = tpu.matmul %586, %587, %cst_348 {dimension_numbers = #tpu.dot_dimension_numbers<[1], [0], [0], [1], [0, 0, 1, 1], [], []>} : vector<16x8xbf16>, vector<8x16xbf16>, vector<16x16xf32> -> vector<16x16xf32>
    %589 = arith.addf %584, %588 : vector<16x16xf32>
    %c76 = arith.constant 76 : index
    %c0_349 = arith.constant 0 : index
    %c0_350 = arith.constant 0 : index
    %590 = vector.load %arg2[%c76, %c0_349, %c0_350] : memref<122x32x32xbf16, #tpu.memory_space<vmem>>, vector<1x16x8xbf16>
    %591 = vector.shape_cast %590 : vector<1x16x8xbf16> to vector<16x8xbf16>
    %592 = vector.extract_strided_slice %560 {offsets = [0, 96], sizes = [8, 16], strides = [1, 1]} : vector<8x144xbf16> to vector<8x16xbf16>
    %cst_351 = arith.constant dense<0.000000e+00> : vector<16x16xf32>
    %593 = tpu.matmul %591, %592, %cst_351 {dimension_numbers = #tpu.dot_dimension_numbers<[1], [0], [0], [1], [0, 0, 1, 1], [], []>} : vector<16x8xbf16>, vector<8x16xbf16>, vector<16x16xf32> -> vector<16x16xf32>
    %594 = arith.addf %589, %593 : vector<16x16xf32>
    %c77 = arith.constant 77 : index
    %c0_352 = arith.constant 0 : index
    %c0_353 = arith.constant 0 : index
    %595 = vector.load %arg2[%c77, %c0_352, %c0_353] : memref<122x32x32xbf16, #tpu.memory_space<vmem>>, vector<1x16x8xbf16>
    %596 = vector.shape_cast %595 : vector<1x16x8xbf16> to vector<16x8xbf16>
    %597 = vector.extract_strided_slice %560 {offsets = [0, 112], sizes = [8, 16], strides = [1, 1]} : vector<8x144xbf16> to vector<8x16xbf16>
    %cst_354 = arith.constant dense<0.000000e+00> : vector<16x16xf32>
    %598 = tpu.matmul %596, %597, %cst_354 {dimension_numbers = #tpu.dot_dimension_numbers<[1], [0], [0], [1], [0, 0, 1, 1], [], []>} : vector<16x8xbf16>, vector<8x16xbf16>, vector<16x16xf32> -> vector<16x16xf32>
    %599 = arith.addf %594, %598 : vector<16x16xf32>
    %c78 = arith.constant 78 : index
    %c0_355 = arith.constant 0 : index
    %c0_356 = arith.constant 0 : index
    %600 = vector.load %arg2[%c78, %c0_355, %c0_356] : memref<122x32x32xbf16, #tpu.memory_space<vmem>>, vector<1x16x8xbf16>
    %601 = vector.shape_cast %600 : vector<1x16x8xbf16> to vector<16x8xbf16>
    %602 = vector.extract_strided_slice %560 {offsets = [0, 128], sizes = [8, 16], strides = [1, 1]} : vector<8x144xbf16> to vector<8x16xbf16>
    %cst_357 = arith.constant dense<0.000000e+00> : vector<16x16xf32>
    %603 = tpu.matmul %601, %602, %cst_357 {dimension_numbers = #tpu.dot_dimension_numbers<[1], [0], [0], [1], [0, 0, 1, 1], [], []>} : vector<16x8xbf16>, vector<8x16xbf16>, vector<16x16xf32> -> vector<16x16xf32>
    %604 = arith.addf %599, %603 : vector<16x16xf32>
    %c14_358 = arith.constant 14 : index
    %c0_359 = arith.constant 0 : index
    %c0_360 = arith.constant 0 : index
    %605 = vector.load %arg3[%c14_358, %c0_359, %c0_360] : memref<26x32x1xf32, #tpu.memory_space<vmem>>, vector<1x16x1xf32>
    %606 = vector.shape_cast %605 : vector<1x16x1xf32> to vector<16x1xf32>
    %607 = vector.broadcast %606 : vector<16x1xf32> to vector<16x16xf32>
    %608 = arith.addf %604, %607 : vector<16x16xf32>
    %cst_361 = arith.constant 0.000000e+00 : f32
    %609 = vector.broadcast %cst_361 : f32 to vector<16x16xf32>
    %610 = arith.cmpf ogt, %608, %609 : vector<16x16xf32>
    %cst_362 = arith.constant 1.000000e-01 : f32
    %611 = vector.broadcast %cst_362 : f32 to vector<16x16xf32>
    %612 = arith.mulf %611, %608 : vector<16x16xf32>
    %613 = arith.select %610, %608, %612 : vector<16x16xi1>, vector<16x16xf32>
    %614 = arith.truncf %613 : vector<16x16xf32> to vector<16x16xbf16>
    %c79 = arith.constant 79 : index
    %c0_363 = arith.constant 0 : index
    %c0_364 = arith.constant 0 : index
    %615 = vector.load %arg2[%c79, %c0_363, %c0_364] : memref<122x32x32xbf16, #tpu.memory_space<vmem>>, vector<1x8x16xbf16>
    %616 = vector.shape_cast %615 : vector<1x8x16xbf16> to vector<8x16xbf16>
    %cst_365 = arith.constant dense<0.000000e+00> : vector<8x16xf32>
    %617 = tpu.matmul %616, %614, %cst_365 {dimension_numbers = #tpu.dot_dimension_numbers<[1], [0], [0], [1], [0, 0, 1, 1], [], []>} : vector<8x16xbf16>, vector<16x16xbf16>, vector<8x16xf32> -> vector<8x16xf32>
    %c15_366 = arith.constant 15 : index
    %c0_367 = arith.constant 0 : index
    %c0_368 = arith.constant 0 : index
    %618 = vector.load %arg3[%c15_366, %c0_367, %c0_368] : memref<26x32x1xf32, #tpu.memory_space<vmem>>, vector<1x8x1xf32>
    %619 = vector.shape_cast %618 : vector<1x8x1xf32> to vector<8x1xf32>
    %620 = vector.broadcast %619 : vector<8x1xf32> to vector<8x16xf32>
    %621 = arith.addf %617, %620 : vector<8x16xf32>
    %cst_369 = arith.constant 0.000000e+00 : f32
    %622 = vector.broadcast %cst_369 : f32 to vector<8x16xf32>
    %623 = arith.cmpf ogt, %621, %622 : vector<8x16xf32>
    %cst_370 = arith.constant 1.000000e-01 : f32
    %624 = vector.broadcast %cst_370 : f32 to vector<8x16xf32>
    %625 = arith.mulf %624, %621 : vector<8x16xf32>
    %626 = arith.select %623, %621, %625 : vector<8x16xi1>, vector<8x16xf32>
    %627 = arith.truncf %626 : vector<8x16xf32> to vector<8x16xbf16>
    %c0_371 = arith.constant 0 : index
    %c0_372 = arith.constant 0 : index
    %628 = vector.load %arg8[%c0_371, %c0_372] : memref<16x144xbf16, #tpu.memory_space<vmem>>, vector<16x144xbf16>
    %cst_373 = arith.constant dense<0.000000e+00> : vector<8x144xf32>
    %629 = tpu.matmul %627, %628, %cst_373 {dimension_numbers = #tpu.dot_dimension_numbers<[1], [0], [0], [1], [0, 0, 1, 1], [], []>} : vector<8x16xbf16>, vector<16x144xbf16>, vector<8x144xf32> -> vector<8x144xf32>
    %630 = arith.truncf %629 : vector<8x144xf32> to vector<8x144xbf16>
    %c80 = arith.constant 80 : index
    %c0_374 = arith.constant 0 : index
    %c0_375 = arith.constant 0 : index
    %631 = vector.load %arg2[%c80, %c0_374, %c0_375] : memref<122x32x32xbf16, #tpu.memory_space<vmem>>, vector<1x16x8xbf16>
    %632 = vector.shape_cast %631 : vector<1x16x8xbf16> to vector<16x8xbf16>
    %633 = vector.extract_strided_slice %630 {offsets = [0, 0], sizes = [8, 16], strides = [1, 1]} : vector<8x144xbf16> to vector<8x16xbf16>
    %cst_376 = arith.constant dense<0.000000e+00> : vector<16x16xf32>
    %634 = tpu.matmul %632, %633, %cst_376 {dimension_numbers = #tpu.dot_dimension_numbers<[1], [0], [0], [1], [0, 0, 1, 1], [], []>} : vector<16x8xbf16>, vector<8x16xbf16>, vector<16x16xf32> -> vector<16x16xf32>
    %c81 = arith.constant 81 : index
    %c0_377 = arith.constant 0 : index
    %c0_378 = arith.constant 0 : index
    %635 = vector.load %arg2[%c81, %c0_377, %c0_378] : memref<122x32x32xbf16, #tpu.memory_space<vmem>>, vector<1x16x8xbf16>
    %636 = vector.shape_cast %635 : vector<1x16x8xbf16> to vector<16x8xbf16>
    %637 = vector.extract_strided_slice %630 {offsets = [0, 16], sizes = [8, 16], strides = [1, 1]} : vector<8x144xbf16> to vector<8x16xbf16>
    %cst_379 = arith.constant dense<0.000000e+00> : vector<16x16xf32>
    %638 = tpu.matmul %636, %637, %cst_379 {dimension_numbers = #tpu.dot_dimension_numbers<[1], [0], [0], [1], [0, 0, 1, 1], [], []>} : vector<16x8xbf16>, vector<8x16xbf16>, vector<16x16xf32> -> vector<16x16xf32>
    %639 = arith.addf %634, %638 : vector<16x16xf32>
    %c82 = arith.constant 82 : index
    %c0_380 = arith.constant 0 : index
    %c0_381 = arith.constant 0 : index
    %640 = vector.load %arg2[%c82, %c0_380, %c0_381] : memref<122x32x32xbf16, #tpu.memory_space<vmem>>, vector<1x16x8xbf16>
    %641 = vector.shape_cast %640 : vector<1x16x8xbf16> to vector<16x8xbf16>
    %642 = vector.extract_strided_slice %630 {offsets = [0, 32], sizes = [8, 16], strides = [1, 1]} : vector<8x144xbf16> to vector<8x16xbf16>
    %cst_382 = arith.constant dense<0.000000e+00> : vector<16x16xf32>
    %643 = tpu.matmul %641, %642, %cst_382 {dimension_numbers = #tpu.dot_dimension_numbers<[1], [0], [0], [1], [0, 0, 1, 1], [], []>} : vector<16x8xbf16>, vector<8x16xbf16>, vector<16x16xf32> -> vector<16x16xf32>
    %644 = arith.addf %639, %643 : vector<16x16xf32>
    %c83 = arith.constant 83 : index
    %c0_383 = arith.constant 0 : index
    %c0_384 = arith.constant 0 : index
    %645 = vector.load %arg2[%c83, %c0_383, %c0_384] : memref<122x32x32xbf16, #tpu.memory_space<vmem>>, vector<1x16x8xbf16>
    %646 = vector.shape_cast %645 : vector<1x16x8xbf16> to vector<16x8xbf16>
    %647 = vector.extract_strided_slice %630 {offsets = [0, 48], sizes = [8, 16], strides = [1, 1]} : vector<8x144xbf16> to vector<8x16xbf16>
    %cst_385 = arith.constant dense<0.000000e+00> : vector<16x16xf32>
    %648 = tpu.matmul %646, %647, %cst_385 {dimension_numbers = #tpu.dot_dimension_numbers<[1], [0], [0], [1], [0, 0, 1, 1], [], []>} : vector<16x8xbf16>, vector<8x16xbf16>, vector<16x16xf32> -> vector<16x16xf32>
    %649 = arith.addf %644, %648 : vector<16x16xf32>
    %c84 = arith.constant 84 : index
    %c0_386 = arith.constant 0 : index
    %c0_387 = arith.constant 0 : index
    %650 = vector.load %arg2[%c84, %c0_386, %c0_387] : memref<122x32x32xbf16, #tpu.memory_space<vmem>>, vector<1x16x8xbf16>
    %651 = vector.shape_cast %650 : vector<1x16x8xbf16> to vector<16x8xbf16>
    %652 = vector.extract_strided_slice %630 {offsets = [0, 64], sizes = [8, 16], strides = [1, 1]} : vector<8x144xbf16> to vector<8x16xbf16>
    %cst_388 = arith.constant dense<0.000000e+00> : vector<16x16xf32>
    %653 = tpu.matmul %651, %652, %cst_388 {dimension_numbers = #tpu.dot_dimension_numbers<[1], [0], [0], [1], [0, 0, 1, 1], [], []>} : vector<16x8xbf16>, vector<8x16xbf16>, vector<16x16xf32> -> vector<16x16xf32>
    %654 = arith.addf %649, %653 : vector<16x16xf32>
    %c85 = arith.constant 85 : index
    %c0_389 = arith.constant 0 : index
    %c0_390 = arith.constant 0 : index
    %655 = vector.load %arg2[%c85, %c0_389, %c0_390] : memref<122x32x32xbf16, #tpu.memory_space<vmem>>, vector<1x16x8xbf16>
    %656 = vector.shape_cast %655 : vector<1x16x8xbf16> to vector<16x8xbf16>
    %657 = vector.extract_strided_slice %630 {offsets = [0, 80], sizes = [8, 16], strides = [1, 1]} : vector<8x144xbf16> to vector<8x16xbf16>
    %cst_391 = arith.constant dense<0.000000e+00> : vector<16x16xf32>
    %658 = tpu.matmul %656, %657, %cst_391 {dimension_numbers = #tpu.dot_dimension_numbers<[1], [0], [0], [1], [0, 0, 1, 1], [], []>} : vector<16x8xbf16>, vector<8x16xbf16>, vector<16x16xf32> -> vector<16x16xf32>
    %659 = arith.addf %654, %658 : vector<16x16xf32>
    %c86 = arith.constant 86 : index
    %c0_392 = arith.constant 0 : index
    %c0_393 = arith.constant 0 : index
    %660 = vector.load %arg2[%c86, %c0_392, %c0_393] : memref<122x32x32xbf16, #tpu.memory_space<vmem>>, vector<1x16x8xbf16>
    %661 = vector.shape_cast %660 : vector<1x16x8xbf16> to vector<16x8xbf16>
    %662 = vector.extract_strided_slice %630 {offsets = [0, 96], sizes = [8, 16], strides = [1, 1]} : vector<8x144xbf16> to vector<8x16xbf16>
    %cst_394 = arith.constant dense<0.000000e+00> : vector<16x16xf32>
    %663 = tpu.matmul %661, %662, %cst_394 {dimension_numbers = #tpu.dot_dimension_numbers<[1], [0], [0], [1], [0, 0, 1, 1], [], []>} : vector<16x8xbf16>, vector<8x16xbf16>, vector<16x16xf32> -> vector<16x16xf32>
    %664 = arith.addf %659, %663 : vector<16x16xf32>
    %c87 = arith.constant 87 : index
    %c0_395 = arith.constant 0 : index
    %c0_396 = arith.constant 0 : index
    %665 = vector.load %arg2[%c87, %c0_395, %c0_396] : memref<122x32x32xbf16, #tpu.memory_space<vmem>>, vector<1x16x8xbf16>
    %666 = vector.shape_cast %665 : vector<1x16x8xbf16> to vector<16x8xbf16>
    %667 = vector.extract_strided_slice %630 {offsets = [0, 112], sizes = [8, 16], strides = [1, 1]} : vector<8x144xbf16> to vector<8x16xbf16>
    %cst_397 = arith.constant dense<0.000000e+00> : vector<16x16xf32>
    %668 = tpu.matmul %666, %667, %cst_397 {dimension_numbers = #tpu.dot_dimension_numbers<[1], [0], [0], [1], [0, 0, 1, 1], [], []>} : vector<16x8xbf16>, vector<8x16xbf16>, vector<16x16xf32> -> vector<16x16xf32>
    %669 = arith.addf %664, %668 : vector<16x16xf32>
    %c88 = arith.constant 88 : index
    %c0_398 = arith.constant 0 : index
    %c0_399 = arith.constant 0 : index
    %670 = vector.load %arg2[%c88, %c0_398, %c0_399] : memref<122x32x32xbf16, #tpu.memory_space<vmem>>, vector<1x16x8xbf16>
    %671 = vector.shape_cast %670 : vector<1x16x8xbf16> to vector<16x8xbf16>
    %672 = vector.extract_strided_slice %630 {offsets = [0, 128], sizes = [8, 16], strides = [1, 1]} : vector<8x144xbf16> to vector<8x16xbf16>
    %cst_400 = arith.constant dense<0.000000e+00> : vector<16x16xf32>
    %673 = tpu.matmul %671, %672, %cst_400 {dimension_numbers = #tpu.dot_dimension_numbers<[1], [0], [0], [1], [0, 0, 1, 1], [], []>} : vector<16x8xbf16>, vector<8x16xbf16>, vector<16x16xf32> -> vector<16x16xf32>
    %674 = arith.addf %669, %673 : vector<16x16xf32>
    %c16_401 = arith.constant 16 : index
    %c0_402 = arith.constant 0 : index
    %c0_403 = arith.constant 0 : index
    %675 = vector.load %arg3[%c16_401, %c0_402, %c0_403] : memref<26x32x1xf32, #tpu.memory_space<vmem>>, vector<1x16x1xf32>
    %676 = vector.shape_cast %675 : vector<1x16x1xf32> to vector<16x1xf32>
    %677 = vector.broadcast %676 : vector<16x1xf32> to vector<16x16xf32>
    %678 = arith.addf %674, %677 : vector<16x16xf32>
    %cst_404 = arith.constant 0.000000e+00 : f32
    %679 = vector.broadcast %cst_404 : f32 to vector<16x16xf32>
    %680 = arith.cmpf ogt, %678, %679 : vector<16x16xf32>
    %cst_405 = arith.constant 1.000000e-01 : f32
    %681 = vector.broadcast %cst_405 : f32 to vector<16x16xf32>
    %682 = arith.mulf %681, %678 : vector<16x16xf32>
    %683 = arith.select %680, %678, %682 : vector<16x16xi1>, vector<16x16xf32>
    %684 = arith.truncf %683 : vector<16x16xf32> to vector<16x16xbf16>
    %c89 = arith.constant 89 : index
    %c0_406 = arith.constant 0 : index
    %c0_407 = arith.constant 0 : index
    %685 = vector.load %arg2[%c89, %c0_406, %c0_407] : memref<122x32x32xbf16, #tpu.memory_space<vmem>>, vector<1x24x16xbf16>
    %686 = vector.shape_cast %685 : vector<1x24x16xbf16> to vector<24x16xbf16>
    %cst_408 = arith.constant dense<0.000000e+00> : vector<24x16xf32>
    %687 = tpu.matmul %686, %684, %cst_408 {dimension_numbers = #tpu.dot_dimension_numbers<[1], [0], [0], [1], [0, 0, 1, 1], [], []>} : vector<24x16xbf16>, vector<16x16xbf16>, vector<24x16xf32> -> vector<24x16xf32>
    %c17_409 = arith.constant 17 : index
    %c0_410 = arith.constant 0 : index
    %c0_411 = arith.constant 0 : index
    %688 = vector.load %arg3[%c17_409, %c0_410, %c0_411] : memref<26x32x1xf32, #tpu.memory_space<vmem>>, vector<1x24x1xf32>
    %689 = vector.shape_cast %688 : vector<1x24x1xf32> to vector<24x1xf32>
    %690 = vector.broadcast %689 : vector<24x1xf32> to vector<24x16xf32>
    %691 = arith.addf %687, %690 : vector<24x16xf32>
    %c2_412 = arith.constant 2 : index
    %c0_413 = arith.constant 0 : index
    %692 = vector.load %arg12[%c2_412, %c0_413] : memref<8x128xf32, #tpu.memory_space<vmem>>, vector<1x16xf32>
    %c3_414 = arith.constant 3 : index
    %c0_415 = arith.constant 0 : index
    %693 = vector.load %arg12[%c3_414, %c0_415] : memref<8x128xf32, #tpu.memory_space<vmem>>, vector<1x16xf32>
    %694 = vector.extract_strided_slice %691 {offsets = [0, 0], sizes = [6, 16], strides = [1, 1]} : vector<24x16xf32> to vector<6x16xf32>
    %cst_416 = arith.constant 5.000000e-01 : f32
    %695 = vector.broadcast %cst_416 : f32 to vector<6x16xf32>
    %696 = arith.mulf %695, %694 : vector<6x16xf32>
    %697 = math.tanh %696 : vector<6x16xf32>
    %cst_417 = arith.constant 1.000000e+00 : f32
    %698 = vector.broadcast %cst_417 : f32 to vector<6x16xf32>
    %699 = arith.addf %697, %698 : vector<6x16xf32>
    %cst_418 = arith.constant 5.000000e-01 : f32
    %700 = vector.broadcast %cst_418 : f32 to vector<6x16xf32>
    %701 = arith.mulf %700, %699 : vector<6x16xf32>
    %702 = vector.extract_strided_slice %701 {offsets = [0, 0], sizes = [3, 16], strides = [1, 1]} : vector<6x16xf32> to vector<3x16xf32>
    %cst_419 = arith.constant 4.000000e+00 : f32
    %703 = vector.broadcast %cst_419 : f32 to vector<3x16xf32>
    %704 = arith.mulf %702, %703 : vector<3x16xf32>
    %705 = vector.broadcast %692 : vector<1x16xf32> to vector<3x16xf32>
    %706 = arith.addf %704, %705 : vector<3x16xf32>
    %707 = vector.extract_strided_slice %701 {offsets = [3, 0], sizes = [3, 16], strides = [1, 1]} : vector<6x16xf32> to vector<3x16xf32>
    %cst_420 = arith.constant 4.000000e+00 : f32
    %708 = vector.broadcast %cst_420 : f32 to vector<3x16xf32>
    %709 = arith.mulf %707, %708 : vector<3x16xf32>
    %710 = vector.broadcast %693 : vector<1x16xf32> to vector<3x16xf32>
    %711 = arith.addf %709, %710 : vector<3x16xf32>
    %712 = vector.extract_strided_slice %691 {offsets = [6, 0], sizes = [6, 16], strides = [1, 1]} : vector<24x16xf32> to vector<6x16xf32>
    %713 = math.exp %712 : vector<6x16xf32>
    %714 = vector.extract_strided_slice %713 {offsets = [0, 0], sizes = [3, 16], strides = [1, 1]} : vector<6x16xf32> to vector<3x16xf32>
    %715 = vector.extract_strided_slice %713 {offsets = [3, 0], sizes = [3, 16], strides = [1, 1]} : vector<6x16xf32> to vector<3x16xf32>
    %716 = vector.extract_strided_slice %691 {offsets = [12, 0], sizes = [3, 16], strides = [1, 1]} : vector<24x16xf32> to vector<3x16xf32>
    %cst_421 = arith.constant 5.000000e-01 : f32
    %717 = vector.broadcast %cst_421 : f32 to vector<3x16xf32>
    %718 = arith.mulf %717, %716 : vector<3x16xf32>
    %719 = math.tanh %718 : vector<3x16xf32>
    %cst_422 = arith.constant 1.000000e+00 : f32
    %720 = vector.broadcast %cst_422 : f32 to vector<3x16xf32>
    %721 = arith.addf %719, %720 : vector<3x16xf32>
    %cst_423 = arith.constant 5.000000e-01 : f32
    %722 = vector.broadcast %cst_423 : f32 to vector<3x16xf32>
    %723 = arith.mulf %722, %721 : vector<3x16xf32>
    %724 = vector.extract_strided_slice %691 {offsets = [15, 0], sizes = [9, 16], strides = [1, 1]} : vector<24x16xf32> to vector<9x16xf32>
    %cst_424 = arith.constant 5.000000e-01 : f32
    %725 = vector.broadcast %cst_424 : f32 to vector<9x16xf32>
    %726 = arith.mulf %725, %724 : vector<9x16xf32>
    %727 = math.tanh %726 : vector<9x16xf32>
    %cst_425 = arith.constant 1.000000e+00 : f32
    %728 = vector.broadcast %cst_425 : f32 to vector<9x16xf32>
    %729 = arith.addf %727, %728 : vector<9x16xf32>
    %cst_426 = arith.constant 5.000000e-01 : f32
    %730 = vector.broadcast %cst_426 : f32 to vector<9x16xf32>
    %731 = arith.mulf %730, %729 : vector<9x16xf32>
    %732 = vector.extract_strided_slice %731 {offsets = [0, 0], sizes = [3, 16], strides = [1, 1]} : vector<9x16xf32> to vector<3x16xf32>
    %733 = vector.extract_strided_slice %723 {offsets = [0, 0], sizes = [1, 16], strides = [1, 1]} : vector<3x16xf32> to vector<1x16xf32>
    %734 = vector.broadcast %733 : vector<1x16xf32> to vector<3x16xf32>
    %735 = arith.mulf %732, %734 : vector<3x16xf32>
    %736 = vector.extract_strided_slice %731 {offsets = [3, 0], sizes = [3, 16], strides = [1, 1]} : vector<9x16xf32> to vector<3x16xf32>
    %737 = vector.extract_strided_slice %723 {offsets = [1, 0], sizes = [1, 16], strides = [1, 1]} : vector<3x16xf32> to vector<1x16xf32>
    %738 = vector.broadcast %737 : vector<1x16xf32> to vector<3x16xf32>
    %739 = arith.mulf %736, %738 : vector<3x16xf32>
    %740 = vector.extract_strided_slice %731 {offsets = [6, 0], sizes = [3, 16], strides = [1, 1]} : vector<9x16xf32> to vector<3x16xf32>
    %741 = vector.extract_strided_slice %723 {offsets = [2, 0], sizes = [1, 16], strides = [1, 1]} : vector<3x16xf32> to vector<1x16xf32>
    %742 = vector.broadcast %741 : vector<1x16xf32> to vector<3x16xf32>
    %743 = arith.mulf %740, %742 : vector<3x16xf32>
    %744 = tpu.concatenate %735, %739, %743 in 0 : vector<3x16xf32>, vector<3x16xf32>, vector<3x16xf32> -> vector<9x16xf32>
    %745 = arith.subf %706, %714 : vector<3x16xf32>
    %746 = arith.subf %711, %715 : vector<3x16xf32>
    %747 = arith.addf %706, %714 : vector<3x16xf32>
    %748 = arith.addf %711, %715 : vector<3x16xf32>
    %749 = tpu.concatenate %745, %746, %747, %748, %744 in 0 : vector<3x16xf32>, vector<3x16xf32>, vector<3x16xf32>, vector<3x16xf32>, vector<9x16xf32> -> vector<21x16xf32>
    %cst_427 = arith.constant 0.000000e+00 : f32
    %750 = vector.broadcast %cst_427 : f32 to vector<3x16xf32>
    %751 = tpu.concatenate %749, %750 in 0 : vector<21x16xf32>, vector<3x16xf32> -> vector<24x16xf32>
    %cst_428 = arith.constant 0.000000e+00 : f32
    %752 = vector.broadcast %cst_428 : f32 to vector<24x112xf32>
    %753 = tpu.concatenate %751, %752 in 1 : vector<24x16xf32>, vector<24x112xf32> -> vector<24x128xf32>
    %c0_429 = arith.constant 0 : index
    %c24_430 = arith.constant 24 : index
    %c0_431 = arith.constant 0 : index
    %754 = vector.load %arg13[%c0_429, %c24_430, %c0_431] : memref<1x72x128xf32, #tpu.memory_space<vmem>>, vector<1x24x128xf32>
    %755 = vector.shape_cast %754 : vector<1x24x128xf32> to vector<24x128xf32>
    %756 = vector.shape_cast %753 : vector<24x128xf32> to vector<1x24x128xf32>
    tpu.vector_store %arg13[%c0_429, %c24_430, %c0_431], %756 {strides = array<i32>} : memref<1x72x128xf32, #tpu.memory_space<vmem>>, vector<1x24x128xf32>,
    %c90 = arith.constant 90 : index
    %c0_432 = arith.constant 0 : index
    %c0_433 = arith.constant 0 : index
    %757 = vector.load %arg2[%c90, %c0_432, %c0_433] : memref<122x32x32xbf16, #tpu.memory_space<vmem>>, vector<1x4x8xbf16>
    %758 = vector.shape_cast %757 : vector<1x4x8xbf16> to vector<4x8xbf16>
    %cst_434 = arith.constant dense<0.000000e+00> : vector<4x16xf32>
    %759 = tpu.matmul %758, %627, %cst_434 {dimension_numbers = #tpu.dot_dimension_numbers<[1], [0], [0], [1], [0, 0, 1, 1], [], []>} : vector<4x8xbf16>, vector<8x16xbf16>, vector<4x16xf32> -> vector<4x16xf32>
    %c18_435 = arith.constant 18 : index
    %c0_436 = arith.constant 0 : index
    %c0_437 = arith.constant 0 : index
    %760 = vector.load %arg3[%c18_435, %c0_436, %c0_437] : memref<26x32x1xf32, #tpu.memory_space<vmem>>, vector<1x4x1xf32>
    %761 = vector.shape_cast %760 : vector<1x4x1xf32> to vector<4x1xf32>
    %762 = vector.broadcast %761 : vector<4x1xf32> to vector<4x16xf32>
    %763 = arith.addf %759, %762 : vector<4x16xf32>
    %cst_438 = arith.constant 0.000000e+00 : f32
    %764 = vector.broadcast %cst_438 : f32 to vector<4x16xf32>
    %765 = arith.cmpf ogt, %763, %764 : vector<4x16xf32>
    %cst_439 = arith.constant 1.000000e-01 : f32
    %766 = vector.broadcast %cst_439 : f32 to vector<4x16xf32>
    %767 = arith.mulf %766, %763 : vector<4x16xf32>
    %768 = arith.select %765, %763, %767 : vector<4x16xi1>, vector<4x16xf32>
    %769 = arith.truncf %768 : vector<4x16xf32> to vector<4x16xbf16>
    %c0_440 = arith.constant 0 : index
    %c0_441 = arith.constant 0 : index
    %770 = vector.load %arg11[%c0_440, %c0_441] : memref<16x64xbf16, #tpu.memory_space<vmem>>, vector<16x64xbf16>
    %cst_442 = arith.constant dense<0.000000e+00> : vector<4x64xf32>
    %771 = tpu.matmul %769, %770, %cst_442 {dimension_numbers = #tpu.dot_dimension_numbers<[1], [0], [0], [1], [0, 0, 1, 1], [], []>} : vector<4x16xbf16>, vector<16x64xbf16>, vector<4x64xf32> -> vector<4x64xf32>
    %772 = arith.truncf %771 : vector<4x64xf32> to vector<4x64xbf16>
    %c91 = arith.constant 91 : index
    %c0_443 = arith.constant 0 : index
    %c0_444 = arith.constant 0 : index
    %773 = vector.load %arg2[%c91, %c0_443, %c0_444] : memref<122x32x32xbf16, #tpu.memory_space<vmem>>, vector<1x4x4xbf16>
    %774 = vector.shape_cast %773 : vector<1x4x4xbf16> to vector<4x4xbf16>
    %cst_445 = arith.constant dense<0.000000e+00> : vector<4x64xf32>
    %775 = tpu.matmul %774, %772, %cst_445 {dimension_numbers = #tpu.dot_dimension_numbers<[1], [0], [0], [1], [0, 0, 1, 1], [], []>} : vector<4x4xbf16>, vector<4x64xbf16>, vector<4x64xf32> -> vector<4x64xf32>
    %c91_446 = arith.constant 91 : index
    %c0_447 = arith.constant 0 : index
    %c4_448 = arith.constant 4 : index
    %776 = vector.load %arg2[%c91_446, %c0_447, %c4_448] : memref<122x32x32xbf16, #tpu.memory_space<vmem>>, vector<1x4x8xbf16>
    %777 = vector.shape_cast %776 : vector<1x4x8xbf16> to vector<4x8xbf16>
    %cst_449 = arith.constant dense<0.000000e+00> : vector<4x64xf32>
    %778 = tpu.matmul %777, %58, %cst_449 {dimension_numbers = #tpu.dot_dimension_numbers<[1], [0], [0], [1], [0, 0, 1, 1], [], []>} : vector<4x8xbf16>, vector<8x64xbf16>, vector<4x64xf32> -> vector<4x64xf32>
    %779 = arith.addf %775, %778 : vector<4x64xf32>
    %c19_450 = arith.constant 19 : index
    %c0_451 = arith.constant 0 : index
    %c0_452 = arith.constant 0 : index
    %780 = vector.load %arg3[%c19_450, %c0_451, %c0_452] : memref<26x32x1xf32, #tpu.memory_space<vmem>>, vector<1x4x1xf32>
    %781 = vector.shape_cast %780 : vector<1x4x1xf32> to vector<4x1xf32>
    %782 = vector.broadcast %781 : vector<4x1xf32> to vector<4x64xf32>
    %783 = arith.addf %779, %782 : vector<4x64xf32>
    %cst_453 = arith.constant 0.000000e+00 : f32
    %784 = vector.broadcast %cst_453 : f32 to vector<4x64xf32>
    %785 = arith.cmpf ogt, %783, %784 : vector<4x64xf32>
    %cst_454 = arith.constant 1.000000e-01 : f32
    %786 = vector.broadcast %cst_454 : f32 to vector<4x64xf32>
    %787 = arith.mulf %786, %783 : vector<4x64xf32>
    %788 = arith.select %785, %783, %787 : vector<4x64xi1>, vector<4x64xf32>
    %789 = arith.truncf %788 : vector<4x64xf32> to vector<4x64xbf16>
    %c0_455 = arith.constant 0 : index
    %c0_456 = arith.constant 0 : index
    %790 = vector.load %arg9[%c0_455, %c0_456] : memref<64x576xbf16, #tpu.memory_space<vmem>>, vector<64x576xbf16>
    %cst_457 = arith.constant dense<0.000000e+00> : vector<4x576xf32>
    %791 = tpu.matmul %789, %790, %cst_457 {dimension_numbers = #tpu.dot_dimension_numbers<[1], [0], [0], [1], [0, 0, 1, 1], [], []>} : vector<4x64xbf16>, vector<64x576xbf16>, vector<4x576xf32> -> vector<4x576xf32>
    %792 = arith.truncf %791 : vector<4x576xf32> to vector<4x576xbf16>
    %c92 = arith.constant 92 : index
    %c0_458 = arith.constant 0 : index
    %c0_459 = arith.constant 0 : index
    %793 = vector.load %arg2[%c92, %c0_458, %c0_459] : memref<122x32x32xbf16, #tpu.memory_space<vmem>>, vector<1x8x4xbf16>
    %794 = vector.shape_cast %793 : vector<1x8x4xbf16> to vector<8x4xbf16>
    %795 = vector.extract_strided_slice %792 {offsets = [0, 0], sizes = [4, 64], strides = [1, 1]} : vector<4x576xbf16> to vector<4x64xbf16>
    %cst_460 = arith.constant dense<0.000000e+00> : vector<8x64xf32>
    %796 = tpu.matmul %794, %795, %cst_460 {dimension_numbers = #tpu.dot_dimension_numbers<[1], [0], [0], [1], [0, 0, 1, 1], [], []>} : vector<8x4xbf16>, vector<4x64xbf16>, vector<8x64xf32> -> vector<8x64xf32>
    %c93 = arith.constant 93 : index
    %c0_461 = arith.constant 0 : index
    %c0_462 = arith.constant 0 : index
    %797 = vector.load %arg2[%c93, %c0_461, %c0_462] : memref<122x32x32xbf16, #tpu.memory_space<vmem>>, vector<1x8x4xbf16>
    %798 = vector.shape_cast %797 : vector<1x8x4xbf16> to vector<8x4xbf16>
    %799 = vector.extract_strided_slice %792 {offsets = [0, 64], sizes = [4, 64], strides = [1, 1]} : vector<4x576xbf16> to vector<4x64xbf16>
    %cst_463 = arith.constant dense<0.000000e+00> : vector<8x64xf32>
    %800 = tpu.matmul %798, %799, %cst_463 {dimension_numbers = #tpu.dot_dimension_numbers<[1], [0], [0], [1], [0, 0, 1, 1], [], []>} : vector<8x4xbf16>, vector<4x64xbf16>, vector<8x64xf32> -> vector<8x64xf32>
    %801 = arith.addf %796, %800 : vector<8x64xf32>
    %c94 = arith.constant 94 : index
    %c0_464 = arith.constant 0 : index
    %c0_465 = arith.constant 0 : index
    %802 = vector.load %arg2[%c94, %c0_464, %c0_465] : memref<122x32x32xbf16, #tpu.memory_space<vmem>>, vector<1x8x4xbf16>
    %803 = vector.shape_cast %802 : vector<1x8x4xbf16> to vector<8x4xbf16>
    %804 = vector.extract_strided_slice %792 {offsets = [0, 128], sizes = [4, 64], strides = [1, 1]} : vector<4x576xbf16> to vector<4x64xbf16>
    %cst_466 = arith.constant dense<0.000000e+00> : vector<8x64xf32>
    %805 = tpu.matmul %803, %804, %cst_466 {dimension_numbers = #tpu.dot_dimension_numbers<[1], [0], [0], [1], [0, 0, 1, 1], [], []>} : vector<8x4xbf16>, vector<4x64xbf16>, vector<8x64xf32> -> vector<8x64xf32>
    %806 = arith.addf %801, %805 : vector<8x64xf32>
    %c95 = arith.constant 95 : index
    %c0_467 = arith.constant 0 : index
    %c0_468 = arith.constant 0 : index
    %807 = vector.load %arg2[%c95, %c0_467, %c0_468] : memref<122x32x32xbf16, #tpu.memory_space<vmem>>, vector<1x8x4xbf16>
    %808 = vector.shape_cast %807 : vector<1x8x4xbf16> to vector<8x4xbf16>
    %809 = vector.extract_strided_slice %792 {offsets = [0, 192], sizes = [4, 64], strides = [1, 1]} : vector<4x576xbf16> to vector<4x64xbf16>
    %cst_469 = arith.constant dense<0.000000e+00> : vector<8x64xf32>
    %810 = tpu.matmul %808, %809, %cst_469 {dimension_numbers = #tpu.dot_dimension_numbers<[1], [0], [0], [1], [0, 0, 1, 1], [], []>} : vector<8x4xbf16>, vector<4x64xbf16>, vector<8x64xf32> -> vector<8x64xf32>
    %811 = arith.addf %806, %810 : vector<8x64xf32>
    %c96 = arith.constant 96 : index
    %c0_470 = arith.constant 0 : index
    %c0_471 = arith.constant 0 : index
    %812 = vector.load %arg2[%c96, %c0_470, %c0_471] : memref<122x32x32xbf16, #tpu.memory_space<vmem>>, vector<1x8x4xbf16>
    %813 = vector.shape_cast %812 : vector<1x8x4xbf16> to vector<8x4xbf16>
    %814 = vector.extract_strided_slice %792 {offsets = [0, 256], sizes = [4, 64], strides = [1, 1]} : vector<4x576xbf16> to vector<4x64xbf16>
    %cst_472 = arith.constant dense<0.000000e+00> : vector<8x64xf32>
    %815 = tpu.matmul %813, %814, %cst_472 {dimension_numbers = #tpu.dot_dimension_numbers<[1], [0], [0], [1], [0, 0, 1, 1], [], []>} : vector<8x4xbf16>, vector<4x64xbf16>, vector<8x64xf32> -> vector<8x64xf32>
    %816 = arith.addf %811, %815 : vector<8x64xf32>
    %c97 = arith.constant 97 : index
    %c0_473 = arith.constant 0 : index
    %c0_474 = arith.constant 0 : index
    %817 = vector.load %arg2[%c97, %c0_473, %c0_474] : memref<122x32x32xbf16, #tpu.memory_space<vmem>>, vector<1x8x4xbf16>
    %818 = vector.shape_cast %817 : vector<1x8x4xbf16> to vector<8x4xbf16>
    %819 = vector.extract_strided_slice %792 {offsets = [0, 320], sizes = [4, 64], strides = [1, 1]} : vector<4x576xbf16> to vector<4x64xbf16>
    %cst_475 = arith.constant dense<0.000000e+00> : vector<8x64xf32>
    %820 = tpu.matmul %818, %819, %cst_475 {dimension_numbers = #tpu.dot_dimension_numbers<[1], [0], [0], [1], [0, 0, 1, 1], [], []>} : vector<8x4xbf16>, vector<4x64xbf16>, vector<8x64xf32> -> vector<8x64xf32>
    %821 = arith.addf %816, %820 : vector<8x64xf32>
    %c98 = arith.constant 98 : index
    %c0_476 = arith.constant 0 : index
    %c0_477 = arith.constant 0 : index
    %822 = vector.load %arg2[%c98, %c0_476, %c0_477] : memref<122x32x32xbf16, #tpu.memory_space<vmem>>, vector<1x8x4xbf16>
    %823 = vector.shape_cast %822 : vector<1x8x4xbf16> to vector<8x4xbf16>
    %824 = vector.extract_strided_slice %792 {offsets = [0, 384], sizes = [4, 64], strides = [1, 1]} : vector<4x576xbf16> to vector<4x64xbf16>
    %cst_478 = arith.constant dense<0.000000e+00> : vector<8x64xf32>
    %825 = tpu.matmul %823, %824, %cst_478 {dimension_numbers = #tpu.dot_dimension_numbers<[1], [0], [0], [1], [0, 0, 1, 1], [], []>} : vector<8x4xbf16>, vector<4x64xbf16>, vector<8x64xf32> -> vector<8x64xf32>
    %826 = arith.addf %821, %825 : vector<8x64xf32>
    %c99 = arith.constant 99 : index
    %c0_479 = arith.constant 0 : index
    %c0_480 = arith.constant 0 : index
    %827 = vector.load %arg2[%c99, %c0_479, %c0_480] : memref<122x32x32xbf16, #tpu.memory_space<vmem>>, vector<1x8x4xbf16>
    %828 = vector.shape_cast %827 : vector<1x8x4xbf16> to vector<8x4xbf16>
    %829 = vector.extract_strided_slice %792 {offsets = [0, 448], sizes = [4, 64], strides = [1, 1]} : vector<4x576xbf16> to vector<4x64xbf16>
    %cst_481 = arith.constant dense<0.000000e+00> : vector<8x64xf32>
    %830 = tpu.matmul %828, %829, %cst_481 {dimension_numbers = #tpu.dot_dimension_numbers<[1], [0], [0], [1], [0, 0, 1, 1], [], []>} : vector<8x4xbf16>, vector<4x64xbf16>, vector<8x64xf32> -> vector<8x64xf32>
    %831 = arith.addf %826, %830 : vector<8x64xf32>
    %c100 = arith.constant 100 : index
    %c0_482 = arith.constant 0 : index
    %c0_483 = arith.constant 0 : index
    %832 = vector.load %arg2[%c100, %c0_482, %c0_483] : memref<122x32x32xbf16, #tpu.memory_space<vmem>>, vector<1x8x4xbf16>
    %833 = vector.shape_cast %832 : vector<1x8x4xbf16> to vector<8x4xbf16>
    %834 = vector.extract_strided_slice %792 {offsets = [0, 512], sizes = [4, 64], strides = [1, 1]} : vector<4x576xbf16> to vector<4x64xbf16>
    %cst_484 = arith.constant dense<0.000000e+00> : vector<8x64xf32>
    %835 = tpu.matmul %833, %834, %cst_484 {dimension_numbers = #tpu.dot_dimension_numbers<[1], [0], [0], [1], [0, 0, 1, 1], [], []>} : vector<8x4xbf16>, vector<4x64xbf16>, vector<8x64xf32> -> vector<8x64xf32>
    %836 = arith.addf %831, %835 : vector<8x64xf32>
    %c20_485 = arith.constant 20 : index
    %c0_486 = arith.constant 0 : index
    %c0_487 = arith.constant 0 : index
    %837 = vector.load %arg3[%c20_485, %c0_486, %c0_487] : memref<26x32x1xf32, #tpu.memory_space<vmem>>, vector<1x8x1xf32>
    %838 = vector.shape_cast %837 : vector<1x8x1xf32> to vector<8x1xf32>
    %839 = vector.broadcast %838 : vector<8x1xf32> to vector<8x64xf32>
    %840 = arith.addf %836, %839 : vector<8x64xf32>
    %cst_488 = arith.constant 0.000000e+00 : f32
    %841 = vector.broadcast %cst_488 : f32 to vector<8x64xf32>
    %842 = arith.cmpf ogt, %840, %841 : vector<8x64xf32>
    %cst_489 = arith.constant 1.000000e-01 : f32
    %843 = vector.broadcast %cst_489 : f32 to vector<8x64xf32>
    %844 = arith.mulf %843, %840 : vector<8x64xf32>
    %845 = arith.select %842, %840, %844 : vector<8x64xi1>, vector<8x64xf32>
    %846 = arith.truncf %845 : vector<8x64xf32> to vector<8x64xbf16>
    %c101 = arith.constant 101 : index
    %c0_490 = arith.constant 0 : index
    %c0_491 = arith.constant 0 : index
    %847 = vector.load %arg2[%c101, %c0_490, %c0_491] : memref<122x32x32xbf16, #tpu.memory_space<vmem>>, vector<1x4x8xbf16>
    %848 = vector.shape_cast %847 : vector<1x4x8xbf16> to vector<4x8xbf16>
    %cst_492 = arith.constant dense<0.000000e+00> : vector<4x64xf32>
    %849 = tpu.matmul %848, %846, %cst_492 {dimension_numbers = #tpu.dot_dimension_numbers<[1], [0], [0], [1], [0, 0, 1, 1], [], []>} : vector<4x8xbf16>, vector<8x64xbf16>, vector<4x64xf32> -> vector<4x64xf32>
    %c21_493 = arith.constant 21 : index
    %c0_494 = arith.constant 0 : index
    %c0_495 = arith.constant 0 : index
    %850 = vector.load %arg3[%c21_493, %c0_494, %c0_495] : memref<26x32x1xf32, #tpu.memory_space<vmem>>, vector<1x4x1xf32>
    %851 = vector.shape_cast %850 : vector<1x4x1xf32> to vector<4x1xf32>
    %852 = vector.broadcast %851 : vector<4x1xf32> to vector<4x64xf32>
    %853 = arith.addf %849, %852 : vector<4x64xf32>
    %cst_496 = arith.constant 0.000000e+00 : f32
    %854 = vector.broadcast %cst_496 : f32 to vector<4x64xf32>
    %855 = arith.cmpf ogt, %853, %854 : vector<4x64xf32>
    %cst_497 = arith.constant 1.000000e-01 : f32
    %856 = vector.broadcast %cst_497 : f32 to vector<4x64xf32>
    %857 = arith.mulf %856, %853 : vector<4x64xf32>
    %858 = arith.select %855, %853, %857 : vector<4x64xi1>, vector<4x64xf32>
    %859 = arith.truncf %858 : vector<4x64xf32> to vector<4x64xbf16>
    %c0_498 = arith.constant 0 : index
    %c0_499 = arith.constant 0 : index
    %860 = vector.load %arg9[%c0_498, %c0_499] : memref<64x576xbf16, #tpu.memory_space<vmem>>, vector<64x576xbf16>
    %cst_500 = arith.constant dense<0.000000e+00> : vector<4x576xf32>
    %861 = tpu.matmul %859, %860, %cst_500 {dimension_numbers = #tpu.dot_dimension_numbers<[1], [0], [0], [1], [0, 0, 1, 1], [], []>} : vector<4x64xbf16>, vector<64x576xbf16>, vector<4x576xf32> -> vector<4x576xf32>
    %862 = arith.truncf %861 : vector<4x576xf32> to vector<4x576xbf16>
    %c102 = arith.constant 102 : index
    %c0_501 = arith.constant 0 : index
    %c0_502 = arith.constant 0 : index
    %863 = vector.load %arg2[%c102, %c0_501, %c0_502] : memref<122x32x32xbf16, #tpu.memory_space<vmem>>, vector<1x8x4xbf16>
    %864 = vector.shape_cast %863 : vector<1x8x4xbf16> to vector<8x4xbf16>
    %865 = vector.extract_strided_slice %862 {offsets = [0, 0], sizes = [4, 64], strides = [1, 1]} : vector<4x576xbf16> to vector<4x64xbf16>
    %cst_503 = arith.constant dense<0.000000e+00> : vector<8x64xf32>
    %866 = tpu.matmul %864, %865, %cst_503 {dimension_numbers = #tpu.dot_dimension_numbers<[1], [0], [0], [1], [0, 0, 1, 1], [], []>} : vector<8x4xbf16>, vector<4x64xbf16>, vector<8x64xf32> -> vector<8x64xf32>
    %c103 = arith.constant 103 : index
    %c0_504 = arith.constant 0 : index
    %c0_505 = arith.constant 0 : index
    %867 = vector.load %arg2[%c103, %c0_504, %c0_505] : memref<122x32x32xbf16, #tpu.memory_space<vmem>>, vector<1x8x4xbf16>
    %868 = vector.shape_cast %867 : vector<1x8x4xbf16> to vector<8x4xbf16>
    %869 = vector.extract_strided_slice %862 {offsets = [0, 64], sizes = [4, 64], strides = [1, 1]} : vector<4x576xbf16> to vector<4x64xbf16>
    %cst_506 = arith.constant dense<0.000000e+00> : vector<8x64xf32>
    %870 = tpu.matmul %868, %869, %cst_506 {dimension_numbers = #tpu.dot_dimension_numbers<[1], [0], [0], [1], [0, 0, 1, 1], [], []>} : vector<8x4xbf16>, vector<4x64xbf16>, vector<8x64xf32> -> vector<8x64xf32>
    %871 = arith.addf %866, %870 : vector<8x64xf32>
    %c104 = arith.constant 104 : index
    %c0_507 = arith.constant 0 : index
    %c0_508 = arith.constant 0 : index
    %872 = vector.load %arg2[%c104, %c0_507, %c0_508] : memref<122x32x32xbf16, #tpu.memory_space<vmem>>, vector<1x8x4xbf16>
    %873 = vector.shape_cast %872 : vector<1x8x4xbf16> to vector<8x4xbf16>
    %874 = vector.extract_strided_slice %862 {offsets = [0, 128], sizes = [4, 64], strides = [1, 1]} : vector<4x576xbf16> to vector<4x64xbf16>
    %cst_509 = arith.constant dense<0.000000e+00> : vector<8x64xf32>
    %875 = tpu.matmul %873, %874, %cst_509 {dimension_numbers = #tpu.dot_dimension_numbers<[1], [0], [0], [1], [0, 0, 1, 1], [], []>} : vector<8x4xbf16>, vector<4x64xbf16>, vector<8x64xf32> -> vector<8x64xf32>
    %876 = arith.addf %871, %875 : vector<8x64xf32>
    %c105 = arith.constant 105 : index
    %c0_510 = arith.constant 0 : index
    %c0_511 = arith.constant 0 : index
    %877 = vector.load %arg2[%c105, %c0_510, %c0_511] : memref<122x32x32xbf16, #tpu.memory_space<vmem>>, vector<1x8x4xbf16>
    %878 = vector.shape_cast %877 : vector<1x8x4xbf16> to vector<8x4xbf16>
    %879 = vector.extract_strided_slice %862 {offsets = [0, 192], sizes = [4, 64], strides = [1, 1]} : vector<4x576xbf16> to vector<4x64xbf16>
    %cst_512 = arith.constant dense<0.000000e+00> : vector<8x64xf32>
    %880 = tpu.matmul %878, %879, %cst_512 {dimension_numbers = #tpu.dot_dimension_numbers<[1], [0], [0], [1], [0, 0, 1, 1], [], []>} : vector<8x4xbf16>, vector<4x64xbf16>, vector<8x64xf32> -> vector<8x64xf32>
    %881 = arith.addf %876, %880 : vector<8x64xf32>
    %c106 = arith.constant 106 : index
    %c0_513 = arith.constant 0 : index
    %c0_514 = arith.constant 0 : index
    %882 = vector.load %arg2[%c106, %c0_513, %c0_514] : memref<122x32x32xbf16, #tpu.memory_space<vmem>>, vector<1x8x4xbf16>
    %883 = vector.shape_cast %882 : vector<1x8x4xbf16> to vector<8x4xbf16>
    %884 = vector.extract_strided_slice %862 {offsets = [0, 256], sizes = [4, 64], strides = [1, 1]} : vector<4x576xbf16> to vector<4x64xbf16>
    %cst_515 = arith.constant dense<0.000000e+00> : vector<8x64xf32>
    %885 = tpu.matmul %883, %884, %cst_515 {dimension_numbers = #tpu.dot_dimension_numbers<[1], [0], [0], [1], [0, 0, 1, 1], [], []>} : vector<8x4xbf16>, vector<4x64xbf16>, vector<8x64xf32> -> vector<8x64xf32>
    %886 = arith.addf %881, %885 : vector<8x64xf32>
    %c107 = arith.constant 107 : index
    %c0_516 = arith.constant 0 : index
    %c0_517 = arith.constant 0 : index
    %887 = vector.load %arg2[%c107, %c0_516, %c0_517] : memref<122x32x32xbf16, #tpu.memory_space<vmem>>, vector<1x8x4xbf16>
    %888 = vector.shape_cast %887 : vector<1x8x4xbf16> to vector<8x4xbf16>
    %889 = vector.extract_strided_slice %862 {offsets = [0, 320], sizes = [4, 64], strides = [1, 1]} : vector<4x576xbf16> to vector<4x64xbf16>
    %cst_518 = arith.constant dense<0.000000e+00> : vector<8x64xf32>
    %890 = tpu.matmul %888, %889, %cst_518 {dimension_numbers = #tpu.dot_dimension_numbers<[1], [0], [0], [1], [0, 0, 1, 1], [], []>} : vector<8x4xbf16>, vector<4x64xbf16>, vector<8x64xf32> -> vector<8x64xf32>
    %891 = arith.addf %886, %890 : vector<8x64xf32>
    %c108 = arith.constant 108 : index
    %c0_519 = arith.constant 0 : index
    %c0_520 = arith.constant 0 : index
    %892 = vector.load %arg2[%c108, %c0_519, %c0_520] : memref<122x32x32xbf16, #tpu.memory_space<vmem>>, vector<1x8x4xbf16>
    %893 = vector.shape_cast %892 : vector<1x8x4xbf16> to vector<8x4xbf16>
    %894 = vector.extract_strided_slice %862 {offsets = [0, 384], sizes = [4, 64], strides = [1, 1]} : vector<4x576xbf16> to vector<4x64xbf16>
    %cst_521 = arith.constant dense<0.000000e+00> : vector<8x64xf32>
    %895 = tpu.matmul %893, %894, %cst_521 {dimension_numbers = #tpu.dot_dimension_numbers<[1], [0], [0], [1], [0, 0, 1, 1], [], []>} : vector<8x4xbf16>, vector<4x64xbf16>, vector<8x64xf32> -> vector<8x64xf32>
    %896 = arith.addf %891, %895 : vector<8x64xf32>
    %c109 = arith.constant 109 : index
    %c0_522 = arith.constant 0 : index
    %c0_523 = arith.constant 0 : index
    %897 = vector.load %arg2[%c109, %c0_522, %c0_523] : memref<122x32x32xbf16, #tpu.memory_space<vmem>>, vector<1x8x4xbf16>
    %898 = vector.shape_cast %897 : vector<1x8x4xbf16> to vector<8x4xbf16>
    %899 = vector.extract_strided_slice %862 {offsets = [0, 448], sizes = [4, 64], strides = [1, 1]} : vector<4x576xbf16> to vector<4x64xbf16>
    %cst_524 = arith.constant dense<0.000000e+00> : vector<8x64xf32>
    %900 = tpu.matmul %898, %899, %cst_524 {dimension_numbers = #tpu.dot_dimension_numbers<[1], [0], [0], [1], [0, 0, 1, 1], [], []>} : vector<8x4xbf16>, vector<4x64xbf16>, vector<8x64xf32> -> vector<8x64xf32>
    %901 = arith.addf %896, %900 : vector<8x64xf32>
    %c110 = arith.constant 110 : index
    %c0_525 = arith.constant 0 : index
    %c0_526 = arith.constant 0 : index
    %902 = vector.load %arg2[%c110, %c0_525, %c0_526] : memref<122x32x32xbf16, #tpu.memory_space<vmem>>, vector<1x8x4xbf16>
    %903 = vector.shape_cast %902 : vector<1x8x4xbf16> to vector<8x4xbf16>
    %904 = vector.extract_strided_slice %862 {offsets = [0, 512], sizes = [4, 64], strides = [1, 1]} : vector<4x576xbf16> to vector<4x64xbf16>
    %cst_527 = arith.constant dense<0.000000e+00> : vector<8x64xf32>
    %905 = tpu.matmul %903, %904, %cst_527 {dimension_numbers = #tpu.dot_dimension_numbers<[1], [0], [0], [1], [0, 0, 1, 1], [], []>} : vector<8x4xbf16>, vector<4x64xbf16>, vector<8x64xf32> -> vector<8x64xf32>
    %906 = arith.addf %901, %905 : vector<8x64xf32>
    %c22_528 = arith.constant 22 : index
    %c0_529 = arith.constant 0 : index
    %c0_530 = arith.constant 0 : index
    %907 = vector.load %arg3[%c22_528, %c0_529, %c0_530] : memref<26x32x1xf32, #tpu.memory_space<vmem>>, vector<1x8x1xf32>
    %908 = vector.shape_cast %907 : vector<1x8x1xf32> to vector<8x1xf32>
    %909 = vector.broadcast %908 : vector<8x1xf32> to vector<8x64xf32>
    %910 = arith.addf %906, %909 : vector<8x64xf32>
    %cst_531 = arith.constant 0.000000e+00 : f32
    %911 = vector.broadcast %cst_531 : f32 to vector<8x64xf32>
    %912 = arith.cmpf ogt, %910, %911 : vector<8x64xf32>
    %cst_532 = arith.constant 1.000000e-01 : f32
    %913 = vector.broadcast %cst_532 : f32 to vector<8x64xf32>
    %914 = arith.mulf %913, %910 : vector<8x64xf32>
    %915 = arith.select %912, %910, %914 : vector<8x64xi1>, vector<8x64xf32>
    %916 = arith.truncf %915 : vector<8x64xf32> to vector<8x64xbf16>
    %c111 = arith.constant 111 : index
    %c0_533 = arith.constant 0 : index
    %c0_534 = arith.constant 0 : index
    %917 = vector.load %arg2[%c111, %c0_533, %c0_534] : memref<122x32x32xbf16, #tpu.memory_space<vmem>>, vector<1x4x8xbf16>
    %918 = vector.shape_cast %917 : vector<1x4x8xbf16> to vector<4x8xbf16>
    %cst_535 = arith.constant dense<0.000000e+00> : vector<4x64xf32>
    %919 = tpu.matmul %918, %916, %cst_535 {dimension_numbers = #tpu.dot_dimension_numbers<[1], [0], [0], [1], [0, 0, 1, 1], [], []>} : vector<4x8xbf16>, vector<8x64xbf16>, vector<4x64xf32> -> vector<4x64xf32>
    %c23_536 = arith.constant 23 : index
    %c0_537 = arith.constant 0 : index
    %c0_538 = arith.constant 0 : index
    %920 = vector.load %arg3[%c23_536, %c0_537, %c0_538] : memref<26x32x1xf32, #tpu.memory_space<vmem>>, vector<1x4x1xf32>
    %921 = vector.shape_cast %920 : vector<1x4x1xf32> to vector<4x1xf32>
    %922 = vector.broadcast %921 : vector<4x1xf32> to vector<4x64xf32>
    %923 = arith.addf %919, %922 : vector<4x64xf32>
    %cst_539 = arith.constant 0.000000e+00 : f32
    %924 = vector.broadcast %cst_539 : f32 to vector<4x64xf32>
    %925 = arith.cmpf ogt, %923, %924 : vector<4x64xf32>
    %cst_540 = arith.constant 1.000000e-01 : f32
    %926 = vector.broadcast %cst_540 : f32 to vector<4x64xf32>
    %927 = arith.mulf %926, %923 : vector<4x64xf32>
    %928 = arith.select %925, %923, %927 : vector<4x64xi1>, vector<4x64xf32>
    %929 = arith.truncf %928 : vector<4x64xf32> to vector<4x64xbf16>
    %c0_541 = arith.constant 0 : index
    %c0_542 = arith.constant 0 : index
    %930 = vector.load %arg9[%c0_541, %c0_542] : memref<64x576xbf16, #tpu.memory_space<vmem>>, vector<64x576xbf16>
    %cst_543 = arith.constant dense<0.000000e+00> : vector<4x576xf32>
    %931 = tpu.matmul %929, %930, %cst_543 {dimension_numbers = #tpu.dot_dimension_numbers<[1], [0], [0], [1], [0, 0, 1, 1], [], []>} : vector<4x64xbf16>, vector<64x576xbf16>, vector<4x576xf32> -> vector<4x576xf32>
    %932 = arith.truncf %931 : vector<4x576xf32> to vector<4x576xbf16>
    %c112 = arith.constant 112 : index
    %c0_544 = arith.constant 0 : index
    %c0_545 = arith.constant 0 : index
    %933 = vector.load %arg2[%c112, %c0_544, %c0_545] : memref<122x32x32xbf16, #tpu.memory_space<vmem>>, vector<1x8x4xbf16>
    %934 = vector.shape_cast %933 : vector<1x8x4xbf16> to vector<8x4xbf16>
    %935 = vector.extract_strided_slice %932 {offsets = [0, 0], sizes = [4, 64], strides = [1, 1]} : vector<4x576xbf16> to vector<4x64xbf16>
    %cst_546 = arith.constant dense<0.000000e+00> : vector<8x64xf32>
    %936 = tpu.matmul %934, %935, %cst_546 {dimension_numbers = #tpu.dot_dimension_numbers<[1], [0], [0], [1], [0, 0, 1, 1], [], []>} : vector<8x4xbf16>, vector<4x64xbf16>, vector<8x64xf32> -> vector<8x64xf32>
    %c113 = arith.constant 113 : index
    %c0_547 = arith.constant 0 : index
    %c0_548 = arith.constant 0 : index
    %937 = vector.load %arg2[%c113, %c0_547, %c0_548] : memref<122x32x32xbf16, #tpu.memory_space<vmem>>, vector<1x8x4xbf16>
    %938 = vector.shape_cast %937 : vector<1x8x4xbf16> to vector<8x4xbf16>
    %939 = vector.extract_strided_slice %932 {offsets = [0, 64], sizes = [4, 64], strides = [1, 1]} : vector<4x576xbf16> to vector<4x64xbf16>
    %cst_549 = arith.constant dense<0.000000e+00> : vector<8x64xf32>
    %940 = tpu.matmul %938, %939, %cst_549 {dimension_numbers = #tpu.dot_dimension_numbers<[1], [0], [0], [1], [0, 0, 1, 1], [], []>} : vector<8x4xbf16>, vector<4x64xbf16>, vector<8x64xf32> -> vector<8x64xf32>
    %941 = arith.addf %936, %940 : vector<8x64xf32>
    %c114 = arith.constant 114 : index
    %c0_550 = arith.constant 0 : index
    %c0_551 = arith.constant 0 : index
    %942 = vector.load %arg2[%c114, %c0_550, %c0_551] : memref<122x32x32xbf16, #tpu.memory_space<vmem>>, vector<1x8x4xbf16>
    %943 = vector.shape_cast %942 : vector<1x8x4xbf16> to vector<8x4xbf16>
    %944 = vector.extract_strided_slice %932 {offsets = [0, 128], sizes = [4, 64], strides = [1, 1]} : vector<4x576xbf16> to vector<4x64xbf16>
    %cst_552 = arith.constant dense<0.000000e+00> : vector<8x64xf32>
    %945 = tpu.matmul %943, %944, %cst_552 {dimension_numbers = #tpu.dot_dimension_numbers<[1], [0], [0], [1], [0, 0, 1, 1], [], []>} : vector<8x4xbf16>, vector<4x64xbf16>, vector<8x64xf32> -> vector<8x64xf32>
    %946 = arith.addf %941, %945 : vector<8x64xf32>
    %c115 = arith.constant 115 : index
    %c0_553 = arith.constant 0 : index
    %c0_554 = arith.constant 0 : index
    %947 = vector.load %arg2[%c115, %c0_553, %c0_554] : memref<122x32x32xbf16, #tpu.memory_space<vmem>>, vector<1x8x4xbf16>
    %948 = vector.shape_cast %947 : vector<1x8x4xbf16> to vector<8x4xbf16>
    %949 = vector.extract_strided_slice %932 {offsets = [0, 192], sizes = [4, 64], strides = [1, 1]} : vector<4x576xbf16> to vector<4x64xbf16>
    %cst_555 = arith.constant dense<0.000000e+00> : vector<8x64xf32>
    %950 = tpu.matmul %948, %949, %cst_555 {dimension_numbers = #tpu.dot_dimension_numbers<[1], [0], [0], [1], [0, 0, 1, 1], [], []>} : vector<8x4xbf16>, vector<4x64xbf16>, vector<8x64xf32> -> vector<8x64xf32>
    %951 = arith.addf %946, %950 : vector<8x64xf32>
    %c116 = arith.constant 116 : index
    %c0_556 = arith.constant 0 : index
    %c0_557 = arith.constant 0 : index
    %952 = vector.load %arg2[%c116, %c0_556, %c0_557] : memref<122x32x32xbf16, #tpu.memory_space<vmem>>, vector<1x8x4xbf16>
    %953 = vector.shape_cast %952 : vector<1x8x4xbf16> to vector<8x4xbf16>
    %954 = vector.extract_strided_slice %932 {offsets = [0, 256], sizes = [4, 64], strides = [1, 1]} : vector<4x576xbf16> to vector<4x64xbf16>
    %cst_558 = arith.constant dense<0.000000e+00> : vector<8x64xf32>
    %955 = tpu.matmul %953, %954, %cst_558 {dimension_numbers = #tpu.dot_dimension_numbers<[1], [0], [0], [1], [0, 0, 1, 1], [], []>} : vector<8x4xbf16>, vector<4x64xbf16>, vector<8x64xf32> -> vector<8x64xf32>
    %956 = arith.addf %951, %955 : vector<8x64xf32>
    %c117 = arith.constant 117 : index
    %c0_559 = arith.constant 0 : index
    %c0_560 = arith.constant 0 : index
    %957 = vector.load %arg2[%c117, %c0_559, %c0_560] : memref<122x32x32xbf16, #tpu.memory_space<vmem>>, vector<1x8x4xbf16>
    %958 = vector.shape_cast %957 : vector<1x8x4xbf16> to vector<8x4xbf16>
    %959 = vector.extract_strided_slice %932 {offsets = [0, 320], sizes = [4, 64], strides = [1, 1]} : vector<4x576xbf16> to vector<4x64xbf16>
    %cst_561 = arith.constant dense<0.000000e+00> : vector<8x64xf32>
    %960 = tpu.matmul %958, %959, %cst_561 {dimension_numbers = #tpu.dot_dimension_numbers<[1], [0], [0], [1], [0, 0, 1, 1], [], []>} : vector<8x4xbf16>, vector<4x64xbf16>, vector<8x64xf32> -> vector<8x64xf32>
    %961 = arith.addf %956, %960 : vector<8x64xf32>
    %c118 = arith.constant 118 : index
    %c0_562 = arith.constant 0 : index
    %c0_563 = arith.constant 0 : index
    %962 = vector.load %arg2[%c118, %c0_562, %c0_563] : memref<122x32x32xbf16, #tpu.memory_space<vmem>>, vector<1x8x4xbf16>
    %963 = vector.shape_cast %962 : vector<1x8x4xbf16> to vector<8x4xbf16>
    %964 = vector.extract_strided_slice %932 {offsets = [0, 384], sizes = [4, 64], strides = [1, 1]} : vector<4x576xbf16> to vector<4x64xbf16>
    %cst_564 = arith.constant dense<0.000000e+00> : vector<8x64xf32>
    %965 = tpu.matmul %963, %964, %cst_564 {dimension_numbers = #tpu.dot_dimension_numbers<[1], [0], [0], [1], [0, 0, 1, 1], [], []>} : vector<8x4xbf16>, vector<4x64xbf16>, vector<8x64xf32> -> vector<8x64xf32>
    %966 = arith.addf %961, %965 : vector<8x64xf32>
    %c119 = arith.constant 119 : index
    %c0_565 = arith.constant 0 : index
    %c0_566 = arith.constant 0 : index
    %967 = vector.load %arg2[%c119, %c0_565, %c0_566] : memref<122x32x32xbf16, #tpu.memory_space<vmem>>, vector<1x8x4xbf16>
    %968 = vector.shape_cast %967 : vector<1x8x4xbf16> to vector<8x4xbf16>
    %969 = vector.extract_strided_slice %932 {offsets = [0, 448], sizes = [4, 64], strides = [1, 1]} : vector<4x576xbf16> to vector<4x64xbf16>
    %cst_567 = arith.constant dense<0.000000e+00> : vector<8x64xf32>
    %970 = tpu.matmul %968, %969, %cst_567 {dimension_numbers = #tpu.dot_dimension_numbers<[1], [0], [0], [1], [0, 0, 1, 1], [], []>} : vector<8x4xbf16>, vector<4x64xbf16>, vector<8x64xf32> -> vector<8x64xf32>
    %971 = arith.addf %966, %970 : vector<8x64xf32>
    %c120 = arith.constant 120 : index
    %c0_568 = arith.constant 0 : index
    %c0_569 = arith.constant 0 : index
    %972 = vector.load %arg2[%c120, %c0_568, %c0_569] : memref<122x32x32xbf16, #tpu.memory_space<vmem>>, vector<1x8x4xbf16>
    %973 = vector.shape_cast %972 : vector<1x8x4xbf16> to vector<8x4xbf16>
    %974 = vector.extract_strided_slice %932 {offsets = [0, 512], sizes = [4, 64], strides = [1, 1]} : vector<4x576xbf16> to vector<4x64xbf16>
    %cst_570 = arith.constant dense<0.000000e+00> : vector<8x64xf32>
    %975 = tpu.matmul %973, %974, %cst_570 {dimension_numbers = #tpu.dot_dimension_numbers<[1], [0], [0], [1], [0, 0, 1, 1], [], []>} : vector<8x4xbf16>, vector<4x64xbf16>, vector<8x64xf32> -> vector<8x64xf32>
    %976 = arith.addf %971, %975 : vector<8x64xf32>
    %c24_571 = arith.constant 24 : index
    %c0_572 = arith.constant 0 : index
    %c0_573 = arith.constant 0 : index
    %977 = vector.load %arg3[%c24_571, %c0_572, %c0_573] : memref<26x32x1xf32, #tpu.memory_space<vmem>>, vector<1x8x1xf32>
    %978 = vector.shape_cast %977 : vector<1x8x1xf32> to vector<8x1xf32>
    %979 = vector.broadcast %978 : vector<8x1xf32> to vector<8x64xf32>
    %980 = arith.addf %976, %979 : vector<8x64xf32>
    %cst_574 = arith.constant 0.000000e+00 : f32
    %981 = vector.broadcast %cst_574 : f32 to vector<8x64xf32>
    %982 = arith.cmpf ogt, %980, %981 : vector<8x64xf32>
    %cst_575 = arith.constant 1.000000e-01 : f32
    %983 = vector.broadcast %cst_575 : f32 to vector<8x64xf32>
    %984 = arith.mulf %983, %980 : vector<8x64xf32>
    %985 = arith.select %982, %980, %984 : vector<8x64xi1>, vector<8x64xf32>
    %986 = arith.truncf %985 : vector<8x64xf32> to vector<8x64xbf16>
    %c121 = arith.constant 121 : index
    %c0_576 = arith.constant 0 : index
    %c0_577 = arith.constant 0 : index
    %987 = vector.load %arg2[%c121, %c0_576, %c0_577] : memref<122x32x32xbf16, #tpu.memory_space<vmem>>, vector<1x24x8xbf16>
    %988 = vector.shape_cast %987 : vector<1x24x8xbf16> to vector<24x8xbf16>
    %cst_578 = arith.constant dense<0.000000e+00> : vector<24x64xf32>
    %989 = tpu.matmul %988, %986, %cst_578 {dimension_numbers = #tpu.dot_dimension_numbers<[1], [0], [0], [1], [0, 0, 1, 1], [], []>} : vector<24x8xbf16>, vector<8x64xbf16>, vector<24x64xf32> -> vector<24x64xf32>
    %c25_579 = arith.constant 25 : index
    %c0_580 = arith.constant 0 : index
    %c0_581 = arith.constant 0 : index
    %990 = vector.load %arg3[%c25_579, %c0_580, %c0_581] : memref<26x32x1xf32, #tpu.memory_space<vmem>>, vector<1x24x1xf32>
    %991 = vector.shape_cast %990 : vector<1x24x1xf32> to vector<24x1xf32>
    %992 = vector.broadcast %991 : vector<24x1xf32> to vector<24x64xf32>
    %993 = arith.addf %989, %992 : vector<24x64xf32>
    %c4_582 = arith.constant 4 : index
    %c0_583 = arith.constant 0 : index
    %994 = vector.load %arg12[%c4_582, %c0_583] : memref<8x128xf32, #tpu.memory_space<vmem>>, vector<1x64xf32>
    %c5_584 = arith.constant 5 : index
    %c0_585 = arith.constant 0 : index
    %995 = vector.load %arg12[%c5_584, %c0_585] : memref<8x128xf32, #tpu.memory_space<vmem>>, vector<1x64xf32>
    %996 = vector.extract_strided_slice %993 {offsets = [0, 0], sizes = [6, 64], strides = [1, 1]} : vector<24x64xf32> to vector<6x64xf32>
    %cst_586 = arith.constant 5.000000e-01 : f32
    %997 = vector.broadcast %cst_586 : f32 to vector<6x64xf32>
    %998 = arith.mulf %997, %996 : vector<6x64xf32>
    %999 = math.tanh %998 : vector<6x64xf32>
    %cst_587 = arith.constant 1.000000e+00 : f32
    %1000 = vector.broadcast %cst_587 : f32 to vector<6x64xf32>
    %1001 = arith.addf %999, %1000 : vector<6x64xf32>
    %cst_588 = arith.constant 5.000000e-01 : f32
    %1002 = vector.broadcast %cst_588 : f32 to vector<6x64xf32>
    %1003 = arith.mulf %1002, %1001 : vector<6x64xf32>
    %1004 = vector.extract_strided_slice %1003 {offsets = [0, 0], sizes = [3, 64], strides = [1, 1]} : vector<6x64xf32> to vector<3x64xf32>
    %cst_589 = arith.constant 2.000000e+00 : f32
    %1005 = vector.broadcast %cst_589 : f32 to vector<3x64xf32>
    %1006 = arith.mulf %1004, %1005 : vector<3x64xf32>
    %1007 = vector.broadcast %994 : vector<1x64xf32> to vector<3x64xf32>
    %1008 = arith.addf %1006, %1007 : vector<3x64xf32>
    %1009 = vector.extract_strided_slice %1003 {offsets = [3, 0], sizes = [3, 64], strides = [1, 1]} : vector<6x64xf32> to vector<3x64xf32>
    %cst_590 = arith.constant 2.000000e+00 : f32
    %1010 = vector.broadcast %cst_590 : f32 to vector<3x64xf32>
    %1011 = arith.mulf %1009, %1010 : vector<3x64xf32>
    %1012 = vector.broadcast %995 : vector<1x64xf32> to vector<3x64xf32>
    %1013 = arith.addf %1011, %1012 : vector<3x64xf32>
    %1014 = vector.extract_strided_slice %993 {offsets = [6, 0], sizes = [6, 64], strides = [1, 1]} : vector<24x64xf32> to vector<6x64xf32>
    %1015 = math.exp %1014 : vector<6x64xf32>
    %1016 = vector.extract_strided_slice %1015 {offsets = [0, 0], sizes = [3, 64], strides = [1, 1]} : vector<6x64xf32> to vector<3x64xf32>
    %1017 = vector.extract_strided_slice %1015 {offsets = [3, 0], sizes = [3, 64], strides = [1, 1]} : vector<6x64xf32> to vector<3x64xf32>
    %1018 = vector.extract_strided_slice %993 {offsets = [12, 0], sizes = [3, 64], strides = [1, 1]} : vector<24x64xf32> to vector<3x64xf32>
    %cst_591 = arith.constant 5.000000e-01 : f32
    %1019 = vector.broadcast %cst_591 : f32 to vector<3x64xf32>
    %1020 = arith.mulf %1019, %1018 : vector<3x64xf32>
    %1021 = math.tanh %1020 : vector<3x64xf32>
    %cst_592 = arith.constant 1.000000e+00 : f32
    %1022 = vector.broadcast %cst_592 : f32 to vector<3x64xf32>
    %1023 = arith.addf %1021, %1022 : vector<3x64xf32>
    %cst_593 = arith.constant 5.000000e-01 : f32
    %1024 = vector.broadcast %cst_593 : f32 to vector<3x64xf32>
    %1025 = arith.mulf %1024, %1023 : vector<3x64xf32>
    %1026 = vector.extract_strided_slice %993 {offsets = [15, 0], sizes = [9, 64], strides = [1, 1]} : vector<24x64xf32> to vector<9x64xf32>
    %cst_594 = arith.constant 5.000000e-01 : f32
    %1027 = vector.broadcast %cst_594 : f32 to vector<9x64xf32>
    %1028 = arith.mulf %1027, %1026 : vector<9x64xf32>
    %1029 = math.tanh %1028 : vector<9x64xf32>
    %cst_595 = arith.constant 1.000000e+00 : f32
    %1030 = vector.broadcast %cst_595 : f32 to vector<9x64xf32>
    %1031 = arith.addf %1029, %1030 : vector<9x64xf32>
    %cst_596 = arith.constant 5.000000e-01 : f32
    %1032 = vector.broadcast %cst_596 : f32 to vector<9x64xf32>
    %1033 = arith.mulf %1032, %1031 : vector<9x64xf32>
    %1034 = vector.extract_strided_slice %1033 {offsets = [0, 0], sizes = [3, 64], strides = [1, 1]} : vector<9x64xf32> to vector<3x64xf32>
    %1035 = vector.extract_strided_slice %1025 {offsets = [0, 0], sizes = [1, 64], strides = [1, 1]} : vector<3x64xf32> to vector<1x64xf32>
    %1036 = vector.broadcast %1035 : vector<1x64xf32> to vector<3x64xf32>
    %1037 = arith.mulf %1034, %1036 : vector<3x64xf32>
    %1038 = vector.extract_strided_slice %1033 {offsets = [3, 0], sizes = [3, 64], strides = [1, 1]} : vector<9x64xf32> to vector<3x64xf32>
    %1039 = vector.extract_strided_slice %1025 {offsets = [1, 0], sizes = [1, 64], strides = [1, 1]} : vector<3x64xf32> to vector<1x64xf32>
    %1040 = vector.broadcast %1039 : vector<1x64xf32> to vector<3x64xf32>
    %1041 = arith.mulf %1038, %1040 : vector<3x64xf32>
    %1042 = vector.extract_strided_slice %1033 {offsets = [6, 0], sizes = [3, 64], strides = [1, 1]} : vector<9x64xf32> to vector<3x64xf32>
    %1043 = vector.extract_strided_slice %1025 {offsets = [2, 0], sizes = [1, 64], strides = [1, 1]} : vector<3x64xf32> to vector<1x64xf32>
    %1044 = vector.broadcast %1043 : vector<1x64xf32> to vector<3x64xf32>
    %1045 = arith.mulf %1042, %1044 : vector<3x64xf32>
    %1046 = tpu.concatenate %1037, %1041, %1045 in 0 : vector<3x64xf32>, vector<3x64xf32>, vector<3x64xf32> -> vector<9x64xf32>
    %1047 = arith.subf %1008, %1016 : vector<3x64xf32>
    %1048 = arith.subf %1013, %1017 : vector<3x64xf32>
    %1049 = arith.addf %1008, %1016 : vector<3x64xf32>
    %1050 = arith.addf %1013, %1017 : vector<3x64xf32>
    %1051 = tpu.concatenate %1047, %1048, %1049, %1050, %1046 in 0 : vector<3x64xf32>, vector<3x64xf32>, vector<3x64xf32>, vector<3x64xf32>, vector<9x64xf32> -> vector<21x64xf32>
    %cst_597 = arith.constant 0.000000e+00 : f32
    %1052 = vector.broadcast %cst_597 : f32 to vector<3x64xf32>
    %1053 = tpu.concatenate %1051, %1052 in 0 : vector<21x64xf32>, vector<3x64xf32> -> vector<24x64xf32>
    %cst_598 = arith.constant 0.000000e+00 : f32
    %1054 = vector.broadcast %cst_598 : f32 to vector<24x64xf32>
    %1055 = tpu.concatenate %1053, %1054 in 1 : vector<24x64xf32>, vector<24x64xf32> -> vector<24x128xf32>
    %c0_599 = arith.constant 0 : index
    %c48_600 = arith.constant 48 : index
    %c0_601 = arith.constant 0 : index
    %1056 = vector.load %arg13[%c0_599, %c48_600, %c0_601] : memref<1x72x128xf32, #tpu.memory_space<vmem>>, vector<1x24x128xf32>
    %1057 = vector.shape_cast %1056 : vector<1x24x128xf32> to vector<24x128xf32>
    %1058 = vector.shape_cast %1055 : vector<24x128xf32> to vector<1x24x128xf32>
    tpu.vector_store %arg13[%c0_599, %c48_600, %c0_601], %1058 {strides = array<i32>} : memref<1x72x128xf32, #tpu.memory_space<vmem>>, vector<1x24x128xf32>,
    return
  }
  func.func @transform_0(%arg0: i32) -> (i32, i32, i32) {
    %c0_i32 = arith.constant 0 : i32
    %c0_i32_0 = arith.constant 0 : i32
    %c0_i32_1 = arith.constant 0 : i32
    return %arg0, %c0_i32, %c0_i32_0 : i32, i32, i32
  }
  func.func @transform_1(%arg0: i32) -> (i32, i32, i32) {
    %c0_i32 = arith.constant 0 : i32
    %c0_i32_0 = arith.constant 0 : i32
    %c0_i32_1 = arith.constant 0 : i32
    %c0_i32_2 = arith.constant 0 : i32
    return %c0_i32, %c0_i32_0, %c0_i32_1 : i32, i32, i32
  }
  func.func @transform_2(%arg0: i32) -> (i32, i32, i32) {
    %c0_i32 = arith.constant 0 : i32
    %c0_i32_0 = arith.constant 0 : i32
    %c0_i32_1 = arith.constant 0 : i32
    %c0_i32_2 = arith.constant 0 : i32
    return %c0_i32, %c0_i32_0, %c0_i32_1 : i32, i32, i32
  }
  func.func @transform_3(%arg0: i32) -> (i32, i32) {
    %c0_i32 = arith.constant 0 : i32
    %c0_i32_0 = arith.constant 0 : i32
    %c0_i32_1 = arith.constant 0 : i32
    return %c0_i32, %c0_i32_0 : i32, i32
  }
  func.func @transform_4(%arg0: i32) -> (i32, i32) {
    %c0_i32 = arith.constant 0 : i32
    %c0_i32_0 = arith.constant 0 : i32
    %c0_i32_1 = arith.constant 0 : i32
    return %c0_i32, %c0_i32_0 : i32, i32
  }
  func.func @transform_5(%arg0: i32) -> (i32, i32) {
    %c0_i32 = arith.constant 0 : i32
    %c0_i32_0 = arith.constant 0 : i32
    %c0_i32_1 = arith.constant 0 : i32
    return %c0_i32, %c0_i32_0 : i32, i32
  }
  func.func @transform_6(%arg0: i32) -> (i32, i32) {
    %c0_i32 = arith.constant 0 : i32
    %c0_i32_0 = arith.constant 0 : i32
    %c0_i32_1 = arith.constant 0 : i32
    return %c0_i32, %c0_i32_0 : i32, i32
  }
  func.func @transform_7(%arg0: i32) -> (i32, i32) {
    %c0_i32 = arith.constant 0 : i32
    %c0_i32_0 = arith.constant 0 : i32
    %c0_i32_1 = arith.constant 0 : i32
    return %c0_i32, %c0_i32_0 : i32, i32
  }
  func.func @transform_8(%arg0: i32) -> (i32, i32) {
    %c0_i32 = arith.constant 0 : i32
    %c0_i32_0 = arith.constant 0 : i32
    %c0_i32_1 = arith.constant 0 : i32
    return %c0_i32, %c0_i32_0 : i32, i32
  }
  func.func @transform_9(%arg0: i32) -> (i32, i32) {
    %c0_i32 = arith.constant 0 : i32
    %c0_i32_0 = arith.constant 0 : i32
    %c0_i32_1 = arith.constant 0 : i32
    return %c0_i32, %c0_i32_0 : i32, i32
  }
  func.func @transform_10(%arg0: i32) -> (i32, i32) {
    %c0_i32 = arith.constant 0 : i32
    %c0_i32_0 = arith.constant 0 : i32
    %c0_i32_1 = arith.constant 0 : i32
    return %c0_i32, %c0_i32_0 : i32, i32
  }
  func.func @transform_11(%arg0: i32) -> (i32, i32) {
    %c0_i32 = arith.constant 0 : i32
    %c0_i32_0 = arith.constant 0 : i32
    %c0_i32_1 = arith.constant 0 : i32
    return %c0_i32, %c0_i32_0 : i32, i32
  }
  func.func @transform_12(%arg0: i32) -> (i32, i32, i32) {
    %c0_i32 = arith.constant 0 : i32
    %c0_i32_0 = arith.constant 0 : i32
    %c0_i32_1 = arith.constant 0 : i32
    return %arg0, %c0_i32, %c0_i32_0 : i32, i32, i32
  }
}

module attributes {stable_mosaic.version = 11 : i64} {
  func.func @nms_kernel(%arg0: i32, %arg1: memref<1x400x512xf32, #tpu.memory_space<vmem>>, %arg2: memref<1x1x512xf32, #tpu.memory_space<vmem>>, %arg3: memref<1x1x512xf32, #tpu.memory_space<vmem>>) attributes {dimension_semantics = [#tpu.dimension_semantics<parallel>], iteration_bounds = array<i64: 2>, scalar_prefetch = 0 : i64, scratch_operands = 0 : i64, tpu.core_type = #tpu.core_type<tc>, window_params = [{transform_indices = @transform_0, window_bounds = array<i64: 1, 400, 512>}, {transform_indices = @transform_1, window_bounds = array<i64: 1, 1, 512>}, {transform_indices = @transform_2, window_bounds = array<i64: 1, 1, 512>}]} {
    %0 = tpu.iota {dimensions = array<i32: 1>} : vector<1x512xi32>
    %c0 = arith.constant 0 : index
    %c0_0 = arith.constant 0 : index
    %c0_1 = arith.constant 0 : index
    %1 = vector.load %arg2[%c0, %c0_0, %c0_1] : memref<1x1x512xf32, #tpu.memory_space<vmem>>, vector<1x1x512xf32>
    %2 = vector.shape_cast %1 : vector<1x1x512xf32> to vector<1x512xf32>
    %c0_i32 = arith.constant 0 : i32
    %c400_i32 = arith.constant 400 : i32
    %3 = arith.addi %c0_i32, %c400_i32 : i32
    %c1_i32 = arith.constant 1 : i32
    %4 = scf.for %arg4 = %c0_i32 to %3 step %c1_i32 iter_args(%arg5 = %2) -> (vector<1x512xf32>)  : i32 {
      %8 = vector.broadcast %arg4 : i32 to vector<1x512xi32>
      %9 = arith.cmpi eq, %0, %8 : vector<1x512xi32>
      %10 = arith.extui %9 : vector<1x512xi1> to vector<1x512xi32>
      %11 = arith.sitofp %10 : vector<1x512xi32> to vector<1x512xf32>
      %12 = arith.mulf %arg5, %11 : vector<1x512xf32>
      %cst = arith.constant dense<0.000000e+00> : vector<1xf32>
      %13 = vector.multi_reduction <add>, %12, %cst [1] : vector<1x512xf32> to vector<1xf32>
      %14 = vector.shape_cast %13 : vector<1xf32> to vector<1x1xf32>
      %c0_6 = arith.constant 0 : index
      %15 = arith.index_cast %arg4 : i32 to index
      %c0_7 = arith.constant 0 : index
      %16 = vector.load %arg1[%c0_6, %15, %c0_7] : memref<1x400x512xf32, #tpu.memory_space<vmem>>, vector<1x1x512xf32>
      %17 = vector.shape_cast %16 : vector<1x1x512xf32> to vector<1x512xf32>
      %18 = vector.broadcast %14 : vector<1x1xf32> to vector<1x512xf32>
      %19 = arith.mulf %17, %18 : vector<1x512xf32>
      %cst_8 = arith.constant 1.000000e+00 : f32
      %20 = vector.broadcast %cst_8 : f32 to vector<1x512xf32>
      %21 = arith.subf %20, %19 : vector<1x512xf32>
      %22 = arith.mulf %arg5, %21 : vector<1x512xf32>
      scf.yield %22 : vector<1x512xf32>
    }
    %c400_i32_2 = arith.constant 400 : i32
    %c0_3 = arith.constant 0 : index
    %c0_4 = arith.constant 0 : index
    %c0_5 = arith.constant 0 : index
    %5 = vector.load %arg3[%c0_3, %c0_4, %c0_5] : memref<1x1x512xf32, #tpu.memory_space<vmem>>, vector<1x1x512xf32>
    %6 = vector.shape_cast %5 : vector<1x1x512xf32> to vector<1x512xf32>
    %7 = vector.shape_cast %4 : vector<1x512xf32> to vector<1x1x512xf32>
    tpu.vector_store %arg3[%c0_3, %c0_4, %c0_5], %7 {strides = array<i32>} : memref<1x1x512xf32, #tpu.memory_space<vmem>>, vector<1x1x512xf32>,
    return
  }
  func.func @transform_0(%arg0: i32) -> (i32, i32, i32) {
    %c0_i32 = arith.constant 0 : i32
    %c0_i32_0 = arith.constant 0 : i32
    %c0_i32_1 = arith.constant 0 : i32
    return %arg0, %c0_i32, %c0_i32_0 : i32, i32, i32
  }
  func.func @transform_1(%arg0: i32) -> (i32, i32, i32) {
    %c0_i32 = arith.constant 0 : i32
    %c0_i32_0 = arith.constant 0 : i32
    %c0_i32_1 = arith.constant 0 : i32
    return %arg0, %c0_i32, %c0_i32_0 : i32, i32, i32
  }
  func.func @transform_2(%arg0: i32) -> (i32, i32, i32) {
    %c0_i32 = arith.constant 0 : i32
    %c0_i32_0 = arith.constant 0 : i32
    %c0_i32_1 = arith.constant 0 : i32
    return %arg0, %c0_i32, %c0_i32_0 : i32, i32, i32
  }
}

</mosaic_0001>

<llo_original>
// kernel: yolov3_forward.2
$region0: #{yolov3_forward.2}
  #allocation0 [shape = 'u32[]', space=smem, size = 0x4, offset = 0x4, fixed_abs, tag = 'smem constant byte address 0x4 - core index']
  #allocation1 [shape = 'u32[72,128]{1,0:T(1,128)}', space=vmem, size = 0x9000, scoped, tag = 'internal scratch']
  %s0 = inlined_call_operand.vmem [shape: bf16[2,4,256], index: 0, kind: input, shape index: {}]
  %s1 = inlined_call_operand.vmem [shape: bf16[122,32,32], index: 1, kind: input, shape index: {}]
  %s2 = inlined_call_operand.vmem [shape: f32[26,32,1], index: 2, kind: input, shape index: {}]
  %s3 = inlined_call_operand.vmem [shape: bf16[256,576], index: 3, kind: input, shape index: {}]
  %s4 = inlined_call_operand.vmem [shape: bf16[64,144], index: 4, kind: input, shape index: {}]
  %s5 = inlined_call_operand.vmem [shape: bf16[16,36], index: 5, kind: input, shape index: {}]
  %s6 = inlined_call_operand.vmem [shape: bf16[4,36], index: 6, kind: input, shape index: {}]
  %s7 = inlined_call_operand.vmem [shape: bf16[16,144], index: 7, kind: input, shape index: {}]
  %s8 = inlined_call_operand.vmem [shape: bf16[64,576], index: 8, kind: input, shape index: {}]
  %s9 = inlined_call_operand.vmem [shape: bf16[4,16], index: 9, kind: input, shape index: {}]
  %s10 = inlined_call_operand.vmem [shape: bf16[16,64], index: 10, kind: input, shape index: {}]
  %s11 = inlined_call_operand.vmem [shape: f32[8,128], index: 11, kind: input, shape index: {}]
  %s12 = inlined_call_operand.vmem [shape: f32[2,72,128], index: 12, kind: output, shape index: {}]
  %s13 = sld [smem:[#allocation0]]
  $region81: #{yolov3_forward.2} parent=0
    _
  %s15 = ssub.s32 1, %s13
  %s16 = scalar_select 0, %s15, %s13
  loop: start=0, step=1, limit=4
  $region2: #{yolov3_forward.2} parent=0 // loop_pre_header
    _
  $region3: #{yolov3_forward.2} parent=0 // loop_header
    %s18 = sphi 0, %s22
    %p19 = scmp.ge.s32.totalorder %s18, 4
    %s28 = sphi 0, %s30
    %s31 = sphi 0, %s28
    %s32 = sphi 0, %s31
    %s48 = sphi 0, %s32
    %s52 = sphi 0, %s52
    %s54 = sphi 0, %s52
    %s55 = sphi 0, %s54
    %s69 = sphi 0, %s55
    %s73 = sphi 0, %s73
    %s75 = sphi 0, %s73
    %s76 = sphi 0, %s75
    %s90 = sphi 0, %s76
    %s94 = sphi 0, %s94
    %s96 = sphi 0, %s94
    %s97 = sphi 0, %s96
    %s111 = sphi 0, %s97
    %s115 = sphi 0, %s115
    %s117 = sphi 0, %s115
    %s118 = sphi 0, %s117
    %s132 = sphi 0, %s118
    %s136 = sphi 0, %s136
    %s138 = sphi 0, %s136
    %s139 = sphi 0, %s138
    %s153 = sphi 0, %s139
    %s157 = sphi 0, %s157
    %s159 = sphi 0, %s157
    %s160 = sphi 0, %s159
    %s174 = sphi 0, %s160
    %s178 = sphi 0, %s178
    %s180 = sphi 0, %s178
    %s181 = sphi 0, %s180
    %s195 = sphi 0, %s181
    %s199 = sphi 0, %s199
    %s201 = sphi 0, %s199
    %s202 = sphi 0, %s201
    %s216 = sphi 0, %s202
    %s220 = sphi 0, %s220
    %s222 = sphi 0, %s220
    %s223 = sphi 0, %s222
    %s237 = sphi 0, %s223
    %s241 = sphi 0, %s241
    %s243 = sphi 0, %s241
    %s244 = sphi 0, %s243
    %s258 = sphi 0, %s244
    %s262 = sphi 0, %s262
    %s264 = sphi 0, %s262
    %s265 = sphi 0, %s264
    %s279 = sphi 0, %s265
    %s285 = sphi 0, %s287
    %s288 = sphi 0, %s285
    %s289 = sphi 0, %s288
    %s305 = sphi 0, %s289
  $region4: #{yolov3_forward.2} parent=0 // loop_header_branch
    %21 = sbr.rel (%p19) target = $region8
  $region5: #{yolov3_forward.2} parent=0 // loop_body
    %s23 = ssub.s32 %s18, 1
    %s24 = ssub.s32 %s18, 2
    %s25 = sadd.s32 %s18, 1
    %s26 = ssub.s32 %s18, %s25
    %p27 = scmp.eq.s32.totalorder %s26, 0
    %s29 = sadd.s32 %s28, 1
    %s30 = scalar_select %p27, %s28, %s29
    %p33 = pneg %p27
    %p34 = scmp.eq.s32.totalorder %s18, 1
    %p35 = por %p33, %p34
    %p36 = scmp.ne.s32.totalorder %s28, %s31
    %p37 = scmp.eq.s32.totalorder %s18, 0
    %p38 = por %p36, %p37
    %p39 = scmp.ne.s32.totalorder %s28, %s31
    %p40 = scmp.eq.s32.totalorder %s23, 1
    %p41 = por %p39, %p40
    %p42 = scmp.ne.s32.totalorder %s31, %s32
    %p43 = scmp.eq.s32.totalorder %s23, 0
    %p44 = por %p42, %p43
    %p45 = scmp.ne.s32.totalorder %s31, %s32
    %p46 = scmp.eq.s32.totalorder %s24, 1
    %p47 = por %p45, %p46
    %p49 = scmp.ne.s32.totalorder %s32, %s48
    %p50 = scmp.eq.s32.totalorder %s24, 0
    %p51 = por %p49, %p50
    %s53 = sadd.s32 %s52, 1
    %p56 = scmp.eq.s32.totalorder %s18, 1
    %p57 = scmp.ne.s32.totalorder %s52, %s54
    %p58 = scmp.eq.s32.totalorder %s18, 0
    %p59 = por %p57, %p58
    %p60 = scmp.ne.s32.totalorder %s52, %s54
    %p61 = scmp.eq.s32.totalorder %s23, 1
    %p62 = por %p60, %p61
    %p63 = scmp.ne.s32.totalorder %s54, %s55
    %p64 = scmp.eq.s32.totalorder %s23, 0
    %p65 = por %p63, %p64
    %p66 = scmp.ne.s32.totalorder %s54, %s55
    %p67 = scmp.eq.s32.totalorder %s24, 1
    %p68 = por %p66, %p67
    %p70 = scmp.ne.s32.totalorder %s55, %s69
    %p71 = scmp.eq.s32.totalorder %s24, 0
    %p72 = por %p70, %p71
    %s74 = sadd.s32 %s73, 1
    %p77 = scmp.eq.s32.totalorder %s18, 1
    %p78 = scmp.ne.s32.totalorder %s73, %s75
    %p79 = scmp.eq.s32.totalorder %s18, 0
    %p80 = por %p78, %p79
    %p81 = scmp.ne.s32.totalorder %s73, %s75
    %p82 = scmp.eq.s32.totalorder %s23, 1
    %p83 = por %p81, %p82
    %p84 = scmp.ne.s32.totalorder %s75, %s76
    %p85 = scmp.eq.s32.totalorder %s23, 0
    %p86 = por %p84, %p85
    %p87 = scmp.ne.s32.totalorder %s75, %s76
    %p88 = scmp.eq.s32.totalorder %s24, 1
    %p89 = por %p87, %p88
    %p91 = scmp.ne.s32.totalorder %s76, %s90
    %p92 = scmp.eq.s32.totalorder %s24, 0
    %p93 = por %p91, %p92
    %s95 = sadd.s32 %s94, 1
    %p98 = scmp.eq.s32.totalorder %s18, 1
    %p99 = scmp.ne.s32.totalorder %s94, %s96
    %p100 = scmp.eq.s32.totalorder %s18, 0
    %p101 = por %p99, %p100
    %p102 = scmp.ne.s32.totalorder %s94, %s96
    %p103 = scmp.eq.s32.totalorder %s23, 1
    %p104 = por %p102, %p103
    %p105 = scmp.ne.s32.totalorder %s96, %s97
    %p106 = scmp.eq.s32.totalorder %s23, 0
    %p107 = por %p105, %p106
    %p108 = scmp.ne.s32.totalorder %s96, %s97
    %p109 = scmp.eq.s32.totalorder %s24, 1
    %p110 = por %p108, %p109
    %p112 = scmp.ne.s32.totalorder %s97, %s111
    %p113 = scmp.eq.s32.totalorder %s24, 0
    %p114 = por %p112, %p113
    %s116 = sadd.s32 %s115, 1
    %p119 = scmp.eq.s32.totalorder %s18, 1
    %p120 = scmp.ne.s32.totalorder %s115, %s117
    %p121 = scmp.eq.s32.totalorder %s18, 0
    %p122 = por %p120, %p121
    %p123 = scmp.ne.s32.totalorder %s115, %s117
    %p124 = scmp.eq.s32.totalorder %s23, 1
    %p125 = por %p123, %p124
    %p126 = scmp.ne.s32.totalorder %s117, %s118
    %p127 = scmp.eq.s32.totalorder %s23, 0
    %p128 = por %p126, %p127
    %p129 = scmp.ne.s32.totalorder %s117, %s118
    %p130 = scmp.eq.s32.totalorder %s24, 1
    %p131 = por %p129, %p130
    %p133 = scmp.ne.s32.totalorder %s118, %s132
    %p134 = scmp.eq.s32.totalorder %s24, 0
    %p135 = por %p133, %p134
    %s137 = sadd.s32 %s136, 1
    %p140 = scmp.eq.s32.totalorder %s18, 1
    %p141 = scmp.ne.s32.totalorder %s136, %s138
    %p142 = scmp.eq.s32.totalorder %s18, 0
    %p143 = por %p141, %p142
    %p144 = scmp.ne.s32.totalorder %s136, %s138
    %p145 = scmp.eq.s32.totalorder %s23, 1
    %p146 = por %p144, %p145
    %p147 = scmp.ne.s32.totalorder %s138, %s139
    %p148 = scmp.eq.s32.totalorder %s23, 0
    %p149 = por %p147, %p148
    %p150 = scmp.ne.s32.totalorder %s138, %s139
    %p151 = scmp.eq.s32.totalorder %s24, 1
    %p152 = por %p150, %p151
    %p154 = scmp.ne.s32.totalorder %s139, %s153
    %p155 = scmp.eq.s32.totalorder %s24, 0
    %p156 = por %p154, %p155
    %s158 = sadd.s32 %s157, 1
    %p161 = scmp.eq.s32.totalorder %s18, 1
    %p162 = scmp.ne.s32.totalorder %s157, %s159
    %p163 = scmp.eq.s32.totalorder %s18, 0
    %p164 = por %p162, %p163
    %p165 = scmp.ne.s32.totalorder %s157, %s159
    %p166 = scmp.eq.s32.totalorder %s23, 1
    %p167 = por %p165, %p166
    %p168 = scmp.ne.s32.totalorder %s159, %s160
    %p169 = scmp.eq.s32.totalorder %s23, 0
    %p170 = por %p168, %p169
    %p171 = scmp.ne.s32.totalorder %s159, %s160
    %p172 = scmp.eq.s32.totalorder %s24, 1
    %p173 = por %p171, %p172
    %p175 = scmp.ne.s32.totalorder %s160, %s174
    %p176 = scmp.eq.s32.totalorder %s24, 0
    %p177 = por %p175, %p176
    %s179 = sadd.s32 %s178, 1
    %p182 = scmp.eq.s32.totalorder %s18, 1
    %p183 = scmp.ne.s32.totalorder %s178, %s180
    %p184 = scmp.eq.s32.totalorder %s18, 0
    %p185 = por %p183, %p184
    %p186 = scmp.ne.s32.totalorder %s178, %s180
    %p187 = scmp.eq.s32.totalorder %s23, 1
    %p188 = por %p186, %p187
    %p189 = scmp.ne.s32.totalorder %s180, %s181
    %p190 = scmp.eq.s32.totalorder %s23, 0
    %p191 = por %p189, %p190
    %p192 = scmp.ne.s32.totalorder %s180, %s181
    %p193 = scmp.eq.s32.totalorder %s24, 1
    %p194 = por %p192, %p193
    %p196 = scmp.ne.s32.totalorder %s181, %s195
    %p197 = scmp.eq.s32.totalorder %s24, 0
    %p198 = por %p196, %p197
    %s200 = sadd.s32 %s199, 1
    %p203 = scmp.eq.s32.totalorder %s18, 1
    %p204 = scmp.ne.s32.totalorder %s199, %s201
    %p205 = scmp.eq.s32.totalorder %s18, 0
    %p206 = por %p204, %p205
    %p207 = scmp.ne.s32.totalorder %s199, %s201
    %p208 = scmp.eq.s32.totalorder %s23, 1
    %p209 = por %p207, %p208
    %p210 = scmp.ne.s32.totalorder %s201, %s202
    %p211 = scmp.eq.s32.totalorder %s23, 0
    %p212 = por %p210, %p211
    %p213 = scmp.ne.s32.totalorder %s201, %s202
    %p214 = scmp.eq.s32.totalorder %s24, 1
    %p215 = por %p213, %p214
    %p217 = scmp.ne.s32.totalorder %s202, %s216
    %p218 = scmp.eq.s32.totalorder %s24, 0
    %p219 = por %p217, %p218
    %s221 = sadd.s32 %s220, 1
    %p224 = scmp.eq.s32.totalorder %s18, 1
    %p225 = scmp.ne.s32.totalorder %s220, %s222
    %p226 = scmp.eq.s32.totalorder %s18, 0
    %p227 = por %p225, %p226
    %p228 = scmp.ne.s32.totalorder %s220, %s222
    %p229 = scmp.eq.s32.totalorder %s23, 1
    %p230 = por %p228, %p229
    %p231 = scmp.ne.s32.totalorder %s222, %s223
    %p232 = scmp.eq.s32.totalorder %s23, 0
    %p233 = por %p231, %p232
    %p234 = scmp.ne.s32.totalorder %s222, %s223
    %p235 = scmp.eq.s32.totalorder %s24, 1
    %p236 = por %p234, %p235
    %p238 = scmp.ne.s32.totalorder %s223, %s237
    %p239 = scmp.eq.s32.totalorder %s24, 0
    %p240 = por %p238, %p239
    %s242 = sadd.s32 %s241, 1
    %p245 = scmp.eq.s32.totalorder %s18, 1
    %p246 = scmp.ne.s32.totalorder %s241, %s243
    %p247 = scmp.eq.s32.totalorder %s18, 0
    %p248 = por %p246, %p247
    %p249 = scmp.ne.s32.totalorder %s241, %s243
    %p250 = scmp.eq.s32.totalorder %s23, 1
    %p251 = por %p249, %p250
    %p252 = scmp.ne.s32.totalorder %s243, %s244
    %p253 = scmp.eq.s32.totalorder %s23, 0
    %p254 = por %p252, %p253
    %p255 = scmp.ne.s32.totalorder %s243, %s244
    %p256 = scmp.eq.s32.totalorder %s24, 1
    %p257 = por %p255, %p256
    %p259 = scmp.ne.s32.totalorder %s244, %s258
    %p260 = scmp.eq.s32.totalorder %s24, 0
    %p261 = por %p259, %p260
    %s263 = sadd.s32 %s262, 1
    %p266 = scmp.eq.s32.totalorder %s18, 1
    %p267 = scmp.ne.s32.totalorder %s262, %s264
    %p268 = scmp.eq.s32.totalorder %s18, 0
    %p269 = por %p267, %p268
    %p270 = scmp.ne.s32.totalorder %s262, %s264
    %p271 = scmp.eq.s32.totalorder %s23, 1
    %p272 = por %p270, %p271
    %p273 = scmp.ne.s32.totalorder %s264, %s265
    %p274 = scmp.eq.s32.totalorder %s23, 0
    %p275 = por %p273, %p274
    %p276 = scmp.ne.s32.totalorder %s264, %s265
    %p277 = scmp.eq.s32.totalorder %s24, 1
    %p278 = por %p276, %p277
    %p280 = scmp.ne.s32.totalorder %s265, %s279
    %p281 = scmp.eq.s32.totalorder %s24, 0
    %p282 = por %p280, %p281
    %s283 = ssub.s32 %s18, %s25
    %p284 = scmp.eq.s32.totalorder %s283, 0
    %s286 = sadd.s32 %s285, 1
    %s287 = scalar_select %p284, %s285, %s286
    %p290 = pneg %p284
    %p291 = scmp.eq.s32.totalorder %s18, 1
    %p292 = por %p290, %p291
    %p293 = scmp.ne.s32.totalorder %s285, %s288
    %p294 = scmp.eq.s32.totalorder %s18, 0
    %p295 = por %p293, %p294
    %p296 = scmp.ne.s32.totalorder %s285, %s288
    %p297 = scmp.eq.s32.totalorder %s23, 1
    %p298 = por %p296, %p297
    %p299 = scmp.ne.s32.totalorder %s288, %s289
    %p300 = scmp.eq.s32.totalorder %s23, 0
    %p301 = por %p299, %p300
    %p302 = scmp.ne.s32.totalorder %s288, %s289
    %p303 = scmp.eq.s32.totalorder %s24, 1
    %p304 = por %p302, %p303
    %p306 = scmp.ne.s32.totalorder %s289, %s305
    %p307 = scmp.eq.s32.totalorder %s24, 0
    %p308 = por %p306, %p307
    %p309 = scmp.le.s32.totalorder 1, %s18
    %p310 = scmp.lt.s32.totalorder %s18, 3
    %p311 = pnand %p309, %p310
    %p312 = pneg %p311
    // Predicated region
    $region9: #{yolov3_forward.2} parent=5 // pred_check
      _
    $region10: #{yolov3_forward.2} parent=5 // pred_check_branch
      %314 = sbr.rel (%p311) target = $region12
    $region11: #{yolov3_forward.2} parent=5 // pred_region
      %s315 = ssub.s32 %s18, 1
      // Predicated region
      $region13: #{yolov3_forward.2} parent=11 // pred_check
        %p316 = pneg %p65
      $region14: #{yolov3_forward.2} parent=11 // pred_check_branch
        %318 = sbr.rel (%p316) target = $region16
      $region15: #{yolov3_forward.2} parent=11 // pred_region
        _
      $region16: #{yolov3_forward.2} parent=11 // pred_fallthru
        _
      // Predicated region
      $region17: #{yolov3_forward.2} parent=11 // pred_check
        %p319 = pneg %p86
      $region18: #{yolov3_forward.2} parent=11 // pred_check_branch
        %321 = sbr.rel (%p319) target = $region20
      $region19: #{yolov3_forward.2} parent=11 // pred_region
        _
      $region20: #{yolov3_forward.2} parent=11 // pred_fallthru
        _
      // Predicated region
      $region21: #{yolov3_forward.2} parent=11 // pred_check
        %p322 = pneg %p107
      $region22: #{yolov3_forward.2} parent=11 // pred_check_branch
        %324 = sbr.rel (%p322) target = $region24
      $region23: #{yolov3_forward.2} parent=11 // pred_region
        _
      $region24: #{yolov3_forward.2} parent=11 // pred_fallthru
        _
      // Predicated region
      $region25: #{yolov3_forward.2} parent=11 // pred_check
        %p325 = pneg %p128
      $region26: #{yolov3_forward.2} parent=11 // pred_check_branch
        %327 = sbr.rel (%p325) target = $region28
      $region27: #{yolov3_forward.2} parent=11 // pred_region
        _
      $region28: #{yolov3_forward.2} parent=11 // pred_fallthru
        _
      // Predicated region
      $region29: #{yolov3_forward.2} parent=11 // pred_check
        %p328 = pneg %p149
      $region30: #{yolov3_forward.2} parent=11 // pred_check_branch
        %330 = sbr.rel (%p328) target = $region32
      $region31: #{yolov3_forward.2} parent=11 // pred_region
        _
      $region32: #{yolov3_forward.2} parent=11 // pred_fallthru
        _
      // Predicated region
      $region33: #{yolov3_forward.2} parent=11 // pred_check
        %p331 = pneg %p170
      $region34: #{yolov3_forward.2} parent=11 // pred_check_branch
        %333 = sbr.rel (%p331) target = $region36
      $region35: #{yolov3_forward.2} parent=11 // pred_region
        _
      $region36: #{yolov3_forward.2} parent=11 // pred_fallthru
        _
      // Predicated region
      $region37: #{yolov3_forward.2} parent=11 // pred_check
        %p334 = pneg %p191
      $region38: #{yolov3_forward.2} parent=11 // pred_check_branch
        %336 = sbr.rel (%p334) target = $region40
      $region39: #{yolov3_forward.2} parent=11 // pred_region
        _
      $region40: #{yolov3_forward.2} parent=11 // pred_fallthru
        _
      // Predicated region
      $region41: #{yolov3_forward.2} parent=11 // pred_check
        %p337 = pneg %p212
      $region42: #{yolov3_forward.2} parent=11 // pred_check_branch
        %339 = sbr.rel (%p337) target = $region44
      $region43: #{yolov3_forward.2} parent=11 // pred_region
        _
      $region44: #{yolov3_forward.2} parent=11 // pred_fallthru
        _
      // Predicated region
      $region45: #{yolov3_forward.2} parent=11 // pred_check
        %p340 = pneg %p233
      $region46: #{yolov3_forward.2} parent=11 // pred_check_branch
        %342 = sbr.rel (%p340) target = $region48
      $region47: #{yolov3_forward.2} parent=11 // pred_region
        _
      $region48: #{yolov3_forward.2} parent=11 // pred_fallthru
        _
      // Predicated region
      $region49: #{yolov3_forward.2} parent=11 // pred_check
        %p343 = pneg %p254
      $region50: #{yolov3_forward.2} parent=11 // pred_check_branch
        %345 = sbr.rel (%p343) target = $region52
      $region51: #{yolov3_forward.2} parent=11 // pred_region
        _
      $region52: #{yolov3_forward.2} parent=11 // pred_fallthru
        _
      // Predicated region
      $region53: #{yolov3_forward.2} parent=11 // pred_check
        %p346 = pneg %p275
      $region54: #{yolov3_forward.2} parent=11 // pred_check_branch
        %348 = sbr.rel (%p346) target = $region56
      $region55: #{yolov3_forward.2} parent=11 // pred_region
        _
      $region56: #{yolov3_forward.2} parent=11 // pred_fallthru
        _
    $region12: #{yolov3_forward.2} parent=5 // pred_fallthru
      _
    %p349 = scmp.lt.s32.totalorder %s18, 2
    // Predicated region
    $region57: #{yolov3_forward.2} parent=5 // pred_check
      %p350 = pneg %p349
    $region58: #{yolov3_forward.2} parent=5 // pred_check_branch
      %352 = sbr.rel (%p350) target = $region60
    $region59: #{yolov3_forward.2} parent=5 // pred_region
      // Predicated region
      $region61: #{yolov3_forward.2} parent=59 // pred_check
        %p353 = pneg %p38
      $region62: #{yolov3_forward.2} parent=59 // pred_check_branch
        %355 = sbr.rel (%p353) target = $region64
      $region63: #{yolov3_forward.2} parent=59 // pred_region
        %p356 = scmp.lt.s32.totalorder %s18, 1
        %s357 = scalar_select %p356, %s18, 1
        %s358 = smul.addr %s357, 2
        %s359 = smul.addr %s358, 2
        %s360 = scalar_lea.vmem %s0, %s359
      $region64: #{yolov3_forward.2} parent=59 // pred_fallthru
        _
    $region60: #{yolov3_forward.2} parent=5 // pred_fallthru
      _
    %p361 = scmp.le.s32.totalorder 1, %s18
    %p362 = scmp.lt.s32.totalorder %s18, 3
    %p363 = pnand %p361, %p362
    %p364 = pneg %p363
    // Predicated region
    $region65: #{yolov3_forward.2} parent=5 // pred_check
      _
    $region66: #{yolov3_forward.2} parent=5 // pred_check_branch
      %366 = sbr.rel (%p363) target = $region68
    $region67: #{yolov3_forward.2} parent=5 // pred_region
      %s367 = ssub.s32 %s18, 1
      %p368 = scmp.lt.s32.totalorder %s23, 1
      %s369 = scalar_select %p368, %s23, 1
      %s370 = smul.addr %s369, 2
      %s371 = smul.addr %s370, 2
      %s372 = scalar_lea.vmem %s0, %s371
      %p373 = pneg %p44
      %p374 = pneg %p41
      %p375 = pneg %p65
      %p376 = pneg %p62
      %p377 = pneg %p86
      %p378 = pneg %p83
      %p379 = pneg %p107
      %p380 = pneg %p104
      %p381 = pneg %p128
      %p382 = pneg %p125
      %p383 = pneg %p149
      %p384 = pneg %p146
      %p385 = pneg %p170
      %p386 = pneg %p167
      %p387 = pneg %p191
      %p388 = pneg %p188
      %p389 = pneg %p212
      %p390 = pneg %p209
      %p391 = pneg %p233
      %p392 = pneg %p230
      %p393 = pneg %p254
      %p394 = pneg %p251
      %p395 = pneg %p275
      %p396 = pneg %p272
      %p397 = pneg %p301
      %p398 = pneg %p298
      %p399 = scmp.lt.s32.totalorder %s23, 1
      %s400 = scalar_select %p399, %s23, 1
      %s401 = smul.addr %s400, 9
      %s402 = smul.addr %s401, 8
      %s403 = scalar_lea.vmem %s12, %s402
      %p404 = scmp.lt.s32.totalorder %s23, 1
      %s405 = scalar_select %p404, %s23, 1
      %s406 = smul.addr %s405, 2
      %s407 = smul.addr %s406, 2
      %s408 = scalar_lea.vmem %s0, %s407
      %p409 = scmp.lt.s32.totalorder %s23, 1
      %s410 = scalar_select %p409, %s23, 1
      %s411 = smul.addr %s410, 9
      %s412 = smul.addr %s411, 8
      %s413 = scalar_lea.vmem %s12, %s412
      %v415 = vld [vmem:[%s408] sm:$0xf]
      %v416 = vld [vmem:[%s3] sm:$0xff]
      %v417 = vld [vmem:[%s3 + $0x8] sm:$0xff]
      %v418 = vld [vmem:[%s3 + $0x10] sm:$0xf]
      %v419 = vld [vmem:[%s3 + $0x14] sm:$0xff]
      %v420 = vld [vmem:[%s3 + $0x1c] sm:$0xff]
      %v421 = vld [vmem:[%s3 + $0x24] sm:$0xf]
      %v422 = vld [vmem:[%s3 + $0x28] sm:$0xff]
      %v423 = vld [vmem:[%s3 + $0x30] sm:$0xff]
      %v424 = vld [vmem:[%s3 + $0x38] sm:$0xf]
      %v425 = vld [vmem:[%s3 + $0x3c] sm:$0xff]
      %v426 = vld [vmem:[%s3 + $0x44] sm:$0xff]
      %v427 = vld [vmem:[%s3 + $0x4c] sm:$0xf]
      %v428 = vld [vmem:[%s3 + $0x50] sm:$0xff]
      %v429 = vld [vmem:[%s3 + $0x58] sm:$0xff]
      %v430 = vld [vmem:[%s3 + $0x60] sm:$0xf]
      %v431 = vld [vmem:[%s3 + $0x64] sm:$0xff]
      %v432 = vld [vmem:[%s3 + $0x6c] sm:$0xff]
      %v433 = vld [vmem:[%s3 + $0x74] sm:$0xf]
      %v434 = vld [vmem:[%s3 + $0x78] sm:$0xff]
      %v435 = vld [vmem:[%s3 + $0x80] sm:$0xff]
      %v436 = vld [vmem:[%s3 + $0x88] sm:$0xf]
      %v437 = vld [vmem:[%s3 + $0x8c] sm:$0xff]
      %v438 = vld [vmem:[%s3 + $0x94] sm:$0xff]
      %v439 = vld [vmem:[%s3 + $0x9c] sm:$0xf]
      %v440 = vld [vmem:[%s3 + $0xa0] sm:$0xff]
      %v441 = vld [vmem:[%s3 + $0xa8] sm:$0xff]
      %v442 = vld [vmem:[%s3 + $0xb0] sm:$0xf]
      %v443 = vld [vmem:[%s3 + $0xb4] sm:$0xff]
      %v444 = vld [vmem:[%s3 + $0xbc] sm:$0xff]
      %v445 = vld [vmem:[%s3 + $0xc4] sm:$0xf]
      %v446 = vld [vmem:[%s3 + $0xc8] sm:$0xff]
      %v447 = vld [vmem:[%s3 + $0xd0] sm:$0xff]
      %v448 = vld [vmem:[%s3 + $0xd8] sm:$0xf]
      %v449 = vld [vmem:[%s3 + $0xdc] sm:$0xff]
      %v450 = vld [vmem:[%s3 + $0xe4] sm:$0xff]
      %v451 = vld [vmem:[%s3 + $0xec] sm:$0xf]
      %v452 = vld [vmem:[%s3 + $0xf0] sm:$0xff]
      %v453 = vld [vmem:[%s3 + $0xf8] sm:$0xff]
      %v454 = vld [vmem:[%s3 + $0x100] sm:$0xf]
      %v455 = vld [vmem:[%s3 + $0x104] sm:$0xff]
      %v456 = vld [vmem:[%s3 + $0x10c] sm:$0xff]
      %v457 = vld [vmem:[%s3 + $0x114] sm:$0xf]
      %v458 = vld [vmem:[%s3 + $0x118] sm:$0xff]
      %v459 = vld [vmem:[%s3 + $0x120] sm:$0xff]
      %v460 = vld [vmem:[%s3 + $0x128] sm:$0xf]
      %v461 = vld [vmem:[%s3 + $0x12c] sm:$0xff]
      %v462 = vld [vmem:[%s3 + $0x134] sm:$0xff]
      %v463 = vld [vmem:[%s3 + $0x13c] sm:$0xf]
      %v464 = vld [vmem:[%s3 + $0x140] sm:$0xff]
      %v465 = vld [vmem:[%s3 + $0x148] sm:$0xff]
      %v466 = vld [vmem:[%s3 + $0x150] sm:$0xf]
      %v467 = vld [vmem:[%s3 + $0x154] sm:$0xff]
      %v468 = vld [vmem:[%s3 + $0x15c] sm:$0xff]
      %v469 = vld [vmem:[%s3 + $0x164] sm:$0xf]
      %v470 = vld [vmem:[%s3 + $0x168] sm:$0xff]
      %v471 = vld [vmem:[%s3 + $0x170] sm:$0xff]
      %v472 = vld [vmem:[%s3 + $0x178] sm:$0xf]
      %v473 = vld [vmem:[%s3 + $0x17c] sm:$0xff]
      %v474 = vld [vmem:[%s3 + $0x184] sm:$0xff]
      %v475 = vld [vmem:[%s3 + $0x18c] sm:$0xf]
      %v476 = vld [vmem:[%s3 + $0x190] sm:$0xff]
      %v477 = vld [vmem:[%s3 + $0x198] sm:$0xff]
      %v478 = vld [vmem:[%s3 + $0x1a0] sm:$0xf]
      %v479 = vld [vmem:[%s3 + $0x1a4] sm:$0xff]
      %v480 = vld [vmem:[%s3 + $0x1ac] sm:$0xff]
      %v481 = vld [vmem:[%s3 + $0x1b4] sm:$0xf]
      %v482 = vld [vmem:[%s3 + $0x1b8] sm:$0xff]
      %v483 = vld [vmem:[%s3 + $0x1c0] sm:$0xff]
      %v484 = vld [vmem:[%s3 + $0x1c8] sm:$0xf]
      %v485 = vld [vmem:[%s3 + $0x1cc] sm:$0xff]
      %v486 = vld [vmem:[%s3 + $0x1d4] sm:$0xff]
      %v487 = vld [vmem:[%s3 + $0x1dc] sm:$0xf]
      %v488 = vld [vmem:[%s3 + $0x1e0] sm:$0xff]
      %v489 = vld [vmem:[%s3 + $0x1e8] sm:$0xff]
      %v490 = vld [vmem:[%s3 + $0x1f0] sm:$0xf]
      %v491 = vld [vmem:[%s3 + $0x1f4] sm:$0xff]
      %v492 = vld [vmem:[%s3 + $0x1fc] sm:$0xff]
      %v493 = vld [vmem:[%s3 + $0x204] sm:$0xf]
      %v494 = vld [vmem:[%s3 + $0x208] sm:$0xff]
      %v495 = vld [vmem:[%s3 + $0x210] sm:$0xff]
      %v496 = vld [vmem:[%s3 + $0x218] sm:$0xf]
      %v497 = vld [vmem:[%s3 + $0x21c] sm:$0xff]
      %v498 = vld [vmem:[%s3 + $0x224] sm:$0xff]
      %v499 = vld [vmem:[%s3 + $0x22c] sm:$0xf]
      %v500 = vld [vmem:[%s3 + $0x230] sm:$0xff]
      %v501 = vld [vmem:[%s3 + $0x238] sm:$0xff]
      %v502 = vld [vmem:[%s3 + $0x240] sm:$0xf]
      %v503 = vld [vmem:[%s3 + $0x244] sm:$0xff]
      %v504 = vld [vmem:[%s3 + $0x24c] sm:$0xff]
      %v505 = vld [vmem:[%s3 + $0x254] sm:$0xf]
      %v506 = vld [vmem:[%s3 + $0x258] sm:$0xff]
      %v507 = vld [vmem:[%s3 + $0x260] sm:$0xff]
      %v508 = vld [vmem:[%s3 + $0x268] sm:$0xf]
      %v509 = vld [vmem:[%s3 + $0x26c] sm:$0xff]
      %v510 = vld [vmem:[%s3 + $0x274] sm:$0xff]
      %v511 = vld [vmem:[%s3 + $0x27c] sm:$0xf]
      %513 = vst [vmem:[#allocation1] ss:$4 sm:$0xff] %v415
      %v514 = vld.sshfl [vmem:[#allocation1] sm:$0xff pattern:$0x73625140]
      %v515 = vld.sshfl [vmem:[#allocation1 + $0x8] sm:$0xff pattern:$0x73625140]
      %v614 = vunpack.c.l.b16 %v416
      %v615 = vunpack.c.h.b16 %v416
      %v616 = vunpack.c.l.b16 %v417
      %v617 = vunpack.c.h.b16 %v417
      %v618 = vunpack.c.l.b16 %v418
      %v619 = vunpack.c.l.b16 %v419
      %v620 = vunpack.c.h.b16 %v419
      %v621 = vunpack.c.l.b16 %v420
      %v622 = vunpack.c.h.b16 %v420
      %v623 = vunpack.c.l.b16 %v421
      %v624 = vunpack.c.l.b16 %v422
      %v625 = vunpack.c.h.b16 %v422
      %v626 = vunpack.c.l.b16 %v423
      %v627 = vunpack.c.h.b16 %v423
      %v628 = vunpack.c.l.b16 %v424
      %v629 = vunpack.c.l.b16 %v425
      %v630 = vunpack.c.h.b16 %v425
      %v631 = vunpack.c.l.b16 %v426
      %v632 = vunpack.c.h.b16 %v426
      %v633 = vunpack.c.l.b16 %v427
      %v634 = vunpack.c.l.b16 %v428
      %v635 = vunpack.c.h.b16 %v428
      %v636 = vunpack.c.l.b16 %v429
      %v637 = vunpack.c.h.b16 %v429
      %v638 = vunpack.c.l.b16 %v430
      %v639 = vunpack.c.l.b16 %v431
      %v640 = vunpack.c.h.b16 %v431
      %v641 = vunpack.c.l.b16 %v432
      %v642 = vunpack.c.h.b16 %v432
      %v643 = vunpack.c.l.b16 %v433
      %v644 = vunpack.c.l.b16 %v434
      %v645 = vunpack.c.h.b16 %v434
      %v646 = vunpack.c.l.b16 %v435
      %v647 = vunpack.c.h.b16 %v435
      %v648 = vunpack.c.l.b16 %v436
      %v649 = vunpack.c.l.b16 %v437
      %v650 = vunpack.c.h.b16 %v437
      %v651 = vunpack.c.l.b16 %v438
      %v652 = vunpack.c.h.b16 %v438
      %v653 = vunpack.c.l.b16 %v439
      %v654 = vunpack.c.l.b16 %v440
      %v655 = vunpack.c.h.b16 %v440
      %v656 = vunpack.c.l.b16 %v441
      %v657 = vunpack.c.h.b16 %v441
      %v658 = vunpack.c.l.b16 %v442
      %v659 = vunpack.c.l.b16 %v443
      %v660 = vunpack.c.h.b16 %v443
      %v661 = vunpack.c.l.b16 %v444
      %v662 = vunpack.c.h.b16 %v444
      %v663 = vunpack.c.l.b16 %v445
      %v664 = vunpack.c.l.b16 %v446
      %v665 = vunpack.c.h.b16 %v446
      %v666 = vunpack.c.l.b16 %v447
      %v667 = vunpack.c.h.b16 %v447
      %v668 = vunpack.c.l.b16 %v448
      %v669 = vunpack.c.l.b16 %v449
      %v670 = vunpack.c.h.b16 %v449
      %v671 = vunpack.c.l.b16 %v450
      %v672 = vunpack.c.h.b16 %v450
      %v673 = vunpack.c.l.b16 %v451
      %v674 = vunpack.c.l.b16 %v452
      %v675 = vunpack.c.h.b16 %v452
      %v676 = vunpack.c.l.b16 %v453
      %v677 = vunpack.c.h.b16 %v453
      %v678 = vunpack.c.l.b16 %v454
      %v679 = vunpack.c.l.b16 %v455
      %v680 = vunpack.c.h.b16 %v455
      %v681 = vunpack.c.l.b16 %v456
      %v682 = vunpack.c.h.b16 %v456
      %v683 = vunpack.c.l.b16 %v457
      %v684 = vunpack.c.l.b16 %v458
      %v685 = vunpack.c.h.b16 %v458
      %v686 = vunpack.c.l.b16 %v459
      %v687 = vunpack.c.h.b16 %v459
      %v688 = vunpack.c.l.b16 %v460
      %v689 = vunpack.c.l.b16 %v461
      %v690 = vunpack.c.h.b16 %v461
      %v691 = vunpack.c.l.b16 %v462
      %v692 = vunpack.c.h.b16 %v462
      %v693 = vunpack.c.l.b16 %v463
      %v694 = vunpack.c.l.b16 %v464
      %v695 = vunpack.c.h.b16 %v464
      %v696 = vunpack.c.l.b16 %v465
      %v697 = vunpack.c.h.b16 %v465
      %v698 = vunpack.c.l.b16 %v466
      %v699 = vunpack.c.l.b16 %v467
      %v700 = vunpack.c.h.b16 %v467
      %v701 = vunpack.c.l.b16 %v468
      %v702 = vunpack.c.h.b16 %v468
      %v703 = vunpack.c.l.b16 %v469
      %v704 = vunpack.c.l.b16 %v470
      %v705 = vunpack.c.h.b16 %v470
      %v706 = vunpack.c.l.b16 %v471
      %v707 = vunpack.c.h.b16 %v471
      %v708 = vunpack.c.l.b16 %v472
      %v709 = vunpack.c.l.b16 %v473
      %v710 = vunpack.c.h.b16 %v473
      %v711 = vunpack.c.l.b16 %v474
      %v712 = vunpack.c.h.b16 %v474
      %v713 = vunpack.c.l.b16 %v475
      %v714 = vunpack.c.l.b16 %v476
      %v715 = vunpack.c.h.b16 %v476
      %v716 = vunpack.c.l.b16 %v477
      %v717 = vunpack.c.h.b16 %v477
      %v718 = vunpack.c.l.b16 %v478
      %v719 = vunpack.c.l.b16 %v479
      %v720 = vunpack.c.h.b16 %v479
      %v721 = vunpack.c.l.b16 %v480
      %v722 = vunpack.c.h.b16 %v480
      %v723 = vunpack.c.l.b16 %v481
      %v724 = vunpack.c.l.b16 %v482
      %v725 = vunpack.c.h.b16 %v482
      %v726 = vunpack.c.l.b16 %v483
      %v727 = vunpack.c.h.b16 %v483
      %v728 = vunpack.c.l.b16 %v484
      %v729 = vunpack.c.l.b16 %v485
      %v730 = vunpack.c.h.b16 %v485
      %v731 = vunpack.c.l.b16 %v486
      %v732 = vunpack.c.h.b16 %v486
      %v733 = vunpack.c.l.b16 %v487
      %v734 = vunpack.c.l.b16 %v488
      %v735 = vunpack.c.h.b16 %v488
      %v736 = vunpack.c.l.b16 %v489
      %v737 = vunpack.c.h.b16 %v489
      %v738 = vunpack.c.l.b16 %v490
      %v739 = vunpack.c.l.b16 %v491
      %v740 = vunpack.c.h.b16 %v491
      %v741 = vunpack.c.l.b16 %v492
      %v742 = vunpack.c.h.b16 %v492
      %v743 = vunpack.c.l.b16 %v493
      %v744 = vunpack.c.l.b16 %v494
      %v745 = vunpack.c.h.b16 %v494
      %v746 = vunpack.c.l.b16 %v495
      %v747 = vunpack.c.h.b16 %v495
      %v748 = vunpack.c.l.b16 %v496
      %v749 = vunpack.c.l.b16 %v497
      %v750 = vunpack.c.h.b16 %v497
      %v751 = vunpack.c.l.b16 %v498
      %v752 = vunpack.c.h.b16 %v498
      %v753 = vunpack.c.l.b16 %v499
      %v754 = vunpack.c.l.b16 %v500
      %v755 = vunpack.c.h.b16 %v500
      %v756 = vunpack.c.l.b16 %v501
      %v757 = vunpack.c.h.b16 %v501
      %v758 = vunpack.c.l.b16 %v502
      %v759 = vunpack.c.l.b16 %v503
      %v760 = vunpack.c.h.b16 %v503
      %v761 = vunpack.c.l.b16 %v504
      %v762 = vunpack.c.h.b16 %v504
      %v763 = vunpack.c.l.b16 %v505
      %v764 = vunpack.c.l.b16 %v506
      %v765 = vunpack.c.h.b16 %v506
      %v766 = vunpack.c.l.b16 %v507
      %v767 = vunpack.c.h.b16 %v507
      %v768 = vunpack.c.l.b16 %v508
      %v769 = vunpack.c.l.b16 %v509
      %v770 = vunpack.c.h.b16 %v509
      %v771 = vunpack.c.l.b16 %v510
      %v772 = vunpack.c.h.b16 %v510
      %v773 = vunpack.c.l.b16 %v511
      %v774 = vpack.c.b16 %v619, %v614
      %v775 = vpack.c.b16 %v620, %v615
      %v776 = vpack.c.b16 %v621, %v616
      %v777 = vpack.c.b16 %v622, %v617
      %v778 = vpack.c.b16 %v623, %v618
      %v779 = vpack.c.b16 %v629, %v624
      %v780 = vpack.c.b16 %v630, %v625
      %v781 = vpack.c.b16 %v631, %v626
      %v782 = vpack.c.b16 %v632, %v627
      %v783 = vpack.c.b16 %v633, %v628
      %v784 = vpack.c.b16 %v639, %v634
      %v785 = vpack.c.b16 %v640, %v635
      %v786 = vpack.c.b16 %v641, %v636
      %v787 = vpack.c.b16 %v642, %v637
      %v788 = vpack.c.b16 %v643, %v638
      %v789 = vpack.c.b16 %v649, %v644
      %v790 = vpack.c.b16 %v650, %v645
      %v791 = vpack.c.b16 %v651, %v646
      %v792 = vpack.c.b16 %v652, %v647
      %v793 = vpack.c.b16 %v653, %v648
      %v794 = vpack.c.b16 %v659, %v654
      %v795 = vpack.c.b16 %v660, %v655
      %v796 = vpack.c.b16 %v661, %v656
      %v797 = vpack.c.b16 %v662, %v657
      %v798 = vpack.c.b16 %v663, %v658
      %v799 = vpack.c.b16 %v669, %v664
      %v800 = vpack.c.b16 %v670, %v665
      %v801 = vpack.c.b16 %v671, %v666
      %v802 = vpack.c.b16 %v672, %v667
      %v803 = vpack.c.b16 %v673, %v668
      %v804 = vpack.c.b16 %v679, %v674
      %v805 = vpack.c.b16 %v680, %v675
      %v806 = vpack.c.b16 %v681, %v676
      %v807 = vpack.c.b16 %v682, %v677
      %v808 = vpack.c.b16 %v683, %v678
      %v809 = vpack.c.b16 %v689, %v684
      %v810 = vpack.c.b16 %v690, %v685
      %v811 = vpack.c.b16 %v691, %v686
      %v812 = vpack.c.b16 %v692, %v687
      %v813 = vpack.c.b16 %v693, %v688
      %v814 = vpack.c.b16 %v699, %v694
      %v815 = vpack.c.b16 %v700, %v695
      %v816 = vpack.c.b16 %v701, %v696
      %v817 = vpack.c.b16 %v702, %v697
      %v818 = vpack.c.b16 %v703, %v698
      %v819 = vpack.c.b16 %v709, %v704
      %v820 = vpack.c.b16 %v710, %v705
      %v821 = vpack.c.b16 %v711, %v706
      %v822 = vpack.c.b16 %v712, %v707
      %v823 = vpack.c.b16 %v713, %v708
      %v824 = vpack.c.b16 %v719, %v714
      %v825 = vpack.c.b16 %v720, %v715
      %v826 = vpack.c.b16 %v721, %v716
      %v827 = vpack.c.b16 %v722, %v717
      %v828 = vpack.c.b16 %v723, %v718
      %v829 = vpack.c.b16 %v729, %v724
      %v830 = vpack.c.b16 %v730, %v725
      %v831 = vpack.c.b16 %v731, %v726
      %v832 = vpack.c.b16 %v732, %v727
      %v833 = vpack.c.b16 %v733, %v728
      %v834 = vpack.c.b16 %v739, %v734
      %v835 = vpack.c.b16 %v740, %v735
      %v836 = vpack.c.b16 %v741, %v736
      %v837 = vpack.c.b16 %v742, %v737
      %v838 = vpack.c.b16 %v743, %v738
      %v839 = vpack.c.b16 %v749, %v744
      %v840 = vpack.c.b16 %v750, %v745
      %v841 = vpack.c.b16 %v751, %v746
      %v842 = vpack.c.b16 %v752, %v747
      %v843 = vpack.c.b16 %v753, %v748
      %v844 = vpack.c.b16 %v759, %v754
      %v845 = vpack.c.b16 %v760, %v755
      %v846 = vpack.c.b16 %v761, %v756
      %v847 = vpack.c.b16 %v762, %v757
      %v848 = vpack.c.b16 %v763, %v758
      %v849 = vpack.c.b16 %v769, %v764
      %v850 = vpack.c.b16 %v770, %v765
      %v851 = vpack.c.b16 %v771, %v766
      %v852 = vpack.c.b16 %v772, %v767
      %v853 = vpack.c.b16 %v773, %v768
      %934 = vmatpush.bf16.msra.mxu0 %v809
      %935 = vmatpush.bf16.msra.mxu0 %v804
      %936 = vmatpush.bf16.msra.mxu0 %v799
      %937 = vmatpush.bf16.msra.mxu0 %v794
      %938 = vmatpush.bf16.msra.mxu0 %v789
      %939 = vmatpush.bf16.msra.mxu0 %v784
      %940 = vmatpush.bf16.msra.mxu0 %v779
      %941 = vmatpush.bf16.msra.mxu0 %v774
      %942 = vmatmul.bf16.gmra.mxu0 %v514
      %v943 = vpop.f32.mrf.mxu0
      %v944 = vadd.f32 0.0, %v943
      %v945 = vpop.f32.mrf.mxu0
      %946 = vdwg.mxu0
      %947 = vmatpush.bf16.msra.mxu0 %v849
      %948 = vmatpush.bf16.msra.mxu0 %v844
      %949 = vmatpush.bf16.msra.mxu0 %v839
      %950 = vmatpush.bf16.msra.mxu0 %v834
      %951 = vmatpush.bf16.msra.mxu0 %v829
      %952 = vmatpush.bf16.msra.mxu0 %v824
      %953 = vmatpush.bf16.msra.mxu0 %v819
      %954 = vmatpush.bf16.msra.mxu0 %v814
      %955 = vmatmul.bf16.gmra.mxu0 %v515
      %v956 = vpop.f32.mrf.mxu0
      %v957 = vadd.f32 %v944, %v956
      %v958 = vpop.f32.mrf.mxu0
      %959 = vdwg.mxu0
      %960 = vmatpush.bf16.msra.mxu0 %v810
      %961 = vmatpush.bf16.msra.mxu0 %v805
      %962 = vmatpush.bf16.msra.mxu0 %v800
      %963 = vmatpush.bf16.msra.mxu0 %v795
      %964 = vmatpush.bf16.msra.mxu0 %v790
      %965 = vmatpush.bf16.msra.mxu0 %v785
      %966 = vmatpush.bf16.msra.mxu0 %v780
      %967 = vmatpush.bf16.msra.mxu0 %v775
      %968 = vmatmul.bf16.gmra.mxu0 %v514
      %v969 = vpop.f32.mrf.mxu0
      %v970 = vadd.f32 0.0, %v969
      %v971 = vpop.f32.mrf.mxu0
      %972 = vdwg.mxu0
      %973 = vmatpush.bf16.msra.mxu0 %v850
      %974 = vmatpush.bf16.msra.mxu0 %v845
      %975 = vmatpush.bf16.msra.mxu0 %v840
      %976 = vmatpush.bf16.msra.mxu0 %v835
      %977 = vmatpush.bf16.msra.mxu0 %v830
      %978 = vmatpush.bf16.msra.mxu0 %v825
      %979 = vmatpush.bf16.msra.mxu0 %v820
      %980 = vmatpush.bf16.msra.mxu0 %v815
      %981 = vmatmul.bf16.gmra.mxu0 %v515
      %v982 = vpop.f32.mrf.mxu0
      %v983 = vadd.f32 %v970, %v982
      %v984 = vpop.f32.mrf.mxu0
      %985 = vdwg.mxu0
      %986 = vmatpush.bf16.msra.mxu0 %v811
      %987 = vmatpush.bf16.msra.mxu0 %v806
      %988 = vmatpush.bf16.msra.mxu0 %v801
      %989 = vmatpush.bf16.msra.mxu0 %v796
      %990 = vmatpush.bf16.msra.mxu0 %v791
      %991 = vmatpush.bf16.msra.mxu0 %v786
      %992 = vmatpush.bf16.msra.mxu0 %v781
      %993 = vmatpush.bf16.msra.mxu0 %v776
      %994 = vmatmul.bf16.gmra.mxu0 %v514
      %v995 = vpop.f32.mrf.mxu0
      %v996 = vadd.f32 0.0, %v995
      %v997 = vpop.f32.mrf.mxu0
      %998 = vdwg.mxu0
      %999 = vmatpush.bf16.msra.mxu0 %v851
      %1000 = vmatpush.bf16.msra.mxu0 %v846
      %1001 = vmatpush.bf16.msra.mxu0 %v841
      %1002 = vmatpush.bf16.msra.mxu0 %v836
      %1003 = vmatpush.bf16.msra.mxu0 %v831
      %1004 = vmatpush.bf16.msra.mxu0 %v826
      %1005 = vmatpush.bf16.msra.mxu0 %v821
      %1006 = vmatpush.bf16.msra.mxu0 %v816
      %1007 = vmatmul.bf16.gmra.mxu0 %v515
      %v1008 = vpop.f32.mrf.mxu0
      %v1009 = vadd.f32 %v996, %v1008
      %v1010 = vpop.f32.mrf.mxu0
      %1011 = vdwg.mxu0
      %1012 = vmatpush.bf16.msra.mxu0 %v812
      %1013 = vmatpush.bf16.msra.mxu0 %v807
      %1014 = vmatpush.bf16.msra.mxu0 %v802
      %1015 = vmatpush.bf16.msra.mxu0 %v797
      %1016 = vmatpush.bf16.msra.mxu0 %v792
      %1017 = vmatpush.bf16.msra.mxu0 %v787
      %1018 = vmatpush.bf16.msra.mxu0 %v782
      %1019 = vmatpush.bf16.msra.mxu0 %v777
      %1020 = vmatmul.bf16.gmra.mxu0 %v514
      %v1021 = vpop.f32.mrf.mxu0
      %v1022 = vadd.f32 0.0, %v1021
      %v1023 = vpop.f32.mrf.mxu0
      %1024 = vdwg.mxu0
      %1025 = vmatpush.bf16.msra.mxu0 %v852
      %1026 = vmatpush.bf16.msra.mxu0 %v847
      %1027 = vmatpush.bf16.msra.mxu0 %v842
      %1028 = vmatpush.bf16.msra.mxu0 %v837
      %1029 = vmatpush.bf16.msra.mxu0 %v832
      %1030 = vmatpush.bf16.msra.mxu0 %v827
      %1031 = vmatpush.bf16.msra.mxu0 %v822
      %1032 = vmatpush.bf16.msra.mxu0 %v817
      %1033 = vmatmul.bf16.gmra.mxu0 %v515
      %v1034 = vpop.f32.mrf.mxu0
      %v1035 = vadd.f32 %v1022, %v1034
      %v1036 = vpop.f32.mrf.mxu0
      %1037 = vdwg.mxu0
      %1038 = vmatpush.bf16.msra.mxu0 %v813
      %1039 = vmatpush.bf16.msra.mxu0 %v808
      %1040 = vmatpush.bf16.msra.mxu0 %v803
      %1041 = vmatpush.bf16.msra.mxu0 %v798
      %1042 = vmatpush.bf16.msra.mxu0 %v793
      %1043 = vmatpush.bf16.msra.mxu0 %v788
      %1044 = vmatpush.bf16.msra.mxu0 %v783
      %1045 = vmatpush.bf16.msra.mxu0 %v778
      %1046 = vmatmul.bf16.gmra.mxu0 %v514
      %v1047 = vpop.f32.mrf.mxu0
      %v1048 = vadd.f32 0.0, %v1047
      %v1049 = vpop.f32.mrf.mxu0
      %1050 = vdwg.mxu0
      %1051 = vmatpush.bf16.msra.mxu0 %v853
      %1052 = vmatpush.bf16.msra.mxu0 %v848
      %1053 = vmatpush.bf16.msra.mxu0 %v843
      %1054 = vmatpush.bf16.msra.mxu0 %v838
      %1055 = vmatpush.bf16.msra.mxu0 %v833
      %1056 = vmatpush.bf16.msra.mxu0 %v828
      %1057 = vmatpush.bf16.msra.mxu0 %v823
      %1058 = vmatpush.bf16.msra.mxu0 %v818
      %1059 = vmatmul.bf16.gmra.mxu0 %v515
      %v1060 = vpop.f32.mrf.mxu0
      %v1061 = vadd.f32 %v1048, %v1060
      %v1062 = vpop.f32.mrf.mxu0
      %1063 = vdwg.mxu0
      %v1064 = vpack.c.bf16 %v983, %v957
      %v1065 = vpack.c.bf16 %v1035, %v1009
      %v1066 = vpack.c.bf16 %v1061, %v1061
      %v1067 = vld [vmem:[%s1] sm:$0xf]
      %s1068 = scalar_lea.vmem %s1, 16
      %v1069 = vld [vmem:[%s1068] sm:$0xf]
      %v1071 = vunpack.c.l.b16 %v1064
      %v1072 = vpack.c.b16 %v1071, %v1071
      %1073 = vrot.lane.b32.xlu0 %v1072, 64
      %v1074 = vpop.permute.xlu0 %1073
      %vm1075 = vcmask 31744
      %v1077 = vsel %vm1075, %v1069, 0
      %vm1079 = vcmask 1041408
      %v1081 = vsel %vm1079, %v1074, 0
      %1083 = vmatpush.bf16.msra.mxu0 0
      %1084 = vmatpush.bf16.msra.mxu0 0
      %1085 = vmatpush.bf16.msra.mxu0 0
      %1086 = vmatpush.bf16.msra.mxu0 0
      %1087 = vmatpush.bf16.msra.mxu0 0
      %1088 = vmatpush.bf16.msra.mxu0 0
      %1089 = vmatpush.bf16.msra.mxu0 0
      %1090 = vmatpush.bf16.msra.mxu0 %v1081
      %1091 = vmatmul.bf16.gmra.mxu0 %v1077
      %v1092 = vpop.f32.mrf.mxu0
      %v1093 = vadd.f32 0.0, %v1092
      %v1094 = vpop.f32.mrf.mxu0
      %1095 = vdwg.mxu0
      %v1097 = vsel %vm1075, %v1067, 0
      %v1100 = vsel %vm1079, %v1064, 0
      %1102 = vmatpush.bf16.msra.mxu0 0
      %1103 = vmatpush.bf16.msra.mxu0 0
      %1104 = vmatpush.bf16.msra.mxu0 0
      %1105 = vmatpush.bf16.msra.mxu0 0
      %1106 = vmatpush.bf16.msra.mxu0 0
      %1107 = vmatpush.bf16.msra.mxu0 0
      %1108 = vmatpush.bf16.msra.mxu0 0
      %1109 = vmatpush.bf16.msra.mxu0 %v1100
      %1110 = vmatmul.bf16.gmra.mxu0 %v1097
      %v1111 = vpop.f32.mrf.mxu0
      %v1112 = vadd.f32 %v1093, %v1111
      %v1113 = vpop.f32.mrf.mxu0
      %1114 = vdwg.mxu0
      %s1115 = scalar_lea.vmem %s1, 32
      %v1116 = vld [vmem:[%s1115] sm:$0xf]
      %v1117 = vunpack.c.h.b16 %v1064
      %v1118 = vpack.c.b16 %v1117, %v1117
      %v1120 = vsel %vm1075, %v1116, 0
      %v1123 = vsel %vm1079, %v1118, 0
      %1125 = vmatpush.bf16.msra.mxu0 0
      %1126 = vmatpush.bf16.msra.mxu0 0
      %1127 = vmatpush.bf16.msra.mxu0 0
      %1128 = vmatpush.bf16.msra.mxu0 0
      %1129 = vmatpush.bf16.msra.mxu0 0
      %1130 = vmatpush.bf16.msra.mxu0 0
      %1131 = vmatpush.bf16.msra.mxu0 0
      %1132 = vmatpush.bf16.msra.mxu0 %v1123
      %1133 = vmatmul.bf16.gmra.mxu0 %v1120
      %v1134 = vpop.f32.mrf.mxu0
      %v1135 = vadd.f32 0.0, %v1134
      %v1136 = vpop.f32.mrf.mxu0
      %1137 = vdwg.mxu0
      %v1138 = vadd.f32 %v1112, %v1135
      %s1139 = scalar_lea.vmem %s1, 48
      %v1140 = vld [vmem:[%s1139] sm:$0xf]
      %1141 = vrot.lane.b32.xlu0 %v1118, 64
      %v1142 = vpop.permute.xlu0 %1141
      %v1144 = vsel %vm1075, %v1140, 0
      %v1147 = vsel %vm1079, %v1142, 0
      %1149 = vmatpush.bf16.msra.mxu0 0
      %1150 = vmatpush.bf16.msra.mxu0 0
      %1151 = vmatpush.bf16.msra.mxu0 0
      %1152 = vmatpush.bf16.msra.mxu0 0
      %1153 = vmatpush.bf16.msra.mxu0 0
      %1154 = vmatpush.bf16.msra.mxu0 0
      %1155 = vmatpush.bf16.msra.mxu0 0
      %1156 = vmatpush.bf16.msra.mxu0 %v1147
      %1157 = vmatmul.bf16.gmra.mxu0 %v1144
      %v1158 = vpop.f32.mrf.mxu0
      %v1159 = vadd.f32 0.0, %v1158
      %v1160 = vpop.f32.mrf.mxu0
      %1161 = vdwg.mxu0
      %v1162 = vadd.f32 %v1138, %v1159
      %s1163 = scalar_lea.vmem %s1, 64
      %v1164 = vld [vmem:[%s1163] sm:$0xf]
      %v1166 = vsel %vm1075, %v1164, 0
      %v1169 = vsel %vm1079, %v1065, 0
      %1171 = vmatpush.bf16.msra.mxu0 0
      %1172 = vmatpush.bf16.msra.mxu0 0
      %1173 = vmatpush.bf16.msra.mxu0 0
      %1174 = vmatpush.bf16.msra.mxu0 0
      %1175 = vmatpush.bf16.msra.mxu0 0
      %1176 = vmatpush.bf16.msra.mxu0 0
      %1177 = vmatpush.bf16.msra.mxu0 0
      %1178 = vmatpush.bf16.msra.mxu0 %v1169
      %1179 = vmatmul.bf16.gmra.mxu0 %v1166
      %v1180 = vpop.f32.mrf.mxu0
      %v1181 = vadd.f32 0.0, %v1180
      %v1182 = vpop.f32.mrf.mxu0
      %1183 = vdwg.mxu0
      %v1184 = vadd.f32 %v1162, %v1181
      %s1185 = scalar_lea.vmem %s1, 80
      %v1186 = vld [vmem:[%s1185] sm:$0xf]
      %v1188 = vunpack.c.l.b16 %v1065
      %v1189 = vpack.c.b16 %v1188, %v1188
      %1190 = vrot.lane.b32.xlu0 %v1189, 64
      %v1191 = vpop.permute.xlu0 %1190
      %v1193 = vsel %vm1075, %v1186, 0
      %v1196 = vsel %vm1079, %v1191, 0
      %1198 = vmatpush.bf16.msra.mxu0 0
      %1199 = vmatpush.bf16.msra.mxu0 0
      %1200 = vmatpush.bf16.msra.mxu0 0
      %1201 = vmatpush.bf16.msra.mxu0 0
      %1202 = vmatpush.bf16.msra.mxu0 0
      %1203 = vmatpush.bf16.msra.mxu0 0
      %1204 = vmatpush.bf16.msra.mxu0 0
      %1205 = vmatpush.bf16.msra.mxu0 %v1196
      %1206 = vmatmul.bf16.gmra.mxu0 %v1193
      %v1207 = vpop.f32.mrf.mxu0
      %v1208 = vadd.f32 0.0, %v1207
      %v1209 = vpop.f32.mrf.mxu0
      %1210 = vdwg.mxu0
      %v1211 = vadd.f32 %v1184, %v1208
      %s1212 = scalar_lea.vmem %s1, 96
      %v1213 = vld [vmem:[%s1212] sm:$0xf]
      %v1214 = vunpack.c.h.b16 %v1065
      %v1215 = vpack.c.b16 %v1214, %v1214
      %v1217 = vsel %vm1075, %v1213, 0
      %v1220 = vsel %vm1079, %v1215, 0
      %1222 = vmatpush.bf16.msra.mxu0 0
      %1223 = vmatpush.bf16.msra.mxu0 0
      %1224 = vmatpush.bf16.msra.mxu0 0
      %1225 = vmatpush.bf16.msra.mxu0 0
      %1226 = vmatpush.bf16.msra.mxu0 0
      %1227 = vmatpush.bf16.msra.mxu0 0
      %1228 = vmatpush.bf16.msra.mxu0 0
      %1229 = vmatpush.bf16.msra.mxu0 %v1220
      %1230 = vmatmul.bf16.gmra.mxu0 %v1217
      %v1231 = vpop.f32.mrf.mxu0
      %v1232 = vadd.f32 0.0, %v1231
      %v1233 = vpop.f32.mrf.mxu0
      %1234 = vdwg.mxu0
      %v1235 = vadd.f32 %v1211, %v1232
      %s1236 = scalar_lea.vmem %s1, 112
      %v1237 = vld [vmem:[%s1236] sm:$0xf]
      %1238 = vrot.lane.b32.xlu0 %v1215, 64
      %v1239 = vpop.permute.xlu0 %1238
      %v1241 = vsel %vm1075, %v1237, 0
      %v1244 = vsel %vm1079, %v1239, 0
      %1246 = vmatpush.bf16.msra.mxu0 0
      %1247 = vmatpush.bf16.msra.mxu0 0
      %1248 = vmatpush.bf16.msra.mxu0 0
      %1249 = vmatpush.bf16.msra.mxu0 0
      %1250 = vmatpush.bf16.msra.mxu0 0
      %1251 = vmatpush.bf16.msra.mxu0 0
      %1252 = vmatpush.bf16.msra.mxu0 0
      %1253 = vmatpush.bf16.msra.mxu0 %v1244
      %1254 = vmatmul.bf16.gmra.mxu0 %v1241
      %v1255 = vpop.f32.mrf.mxu0
      %v1256 = vadd.f32 0.0, %v1255
      %v1257 = vpop.f32.mrf.mxu0
      %1258 = vdwg.mxu0
      %v1259 = vadd.f32 %v1235, %v1256
      %s1260 = scalar_lea.vmem %s1, 128
      %v1261 = vld [vmem:[%s1260] sm:$0xf]
      %v1263 = vsel %vm1075, %v1261, 0
      %v1266 = vsel %vm1079, %v1066, 0
      %1268 = vmatpush.bf16.msra.mxu0 0
      %1269 = vmatpush.bf16.msra.mxu0 0
      %1270 = vmatpush.bf16.msra.mxu0 0
      %1271 = vmatpush.bf16.msra.mxu0 0
      %1272 = vmatpush.bf16.msra.mxu0 0
      %1273 = vmatpush.bf16.msra.mxu0 0
      %1274 = vmatpush.bf16.msra.mxu0 0
      %1275 = vmatpush.bf16.msra.mxu0 %v1266
      %1276 = vmatmul.bf16.gmra.mxu0 %v1263
      %v1277 = vpop.f32.mrf.mxu0
      %v1278 = vadd.f32 0.0, %v1277
      %v1279 = vpop.f32.mrf.mxu0
      %1280 = vdwg.mxu0
      %v1281 = vadd.f32 %v1259, %v1278
      %v1282 = vld [vmem:[%s2] sm:$0xff]
      %1284 = vset.pattern.permute.xlu0 0
      %1285 = vperm.xlu0 %1284, %v1282
      %v1286 = vpop.permute.xlu0 %1285
      %v1288 = vadd.f32 %v1281, %v1286
      %vm1289 = vcmp.gt.f32.partialorder %v1288, 0.0
      %v1290 = vmul.f32 %v1288, 0.1
      %v1291 = vsel %vm1289, %v1288, %v1290
      %v1292 = vpack.c.bf16 %v1291, %v1291
      %v1293 = vld [vmem:[%s4] sm:$0xff]
      %v1294 = vld [vmem:[%s4 + $0x8] sm:$0xff]
      %v1295 = vld [vmem:[%s4 + $0x10] sm:$0xff]
      %v1296 = vld [vmem:[%s4 + $0x18] sm:$0xff]
      %v1297 = vld [vmem:[%s4 + $0x20] sm:$0xff]
      %v1298 = vld [vmem:[%s4 + $0x28] sm:$0xff]
      %v1299 = vld [vmem:[%s4 + $0x30] sm:$0xff]
      %v1300 = vld [vmem:[%s4 + $0x38] sm:$0xff]
      %v1309 = vunpack.c.l.b16 %v1293
      %v1310 = vunpack.c.h.b16 %v1293
      %v1311 = vunpack.c.l.b16 %v1294
      %v1312 = vunpack.c.h.b16 %v1294
      %v1313 = vunpack.c.l.b16 %v1295
      %v1314 = vunpack.c.h.b16 %v1295
      %v1315 = vunpack.c.l.b16 %v1296
      %v1316 = vunpack.c.h.b16 %v1296
      %v1317 = vunpack.c.l.b16 %v1297
      %v1318 = vunpack.c.h.b16 %v1297
      %v1319 = vunpack.c.l.b16 %v1298
      %v1320 = vunpack.c.h.b16 %v1298
      %v1321 = vunpack.c.l.b16 %v1299
      %v1322 = vunpack.c.h.b16 %v1299
      %v1323 = vunpack.c.l.b16 %v1300
      %v1324 = vunpack.c.h.b16 %v1300
      %v1325 = vpack.c.b16 %v1311, %v1309
      %v1326 = vpack.c.b16 %v1312, %v1310
      %v1327 = vpack.c.b16 %v1315, %v1313
      %v1328 = vpack.c.b16 %v1316, %v1314
      %v1329 = vpack.c.b16 %v1319, %v1317
      %v1330 = vpack.c.b16 %v1320, %v1318
      %v1331 = vpack.c.b16 %v1323, %v1321
      %v1332 = vpack.c.b16 %v1324, %v1322
      %vm1341 = vcmask 523264
      %v1343 = vsel %vm1341, %v1292, 0
      %1345 = vmatpush.bf16.msra.mxu0 0
      %1346 = vmatpush.bf16.msra.mxu0 0
      %1347 = vmatpush.bf16.msra.mxu0 0
      %1348 = vmatpush.bf16.msra.mxu0 0
      %1349 = vmatpush.bf16.msra.mxu0 %v1331
      %1350 = vmatpush.bf16.msra.mxu0 %v1329
      %1351 = vmatpush.bf16.msra.mxu0 %v1327
      %1352 = vmatpush.bf16.msra.mxu0 %v1325
      %1353 = vmatmul.bf16.gmra.mxu0 %v1343
      %v1354 = vpop.f32.mrf.mxu0
      %v1355 = vadd.f32 0.0, %v1354
      %v1356 = vpop.f32.mrf.mxu0
      %1357 = vdwg.mxu0
      %1358 = vmatpush.bf16.msra.mxu0 0
      %1359 = vmatpush.bf16.msra.mxu0 0
      %1360 = vmatpush.bf16.msra.mxu0 0
      %1361 = vmatpush.bf16.msra.mxu0 0
      %1362 = vmatpush.bf16.msra.mxu0 %v1332
      %1363 = vmatpush.bf16.msra.mxu0 %v1330
      %1364 = vmatpush.bf16.msra.mxu0 %v1328
      %1365 = vmatpush.bf16.msra.mxu0 %v1326
      %1366 = vmatmul.bf16.gmra.mxu0 %v1343
      %v1367 = vpop.f32.mrf.mxu0
      %v1368 = vadd.f32 0.0, %v1367
      %v1369 = vpop.f32.mrf.mxu0
      %1370 = vdwg.mxu0
      %v1371 = vpack.c.bf16 %v1368, %v1355
      %s1372 = scalar_lea.vmem %s1, 144
      %v1373 = vld [vmem:[%s1372] sm:$0xf]
      %v1374 = vld [vmem:[%s1372 + $0x4] sm:$0xf]
      %s1375 = scalar_lea.vmem %s1, 160
      %v1376 = vld [vmem:[%s1375] sm:$0xf]
      %v1377 = vld [vmem:[%s1375 + $0x4] sm:$0xf]
      %v1380 = vunpack.c.l.b16 %v1376
      %v1381 = vunpack.c.l.b16 %v1377
      %v1382 = vpack.c.b16 %v1381, %v1380
      %v1384 = vunpack.c.l.b16 %v1371
      %v1385 = vpack.c.b16 %v1384, %v1384
      %1386 = vrot.lane.b32.xlu0 %v1385, 112
      %v1387 = vpop.permute.xlu0 %1386
      %vm1388 = vcmask 64512
      %v1390 = vsel %vm1388, %v1382, 0
      %vm1392 = vcmask 1043456
      %v1394 = vsel %vm1392, %v1387, 0
      %1396 = vmatpush.bf16.msra.mxu0 0
      %1397 = vmatpush.bf16.msra.mxu0 0
      %1398 = vmatpush.bf16.msra.mxu0 0
      %1399 = vmatpush.bf16.msra.mxu0 0
      %1400 = vmatpush.bf16.msra.mxu0 0
      %1401 = vmatpush.bf16.msra.mxu0 0
      %1402 = vmatpush.bf16.msra.mxu0 0
      %1403 = vmatpush.bf16.msra.mxu0 %v1394
      %1404 = vmatmul.bf16.gmra.mxu0 %v1390
      %v1405 = vpop.f32.mrf.mxu0
      %v1406 = vadd.f32 0.0, %v1405
      %v1407 = vpop.f32.mrf.mxu0
      %v1408 = vadd.f32 0.0, %v1407
      %1409 = vdwg.mxu0
      %v1412 = vunpack.c.l.b16 %v1373
      %v1413 = vunpack.c.l.b16 %v1374
      %v1414 = vpack.c.b16 %v1413, %v1412
      %v1416 = vsel %vm1388, %v1414, 0
      %v1419 = vsel %vm1392, %v1371, 0
      %1421 = vmatpush.bf16.msra.mxu0 0
      %1422 = vmatpush.bf16.msra.mxu0 0
      %1423 = vmatpush.bf16.msra.mxu0 0
      %1424 = vmatpush.bf16.msra.mxu0 0
      %1425 = vmatpush.bf16.msra.mxu0 0
      %1426 = vmatpush.bf16.msra.mxu0 0
      %1427 = vmatpush.bf16.msra.mxu0 0
      %1428 = vmatpush.bf16.msra.mxu0 %v1419
      %1429 = vmatmul.bf16.gmra.mxu0 %v1416
      %v1430 = vpop.f32.mrf.mxu0
      %v1431 = vadd.f32 %v1406, %v1430
      %v1432 = vpop.f32.mrf.mxu0
      %v1433 = vadd.f32 %v1408, %v1432
      %1434 = vdwg.mxu0
      %s1435 = scalar_lea.vmem %s1, 176
      %v1436 = vld [vmem:[%s1435] sm:$0xf]
      %v1437 = vld [vmem:[%s1435 + $0x4] sm:$0xf]
      %v1440 = vunpack.c.l.b16 %v1436
      %v1441 = vunpack.c.l.b16 %v1437
      %v1442 = vpack.c.b16 %v1441, %v1440
      %1443 = vrot.lane.b32.xlu0 %v1385, 96
      %v1444 = vpop.permute.xlu0 %1443
      %v1446 = vsel %vm1388, %v1442, 0
      %v1449 = vsel %vm1392, %v1444, 0
      %1451 = vmatpush.bf16.msra.mxu0 0
      %1452 = vmatpush.bf16.msra.mxu0 0
      %1453 = vmatpush.bf16.msra.mxu0 0
      %1454 = vmatpush.bf16.msra.mxu0 0
      %1455 = vmatpush.bf16.msra.mxu0 0
      %1456 = vmatpush.bf16.msra.mxu0 0
      %1457 = vmatpush.bf16.msra.mxu0 0
      %1458 = vmatpush.bf16.msra.mxu0 %v1449
      %1459 = vmatmul.bf16.gmra.mxu0 %v1446
      %v1460 = vpop.f32.mrf.mxu0
      %v1461 = vadd.f32 0.0, %v1460
      %v1462 = vpop.f32.mrf.mxu0
      %v1463 = vadd.f32 0.0, %v1462
      %1464 = vdwg.mxu0
      %v1465 = vadd.f32 %v1431, %v1461
      %v1466 = vadd.f32 %v1433, %v1463
      %s1467 = scalar_lea.vmem %s1, 192
      %v1468 = vld [vmem:[%s1467] sm:$0xf]
      %v1469 = vld [vmem:[%s1467 + $0x4] sm:$0xf]
      %v1472 = vunpack.c.l.b16 %v1468
      %v1473 = vunpack.c.l.b16 %v1469
      %v1474 = vpack.c.b16 %v1473, %v1472
      %1475 = vrot.lane.b32.xlu0 %v1385, 80
      %v1476 = vpop.permute.xlu0 %1475
      %v1478 = vsel %vm1388, %v1474, 0
      %v1481 = vsel %vm1392, %v1476, 0
      %1483 = vmatpush.bf16.msra.mxu0 0
      %1484 = vmatpush.bf16.msra.mxu0 0
      %1485 = vmatpush.bf16.msra.mxu0 0
      %1486 = vmatpush.bf16.msra.mxu0 0
      %1487 = vmatpush.bf16.msra.mxu0 0
      %1488 = vmatpush.bf16.msra.mxu0 0
      %1489 = vmatpush.bf16.msra.mxu0 0
      %1490 = vmatpush.bf16.msra.mxu0 %v1481
      %1491 = vmatmul.bf16.gmra.mxu0 %v1478
      %v1492 = vpop.f32.mrf.mxu0
      %v1493 = vadd.f32 0.0, %v1492
      %v1494 = vpop.f32.mrf.mxu0
      %v1495 = vadd.f32 0.0, %v1494
      %1496 = vdwg.mxu0
      %v1497 = vadd.f32 %v1465, %v1493
      %v1498 = vadd.f32 %v1466, %v1495
      %s1499 = scalar_lea.vmem %s1, 208
      %v1500 = vld [vmem:[%s1499] sm:$0xf]
      %v1501 = vld [vmem:[%s1499 + $0x4] sm:$0xf]
      %v1504 = vunpack.c.l.b16 %v1500
      %v1505 = vunpack.c.l.b16 %v1501
      %v1506 = vpack.c.b16 %v1505, %v1504
      %1507 = vrot.lane.b32.xlu0 %v1385, 64
      %v1508 = vpop.permute.xlu0 %1507
      %v1510 = vsel %vm1388, %v1506, 0
      %v1513 = vsel %vm1392, %v1508, 0
      %1515 = vmatpush.bf16.msra.mxu0 0
      %1516 = vmatpush.bf16.msra.mxu0 0
      %1517 = vmatpush.bf16.msra.mxu0 0
      %1518 = vmatpush.bf16.msra.mxu0 0
      %1519 = vmatpush.bf16.msra.mxu0 0
      %1520 = vmatpush.bf16.msra.mxu0 0
      %1521 = vmatpush.bf16.msra.mxu0 0
      %1522 = vmatpush.bf16.msra.mxu0 %v1513
      %1523 = vmatmul.bf16.gmra.mxu0 %v1510
      %v1524 = vpop.f32.mrf.mxu0
      %v1525 = vadd.f32 0.0, %v1524
      %v1526 = vpop.f32.mrf.mxu0
      %v1527 = vadd.f32 0.0, %v1526
      %1528 = vdwg.mxu0
      %v1529 = vadd.f32 %v1497, %v1525
      %v1530 = vadd.f32 %v1498, %v1527
      %s1531 = scalar_lea.vmem %s1, 224
      %v1532 = vld [vmem:[%s1531] sm:$0xf]
      %v1533 = vld [vmem:[%s1531 + $0x4] sm:$0xf]
      %v1536 = vunpack.c.l.b16 %v1532
      %v1537 = vunpack.c.l.b16 %v1533
      %v1538 = vpack.c.b16 %v1537, %v1536
      %1539 = vrot.lane.b32.xlu0 %v1385, 48
      %v1540 = vpop.permute.xlu0 %1539
      %v1542 = vsel %vm1388, %v1538, 0
      %v1545 = vsel %vm1392, %v1540, 0
      %1547 = vmatpush.bf16.msra.mxu0 0
      %1548 = vmatpush.bf16.msra.mxu0 0
      %1549 = vmatpush.bf16.msra.mxu0 0
      %1550 = vmatpush.bf16.msra.mxu0 0
      %1551 = vmatpush.bf16.msra.mxu0 0
      %1552 = vmatpush.bf16.msra.mxu0 0
      %1553 = vmatpush.bf16.msra.mxu0 0
      %1554 = vmatpush.bf16.msra.mxu0 %v1545
      %1555 = vmatmul.bf16.gmra.mxu0 %v1542
      %v1556 = vpop.f32.mrf.mxu0
      %v1557 = vadd.f32 0.0, %v1556
      %v1558 = vpop.f32.mrf.mxu0
      %v1559 = vadd.f32 0.0, %v1558
      %1560 = vdwg.mxu0
      %v1561 = vadd.f32 %v1529, %v1557
      %v1562 = vadd.f32 %v1530, %v1559
      %s1563 = scalar_lea.vmem %s1, 240
      %v1564 = vld [vmem:[%s1563] sm:$0xf]
      %v1565 = vld [vmem:[%s1563 + $0x4] sm:$0xf]
      %v1568 = vunpack.c.l.b16 %v1564
      %v1569 = vunpack.c.l.b16 %v1565
      %v1570 = vpack.c.b16 %v1569, %v1568
      %1571 = vrot.lane.b32.xlu0 %v1385, 32
      %v1572 = vpop.permute.xlu0 %1571
      %v1574 = vsel %vm1388, %v1570, 0
      %v1577 = vsel %vm1392, %v1572, 0
      %1579 = vmatpush.bf16.msra.mxu0 0
      %1580 = vmatpush.bf16.msra.mxu0 0
      %1581 = vmatpush.bf16.msra.mxu0 0
      %1582 = vmatpush.bf16.msra.mxu0 0
      %1583 = vmatpush.bf16.msra.mxu0 0
      %1584 = vmatpush.bf16.msra.mxu0 0
      %1585 = vmatpush.bf16.msra.mxu0 0
      %1586 = vmatpush.bf16.msra.mxu0 %v1577
      %1587 = vmatmul.bf16.gmra.mxu0 %v1574
      %v1588 = vpop.f32.mrf.mxu0
      %v1589 = vadd.f32 0.0, %v1588
      %v1590 = vpop.f32.mrf.mxu0
      %v1591 = vadd.f32 0.0, %v1590
      %1592 = vdwg.mxu0
      %v1593 = vadd.f32 %v1561, %v1589
      %v1594 = vadd.f32 %v1562, %v1591
      %s1595 = scalar_lea.vmem %s1, 256
      %v1596 = vld [vmem:[%s1595] sm:$0xf]
      %v1597 = vld [vmem:[%s1595 + $0x4] sm:$0xf]
      %v1600 = vunpack.c.l.b16 %v1596
      %v1601 = vunpack.c.l.b16 %v1597
      %v1602 = vpack.c.b16 %v1601, %v1600
      %1603 = vrot.lane.b32.xlu0 %v1385, 16
      %v1604 = vpop.permute.xlu0 %1603
      %v1606 = vsel %vm1388, %v1602, 0
      %v1609 = vsel %vm1392, %v1604, 0
      %1611 = vmatpush.bf16.msra.mxu0 0
      %1612 = vmatpush.bf16.msra.mxu0 0
      %1613 = vmatpush.bf16.msra.mxu0 0
      %1614 = vmatpush.bf16.msra.mxu0 0
      %1615 = vmatpush.bf16.msra.mxu0 0
      %1616 = vmatpush.bf16.msra.mxu0 0
      %1617 = vmatpush.bf16.msra.mxu0 0
      %1618 = vmatpush.bf16.msra.mxu0 %v1609
      %1619 = vmatmul.bf16.gmra.mxu0 %v1606
      %v1620 = vpop.f32.mrf.mxu0
      %v1621 = vadd.f32 0.0, %v1620
      %v1622 = vpop.f32.mrf.mxu0
      %v1623 = vadd.f32 0.0, %v1622
      %1624 = vdwg.mxu0
      %v1625 = vadd.f32 %v1593, %v1621
      %v1626 = vadd.f32 %v1594, %v1623
      %s1627 = scalar_lea.vmem %s1, 272
      %v1628 = vld [vmem:[%s1627] sm:$0xf]
      %v1629 = vld [vmem:[%s1627 + $0x4] sm:$0xf]
      %v1632 = vunpack.c.l.b16 %v1628
      %v1633 = vunpack.c.l.b16 %v1629
      %v1634 = vpack.c.b16 %v1633, %v1632
      %v1635 = vunpack.c.h.b16 %v1371
      %v1636 = vpack.c.b16 %v1635, %v1635
      %v1638 = vsel %vm1388, %v1634, 0
      %v1641 = vsel %vm1392, %v1636, 0
      %1643 = vmatpush.bf16.msra.mxu0 0
      %1644 = vmatpush.bf16.msra.mxu0 0
      %1645 = vmatpush.bf16.msra.mxu0 0
      %1646 = vmatpush.bf16.msra.mxu0 0
      %1647 = vmatpush.bf16.msra.mxu0 0
      %1648 = vmatpush.bf16.msra.mxu0 0
      %1649 = vmatpush.bf16.msra.mxu0 0
      %1650 = vmatpush.bf16.msra.mxu0 %v1641
      %1651 = vmatmul.bf16.gmra.mxu0 %v1638
      %v1652 = vpop.f32.mrf.mxu0
      %v1653 = vadd.f32 0.0, %v1652
      %v1654 = vpop.f32.mrf.mxu0
      %v1655 = vadd.f32 0.0, %v1654
      %1656 = vdwg.mxu0
      %v1657 = vadd.f32 %v1625, %v1653
      %v1658 = vadd.f32 %v1626, %v1655
      %s1659 = scalar_lea.vmem %s2, 32
      %v1660 = vld [vmem:[%s1659] sm:$0xff]
      %v1661 = vld [vmem:[%s1659 + $0x8] sm:$0xff]
      %1663 = vset.pattern.permute.xlu0 0
      %1664 = vperm.xlu0 %1663, %v1660
      %v1665 = vpop.permute.xlu0 %1664
      %1668 = vset.pattern.permute.xlu0 0
      %1669 = vperm.xlu0 %1668, %v1661
      %v1670 = vpop.permute.xlu0 %1669
      %v1672 = vadd.f32 %v1657, %v1665
      %v1673 = vadd.f32 %v1658, %v1670
      %vm1674 = vcmp.gt.f32.partialorder %v1672, 0.0
      %vm1675 = vcmp.gt.f32.partialorder %v1673, 0.0
      %v1676 = vmul.f32 %v1672, 0.1
      %v1677 = vmul.f32 %v1673, 0.1
      %v1678 = vsel %vm1674, %v1672, %v1676
      %v1679 = vsel %vm1675, %v1673, %v1677
      %v1680 = vpack.c.bf16 %v1679, %v1678
      %v1681 = vld [vmem:[%s5] sm:$0xf]
      %v1682 = vld [vmem:[%s5 + $0x4] sm:$0xf]
      %v1685 = vunpack.c.l.b16 %v1681
      %v1686 = vunpack.c.l.b16 %v1682
      %v1687 = vpack.c.b16 %v1686, %v1685
      %vm1689 = vcmask 130048
      %v1691 = vsel %vm1689, %v1680, 0
      %1693 = vmatpush.bf16.msra.mxu0 0
      %1694 = vmatpush.bf16.msra.mxu0 0
      %1695 = vmatpush.bf16.msra.mxu0 0
      %1696 = vmatpush.bf16.msra.mxu0 0
      %1697 = vmatpush.bf16.msra.mxu0 0
      %1698 = vmatpush.bf16.msra.mxu0 0
      %1699 = vmatpush.bf16.msra.mxu0 0
      %1700 = vmatpush.bf16.msra.mxu0 %v1687
      %1701 = vmatmul.bf16.gmra.mxu0 %v1691
      %v1702 = vpop.f32.mrf.mxu0
      %v1703 = vadd.f32 0.0, %v1702
      %v1704 = vpop.f32.mrf.mxu0
      %v1705 = vadd.f32 0.0, %v1704
      %1706 = vdwg.mxu0
      %v1707 = vpack.c.bf16 %v1703, %v1703
      %v1708 = vpack.c.bf16 %v1705, %v1705
      %s1709 = scalar_lea.vmem %s1, 288
      %v1710 = vld [vmem:[%s1709] sm:$0xf]
      %v1711 = vld [vmem:[%s1709 + $0x4] sm:$0xf]
      %v1712 = vld [vmem:[%s1709 + $0x8] sm:$0xf]
      %v1713 = vld [vmem:[%s1709 + $0xc] sm:$0xf]
      %s1714 = scalar_lea.vmem %s1, 304
      %v1715 = vld [vmem:[%s1714] sm:$0xf]
      %v1716 = vld [vmem:[%s1714 + $0x4] sm:$0xf]
      %v1717 = vld [vmem:[%s1714 + $0x8] sm:$0xf]
      %v1718 = vld [vmem:[%s1714 + $0xc] sm:$0xf]
      %v1723 = vunpack.c.l.b16 %v1715
      %v1724 = vunpack.c.l.b16 %v1716
      %v1725 = vunpack.c.l.b16 %v1717
      %v1726 = vunpack.c.l.b16 %v1718
      %v1727 = vpack.c.b16 %v1724, %v1723
      %v1728 = vpack.c.b16 %v1726, %v1725
      %v1731 = vunpack.c.l.b16 %v1707
      %v1732 = vunpack.c.l.b16 %v1708
      %v1733 = vpack.c.b16 %v1732, %v1731
      %1734 = vrot.lane.b32.xlu0 %v1733, 124
      %v1735 = vpop.permute.xlu0 %1734
      %v1738 = vsel %vm1689, %v1727, 0
      %v1741 = vsel %vm1689, %v1728, 0
      %1743 = vmatpush.bf16.msra.mxu0 0
      %1744 = vmatpush.bf16.msra.mxu0 0
      %1745 = vmatpush.bf16.msra.mxu0 0
      %1746 = vmatpush.bf16.msra.mxu0 0
      %1747 = vmatpush.bf16.msra.mxu0 0
      %1748 = vmatpush.bf16.msra.mxu0 0
      %1749 = vmatpush.bf16.msra.mxu0 0
      %1750 = vmatpush.bf16.msra.mxu0 %v1735
      %1751 = vmatmul.bf16.gmra.mxu0 %v1738
      %v1752 = vpop.f32.mrf.mxu0
      %v1753 = vadd.f32 0.0, %v1752
      %v1754 = vpop.f32.mrf.mxu0
      %v1755 = vadd.f32 0.0, %v1754
      %1756 = vmatmul.bf16.gmra.mxu0 %v1741
      %v1757 = vpop.f32.mrf.mxu0
      %v1758 = vadd.f32 0.0, %v1757
      %v1759 = vpop.f32.mrf.mxu0
      %v1760 = vadd.f32 0.0, %v1759
      %1761 = vdwg.mxu0
      %v1766 = vunpack.c.l.b16 %v1710
      %v1767 = vunpack.c.l.b16 %v1711
      %v1768 = vunpack.c.l.b16 %v1712
      %v1769 = vunpack.c.l.b16 %v1713
      %v1770 = vpack.c.b16 %v1767, %v1766
      %v1771 = vpack.c.b16 %v1769, %v1768
      %v1774 = vsel %vm1689, %v1770, 0
      %v1777 = vsel %vm1689, %v1771, 0
      %1779 = vmatpush.bf16.msra.mxu0 0
      %1780 = vmatpush.bf16.msra.mxu0 0
      %1781 = vmatpush.bf16.msra.mxu0 0
      %1782 = vmatpush.bf16.msra.mxu0 0
      %1783 = vmatpush.bf16.msra.mxu0 0
      %1784 = vmatpush.bf16.msra.mxu0 0
      %1785 = vmatpush.bf16.msra.mxu0 0
      %1786 = vmatpush.bf16.msra.mxu0 %v1733
      %1787 = vmatmul.bf16.gmra.mxu0 %v1774
      %v1788 = vpop.f32.mrf.mxu0
      %v1789 = vadd.f32 %v1753, %v1788
      %v1790 = vpop.f32.mrf.mxu0
      %v1791 = vadd.f32 %v1755, %v1790
      %1792 = vmatmul.bf16.gmra.mxu0 %v1777
      %v1793 = vpop.f32.mrf.mxu0
      %v1794 = vadd.f32 %v1758, %v1793
      %v1795 = vpop.f32.mrf.mxu0
      %v1796 = vadd.f32 %v1760, %v1795
      %1797 = vdwg.mxu0
      %s1798 = scalar_lea.vmem %s1, 320
      %v1799 = vld [vmem:[%s1798] sm:$0xf]
      %v1800 = vld [vmem:[%s1798 + $0x4] sm:$0xf]
      %v1801 = vld [vmem:[%s1798 + $0x8] sm:$0xf]
      %v1802 = vld [vmem:[%s1798 + $0xc] sm:$0xf]
      %v1807 = vunpack.c.l.b16 %v1799
      %v1808 = vunpack.c.l.b16 %v1800
      %v1809 = vunpack.c.l.b16 %v1801
      %v1810 = vunpack.c.l.b16 %v1802
      %v1811 = vpack.c.b16 %v1808, %v1807
      %v1812 = vpack.c.b16 %v1810, %v1809
      %1813 = vrot.lane.b32.xlu0 %v1733, 120
      %v1814 = vpop.permute.xlu0 %1813
      %v1817 = vsel %vm1689, %v1811, 0
      %v1820 = vsel %vm1689, %v1812, 0
      %1822 = vmatpush.bf16.msra.mxu0 0
      %1823 = vmatpush.bf16.msra.mxu0 0
      %1824 = vmatpush.bf16.msra.mxu0 0
      %1825 = vmatpush.bf16.msra.mxu0 0
      %1826 = vmatpush.bf16.msra.mxu0 0
      %1827 = vmatpush.bf16.msra.mxu0 0
      %1828 = vmatpush.bf16.msra.mxu0 0
      %1829 = vmatpush.bf16.msra.mxu0 %v1814
      %1830 = vmatmul.bf16.gmra.mxu0 %v1817
      %v1831 = vpop.f32.mrf.mxu0
      %v1832 = vadd.f32 0.0, %v1831
      %v1833 = vpop.f32.mrf.mxu0
      %v1834 = vadd.f32 0.0, %v1833
      %1835 = vmatmul.bf16.gmra.mxu0 %v1820
      %v1836 = vpop.f32.mrf.mxu0
      %v1837 = vadd.f32 0.0, %v1836
      %v1838 = vpop.f32.mrf.mxu0
      %v1839 = vadd.f32 0.0, %v1838
      %1840 = vdwg.mxu0
      %v1841 = vadd.f32 %v1789, %v1832
      %v1842 = vadd.f32 %v1791, %v1834
      %v1843 = vadd.f32 %v1794, %v1837
      %v1844 = vadd.f32 %v1796, %v1839
      %s1845 = scalar_lea.vmem %s1, 336
      %v1846 = vld [vmem:[%s1845] sm:$0xf]
      %v1847 = vld [vmem:[%s1845 + $0x4] sm:$0xf]
      %v1848 = vld [vmem:[%s1845 + $0x8] sm:$0xf]
      %v1849 = vld [vmem:[%s1845 + $0xc] sm:$0xf]
      %v1854 = vunpack.c.l.b16 %v1846
      %v1855 = vunpack.c.l.b16 %v1847
      %v1856 = vunpack.c.l.b16 %v1848
      %v1857 = vunpack.c.l.b16 %v1849
      %v1858 = vpack.c.b16 %v1855, %v1854
      %v1859 = vpack.c.b16 %v1857, %v1856
      %1860 = vrot.lane.b32.xlu0 %v1733, 116
      %v1861 = vpop.permute.xlu0 %1860
      %v1864 = vsel %vm1689, %v1858, 0
      %v1867 = vsel %vm1689, %v1859, 0
      %1869 = vmatpush.bf16.msra.mxu0 0
      %1870 = vmatpush.bf16.msra.mxu0 0
      %1871 = vmatpush.bf16.msra.mxu0 0
      %1872 = vmatpush.bf16.msra.mxu0 0
      %1873 = vmatpush.bf16.msra.mxu0 0
      %1874 = vmatpush.bf16.msra.mxu0 0
      %1875 = vmatpush.bf16.msra.mxu0 0
      %1876 = vmatpush.bf16.msra.mxu0 %v1861
      %1877 = vmatmul.bf16.gmra.mxu0 %v1864
      %v1878 = vpop.f32.mrf.mxu0
      %v1879 = vadd.f32 0.0, %v1878
      %v1880 = vpop.f32.mrf.mxu0
      %v1881 = vadd.f32 0.0, %v1880
      %1882 = vmatmul.bf16.gmra.mxu0 %v1867
      %v1883 = vpop.f32.mrf.mxu0
      %v1884 = vadd.f32 0.0, %v1883
      %v1885 = vpop.f32.mrf.mxu0
      %v1886 = vadd.f32 0.0, %v1885
      %1887 = vdwg.mxu0
      %v1888 = vadd.f32 %v1841, %v1879
      %v1889 = vadd.f32 %v1842, %v1881
      %v1890 = vadd.f32 %v1843, %v1884
      %v1891 = vadd.f32 %v1844, %v1886
      %s1892 = scalar_lea.vmem %s1, 352
      %v1893 = vld [vmem:[%s1892] sm:$0xf]
      %v1894 = vld [vmem:[%s1892 + $0x4] sm:$0xf]
      %v1895 = vld [vmem:[%s1892 + $0x8] sm:$0xf]
      %v1896 = vld [vmem:[%s1892 + $0xc] sm:$0xf]
      %v1901 = vunpack.c.l.b16 %v1893
      %v1902 = vunpack.c.l.b16 %v1894
      %v1903 = vunpack.c.l.b16 %v1895
      %v1904 = vunpack.c.l.b16 %v1896
      %v1905 = vpack.c.b16 %v1902, %v1901
      %v1906 = vpack.c.b16 %v1904, %v1903
      %1907 = vrot.lane.b32.xlu0 %v1733, 112
      %v1908 = vpop.permute.xlu0 %1907
      %v1911 = vsel %vm1689, %v1905, 0
      %v1914 = vsel %vm1689, %v1906, 0
      %1916 = vmatpush.bf16.msra.mxu0 0
      %1917 = vmatpush.bf16.msra.mxu0 0
      %1918 = vmatpush.bf16.msra.mxu0 0
      %1919 = vmatpush.bf16.msra.mxu0 0
      %1920 = vmatpush.bf16.msra.mxu0 0
      %1921 = vmatpush.bf16.msra.mxu0 0
      %1922 = vmatpush.bf16.msra.mxu0 0
      %1923 = vmatpush.bf16.msra.mxu0 %v1908
      %1924 = vmatmul.bf16.gmra.mxu0 %v1911
      %v1925 = vpop.f32.mrf.mxu0
      %v1926 = vadd.f32 0.0, %v1925
      %v1927 = vpop.f32.mrf.mxu0
      %v1928 = vadd.f32 0.0, %v1927
      %1929 = vmatmul.bf16.gmra.mxu0 %v1914
      %v1930 = vpop.f32.mrf.mxu0
      %v1931 = vadd.f32 0.0, %v1930
      %v1932 = vpop.f32.mrf.mxu0
      %v1933 = vadd.f32 0.0, %v1932
      %1934 = vdwg.mxu0
      %v1935 = vadd.f32 %v1888, %v1926
      %v1936 = vadd.f32 %v1889, %v1928
      %v1937 = vadd.f32 %v1890, %v1931
      %v1938 = vadd.f32 %v1891, %v1933
      %s1939 = scalar_lea.vmem %s1, 368
      %v1940 = vld [vmem:[%s1939] sm:$0xf]
      %v1941 = vld [vmem:[%s1939 + $0x4] sm:$0xf]
      %v1942 = vld [vmem:[%s1939 + $0x8] sm:$0xf]
      %v1943 = vld [vmem:[%s1939 + $0xc] sm:$0xf]
      %v1948 = vunpack.c.l.b16 %v1940
      %v1949 = vunpack.c.l.b16 %v1941
      %v1950 = vunpack.c.l.b16 %v1942
      %v1951 = vunpack.c.l.b16 %v1943
      %v1952 = vpack.c.b16 %v1949, %v1948
      %v1953 = vpack.c.b16 %v1951, %v1950
      %1954 = vrot.lane.b32.xlu0 %v1733, 108
      %v1955 = vpop.permute.xlu0 %1954
      %v1958 = vsel %vm1689, %v1952, 0
      %v1961 = vsel %vm1689, %v1953, 0
      %1963 = vmatpush.bf16.msra.mxu0 0
      %1964 = vmatpush.bf16.msra.mxu0 0
      %1965 = vmatpush.bf16.msra.mxu0 0
      %1966 = vmatpush.bf16.msra.mxu0 0
      %1967 = vmatpush.bf16.msra.mxu0 0
      %1968 = vmatpush.bf16.msra.mxu0 0
      %1969 = vmatpush.bf16.msra.mxu0 0
      %1970 = vmatpush.bf16.msra.mxu0 %v1955
      %1971 = vmatmul.bf16.gmra.mxu0 %v1958
      %v1972 = vpop.f32.mrf.mxu0
      %v1973 = vadd.f32 0.0, %v1972
      %v1974 = vpop.f32.mrf.mxu0
      %v1975 = vadd.f32 0.0, %v1974
      %1976 = vmatmul.bf16.gmra.mxu0 %v1961
      %v1977 = vpop.f32.mrf.mxu0
      %v1978 = vadd.f32 0.0, %v1977
      %v1979 = vpop.f32.mrf.mxu0
      %v1980 = vadd.f32 0.0, %v1979
      %1981 = vdwg.mxu0
      %v1982 = vadd.f32 %v1935, %v1973
      %v1983 = vadd.f32 %v1936, %v1975
      %v1984 = vadd.f32 %v1937, %v1978
      %v1985 = vadd.f32 %v1938, %v1980
      %s1986 = scalar_lea.vmem %s1, 384
      %v1987 = vld [vmem:[%s1986] sm:$0xf]
      %v1988 = vld [vmem:[%s1986 + $0x4] sm:$0xf]
      %v1989 = vld [vmem:[%s1986 + $0x8] sm:$0xf]
      %v1990 = vld [vmem:[%s1986 + $0xc] sm:$0xf]
      %v1995 = vunpack.c.l.b16 %v1987
      %v1996 = vunpack.c.l.b16 %v1988
      %v1997 = vunpack.c.l.b16 %v1989
      %v1998 = vunpack.c.l.b16 %v1990
      %v1999 = vpack.c.b16 %v1996, %v1995
      %v2000 = vpack.c.b16 %v1998, %v1997
      %2001 = vrot.lane.b32.xlu0 %v1733, 104
      %v2002 = vpop.permute.xlu0 %2001
      %v2005 = vsel %vm1689, %v1999, 0
      %v2008 = vsel %vm1689, %v2000, 0
      %2010 = vmatpush.bf16.msra.mxu0 0
      %2011 = vmatpush.bf16.msra.mxu0 0
      %2012 = vmatpush.bf16.msra.mxu0 0
      %2013 = vmatpush.bf16.msra.mxu0 0
      %2014 = vmatpush.bf16.msra.mxu0 0
      %2015 = vmatpush.bf16.msra.mxu0 0
      %2016 = vmatpush.bf16.msra.mxu0 0
      %2017 = vmatpush.bf16.msra.mxu0 %v2002
      %2018 = vmatmul.bf16.gmra.mxu0 %v2005
      %v2019 = vpop.f32.mrf.mxu0
      %v2020 = vadd.f32 0.0, %v2019
      %v2021 = vpop.f32.mrf.mxu0
      %v2022 = vadd.f32 0.0, %v2021
      %2023 = vmatmul.bf16.gmra.mxu0 %v2008
      %v2024 = vpop.f32.mrf.mxu0
      %v2025 = vadd.f32 0.0, %v2024
      %v2026 = vpop.f32.mrf.mxu0
      %v2027 = vadd.f32 0.0, %v2026
      %2028 = vdwg.mxu0
      %v2029 = vadd.f32 %v1982, %v2020
      %v2030 = vadd.f32 %v1983, %v2022
      %v2031 = vadd.f32 %v1984, %v2025
      %v2032 = vadd.f32 %v1985, %v2027
      %s2033 = scalar_lea.vmem %s1, 400
      %v2034 = vld [vmem:[%s2033] sm:$0xf]
      %v2035 = vld [vmem:[%s2033 + $0x4] sm:$0xf]
      %v2036 = vld [vmem:[%s2033 + $0x8] sm:$0xf]
      %v2037 = vld [vmem:[%s2033 + $0xc] sm:$0xf]
      %v2042 = vunpack.c.l.b16 %v2034
      %v2043 = vunpack.c.l.b16 %v2035
      %v2044 = vunpack.c.l.b16 %v2036
      %v2045 = vunpack.c.l.b16 %v2037
      %v2046 = vpack.c.b16 %v2043, %v2042
      %v2047 = vpack.c.b16 %v2045, %v2044
      %2048 = vrot.lane.b32.xlu0 %v1733, 100
      %v2049 = vpop.permute.xlu0 %2048
      %v2052 = vsel %vm1689, %v2046, 0
      %v2055 = vsel %vm1689, %v2047, 0
      %2057 = vmatpush.bf16.msra.mxu0 0
      %2058 = vmatpush.bf16.msra.mxu0 0
      %2059 = vmatpush.bf16.msra.mxu0 0
      %2060 = vmatpush.bf16.msra.mxu0 0
      %2061 = vmatpush.bf16.msra.mxu0 0
      %2062 = vmatpush.bf16.msra.mxu0 0
      %2063 = vmatpush.bf16.msra.mxu0 0
      %2064 = vmatpush.bf16.msra.mxu0 %v2049
      %2065 = vmatmul.bf16.gmra.mxu0 %v2052
      %v2066 = vpop.f32.mrf.mxu0
      %v2067 = vadd.f32 0.0, %v2066
      %v2068 = vpop.f32.mrf.mxu0
      %v2069 = vadd.f32 0.0, %v2068
      %2070 = vmatmul.bf16.gmra.mxu0 %v2055
      %v2071 = vpop.f32.mrf.mxu0
      %v2072 = vadd.f32 0.0, %v2071
      %v2073 = vpop.f32.mrf.mxu0
      %v2074 = vadd.f32 0.0, %v2073
      %2075 = vdwg.mxu0
      %v2076 = vadd.f32 %v2029, %v2067
      %v2077 = vadd.f32 %v2030, %v2069
      %v2078 = vadd.f32 %v2031, %v2072
      %v2079 = vadd.f32 %v2032, %v2074
      %s2080 = scalar_lea.vmem %s1, 416
      %v2081 = vld [vmem:[%s2080] sm:$0xf]
      %v2082 = vld [vmem:[%s2080 + $0x4] sm:$0xf]
      %v2083 = vld [vmem:[%s2080 + $0x8] sm:$0xf]
      %v2084 = vld [vmem:[%s2080 + $0xc] sm:$0xf]
      %v2089 = vunpack.c.l.b16 %v2081
      %v2090 = vunpack.c.l.b16 %v2082
      %v2091 = vunpack.c.l.b16 %v2083
      %v2092 = vunpack.c.l.b16 %v2084
      %v2093 = vpack.c.b16 %v2090, %v2089
      %v2094 = vpack.c.b16 %v2092, %v2091
      %2095 = vrot.lane.b32.xlu0 %v1733, 96
      %v2096 = vpop.permute.xlu0 %2095
      %v2099 = vsel %vm1689, %v2093, 0
      %v2102 = vsel %vm1689, %v2094, 0
      %2104 = vmatpush.bf16.msra.mxu0 0
      %2105 = vmatpush.bf16.msra.mxu0 0
      %2106 = vmatpush.bf16.msra.mxu0 0
      %2107 = vmatpush.bf16.msra.mxu0 0
      %2108 = vmatpush.bf16.msra.mxu0 0
      %2109 = vmatpush.bf16.msra.mxu0 0
      %2110 = vmatpush.bf16.msra.mxu0 0
      %2111 = vmatpush.bf16.msra.mxu0 %v2096
      %2112 = vmatmul.bf16.gmra.mxu0 %v2099
      %v2113 = vpop.f32.mrf.mxu0
      %v2114 = vadd.f32 0.0, %v2113
      %v2115 = vpop.f32.mrf.mxu0
      %v2116 = vadd.f32 0.0, %v2115
      %2117 = vmatmul.bf16.gmra.mxu0 %v2102
      %v2118 = vpop.f32.mrf.mxu0
      %v2119 = vadd.f32 0.0, %v2118
      %v2120 = vpop.f32.mrf.mxu0
      %v2121 = vadd.f32 0.0, %v2120
      %2122 = vdwg.mxu0
      %v2123 = vadd.f32 %v2076, %v2114
      %v2124 = vadd.f32 %v2077, %v2116
      %v2125 = vadd.f32 %v2078, %v2119
      %v2126 = vadd.f32 %v2079, %v2121
      %s2127 = scalar_lea.vmem %s2, 64
      %v2128 = vld [vmem:[%s2127] sm:$0xff]
      %v2129 = vld [vmem:[%s2127 + $0x8] sm:$0xff]
      %v2130 = vld [vmem:[%s2127 + $0x10] sm:$0xff]
      %v2131 = vld [vmem:[%s2127 + $0x18] sm:$0xff]
      %2133 = vset.pattern.permute.xlu0 0
      %2134 = vperm.xlu0 %2133, %v2128
      %v2135 = vpop.permute.xlu0 %2134
      %2138 = vset.pattern.permute.xlu0 0
      %2139 = vperm.xlu0 %2138, %v2129
      %v2140 = vpop.permute.xlu0 %2139
      %2143 = vset.pattern.permute.xlu0 0
      %2144 = vperm.xlu0 %2143, %v2130
      %v2145 = vpop.permute.xlu0 %2144
      %2148 = vset.pattern.permute.xlu0 0
      %2149 = vperm.xlu0 %2148, %v2131
      %v2150 = vpop.permute.xlu0 %2149
      %v2152 = vadd.f32 %v2123, %v2135
      %v2153 = vadd.f32 %v2124, %v2140
      %v2154 = vadd.f32 %v2125, %v2145
      %v2155 = vadd.f32 %v2126, %v2150
      %vm2156 = vcmp.gt.f32.partialorder %v2152, 0.0
      %vm2157 = vcmp.gt.f32.partialorder %v2153, 0.0
      %vm2158 = vcmp.gt.f32.partialorder %v2154, 0.0
      %vm2159 = vcmp.gt.f32.partialorder %v2155, 0.0
      %v2160 = vmul.f32 %v2152, 0.1
      %v2161 = vmul.f32 %v2153, 0.1
      %v2162 = vmul.f32 %v2154, 0.1
      %v2163 = vmul.f32 %v2155, 0.1
      %v2164 = vsel %vm2156, %v2152, %v2160
      %v2165 = vsel %vm2157, %v2153, %v2161
      %v2166 = vsel %vm2158, %v2154, %v2162
      %v2167 = vsel %vm2159, %v2155, %v2163
      %v2168 = vpack.c.bf16 %v2165, %v2164
      %v2169 = vpack.c.bf16 %v2167, %v2166
      %s2170 = scalar_lea.vmem %s1, 432
      %v2171 = vld [vmem:[%s2170] sm:$0xf]
      %v2172 = vld [vmem:[%s2170 + $0x4] sm:$0xf]
      %s2173 = scalar_lea.vmem %s2, 96
      %v2174 = vld [vmem:[%s2173] sm:$0xff]
      %v2175 = vld [vmem:[%s2173 + $0x8] sm:$0xff]
      %2177 = vset.pattern.permute.xlu0 0
      %2178 = vperm.xlu0 %2177, %v2174
      %v2179 = vpop.permute.xlu0 %2178
      %2182 = vset.pattern.permute.xlu0 0
      %2183 = vperm.xlu0 %2182, %v2175
      %v2184 = vpop.permute.xlu0 %2183
      %v2188 = vunpack.c.l.b16 %v2171
      %v2189 = vunpack.c.l.b16 %v2172
      %v2190 = vpack.c.b16 %v2189, %v2188
      %vm2191 = vcmask 261120
      %v2193 = vsel %vm2191, %v2190, 0
      %2195 = vmatpush.bf16.msra.mxu0 0
      %2196 = vmatpush.bf16.msra.mxu0 0
      %2197 = vmatpush.bf16.msra.mxu0 0
      %2198 = vmatpush.bf16.msra.mxu0 0
      %2199 = vmatpush.bf16.msra.mxu0 0
      %2200 = vmatpush.bf16.msra.mxu0 0
      %2201 = vmatpush.bf16.msra.mxu0 %v2169
      %2202 = vmatpush.bf16.msra.mxu0 %v2168
      %2203 = vmatmul.bf16.gmra.mxu0 %v2193
      %v2204 = vpop.f32.mrf.mxu0
      %v2205 = vadd.f32 %v2179, %v2204
      %v2206 = vpop.f32.mrf.mxu0
      %v2207 = vadd.f32 %v2184, %v2206
      %2208 = vdwg.mxu0
      %vm2209 = vcmp.gt.f32.partialorder %v2205, 0.0
      %vm2210 = vcmp.gt.f32.partialorder %v2207, 0.0
      %v2211 = vmul.f32 %v2205, 0.1
      %v2212 = vmul.f32 %v2207, 0.1
      %v2213 = vsel %vm2209, %v2205, %v2211
      %v2214 = vsel %vm2210, %v2207, %v2212
      %v2215 = vpack.c.bf16 %v2214, %v2213
      %v2216 = vld [vmem:[%s6] sm:$0x3]
      %v2218 = vsel %vm1075, %v2215, 0
      %v2221 = vsel %vm1079, %v2216, 0
      %2223 = vmatpush.bf16.msra.mxu0 0
      %2224 = vmatpush.bf16.msra.mxu0 0
      %2225 = vmatpush.bf16.msra.mxu0 0
      %2226 = vmatpush.bf16.msra.mxu0 0
      %2227 = vmatpush.bf16.msra.mxu0 0
      %2228 = vmatpush.bf16.msra.mxu0 0
      %2229 = vmatpush.bf16.msra.mxu0 0
      %2230 = vmatpush.bf16.msra.mxu0 %v2221
      %2231 = vmatmul.bf16.gmra.mxu0 %v2218
      %v2232 = vpop.f32.mrf.mxu0
      %v2233 = vadd.f32 0.0, %v2232
      %v2234 = vpop.f32.mrf.mxu0
      %v2235 = vadd.f32 0.0, %v2234
      %2236 = vdwg.mxu0
      %v2237 = vpack.c.bf16 %v2233, %v2233
      %v2238 = vpack.c.bf16 %v2235, %v2235
      %s2239 = scalar_lea.vmem %s1, 448
      %v2240 = vld [vmem:[%s2239] sm:$0xf]
      %v2241 = vld [vmem:[%s2239 + $0x4] sm:$0xf]
      %v2242 = vld [vmem:[%s2239 + $0x8] sm:$0xf]
      %v2243 = vld [vmem:[%s2239 + $0xc] sm:$0xf]
      %s2244 = scalar_lea.vmem %s1, 464
      %v2245 = vld [vmem:[%s2244] sm:$0xf]
      %v2246 = vld [vmem:[%s2244 + $0x4] sm:$0xf]
      %v2247 = vld [vmem:[%s2244 + $0x8] sm:$0xf]
      %v2248 = vld [vmem:[%s2244 + $0xc] sm:$0xf]
      %v2253 = vunpack.c.l.b16 %v2245
      %v2254 = vunpack.c.l.b16 %v2246
      %v2255 = vunpack.c.l.b16 %v2247
      %v2256 = vunpack.c.l.b16 %v2248
      %v2257 = vpack.c.b16 %v2254, %v2253
      %v2258 = vpack.c.b16 %v2256, %v2255
      %v2261 = vunpack.c.l.b16 %v2237
      %v2262 = vunpack.c.l.b16 %v2238
      %v2263 = vpack.c.b16 %v2262, %v2261
      %2264 = vrot.lane.b32.xlu0 %v2263, 124
      %v2265 = vpop.permute.xlu0 %2264
      %v2268 = vsel %vm1689, %v2257, 0
      %v2271 = vsel %vm1689, %v2258, 0
      %2273 = vmatpush.bf16.msra.mxu0 0
      %2274 = vmatpush.bf16.msra.mxu0 0
      %2275 = vmatpush.bf16.msra.mxu0 0
      %2276 = vmatpush.bf16.msra.mxu0 0
      %2277 = vmatpush.bf16.msra.mxu0 0
      %2278 = vmatpush.bf16.msra.mxu0 0
      %2279 = vmatpush.bf16.msra.mxu0 0
      %2280 = vmatpush.bf16.msra.mxu0 %v2265
      %2281 = vmatmul.bf16.gmra.mxu0 %v2268
      %v2282 = vpop.f32.mrf.mxu0
      %v2283 = vadd.f32 0.0, %v2282
      %v2284 = vpop.f32.mrf.mxu0
      %v2285 = vadd.f32 0.0, %v2284
      %2286 = vmatmul.bf16.gmra.mxu0 %v2271
      %v2287 = vpop.f32.mrf.mxu0
      %v2288 = vadd.f32 0.0, %v2287
      %v2289 = vpop.f32.mrf.mxu0
      %v2290 = vadd.f32 0.0, %v2289
      %2291 = vdwg.mxu0
      %v2296 = vunpack.c.l.b16 %v2240
      %v2297 = vunpack.c.l.b16 %v2241
      %v2298 = vunpack.c.l.b16 %v2242
      %v2299 = vunpack.c.l.b16 %v2243
      %v2300 = vpack.c.b16 %v2297, %v2296
      %v2301 = vpack.c.b16 %v2299, %v2298
      %v2304 = vsel %vm1689, %v2300, 0
      %v2307 = vsel %vm1689, %v2301, 0
      %2309 = vmatpush.bf16.msra.mxu0 0
      %2310 = vmatpush.bf16.msra.mxu0 0
      %2311 = vmatpush.bf16.msra.mxu0 0
      %2312 = vmatpush.bf16.msra.mxu0 0
      %2313 = vmatpush.bf16.msra.mxu0 0
      %2314 = vmatpush.bf16.msra.mxu0 0
      %2315 = vmatpush.bf16.msra.mxu0 0
      %2316 = vmatpush.bf16.msra.mxu0 %v2263
      %2317 = vmatmul.bf16.gmra.mxu0 %v2304
      %v2318 = vpop.f32.mrf.mxu0
      %v2319 = vadd.f32 %v2283, %v2318
      %v2320 = vpop.f32.mrf.mxu0
      %v2321 = vadd.f32 %v2285, %v2320
      %2322 = vmatmul.bf16.gmra.mxu0 %v2307
      %v2323 = vpop.f32.mrf.mxu0
      %v2324 = vadd.f32 %v2288, %v2323
      %v2325 = vpop.f32.mrf.mxu0
      %v2326 = vadd.f32 %v2290, %v2325
      %2327 = vdwg.mxu0
      %s2328 = scalar_lea.vmem %s1, 480
      %v2329 = vld [vmem:[%s2328] sm:$0xf]
      %v2330 = vld [vmem:[%s2328 + $0x4] sm:$0xf]
      %v2331 = vld [vmem:[%s2328 + $0x8] sm:$0xf]
      %v2332 = vld [vmem:[%s2328 + $0xc] sm:$0xf]
      %v2337 = vunpack.c.l.b16 %v2329
      %v2338 = vunpack.c.l.b16 %v2330
      %v2339 = vunpack.c.l.b16 %v2331
      %v2340 = vunpack.c.l.b16 %v2332
      %v2341 = vpack.c.b16 %v2338, %v2337
      %v2342 = vpack.c.b16 %v2340, %v2339
      %2343 = vrot.lane.b32.xlu0 %v2263, 120
      %v2344 = vpop.permute.xlu0 %2343
      %v2347 = vsel %vm1689, %v2341, 0
      %v2350 = vsel %vm1689, %v2342, 0
      %2352 = vmatpush.bf16.msra.mxu0 0
      %2353 = vmatpush.bf16.msra.mxu0 0
      %2354 = vmatpush.bf16.msra.mxu0 0
      %2355 = vmatpush.bf16.msra.mxu0 0
      %2356 = vmatpush.bf16.msra.mxu0 0
      %2357 = vmatpush.bf16.msra.mxu0 0
      %2358 = vmatpush.bf16.msra.mxu0 0
      %2359 = vmatpush.bf16.msra.mxu0 %v2344
      %2360 = vmatmul.bf16.gmra.mxu0 %v2347
      %v2361 = vpop.f32.mrf.mxu0
      %v2362 = vadd.f32 0.0, %v2361
      %v2363 = vpop.f32.mrf.mxu0
      %v2364 = vadd.f32 0.0, %v2363
      %2365 = vmatmul.bf16.gmra.mxu0 %v2350
      %v2366 = vpop.f32.mrf.mxu0
      %v2367 = vadd.f32 0.0, %v2366
      %v2368 = vpop.f32.mrf.mxu0
      %v2369 = vadd.f32 0.0, %v2368
      %2370 = vdwg.mxu0
      %v2371 = vadd.f32 %v2319, %v2362
      %v2372 = vadd.f32 %v2321, %v2364
      %v2373 = vadd.f32 %v2324, %v2367
      %v2374 = vadd.f32 %v2326, %v2369
      %s2375 = scalar_lea.vmem %s1, 496
      %v2376 = vld [vmem:[%s2375] sm:$0xf]
      %v2377 = vld [vmem:[%s2375 + $0x4] sm:$0xf]
      %v2378 = vld [vmem:[%s2375 + $0x8] sm:$0xf]
      %v2379 = vld [vmem:[%s2375 + $0xc] sm:$0xf]
      %v2384 = vunpack.c.l.b16 %v2376
      %v2385 = vunpack.c.l.b16 %v2377
      %v2386 = vunpack.c.l.b16 %v2378
      %v2387 = vunpack.c.l.b16 %v2379
      %v2388 = vpack.c.b16 %v2385, %v2384
      %v2389 = vpack.c.b16 %v2387, %v2386
      %2390 = vrot.lane.b32.xlu0 %v2263, 116
      %v2391 = vpop.permute.xlu0 %2390
      %v2394 = vsel %vm1689, %v2388, 0
      %v2397 = vsel %vm1689, %v2389, 0
      %2399 = vmatpush.bf16.msra.mxu0 0
      %2400 = vmatpush.bf16.msra.mxu0 0
      %2401 = vmatpush.bf16.msra.mxu0 0
      %2402 = vmatpush.bf16.msra.mxu0 0
      %2403 = vmatpush.bf16.msra.mxu0 0
      %2404 = vmatpush.bf16.msra.mxu0 0
      %2405 = vmatpush.bf16.msra.mxu0 0
      %2406 = vmatpush.bf16.msra.mxu0 %v2391
      %2407 = vmatmul.bf16.gmra.mxu0 %v2394
      %v2408 = vpop.f32.mrf.mxu0
      %v2409 = vadd.f32 0.0, %v2408
      %v2410 = vpop.f32.mrf.mxu0
      %v2411 = vadd.f32 0.0, %v2410
      %2412 = vmatmul.bf16.gmra.mxu0 %v2397
      %v2413 = vpop.f32.mrf.mxu0
      %v2414 = vadd.f32 0.0, %v2413
      %v2415 = vpop.f32.mrf.mxu0
      %v2416 = vadd.f32 0.0, %v2415
      %2417 = vdwg.mxu0
      %v2418 = vadd.f32 %v2371, %v2409
      %v2419 = vadd.f32 %v2372, %v2411
      %v2420 = vadd.f32 %v2373, %v2414
      %v2421 = vadd.f32 %v2374, %v2416
      %s2422 = scalar_lea.vmem %s1, 512
      %v2423 = vld [vmem:[%s2422] sm:$0xf]
      %v2424 = vld [vmem:[%s2422 + $0x4] sm:$0xf]
      %v2425 = vld [vmem:[%s2422 + $0x8] sm:$0xf]
      %v2426 = vld [vmem:[%s2422 + $0xc] sm:$0xf]
      %v2431 = vunpack.c.l.b16 %v2423
      %v2432 = vunpack.c.l.b16 %v2424
      %v2433 = vunpack.c.l.b16 %v2425
      %v2434 = vunpack.c.l.b16 %v2426
      %v2435 = vpack.c.b16 %v2432, %v2431
      %v2436 = vpack.c.b16 %v2434, %v2433
      %2437 = vrot.lane.b32.xlu0 %v2263, 112
      %v2438 = vpop.permute.xlu0 %2437
      %v2441 = vsel %vm1689, %v2435, 0
      %v2444 = vsel %vm1689, %v2436, 0
      %2446 = vmatpush.bf16.msra.mxu0 0
      %2447 = vmatpush.bf16.msra.mxu0 0
      %2448 = vmatpush.bf16.msra.mxu0 0
      %2449 = vmatpush.bf16.msra.mxu0 0
      %2450 = vmatpush.bf16.msra.mxu0 0
      %2451 = vmatpush.bf16.msra.mxu0 0
      %2452 = vmatpush.bf16.msra.mxu0 0
      %2453 = vmatpush.bf16.msra.mxu0 %v2438
      %2454 = vmatmul.bf16.gmra.mxu0 %v2441
      %v2455 = vpop.f32.mrf.mxu0
      %v2456 = vadd.f32 0.0, %v2455
      %v2457 = vpop.f32.mrf.mxu0
      %v2458 = vadd.f32 0.0, %v2457
      %2459 = vmatmul.bf16.gmra.mxu0 %v2444
      %v2460 = vpop.f32.mrf.mxu0
      %v2461 = vadd.f32 0.0, %v2460
      %v2462 = vpop.f32.mrf.mxu0
      %v2463 = vadd.f32 0.0, %v2462
      %2464 = vdwg.mxu0
      %v2465 = vadd.f32 %v2418, %v2456
      %v2466 = vadd.f32 %v2419, %v2458
      %v2467 = vadd.f32 %v2420, %v2461
      %v2468 = vadd.f32 %v2421, %v2463
      %s2469 = scalar_lea.vmem %s1, 528
      %v2470 = vld [vmem:[%s2469] sm:$0xf]
      %v2471 = vld [vmem:[%s2469 + $0x4] sm:$0xf]
      %v2472 = vld [vmem:[%s2469 + $0x8] sm:$0xf]
      %v2473 = vld [vmem:[%s2469 + $0xc] sm:$0xf]
      %v2478 = vunpack.c.l.b16 %v2470
      %v2479 = vunpack.c.l.b16 %v2471
      %v2480 = vunpack.c.l.b16 %v2472
      %v2481 = vunpack.c.l.b16 %v2473
      %v2482 = vpack.c.b16 %v2479, %v2478
      %v2483 = vpack.c.b16 %v2481, %v2480
      %2484 = vrot.lane.b32.xlu0 %v2263, 108
      %v2485 = vpop.permute.xlu0 %2484
      %v2488 = vsel %vm1689, %v2482, 0
      %v2491 = vsel %vm1689, %v2483, 0
      %2493 = vmatpush.bf16.msra.mxu0 0
      %2494 = vmatpush.bf16.msra.mxu0 0
      %2495 = vmatpush.bf16.msra.mxu0 0
      %2496 = vmatpush.bf16.msra.mxu0 0
      %2497 = vmatpush.bf16.msra.mxu0 0
      %2498 = vmatpush.bf16.msra.mxu0 0
      %2499 = vmatpush.bf16.msra.mxu0 0
      %2500 = vmatpush.bf16.msra.mxu0 %v2485
      %2501 = vmatmul.bf16.gmra.mxu0 %v2488
      %v2502 = vpop.f32.mrf.mxu0
      %v2503 = vadd.f32 0.0, %v2502
      %v2504 = vpop.f32.mrf.mxu0
      %v2505 = vadd.f32 0.0, %v2504
      %2506 = vmatmul.bf16.gmra.mxu0 %v2491
      %v2507 = vpop.f32.mrf.mxu0
      %v2508 = vadd.f32 0.0, %v2507
      %v2509 = vpop.f32.mrf.mxu0
      %v2510 = vadd.f32 0.0, %v2509
      %2511 = vdwg.mxu0
      %v2512 = vadd.f32 %v2465, %v2503
      %v2513 = vadd.f32 %v2466, %v2505
      %v2514 = vadd.f32 %v2467, %v2508
      %v2515 = vadd.f32 %v2468, %v2510
      %s2516 = scalar_lea.vmem %s1, 544
      %v2517 = vld [vmem:[%s2516] sm:$0xf]
      %v2518 = vld [vmem:[%s2516 + $0x4] sm:$0xf]
      %v2519 = vld [vmem:[%s2516 + $0x8] sm:$0xf]
      %v2520 = vld [vmem:[%s2516 + $0xc] sm:$0xf]
      %v2525 = vunpack.c.l.b16 %v2517
      %v2526 = vunpack.c.l.b16 %v2518
      %v2527 = vunpack.c.l.b16 %v2519
      %v2528 = vunpack.c.l.b16 %v2520
      %v2529 = vpack.c.b16 %v2526, %v2525
      %v2530 = vpack.c.b16 %v2528, %v2527
      %2531 = vrot.lane.b32.xlu0 %v2263, 104
      %v2532 = vpop.permute.xlu0 %2531
      %v2535 = vsel %vm1689, %v2529, 0
      %v2538 = vsel %vm1689, %v2530, 0
      %2540 = vmatpush.bf16.msra.mxu0 0
      %2541 = vmatpush.bf16.msra.mxu0 0
      %2542 = vmatpush.bf16.msra.mxu0 0
      %2543 = vmatpush.bf16.msra.mxu0 0
      %2544 = vmatpush.bf16.msra.mxu0 0
      %2545 = vmatpush.bf16.msra.mxu0 0
      %2546 = vmatpush.bf16.msra.mxu0 0
      %2547 = vmatpush.bf16.msra.mxu0 %v2532
      %2548 = vmatmul.bf16.gmra.mxu0 %v2535
      %v2549 = vpop.f32.mrf.mxu0
      %v2550 = vadd.f32 0.0, %v2549
      %v2551 = vpop.f32.mrf.mxu0
      %v2552 = vadd.f32 0.0, %v2551
      %2553 = vmatmul.bf16.gmra.mxu0 %v2538
      %v2554 = vpop.f32.mrf.mxu0
      %v2555 = vadd.f32 0.0, %v2554
      %v2556 = vpop.f32.mrf.mxu0
      %v2557 = vadd.f32 0.0, %v2556
      %2558 = vdwg.mxu0
      %v2559 = vadd.f32 %v2512, %v2550
      %v2560 = vadd.f32 %v2513, %v2552
      %v2561 = vadd.f32 %v2514, %v2555
      %v2562 = vadd.f32 %v2515, %v2557
      %s2563 = scalar_lea.vmem %s1, 560
      %v2564 = vld [vmem:[%s2563] sm:$0xf]
      %v2565 = vld [vmem:[%s2563 + $0x4] sm:$0xf]
      %v2566 = vld [vmem:[%s2563 + $0x8] sm:$0xf]
      %v2567 = vld [vmem:[%s2563 + $0xc] sm:$0xf]
      %v2572 = vunpack.c.l.b16 %v2564
      %v2573 = vunpack.c.l.b16 %v2565
      %v2574 = vunpack.c.l.b16 %v2566
      %v2575 = vunpack.c.l.b16 %v2567
      %v2576 = vpack.c.b16 %v2573, %v2572
      %v2577 = vpack.c.b16 %v2575, %v2574
      %2578 = vrot.lane.b32.xlu0 %v2263, 100
      %v2579 = vpop.permute.xlu0 %2578
      %v2582 = vsel %vm1689, %v2576, 0
      %v2585 = vsel %vm1689, %v2577, 0
      %2587 = vmatpush.bf16.msra.mxu0 0
      %2588 = vmatpush.bf16.msra.mxu0 0
      %2589 = vmatpush.bf16.msra.mxu0 0
      %2590 = vmatpush.bf16.msra.mxu0 0
      %2591 = vmatpush.bf16.msra.mxu0 0
      %2592 = vmatpush.bf16.msra.mxu0 0
      %2593 = vmatpush.bf16.msra.mxu0 0
      %2594 = vmatpush.bf16.msra.mxu0 %v2579
      %2595 = vmatmul.bf16.gmra.mxu0 %v2582
      %v2596 = vpop.f32.mrf.mxu0
      %v2597 = vadd.f32 0.0, %v2596
      %v2598 = vpop.f32.mrf.mxu0
      %v2599 = vadd.f32 0.0, %v2598
      %2600 = vmatmul.bf16.gmra.mxu0 %v2585
      %v2601 = vpop.f32.mrf.mxu0
      %v2602 = vadd.f32 0.0, %v2601
      %v2603 = vpop.f32.mrf.mxu0
      %v2604 = vadd.f32 0.0, %v2603
      %2605 = vdwg.mxu0
      %v2606 = vadd.f32 %v2559, %v2597
      %v2607 = vadd.f32 %v2560, %v2599
      %v2608 = vadd.f32 %v2561, %v2602
      %v2609 = vadd.f32 %v2562, %v2604
      %s2610 = scalar_lea.vmem %s1, 576
      %v2611 = vld [vmem:[%s2610] sm:$0xf]
      %v2612 = vld [vmem:[%s2610 + $0x4] sm:$0xf]
      %v2613 = vld [vmem:[%s2610 + $0x8] sm:$0xf]
      %v2614 = vld [vmem:[%s2610 + $0xc] sm:$0xf]
      %v2619 = vunpack.c.l.b16 %v2611
      %v2620 = vunpack.c.l.b16 %v2612
      %v2621 = vunpack.c.l.b16 %v2613
      %v2622 = vunpack.c.l.b16 %v2614
      %v2623 = vpack.c.b16 %v2620, %v2619
      %v2624 = vpack.c.b16 %v2622, %v2621
      %2625 = vrot.lane.b32.xlu0 %v2263, 96
      %v2626 = vpop.permute.xlu0 %2625
      %v2629 = vsel %vm1689, %v2623, 0
      %v2632 = vsel %vm1689, %v2624, 0
      %2634 = vmatpush.bf16.msra.mxu0 0
      %2635 = vmatpush.bf16.msra.mxu0 0
      %2636 = vmatpush.bf16.msra.mxu0 0
      %2637 = vmatpush.bf16.msra.mxu0 0
      %2638 = vmatpush.bf16.msra.mxu0 0
      %2639 = vmatpush.bf16.msra.mxu0 0
      %2640 = vmatpush.bf16.msra.mxu0 0
      %2641 = vmatpush.bf16.msra.mxu0 %v2626
      %2642 = vmatmul.bf16.gmra.mxu0 %v2629
      %v2643 = vpop.f32.mrf.mxu0
      %v2644 = vadd.f32 0.0, %v2643
      %v2645 = vpop.f32.mrf.mxu0
      %v2646 = vadd.f32 0.0, %v2645
      %2647 = vmatmul.bf16.gmra.mxu0 %v2632
      %v2648 = vpop.f32.mrf.mxu0
      %v2649 = vadd.f32 0.0, %v2648
      %v2650 = vpop.f32.mrf.mxu0
      %v2651 = vadd.f32 0.0, %v2650
      %2652 = vdwg.mxu0
      %v2653 = vadd.f32 %v2606, %v2644
      %v2654 = vadd.f32 %v2607, %v2646
      %v2655 = vadd.f32 %v2608, %v2649
      %v2656 = vadd.f32 %v2609, %v2651
      %s2657 = scalar_lea.vmem %s2, 128
      %v2658 = vld [vmem:[%s2657] sm:$0xff]
      %v2659 = vld [vmem:[%s2657 + $0x8] sm:$0xff]
      %v2660 = vld [vmem:[%s2657 + $0x10] sm:$0xff]
      %v2661 = vld [vmem:[%s2657 + $0x18] sm:$0xff]
      %2663 = vset.pattern.permute.xlu0 0
      %2664 = vperm.xlu0 %2663, %v2658
      %v2665 = vpop.permute.xlu0 %2664
      %2668 = vset.pattern.permute.xlu0 0
      %2669 = vperm.xlu0 %2668, %v2659
      %v2670 = vpop.permute.xlu0 %2669
      %2673 = vset.pattern.permute.xlu0 0
      %2674 = vperm.xlu0 %2673, %v2660
      %v2675 = vpop.permute.xlu0 %2674
      %2678 = vset.pattern.permute.xlu0 0
      %2679 = vperm.xlu0 %2678, %v2661
      %v2680 = vpop.permute.xlu0 %2679
      %v2682 = vadd.f32 %v2653, %v2665
      %v2683 = vadd.f32 %v2654, %v2670
      %v2684 = vadd.f32 %v2655, %v2675
      %v2685 = vadd.f32 %v2656, %v2680
      %vm2686 = vcmp.gt.f32.partialorder %v2682, 0.0
      %vm2687 = vcmp.gt.f32.partialorder %v2683, 0.0
      %vm2688 = vcmp.gt.f32.partialorder %v2684, 0.0
      %vm2689 = vcmp.gt.f32.partialorder %v2685, 0.0
      %v2690 = vmul.f32 %v2682, 0.1
      %v2691 = vmul.f32 %v2683, 0.1
      %v2692 = vmul.f32 %v2684, 0.1
      %v2693 = vmul.f32 %v2685, 0.1
      %v2694 = vsel %vm2686, %v2682, %v2690
      %v2695 = vsel %vm2687, %v2683, %v2691
      %v2696 = vsel %vm2688, %v2684, %v2692
      %v2697 = vsel %vm2689, %v2685, %v2693
      %v2698 = vpack.c.bf16 %v2695, %v2694
      %v2699 = vpack.c.bf16 %v2697, %v2696
      %s2700 = scalar_lea.vmem %s1, 592
      %v2701 = vld [vmem:[%s2700] sm:$0xf]
      %v2702 = vld [vmem:[%s2700 + $0x4] sm:$0xf]
      %s2703 = scalar_lea.vmem %s2, 160
      %v2704 = vld [vmem:[%s2703] sm:$0xff]
      %v2705 = vld [vmem:[%s2703 + $0x8] sm:$0xff]
      %2707 = vset.pattern.permute.xlu0 0
      %2708 = vperm.xlu0 %2707, %v2704
      %v2709 = vpop.permute.xlu0 %2708
      %2712 = vset.pattern.permute.xlu0 0
      %2713 = vperm.xlu0 %2712, %v2705
      %v2714 = vpop.permute.xlu0 %2713
      %v2718 = vunpack.c.l.b16 %v2701
      %v2719 = vunpack.c.l.b16 %v2702
      %v2720 = vpack.c.b16 %v2719, %v2718
      %v2722 = vsel %vm2191, %v2720, 0
      %2724 = vmatpush.bf16.msra.mxu0 0
      %2725 = vmatpush.bf16.msra.mxu0 0
      %2726 = vmatpush.bf16.msra.mxu0 0
      %2727 = vmatpush.bf16.msra.mxu0 0
      %2728 = vmatpush.bf16.msra.mxu0 0
      %2729 = vmatpush.bf16.msra.mxu0 0
      %2730 = vmatpush.bf16.msra.mxu0 %v2699
      %2731 = vmatpush.bf16.msra.mxu0 %v2698
      %2732 = vmatmul.bf16.gmra.mxu0 %v2722
      %v2733 = vpop.f32.mrf.mxu0
      %v2734 = vadd.f32 %v2709, %v2733
      %v2735 = vpop.f32.mrf.mxu0
      %v2736 = vadd.f32 %v2714, %v2735
      %2737 = vdwg.mxu0
      %vm2738 = vcmp.gt.f32.partialorder %v2734, 0.0
      %vm2739 = vcmp.gt.f32.partialorder %v2736, 0.0
      %v2740 = vmul.f32 %v2734, 0.1
      %v2741 = vmul.f32 %v2736, 0.1
      %v2742 = vsel %vm2738, %v2734, %v2740
      %v2743 = vsel %vm2739, %v2736, %v2741
      %v2744 = vpack.c.bf16 %v2743, %v2742
      %v2746 = vsel %vm1075, %v2744, 0
      %2748 = vmatpush.bf16.msra.mxu0 0
      %2749 = vmatpush.bf16.msra.mxu0 0
      %2750 = vmatpush.bf16.msra.mxu0 0
      %2751 = vmatpush.bf16.msra.mxu0 0
      %2752 = vmatpush.bf16.msra.mxu0 0
      %2753 = vmatpush.bf16.msra.mxu0 0
      %2754 = vmatpush.bf16.msra.mxu0 0
      %2755 = vmatpush.bf16.msra.mxu0 %v2221
      %2756 = vmatmul.bf16.gmra.mxu0 %v2746
      %v2757 = vpop.f32.mrf.mxu0
      %v2758 = vadd.f32 0.0, %v2757
      %v2759 = vpop.f32.mrf.mxu0
      %v2760 = vadd.f32 0.0, %v2759
      %2761 = vdwg.mxu0
      %v2762 = vpack.c.bf16 %v2758, %v2758
      %v2763 = vpack.c.bf16 %v2760, %v2760
      %s2764 = scalar_lea.vmem %s1, 608
      %v2765 = vld [vmem:[%s2764] sm:$0xf]
      %v2766 = vld [vmem:[%s2764 + $0x4] sm:$0xf]
      %v2767 = vld [vmem:[%s2764 + $0x8] sm:$0xf]
      %v2768 = vld [vmem:[%s2764 + $0xc] sm:$0xf]
      %s2769 = scalar_lea.vmem %s1, 624
      %v2770 = vld [vmem:[%s2769] sm:$0xf]
      %v2771 = vld [vmem:[%s2769 + $0x4] sm:$0xf]
      %v2772 = vld [vmem:[%s2769 + $0x8] sm:$0xf]
      %v2773 = vld [vmem:[%s2769 + $0xc] sm:$0xf]
      %v2778 = vunpack.c.l.b16 %v2770
      %v2779 = vunpack.c.l.b16 %v2771
      %v2780 = vunpack.c.l.b16 %v2772
      %v2781 = vunpack.c.l.b16 %v2773
      %v2782 = vpack.c.b16 %v2779, %v2778
      %v2783 = vpack.c.b16 %v2781, %v2780
      %v2786 = vunpack.c.l.b16 %v2762
      %v2787 = vunpack.c.l.b16 %v2763
      %v2788 = vpack.c.b16 %v2787, %v2786
      %2789 = vrot.lane.b32.xlu0 %v2788, 124
      %v2790 = vpop.permute.xlu0 %2789
      %v2793 = vsel %vm1689, %v2782, 0
      %v2796 = vsel %vm1689, %v2783, 0
      %2798 = vmatpush.bf16.msra.mxu0 0
      %2799 = vmatpush.bf16.msra.mxu0 0
      %2800 = vmatpush.bf16.msra.mxu0 0
      %2801 = vmatpush.bf16.msra.mxu0 0
      %2802 = vmatpush.bf16.msra.mxu0 0
      %2803 = vmatpush.bf16.msra.mxu0 0
      %2804 = vmatpush.bf16.msra.mxu0 0
      %2805 = vmatpush.bf16.msra.mxu0 %v2790
      %2806 = vmatmul.bf16.gmra.mxu0 %v2793
      %v2807 = vpop.f32.mrf.mxu0
      %v2808 = vadd.f32 0.0, %v2807
      %v2809 = vpop.f32.mrf.mxu0
      %v2810 = vadd.f32 0.0, %v2809
      %2811 = vmatmul.bf16.gmra.mxu0 %v2796
      %v2812 = vpop.f32.mrf.mxu0
      %v2813 = vadd.f32 0.0, %v2812
      %v2814 = vpop.f32.mrf.mxu0
      %v2815 = vadd.f32 0.0, %v2814
      %2816 = vdwg.mxu0
      %v2821 = vunpack.c.l.b16 %v2765
      %v2822 = vunpack.c.l.b16 %v2766
      %v2823 = vunpack.c.l.b16 %v2767
      %v2824 = vunpack.c.l.b16 %v2768
      %v2825 = vpack.c.b16 %v2822, %v2821
      %v2826 = vpack.c.b16 %v2824, %v2823
      %v2829 = vsel %vm1689, %v2825, 0
      %v2832 = vsel %vm1689, %v2826, 0
      %2834 = vmatpush.bf16.msra.mxu0 0
      %2835 = vmatpush.bf16.msra.mxu0 0
      %2836 = vmatpush.bf16.msra.mxu0 0
      %2837 = vmatpush.bf16.msra.mxu0 0
      %2838 = vmatpush.bf16.msra.mxu0 0
      %2839 = vmatpush.bf16.msra.mxu0 0
      %2840 = vmatpush.bf16.msra.mxu0 0
      %2841 = vmatpush.bf16.msra.mxu0 %v2788
      %2842 = vmatmul.bf16.gmra.mxu0 %v2829
      %v2843 = vpop.f32.mrf.mxu0
      %v2844 = vadd.f32 %v2808, %v2843
      %v2845 = vpop.f32.mrf.mxu0
      %v2846 = vadd.f32 %v2810, %v2845
      %2847 = vmatmul.bf16.gmra.mxu0 %v2832
      %v2848 = vpop.f32.mrf.mxu0
      %v2849 = vadd.f32 %v2813, %v2848
      %v2850 = vpop.f32.mrf.mxu0
      %v2851 = vadd.f32 %v2815, %v2850
      %2852 = vdwg.mxu0
      %s2853 = scalar_lea.vmem %s1, 640
      %v2854 = vld [vmem:[%s2853] sm:$0xf]
      %v2855 = vld [vmem:[%s2853 + $0x4] sm:$0xf]
      %v2856 = vld [vmem:[%s2853 + $0x8] sm:$0xf]
      %v2857 = vld [vmem:[%s2853 + $0xc] sm:$0xf]
      %v2862 = vunpack.c.l.b16 %v2854
      %v2863 = vunpack.c.l.b16 %v2855
      %v2864 = vunpack.c.l.b16 %v2856
      %v2865 = vunpack.c.l.b16 %v2857
      %v2866 = vpack.c.b16 %v2863, %v2862
      %v2867 = vpack.c.b16 %v2865, %v2864
      %2868 = vrot.lane.b32.xlu0 %v2788, 120
      %v2869 = vpop.permute.xlu0 %2868
      %v2872 = vsel %vm1689, %v2866, 0
      %v2875 = vsel %vm1689, %v2867, 0
      %2877 = vmatpush.bf16.msra.mxu0 0
      %2878 = vmatpush.bf16.msra.mxu0 0
      %2879 = vmatpush.bf16.msra.mxu0 0
      %2880 = vmatpush.bf16.msra.mxu0 0
      %2881 = vmatpush.bf16.msra.mxu0 0
      %2882 = vmatpush.bf16.msra.mxu0 0
      %2883 = vmatpush.bf16.msra.mxu0 0
      %2884 = vmatpush.bf16.msra.mxu0 %v2869
      %2885 = vmatmul.bf16.gmra.mxu0 %v2872
      %v2886 = vpop.f32.mrf.mxu0
      %v2887 = vadd.f32 0.0, %v2886
      %v2888 = vpop.f32.mrf.mxu0
      %v2889 = vadd.f32 0.0, %v2888
      %2890 = vmatmul.bf16.gmra.mxu0 %v2875
      %v2891 = vpop.f32.mrf.mxu0
      %v2892 = vadd.f32 0.0, %v2891
      %v2893 = vpop.f32.mrf.mxu0
      %v2894 = vadd.f32 0.0, %v2893
      %2895 = vdwg.mxu0
      %v2896 = vadd.f32 %v2844, %v2887
      %v2897 = vadd.f32 %v2846, %v2889
      %v2898 = vadd.f32 %v2849, %v2892
      %v2899 = vadd.f32 %v2851, %v2894
      %s2900 = scalar_lea.vmem %s1, 656
      %v2901 = vld [vmem:[%s2900] sm:$0xf]
      %v2902 = vld [vmem:[%s2900 + $0x4] sm:$0xf]
      %v2903 = vld [vmem:[%s2900 + $0x8] sm:$0xf]
      %v2904 = vld [vmem:[%s2900 + $0xc] sm:$0xf]
      %v2909 = vunpack.c.l.b16 %v2901
      %v2910 = vunpack.c.l.b16 %v2902
      %v2911 = vunpack.c.l.b16 %v2903
      %v2912 = vunpack.c.l.b16 %v2904
      %v2913 = vpack.c.b16 %v2910, %v2909
      %v2914 = vpack.c.b16 %v2912, %v2911
      %2915 = vrot.lane.b32.xlu0 %v2788, 116
      %v2916 = vpop.permute.xlu0 %2915
      %v2919 = vsel %vm1689, %v2913, 0
      %v2922 = vsel %vm1689, %v2914, 0
      %2924 = vmatpush.bf16.msra.mxu0 0
      %2925 = vmatpush.bf16.msra.mxu0 0
      %2926 = vmatpush.bf16.msra.mxu0 0
      %2927 = vmatpush.bf16.msra.mxu0 0
      %2928 = vmatpush.bf16.msra.mxu0 0
      %2929 = vmatpush.bf16.msra.mxu0 0
      %2930 = vmatpush.bf16.msra.mxu0 0
      %2931 = vmatpush.bf16.msra.mxu0 %v2916
      %2932 = vmatmul.bf16.gmra.mxu0 %v2919
      %v2933 = vpop.f32.mrf.mxu0
      %v2934 = vadd.f32 0.0, %v2933
      %v2935 = vpop.f32.mrf.mxu0
      %v2936 = vadd.f32 0.0, %v2935
      %2937 = vmatmul.bf16.gmra.mxu0 %v2922
      %v2938 = vpop.f32.mrf.mxu0
      %v2939 = vadd.f32 0.0, %v2938
      %v2940 = vpop.f32.mrf.mxu0
      %v2941 = vadd.f32 0.0, %v2940
      %2942 = vdwg.mxu0
      %v2943 = vadd.f32 %v2896, %v2934
      %v2944 = vadd.f32 %v2897, %v2936
      %v2945 = vadd.f32 %v2898, %v2939
      %v2946 = vadd.f32 %v2899, %v2941
      %s2947 = scalar_lea.vmem %s1, 672
      %v2948 = vld [vmem:[%s2947] sm:$0xf]
      %v2949 = vld [vmem:[%s2947 + $0x4] sm:$0xf]
      %v2950 = vld [vmem:[%s2947 + $0x8] sm:$0xf]
      %v2951 = vld [vmem:[%s2947 + $0xc] sm:$0xf]
      %v2956 = vunpack.c.l.b16 %v2948
      %v2957 = vunpack.c.l.b16 %v2949
      %v2958 = vunpack.c.l.b16 %v2950
      %v2959 = vunpack.c.l.b16 %v2951
      %v2960 = vpack.c.b16 %v2957, %v2956
      %v2961 = vpack.c.b16 %v2959, %v2958
      %2962 = vrot.lane.b32.xlu0 %v2788, 112
      %v2963 = vpop.permute.xlu0 %2962
      %v2966 = vsel %vm1689, %v2960, 0
      %v2969 = vsel %vm1689, %v2961, 0
      %2971 = vmatpush.bf16.msra.mxu0 0
      %2972 = vmatpush.bf16.msra.mxu0 0
      %2973 = vmatpush.bf16.msra.mxu0 0
      %2974 = vmatpush.bf16.msra.mxu0 0
      %2975 = vmatpush.bf16.msra.mxu0 0
      %2976 = vmatpush.bf16.msra.mxu0 0
      %2977 = vmatpush.bf16.msra.mxu0 0
      %2978 = vmatpush.bf16.msra.mxu0 %v2963
      %2979 = vmatmul.bf16.gmra.mxu0 %v2966
      %v2980 = vpop.f32.mrf.mxu0
      %v2981 = vadd.f32 0.0, %v2980
      %v2982 = vpop.f32.mrf.mxu0
      %v2983 = vadd.f32 0.0, %v2982
      %2984 = vmatmul.bf16.gmra.mxu0 %v2969
      %v2985 = vpop.f32.mrf.mxu0
      %v2986 = vadd.f32 0.0, %v2985
      %v2987 = vpop.f32.mrf.mxu0
      %v2988 = vadd.f32 0.0, %v2987
      %2989 = vdwg.mxu0
      %v2990 = vadd.f32 %v2943, %v2981
      %v2991 = vadd.f32 %v2944, %v2983
      %v2992 = vadd.f32 %v2945, %v2986
      %v2993 = vadd.f32 %v2946, %v2988
      %s2994 = scalar_lea.vmem %s1, 688
      %v2995 = vld [vmem:[%s2994] sm:$0xf]
      %v2996 = vld [vmem:[%s2994 + $0x4] sm:$0xf]
      %v2997 = vld [vmem:[%s2994 + $0x8] sm:$0xf]
      %v2998 = vld [vmem:[%s2994 + $0xc] sm:$0xf]
      %v3003 = vunpack.c.l.b16 %v2995
      %v3004 = vunpack.c.l.b16 %v2996
      %v3005 = vunpack.c.l.b16 %v2997
      %v3006 = vunpack.c.l.b16 %v2998
      %v3007 = vpack.c.b16 %v3004, %v3003
      %v3008 = vpack.c.b16 %v3006, %v3005
      %3009 = vrot.lane.b32.xlu0 %v2788, 108
      %v3010 = vpop.permute.xlu0 %3009
      %v3013 = vsel %vm1689, %v3007, 0
      %v3016 = vsel %vm1689, %v3008, 0
      %3018 = vmatpush.bf16.msra.mxu0 0
      %3019 = vmatpush.bf16.msra.mxu0 0
      %3020 = vmatpush.bf16.msra.mxu0 0
      %3021 = vmatpush.bf16.msra.mxu0 0
      %3022 = vmatpush.bf16.msra.mxu0 0
      %3023 = vmatpush.bf16.msra.mxu0 0
      %3024 = vmatpush.bf16.msra.mxu0 0
      %3025 = vmatpush.bf16.msra.mxu0 %v3010
      %3026 = vmatmul.bf16.gmra.mxu0 %v3013
      %v3027 = vpop.f32.mrf.mxu0
      %v3028 = vadd.f32 0.0, %v3027
      %v3029 = vpop.f32.mrf.mxu0
      %v3030 = vadd.f32 0.0, %v3029
      %3031 = vmatmul.bf16.gmra.mxu0 %v3016
      %v3032 = vpop.f32.mrf.mxu0
      %v3033 = vadd.f32 0.0, %v3032
      %v3034 = vpop.f32.mrf.mxu0
      %v3035 = vadd.f32 0.0, %v3034
      %3036 = vdwg.mxu0
      %v3037 = vadd.f32 %v2990, %v3028
      %v3038 = vadd.f32 %v2991, %v3030
      %v3039 = vadd.f32 %v2992, %v3033
      %v3040 = vadd.f32 %v2993, %v3035
      %s3041 = scalar_lea.vmem %s1, 704
      %v3042 = vld [vmem:[%s3041] sm:$0xf]
      %v3043 = vld [vmem:[%s3041 + $0x4] sm:$0xf]
      %v3044 = vld [vmem:[%s3041 + $0x8] sm:$0xf]
      %v3045 = vld [vmem:[%s3041 + $0xc] sm:$0xf]
      %v3050 = vunpack.c.l.b16 %v3042
      %v3051 = vunpack.c.l.b16 %v3043
      %v3052 = vunpack.c.l.b16 %v3044
      %v3053 = vunpack.c.l.b16 %v3045
      %v3054 = vpack.c.b16 %v3051, %v3050
      %v3055 = vpack.c.b16 %v3053, %v3052
      %3056 = vrot.lane.b32.xlu0 %v2788, 104
      %v3057 = vpop.permute.xlu0 %3056
      %v3060 = vsel %vm1689, %v3054, 0
      %v3063 = vsel %vm1689, %v3055, 0
      %3065 = vmatpush.bf16.msra.mxu0 0
      %3066 = vmatpush.bf16.msra.mxu0 0
      %3067 = vmatpush.bf16.msra.mxu0 0
      %3068 = vmatpush.bf16.msra.mxu0 0
      %3069 = vmatpush.bf16.msra.mxu0 0
      %3070 = vmatpush.bf16.msra.mxu0 0
      %3071 = vmatpush.bf16.msra.mxu0 0
      %3072 = vmatpush.bf16.msra.mxu0 %v3057
      %3073 = vmatmul.bf16.gmra.mxu0 %v3060
      %v3074 = vpop.f32.mrf.mxu0
      %v3075 = vadd.f32 0.0, %v3074
      %v3076 = vpop.f32.mrf.mxu0
      %v3077 = vadd.f32 0.0, %v3076
      %3078 = vmatmul.bf16.gmra.mxu0 %v3063
      %v3079 = vpop.f32.mrf.mxu0
      %v3080 = vadd.f32 0.0, %v3079
      %v3081 = vpop.f32.mrf.mxu0
      %v3082 = vadd.f32 0.0, %v3081
      %3083 = vdwg.mxu0
      %v3084 = vadd.f32 %v3037, %v3075
      %v3085 = vadd.f32 %v3038, %v3077
      %v3086 = vadd.f32 %v3039, %v3080
      %v3087 = vadd.f32 %v3040, %v3082
      %s3088 = scalar_lea.vmem %s1, 720
      %v3089 = vld [vmem:[%s3088] sm:$0xf]
      %v3090 = vld [vmem:[%s3088 + $0x4] sm:$0xf]
      %v3091 = vld [vmem:[%s3088 + $0x8] sm:$0xf]
      %v3092 = vld [vmem:[%s3088 + $0xc] sm:$0xf]
      %v3097 = vunpack.c.l.b16 %v3089
      %v3098 = vunpack.c.l.b16 %v3090
      %v3099 = vunpack.c.l.b16 %v3091
      %v3100 = vunpack.c.l.b16 %v3092
      %v3101 = vpack.c.b16 %v3098, %v3097
      %v3102 = vpack.c.b16 %v3100, %v3099
      %3103 = vrot.lane.b32.xlu0 %v2788, 100
      %v3104 = vpop.permute.xlu0 %3103
      %v3107 = vsel %vm1689, %v3101, 0
      %v3110 = vsel %vm1689, %v3102, 0
      %3112 = vmatpush.bf16.msra.mxu0 0
      %3113 = vmatpush.bf16.msra.mxu0 0
      %3114 = vmatpush.bf16.msra.mxu0 0
      %3115 = vmatpush.bf16.msra.mxu0 0
      %3116 = vmatpush.bf16.msra.mxu0 0
      %3117 = vmatpush.bf16.msra.mxu0 0
      %3118 = vmatpush.bf16.msra.mxu0 0
      %3119 = vmatpush.bf16.msra.mxu0 %v3104
      %3120 = vmatmul.bf16.gmra.mxu0 %v3107
      %v3121 = vpop.f32.mrf.mxu0
      %v3122 = vadd.f32 0.0, %v3121
      %v3123 = vpop.f32.mrf.mxu0
      %v3124 = vadd.f32 0.0, %v3123
      %3125 = vmatmul.bf16.gmra.mxu0 %v3110
      %v3126 = vpop.f32.mrf.mxu0
      %v3127 = vadd.f32 0.0, %v3126
      %v3128 = vpop.f32.mrf.mxu0
      %v3129 = vadd.f32 0.0, %v3128
      %3130 = vdwg.mxu0
      %v3131 = vadd.f32 %v3084, %v3122
      %v3132 = vadd.f32 %v3085, %v3124
      %v3133 = vadd.f32 %v3086, %v3127
      %v3134 = vadd.f32 %v3087, %v3129
      %s3135 = scalar_lea.vmem %s1, 736
      %v3136 = vld [vmem:[%s3135] sm:$0xf]
      %v3137 = vld [vmem:[%s3135 + $0x4] sm:$0xf]
      %v3138 = vld [vmem:[%s3135 + $0x8] sm:$0xf]
      %v3139 = vld [vmem:[%s3135 + $0xc] sm:$0xf]
      %v3144 = vunpack.c.l.b16 %v3136
      %v3145 = vunpack.c.l.b16 %v3137
      %v3146 = vunpack.c.l.b16 %v3138
      %v3147 = vunpack.c.l.b16 %v3139
      %v3148 = vpack.c.b16 %v3145, %v3144
      %v3149 = vpack.c.b16 %v3147, %v3146
      %3150 = vrot.lane.b32.xlu0 %v2788, 96
      %v3151 = vpop.permute.xlu0 %3150
      %v3154 = vsel %vm1689, %v3148, 0
      %v3157 = vsel %vm1689, %v3149, 0
      %3159 = vmatpush.bf16.msra.mxu0 0
      %3160 = vmatpush.bf16.msra.mxu0 0
      %3161 = vmatpush.bf16.msra.mxu0 0
      %3162 = vmatpush.bf16.msra.mxu0 0
      %3163 = vmatpush.bf16.msra.mxu0 0
      %3164 = vmatpush.bf16.msra.mxu0 0
      %3165 = vmatpush.bf16.msra.mxu0 0
      %3166 = vmatpush.bf16.msra.mxu0 %v3151
      %3167 = vmatmul.bf16.gmra.mxu0 %v3154
      %v3168 = vpop.f32.mrf.mxu0
      %v3169 = vadd.f32 0.0, %v3168
      %v3170 = vpop.f32.mrf.mxu0
      %v3171 = vadd.f32 0.0, %v3170
      %3172 = vmatmul.bf16.gmra.mxu0 %v3157
      %v3173 = vpop.f32.mrf.mxu0
      %v3174 = vadd.f32 0.0, %v3173
      %v3175 = vpop.f32.mrf.mxu0
      %v3176 = vadd.f32 0.0, %v3175
      %3177 = vdwg.mxu0
      %v3178 = vadd.f32 %v3131, %v3169
      %v3179 = vadd.f32 %v3132, %v3171
      %v3180 = vadd.f32 %v3133, %v3174
      %v3181 = vadd.f32 %v3134, %v3176
      %s3182 = scalar_lea.vmem %s2, 192
      %v3183 = vld [vmem:[%s3182] sm:$0xff]
      %v3184 = vld [vmem:[%s3182 + $0x8] sm:$0xff]
      %v3185 = vld [vmem:[%s3182 + $0x10] sm:$0xff]
      %v3186 = vld [vmem:[%s3182 + $0x18] sm:$0xff]
      %3188 = vset.pattern.permute.xlu0 0
      %3189 = vperm.xlu0 %3188, %v3183
      %v3190 = vpop.permute.xlu0 %3189
      %3193 = vset.pattern.permute.xlu0 0
      %3194 = vperm.xlu0 %3193, %v3184
      %v3195 = vpop.permute.xlu0 %3194
      %3198 = vset.pattern.permute.xlu0 0
      %3199 = vperm.xlu0 %3198, %v3185
      %v3200 = vpop.permute.xlu0 %3199
      %3203 = vset.pattern.permute.xlu0 0
      %3204 = vperm.xlu0 %3203, %v3186
      %v3205 = vpop.permute.xlu0 %3204
      %v3207 = vadd.f32 %v3178, %v3190
      %v3208 = vadd.f32 %v3179, %v3195
      %v3209 = vadd.f32 %v3180, %v3200
      %v3210 = vadd.f32 %v3181, %v3205
      %vm3211 = vcmp.gt.f32.partialorder %v3207, 0.0
      %vm3212 = vcmp.gt.f32.partialorder %v3208, 0.0
      %vm3213 = vcmp.gt.f32.partialorder %v3209, 0.0
      %vm3214 = vcmp.gt.f32.partialorder %v3210, 0.0
      %v3215 = vmul.f32 %v3207, 0.1
      %v3216 = vmul.f32 %v3208, 0.1
      %v3217 = vmul.f32 %v3209, 0.1
      %v3218 = vmul.f32 %v3210, 0.1
      %v3219 = vsel %vm3211, %v3207, %v3215
      %v3220 = vsel %vm3212, %v3208, %v3216
      %v3221 = vsel %vm3213, %v3209, %v3217
      %v3222 = vsel %vm3214, %v3210, %v3218
      %v3223 = vpack.c.bf16 %v3220, %v3219
      %v3224 = vpack.c.bf16 %v3222, %v3221
      %s3225 = scalar_lea.vmem %s1, 752
      %v3226 = vld [vmem:[%s3225] sm:$0xf]
      %v3227 = vld [vmem:[%s3225 + $0x4] sm:$0xf]
      %s3228 = scalar_lea.vmem %s2, 224
      %v3229 = vld [vmem:[%s3228] sm:$0xff]
      %v3230 = vld [vmem:[%s3228 + $0x8] sm:$0xff]
      %3232 = vset.pattern.permute.xlu0 0
      %3233 = vperm.xlu0 %3232, %v3229
      %v3234 = vpop.permute.xlu0 %3233
      %3237 = vset.pattern.permute.xlu0 0
      %3238 = vperm.xlu0 %3237, %v3230
      %v3239 = vpop.permute.xlu0 %3238
      %v3243 = vunpack.c.l.b16 %v3226
      %v3244 = vunpack.c.l.b16 %v3227
      %v3245 = vpack.c.b16 %v3244, %v3243
      %v3247 = vsel %vm2191, %v3245, 0
      %3249 = vmatpush.bf16.msra.mxu0 0
      %3250 = vmatpush.bf16.msra.mxu0 0
      %3251 = vmatpush.bf16.msra.mxu0 0
      %3252 = vmatpush.bf16.msra.mxu0 0
      %3253 = vmatpush.bf16.msra.mxu0 0
      %3254 = vmatpush.bf16.msra.mxu0 0
      %3255 = vmatpush.bf16.msra.mxu0 %v3224
      %3256 = vmatpush.bf16.msra.mxu0 %v3223
      %3257 = vmatmul.bf16.gmra.mxu0 %v3247
      %v3258 = vpop.f32.mrf.mxu0
      %v3259 = vadd.f32 %v3234, %v3258
      %v3260 = vpop.f32.mrf.mxu0
      %v3261 = vadd.f32 %v3239, %v3260
      %3262 = vdwg.mxu0
      %vm3263 = vcmp.gt.f32.partialorder %v3259, 0.0
      %vm3264 = vcmp.gt.f32.partialorder %v3261, 0.0
      %v3265 = vmul.f32 %v3259, 0.1
      %v3266 = vmul.f32 %v3261, 0.1
      %v3267 = vsel %vm3263, %v3259, %v3265
      %v3268 = vsel %vm3264, %v3261, %v3266
      %v3269 = vpack.c.bf16 %v3268, %v3267
      %v3271 = vsel %vm1075, %v3269, 0
      %3273 = vmatpush.bf16.msra.mxu0 0
      %3274 = vmatpush.bf16.msra.mxu0 0
      %3275 = vmatpush.bf16.msra.mxu0 0
      %3276 = vmatpush.bf16.msra.mxu0 0
      %3277 = vmatpush.bf16.msra.mxu0 0
      %3278 = vmatpush.bf16.msra.mxu0 0
      %3279 = vmatpush.bf16.msra.mxu0 0
      %3280 = vmatpush.bf16.msra.mxu0 %v2221
      %3281 = vmatmul.bf16.gmra.mxu0 %v3271
      %v3282 = vpop.f32.mrf.mxu0
      %v3283 = vadd.f32 0.0, %v3282
      %v3284 = vpop.f32.mrf.mxu0
      %v3285 = vadd.f32 0.0, %v3284
      %3286 = vdwg.mxu0
      %v3287 = vpack.c.bf16 %v3283, %v3283
      %v3288 = vpack.c.bf16 %v3285, %v3285
      %s3289 = scalar_lea.vmem %s1, 768
      %v3290 = vld [vmem:[%s3289] sm:$0xf]
      %v3291 = vld [vmem:[%s3289 + $0x4] sm:$0xf]
      %v3292 = vld [vmem:[%s3289 + $0x8] sm:$0xf]
      %v3293 = vld [vmem:[%s3289 + $0xc] sm:$0xf]
      %s3294 = scalar_lea.vmem %s1, 784
      %v3295 = vld [vmem:[%s3294] sm:$0xf]
      %v3296 = vld [vmem:[%s3294 + $0x4] sm:$0xf]
      %v3297 = vld [vmem:[%s3294 + $0x8] sm:$0xf]
      %v3298 = vld [vmem:[%s3294 + $0xc] sm:$0xf]
      %v3303 = vunpack.c.l.b16 %v3295
      %v3304 = vunpack.c.l.b16 %v3296
      %v3305 = vunpack.c.l.b16 %v3297
      %v3306 = vunpack.c.l.b16 %v3298
      %v3307 = vpack.c.b16 %v3304, %v3303
      %v3308 = vpack.c.b16 %v3306, %v3305
      %v3311 = vunpack.c.l.b16 %v3287
      %v3312 = vunpack.c.l.b16 %v3288
      %v3313 = vpack.c.b16 %v3312, %v3311
      %3314 = vrot.lane.b32.xlu0 %v3313, 124
      %v3315 = vpop.permute.xlu0 %3314
      %v3318 = vsel %vm1689, %v3307, 0
      %v3321 = vsel %vm1689, %v3308, 0
      %3323 = vmatpush.bf16.msra.mxu0 0
      %3324 = vmatpush.bf16.msra.mxu0 0
      %3325 = vmatpush.bf16.msra.mxu0 0
      %3326 = vmatpush.bf16.msra.mxu0 0
      %3327 = vmatpush.bf16.msra.mxu0 0
      %3328 = vmatpush.bf16.msra.mxu0 0
      %3329 = vmatpush.bf16.msra.mxu0 0
      %3330 = vmatpush.bf16.msra.mxu0 %v3315
      %3331 = vmatmul.bf16.gmra.mxu0 %v3318
      %v3332 = vpop.f32.mrf.mxu0
      %v3333 = vadd.f32 0.0, %v3332
      %v3334 = vpop.f32.mrf.mxu0
      %v3335 = vadd.f32 0.0, %v3334
      %3336 = vmatmul.bf16.gmra.mxu0 %v3321
      %v3337 = vpop.f32.mrf.mxu0
      %v3338 = vadd.f32 0.0, %v3337
      %v3339 = vpop.f32.mrf.mxu0
      %v3340 = vadd.f32 0.0, %v3339
      %3341 = vdwg.mxu0
      %v3346 = vunpack.c.l.b16 %v3290
      %v3347 = vunpack.c.l.b16 %v3291
      %v3348 = vunpack.c.l.b16 %v3292
      %v3349 = vunpack.c.l.b16 %v3293
      %v3350 = vpack.c.b16 %v3347, %v3346
      %v3351 = vpack.c.b16 %v3349, %v3348
      %v3354 = vsel %vm1689, %v3350, 0
      %v3357 = vsel %vm1689, %v3351, 0
      %3359 = vmatpush.bf16.msra.mxu0 0
      %3360 = vmatpush.bf16.msra.mxu0 0
      %3361 = vmatpush.bf16.msra.mxu0 0
      %3362 = vmatpush.bf16.msra.mxu0 0
      %3363 = vmatpush.bf16.msra.mxu0 0
      %3364 = vmatpush.bf16.msra.mxu0 0
      %3365 = vmatpush.bf16.msra.mxu0 0
      %3366 = vmatpush.bf16.msra.mxu0 %v3313
      %3367 = vmatmul.bf16.gmra.mxu0 %v3354
      %v3368 = vpop.f32.mrf.mxu0
      %v3369 = vadd.f32 %v3333, %v3368
      %v3370 = vpop.f32.mrf.mxu0
      %v3371 = vadd.f32 %v3335, %v3370
      %3372 = vmatmul.bf16.gmra.mxu0 %v3357
      %v3373 = vpop.f32.mrf.mxu0
      %v3374 = vadd.f32 %v3338, %v3373
      %v3375 = vpop.f32.mrf.mxu0
      %v3376 = vadd.f32 %v3340, %v3375
      %3377 = vdwg.mxu0
      %s3378 = scalar_lea.vmem %s1, 800
      %v3379 = vld [vmem:[%s3378] sm:$0xf]
      %v3380 = vld [vmem:[%s3378 + $0x4] sm:$0xf]
      %v3381 = vld [vmem:[%s3378 + $0x8] sm:$0xf]
      %v3382 = vld [vmem:[%s3378 + $0xc] sm:$0xf]
      %v3387 = vunpack.c.l.b16 %v3379
      %v3388 = vunpack.c.l.b16 %v3380
      %v3389 = vunpack.c.l.b16 %v3381
      %v3390 = vunpack.c.l.b16 %v3382
      %v3391 = vpack.c.b16 %v3388, %v3387
      %v3392 = vpack.c.b16 %v3390, %v3389
      %3393 = vrot.lane.b32.xlu0 %v3313, 120
      %v3394 = vpop.permute.xlu0 %3393
      %v3397 = vsel %vm1689, %v3391, 0
      %v3400 = vsel %vm1689, %v3392, 0
      %3402 = vmatpush.bf16.msra.mxu0 0
      %3403 = vmatpush.bf16.msra.mxu0 0
      %3404 = vmatpush.bf16.msra.mxu0 0
      %3405 = vmatpush.bf16.msra.mxu0 0
      %3406 = vmatpush.bf16.msra.mxu0 0
      %3407 = vmatpush.bf16.msra.mxu0 0
      %3408 = vmatpush.bf16.msra.mxu0 0
      %3409 = vmatpush.bf16.msra.mxu0 %v3394
      %3410 = vmatmul.bf16.gmra.mxu0 %v3397
      %v3411 = vpop.f32.mrf.mxu0
      %v3412 = vadd.f32 0.0, %v3411
      %v3413 = vpop.f32.mrf.mxu0
      %v3414 = vadd.f32 0.0, %v3413
      %3415 = vmatmul.bf16.gmra.mxu0 %v3400
      %v3416 = vpop.f32.mrf.mxu0
      %v3417 = vadd.f32 0.0, %v3416
      %v3418 = vpop.f32.mrf.mxu0
      %v3419 = vadd.f32 0.0, %v3418
      %3420 = vdwg.mxu0
      %v3421 = vadd.f32 %v3369, %v3412
      %v3422 = vadd.f32 %v3371, %v3414
      %v3423 = vadd.f32 %v3374, %v3417
      %v3424 = vadd.f32 %v3376, %v3419
      %s3425 = scalar_lea.vmem %s1, 816
      %v3426 = vld [vmem:[%s3425] sm:$0xf]
      %v3427 = vld [vmem:[%s3425 + $0x4] sm:$0xf]
      %v3428 = vld [vmem:[%s3425 + $0x8] sm:$0xf]
      %v3429 = vld [vmem:[%s3425 + $0xc] sm:$0xf]
      %v3434 = vunpack.c.l.b16 %v3426
      %v3435 = vunpack.c.l.b16 %v3427
      %v3436 = vunpack.c.l.b16 %v3428
      %v3437 = vunpack.c.l.b16 %v3429
      %v3438 = vpack.c.b16 %v3435, %v3434
      %v3439 = vpack.c.b16 %v3437, %v3436
      %3440 = vrot.lane.b32.xlu0 %v3313, 116
      %v3441 = vpop.permute.xlu0 %3440
      %v3444 = vsel %vm1689, %v3438, 0
      %v3447 = vsel %vm1689, %v3439, 0
      %3449 = vmatpush.bf16.msra.mxu0 0
      %3450 = vmatpush.bf16.msra.mxu0 0
      %3451 = vmatpush.bf16.msra.mxu0 0
      %3452 = vmatpush.bf16.msra.mxu0 0
      %3453 = vmatpush.bf16.msra.mxu0 0
      %3454 = vmatpush.bf16.msra.mxu0 0
      %3455 = vmatpush.bf16.msra.mxu0 0
      %3456 = vmatpush.bf16.msra.mxu0 %v3441
      %3457 = vmatmul.bf16.gmra.mxu0 %v3444
      %v3458 = vpop.f32.mrf.mxu0
      %v3459 = vadd.f32 0.0, %v3458
      %v3460 = vpop.f32.mrf.mxu0
      %v3461 = vadd.f32 0.0, %v3460
      %3462 = vmatmul.bf16.gmra.mxu0 %v3447
      %v3463 = vpop.f32.mrf.mxu0
      %v3464 = vadd.f32 0.0, %v3463
      %v3465 = vpop.f32.mrf.mxu0
      %v3466 = vadd.f32 0.0, %v3465
      %3467 = vdwg.mxu0
      %v3468 = vadd.f32 %v3421, %v3459
      %v3469 = vadd.f32 %v3422, %v3461
      %v3470 = vadd.f32 %v3423, %v3464
      %v3471 = vadd.f32 %v3424, %v3466
      %s3472 = scalar_lea.vmem %s1, 832
      %v3473 = vld [vmem:[%s3472] sm:$0xf]
      %v3474 = vld [vmem:[%s3472 + $0x4] sm:$0xf]
      %v3475 = vld [vmem:[%s3472 + $0x8] sm:$0xf]
      %v3476 = vld [vmem:[%s3472 + $0xc] sm:$0xf]
      %v3481 = vunpack.c.l.b16 %v3473
      %v3482 = vunpack.c.l.b16 %v3474
      %v3483 = vunpack.c.l.b16 %v3475
      %v3484 = vunpack.c.l.b16 %v3476
      %v3485 = vpack.c.b16 %v3482, %v3481
      %v3486 = vpack.c.b16 %v3484, %v3483
      %3487 = vrot.lane.b32.xlu0 %v3313, 112
      %v3488 = vpop.permute.xlu0 %3487
      %v3491 = vsel %vm1689, %v3485, 0
      %v3494 = vsel %vm1689, %v3486, 0
      %3496 = vmatpush.bf16.msra.mxu0 0
      %3497 = vmatpush.bf16.msra.mxu0 0
      %3498 = vmatpush.bf16.msra.mxu0 0
      %3499 = vmatpush.bf16.msra.mxu0 0
      %3500 = vmatpush.bf16.msra.mxu0 0
      %3501 = vmatpush.bf16.msra.mxu0 0
      %3502 = vmatpush.bf16.msra.mxu0 0
      %3503 = vmatpush.bf16.msra.mxu0 %v3488
      %3504 = vmatmul.bf16.gmra.mxu0 %v3491
      %v3505 = vpop.f32.mrf.mxu0
      %v3506 = vadd.f32 0.0, %v3505
      %v3507 = vpop.f32.mrf.mxu0
      %v3508 = vadd.f32 0.0, %v3507
      %3509 = vmatmul.bf16.gmra.mxu0 %v3494
      %v3510 = vpop.f32.mrf.mxu0
      %v3511 = vadd.f32 0.0, %v3510
      %v3512 = vpop.f32.mrf.mxu0
      %v3513 = vadd.f32 0.0, %v3512
      %3514 = vdwg.mxu0
      %v3515 = vadd.f32 %v3468, %v3506
      %v3516 = vadd.f32 %v3469, %v3508
      %v3517 = vadd.f32 %v3470, %v3511
      %v3518 = vadd.f32 %v3471, %v3513
      %s3519 = scalar_lea.vmem %s1, 848
      %v3520 = vld [vmem:[%s3519] sm:$0xf]
      %v3521 = vld [vmem:[%s3519 + $0x4] sm:$0xf]
      %v3522 = vld [vmem:[%s3519 + $0x8] sm:$0xf]
      %v3523 = vld [vmem:[%s3519 + $0xc] sm:$0xf]
      %v3528 = vunpack.c.l.b16 %v3520
      %v3529 = vunpack.c.l.b16 %v3521
      %v3530 = vunpack.c.l.b16 %v3522
      %v3531 = vunpack.c.l.b16 %v3523
      %v3532 = vpack.c.b16 %v3529, %v3528
      %v3533 = vpack.c.b16 %v3531, %v3530
      %3534 = vrot.lane.b32.xlu0 %v3313, 108
      %v3535 = vpop.permute.xlu0 %3534
      %v3538 = vsel %vm1689, %v3532, 0
      %v3541 = vsel %vm1689, %v3533, 0
      %3543 = vmatpush.bf16.msra.mxu0 0
      %3544 = vmatpush.bf16.msra.mxu0 0
      %3545 = vmatpush.bf16.msra.mxu0 0
      %3546 = vmatpush.bf16.msra.mxu0 0
      %3547 = vmatpush.bf16.msra.mxu0 0
      %3548 = vmatpush.bf16.msra.mxu0 0
      %3549 = vmatpush.bf16.msra.mxu0 0
      %3550 = vmatpush.bf16.msra.mxu0 %v3535
      %3551 = vmatmul.bf16.gmra.mxu0 %v3538
      %v3552 = vpop.f32.mrf.mxu0
      %v3553 = vadd.f32 0.0, %v3552
      %v3554 = vpop.f32.mrf.mxu0
      %v3555 = vadd.f32 0.0, %v3554
      %3556 = vmatmul.bf16.gmra.mxu0 %v3541
      %v3557 = vpop.f32.mrf.mxu0
      %v3558 = vadd.f32 0.0, %v3557
      %v3559 = vpop.f32.mrf.mxu0
      %v3560 = vadd.f32 0.0, %v3559
      %3561 = vdwg.mxu0
      %v3562 = vadd.f32 %v3515, %v3553
      %v3563 = vadd.f32 %v3516, %v3555
      %v3564 = vadd.f32 %v3517, %v3558
      %v3565 = vadd.f32 %v3518, %v3560
      %s3566 = scalar_lea.vmem %s1, 864
      %v3567 = vld [vmem:[%s3566] sm:$0xf]
      %v3568 = vld [vmem:[%s3566 + $0x4] sm:$0xf]
      %v3569 = vld [vmem:[%s3566 + $0x8] sm:$0xf]
      %v3570 = vld [vmem:[%s3566 + $0xc] sm:$0xf]
      %v3575 = vunpack.c.l.b16 %v3567
      %v3576 = vunpack.c.l.b16 %v3568
      %v3577 = vunpack.c.l.b16 %v3569
      %v3578 = vunpack.c.l.b16 %v3570
      %v3579 = vpack.c.b16 %v3576, %v3575
      %v3580 = vpack.c.b16 %v3578, %v3577
      %3581 = vrot.lane.b32.xlu0 %v3313, 104
      %v3582 = vpop.permute.xlu0 %3581
      %v3585 = vsel %vm1689, %v3579, 0
      %v3588 = vsel %vm1689, %v3580, 0
      %3590 = vmatpush.bf16.msra.mxu0 0
      %3591 = vmatpush.bf16.msra.mxu0 0
      %3592 = vmatpush.bf16.msra.mxu0 0
      %3593 = vmatpush.bf16.msra.mxu0 0
      %3594 = vmatpush.bf16.msra.mxu0 0
      %3595 = vmatpush.bf16.msra.mxu0 0
      %3596 = vmatpush.bf16.msra.mxu0 0
      %3597 = vmatpush.bf16.msra.mxu0 %v3582
      %3598 = vmatmul.bf16.gmra.mxu0 %v3585
      %v3599 = vpop.f32.mrf.mxu0
      %v3600 = vadd.f32 0.0, %v3599
      %v3601 = vpop.f32.mrf.mxu0
      %v3602 = vadd.f32 0.0, %v3601
      %3603 = vmatmul.bf16.gmra.mxu0 %v3588
      %v3604 = vpop.f32.mrf.mxu0
      %v3605 = vadd.f32 0.0, %v3604
      %v3606 = vpop.f32.mrf.mxu0
      %v3607 = vadd.f32 0.0, %v3606
      %3608 = vdwg.mxu0
      %v3609 = vadd.f32 %v3562, %v3600
      %v3610 = vadd.f32 %v3563, %v3602
      %v3611 = vadd.f32 %v3564, %v3605
      %v3612 = vadd.f32 %v3565, %v3607
      %s3613 = scalar_lea.vmem %s1, 880
      %v3614 = vld [vmem:[%s3613] sm:$0xf]
      %v3615 = vld [vmem:[%s3613 + $0x4] sm:$0xf]
      %v3616 = vld [vmem:[%s3613 + $0x8] sm:$0xf]
      %v3617 = vld [vmem:[%s3613 + $0xc] sm:$0xf]
      %v3622 = vunpack.c.l.b16 %v3614
      %v3623 = vunpack.c.l.b16 %v3615
      %v3624 = vunpack.c.l.b16 %v3616
      %v3625 = vunpack.c.l.b16 %v3617
      %v3626 = vpack.c.b16 %v3623, %v3622
      %v3627 = vpack.c.b16 %v3625, %v3624
      %3628 = vrot.lane.b32.xlu0 %v3313, 100
      %v3629 = vpop.permute.xlu0 %3628
      %v3632 = vsel %vm1689, %v3626, 0
      %v3635 = vsel %vm1689, %v3627, 0
      %3637 = vmatpush.bf16.msra.mxu0 0
      %3638 = vmatpush.bf16.msra.mxu0 0
      %3639 = vmatpush.bf16.msra.mxu0 0
      %3640 = vmatpush.bf16.msra.mxu0 0
      %3641 = vmatpush.bf16.msra.mxu0 0
      %3642 = vmatpush.bf16.msra.mxu0 0
      %3643 = vmatpush.bf16.msra.mxu0 0
      %3644 = vmatpush.bf16.msra.mxu0 %v3629
      %3645 = vmatmul.bf16.gmra.mxu0 %v3632
      %v3646 = vpop.f32.mrf.mxu0
      %v3647 = vadd.f32 0.0, %v3646
      %v3648 = vpop.f32.mrf.mxu0
      %v3649 = vadd.f32 0.0, %v3648
      %3650 = vmatmul.bf16.gmra.mxu0 %v3635
      %v3651 = vpop.f32.mrf.mxu0
      %v3652 = vadd.f32 0.0, %v3651
      %v3653 = vpop.f32.mrf.mxu0
      %v3654 = vadd.f32 0.0, %v3653
      %3655 = vdwg.mxu0
      %v3656 = vadd.f32 %v3609, %v3647
      %v3657 = vadd.f32 %v3610, %v3649
      %v3658 = vadd.f32 %v3611, %v3652
      %v3659 = vadd.f32 %v3612, %v3654
      %s3660 = scalar_lea.vmem %s1, 896
      %v3661 = vld [vmem:[%s3660] sm:$0xf]
      %v3662 = vld [vmem:[%s3660 + $0x4] sm:$0xf]
      %v3663 = vld [vmem:[%s3660 + $0x8] sm:$0xf]
      %v3664 = vld [vmem:[%s3660 + $0xc] sm:$0xf]
      %v3669 = vunpack.c.l.b16 %v3661
      %v3670 = vunpack.c.l.b16 %v3662
      %v3671 = vunpack.c.l.b16 %v3663
      %v3672 = vunpack.c.l.b16 %v3664
      %v3673 = vpack.c.b16 %v3670, %v3669
      %v3674 = vpack.c.b16 %v3672, %v3671
      %3675 = vrot.lane.b32.xlu0 %v3313, 96
      %v3676 = vpop.permute.xlu0 %3675
      %v3679 = vsel %vm1689, %v3673, 0
      %v3682 = vsel %vm1689, %v3674, 0
      %3684 = vmatpush.bf16.msra.mxu0 0
      %3685 = vmatpush.bf16.msra.mxu0 0
      %3686 = vmatpush.bf16.msra.mxu0 0
      %3687 = vmatpush.bf16.msra.mxu0 0
      %3688 = vmatpush.bf16.msra.mxu0 0
      %3689 = vmatpush.bf16.msra.mxu0 0
      %3690 = vmatpush.bf16.msra.mxu0 0
      %3691 = vmatpush.bf16.msra.mxu0 %v3676
      %3692 = vmatmul.bf16.gmra.mxu0 %v3679
      %v3693 = vpop.f32.mrf.mxu0
      %v3694 = vadd.f32 0.0, %v3693
      %v3695 = vpop.f32.mrf.mxu0
      %v3696 = vadd.f32 0.0, %v3695
      %3697 = vmatmul.bf16.gmra.mxu0 %v3682
      %v3698 = vpop.f32.mrf.mxu0
      %v3699 = vadd.f32 0.0, %v3698
      %v3700 = vpop.f32.mrf.mxu0
      %v3701 = vadd.f32 0.0, %v3700
      %3702 = vdwg.mxu0
      %v3703 = vadd.f32 %v3656, %v3694
      %v3704 = vadd.f32 %v3657, %v3696
      %v3705 = vadd.f32 %v3658, %v3699
      %v3706 = vadd.f32 %v3659, %v3701
      %s3707 = scalar_lea.vmem %s2, 256
      %v3708 = vld [vmem:[%s3707] sm:$0xff]
      %v3709 = vld [vmem:[%s3707 + $0x8] sm:$0xff]
      %v3710 = vld [vmem:[%s3707 + $0x10] sm:$0xff]
      %v3711 = vld [vmem:[%s3707 + $0x18] sm:$0xff]
      %3713 = vset.pattern.permute.xlu0 0
      %3714 = vperm.xlu0 %3713, %v3708
      %v3715 = vpop.permute.xlu0 %3714
      %3718 = vset.pattern.permute.xlu0 0
      %3719 = vperm.xlu0 %3718, %v3709
      %v3720 = vpop.permute.xlu0 %3719
      %3723 = vset.pattern.permute.xlu0 0
      %3724 = vperm.xlu0 %3723, %v3710
      %v3725 = vpop.permute.xlu0 %3724
      %3728 = vset.pattern.permute.xlu0 0
      %3729 = vperm.xlu0 %3728, %v3711
      %v3730 = vpop.permute.xlu0 %3729
      %v3732 = vadd.f32 %v3703, %v3715
      %v3733 = vadd.f32 %v3704, %v3720
      %v3734 = vadd.f32 %v3705, %v3725
      %v3735 = vadd.f32 %v3706, %v3730
      %vm3736 = vcmp.gt.f32.partialorder %v3732, 0.0
      %vm3737 = vcmp.gt.f32.partialorder %v3733, 0.0
      %vm3738 = vcmp.gt.f32.partialorder %v3734, 0.0
      %vm3739 = vcmp.gt.f32.partialorder %v3735, 0.0
      %v3740 = vmul.f32 %v3732, 0.1
      %v3741 = vmul.f32 %v3733, 0.1
      %v3742 = vmul.f32 %v3734, 0.1
      %v3743 = vmul.f32 %v3735, 0.1
      %v3744 = vsel %vm3736, %v3732, %v3740
      %v3745 = vsel %vm3737, %v3733, %v3741
      %v3746 = vsel %vm3738, %v3734, %v3742
      %v3747 = vsel %vm3739, %v3735, %v3743
      %v3748 = vpack.c.bf16 %v3745, %v3744
      %v3749 = vpack.c.bf16 %v3747, %v3746
      %s3750 = scalar_lea.vmem %s1, 912
      %v3751 = vld [vmem:[%s3750] sm:$0xf]
      %v3752 = vld [vmem:[%s3750 + $0x4] sm:$0xf]
      %v3753 = vld [vmem:[%s3750 + $0x8] sm:$0xf]
      %s3754 = scalar_lea.vmem %s2, 288
      %v3755 = vld [vmem:[%s3754] sm:$0xff]
      %v3756 = vld [vmem:[%s3754 + $0x8] sm:$0xff]
      %v3757 = vld [vmem:[%s3754 + $0x10] sm:$0xff]
      %3759 = vset.pattern.permute.xlu0 0
      %3760 = vperm.xlu0 %3759, %v3755
      %v3761 = vpop.permute.xlu0 %3760
      %3764 = vset.pattern.permute.xlu0 0
      %3765 = vperm.xlu0 %3764, %v3756
      %v3766 = vpop.permute.xlu0 %3765
      %3769 = vset.pattern.permute.xlu0 0
      %3770 = vperm.xlu0 %3769, %v3757
      %v3771 = vpop.permute.xlu0 %3770
      %v3776 = vunpack.c.l.b16 %v3751
      %v3777 = vunpack.c.l.b16 %v3752
      %v3778 = vunpack.c.l.b16 %v3753
      %v3779 = vpack.c.b16 %v3777, %v3776
      %v3780 = vpack.c.b16 %v3778, %v3778
      %v3782 = vsel %vm2191, %v3779, 0
      %v3785 = vsel %vm2191, %v3780, 0
      %3787 = vmatpush.bf16.msra.mxu0 0
      %3788 = vmatpush.bf16.msra.mxu0 0
      %3789 = vmatpush.bf16.msra.mxu0 0
      %3790 = vmatpush.bf16.msra.mxu0 0
      %3791 = vmatpush.bf16.msra.mxu0 0
      %3792 = vmatpush.bf16.msra.mxu0 0
      %3793 = vmatpush.bf16.msra.mxu0 %v3749
      %3794 = vmatpush.bf16.msra.mxu0 %v3748
      %3795 = vmatmul.bf16.gmra.mxu0 %v3782
      %v3796 = vpop.f32.mrf.mxu0
      %v3797 = vadd.f32 %v3761, %v3796
      %v3798 = vpop.f32.mrf.mxu0
      %v3799 = vadd.f32 %v3766, %v3798
      %3800 = vmatmul.bf16.gmra.mxu0 %v3785
      %v3801 = vpop.f32.mrf.mxu0
      %v3802 = vadd.f32 %v3771, %v3801
      %v3803 = vpop.f32.mrf.mxu0
      %3804 = vdwg.mxu0
      %v3805 = vld [vmem:[%s11] sm:$0x1]
      %v3806 = vld [vmem:[%s11 + $0x1] sm:$0x1]
      %v3807 = vmul.f32 %v3797, 0.5
      %v3808 = vtanh.pop %v3807
      %v3809 = vadd.f32 %v3808, 1.0
      %v3810 = vmul.f32 %v3809, 0.5
      %v3811 = vmul.f32 %v3810, 8.0
      %v3812 = vperm.slane %v3805, 0
      %v3813 = vadd.f32 %v3811, %v3812
      %v3814 = vperm.slane %v3806, 0
      %v3815 = vadd.f32 %v3811, %v3814
      %v3816 = vmul.f32 %v3797, 1.442695
      %v3817 = vpow.pop %v3816
      %v3818 = vmul.f32 %v3799, 1.442695
      %v3819 = vpow.pop %v3818
      %v3820 = vmul.f32 %v3799, 0.5
      %v3821 = vtanh.pop %v3820
      %v3822 = vadd.f32 %v3821, 1.0
      %v3823 = vmul.f32 %v3822, 0.5
      %v3824 = vmul.f32 %v3802, 0.5
      %v3825 = vtanh.pop %v3824
      %v3826 = vadd.f32 %v3825, 1.0
      %v3827 = vmul.f32 %v3826, 0.5
      %v3828 = vperm.slane %v3823, 4
      %v3829 = vmul.f32 %v3823, %v3828
      %v3830 = vmul.f32 %v3827, %v3828
      %v3831 = vperm.slane %v3823, 5
      %v3832 = vmul.f32 %v3827, %v3831
      %v3833 = vperm.slane %v3823, 6
      %v3834 = vmul.f32 %v3827, %v3833
      %vm3837 = vcmask 1040384
      %v3838 = vrot.slane %v3829, 7
      %v3839 = vrot.slane %v3830, 7
      %v3840 = vsel %vm3837, %v3838, %v3839
      %v3843 = vrot.slane %v3832, 7
      %v3846 = vrot.slane %v3834, 7
      %vm3848 = vcmask 1042432
      %v3849 = vsel %vm3848, %v3840, %v3843
      %vm3850 = vcmask 1045504
      %v3851 = vsel %vm3850, %v3849, %v3846
      %v3854 = vrot.slane %v3817, 6
      %v3855 = vrot.slane %v3819, 6
      %v3856 = vsel %vm1079, %v3854, %v3855
      %v3858 = vsub.f32 %v3813, %v3856
      %v3860 = vsub.f32 %v3815, %v3855
      %v3861 = vadd.f32 %v3813, %v3856
      %v3862 = vadd.f32 %v3815, %v3855
      %v3864 = vrot.slane %v3861, 2
      %v3867 = vrot.slane %v3862, 2
      %v3870 = vrot.slane %v3851, 4
      %v3871 = vrot.slane %v3846, 4
      %v3872 = vsel %vm1392, %v3870, %v3871
      %v3875 = vsel %vm3848, %v3858, %v3860
      %v3876 = vsel %vm3850, %v3875, %v3864
      %v3877 = vsel %vm3837, %v3864, %v3867
      %v3878 = vsel %vm1392, %v3877, %v3870
      %vm3879 = vcmask 1044480
      %v3880 = vsel %vm3879, %v3872, 0.0
      %v3881 = vsel %vm1075, %v3876, 0.0
      %v3882 = vsel %vm1075, %v3878, 0.0
      %v3883 = vsel %vm1075, %v3880, 0.0
      %3884 = vst [vmem:[%s413] sm:$0xff] %v3881
      %3885 = vst [vmem:[%s413 + $0x8] sm:$0xff] %v3882
      %3886 = vst [vmem:[%s413 + $0x10] sm:$0xff] %v3883
      %s3887 = scalar_lea.vmem %s1, 928
      %v3888 = vld [vmem:[%s3887] sm:$0xf]
      %s3889 = scalar_lea.vmem %s2, 320
      %v3890 = vld [vmem:[%s3889] sm:$0xff]
      %3892 = vset.pattern.permute.xlu0 0
      %3893 = vperm.xlu0 %3892, %v3890
      %v3894 = vpop.permute.xlu0 %3893
      %v3897 = vsel %vm1689, %v3888, 0
      %3899 = vmatpush.bf16.msra.mxu0 0
      %3900 = vmatpush.bf16.msra.mxu0 0
      %3901 = vmatpush.bf16.msra.mxu0 0
      %3902 = vmatpush.bf16.msra.mxu0 0
      %3903 = vmatpush.bf16.msra.mxu0 0
      %3904 = vmatpush.bf16.msra.mxu0 0
      %3905 = vmatpush.bf16.msra.mxu0 0
      %3906 = vmatpush.bf16.msra.mxu0 %v3269
      %3907 = vmatmul.bf16.gmra.mxu0 %v3897
      %v3908 = vpop.f32.mrf.mxu0
      %v3909 = vadd.f32 %v3894, %v3908
      %v3910 = vpop.f32.mrf.mxu0
      %3911 = vdwg.mxu0
      %vm3912 = vcmp.gt.f32.partialorder %v3909, 0.0
      %v3913 = vmul.f32 %v3909, 0.1
      %v3914 = vsel %vm3912, %v3909, %v3913
      %v3915 = vpack.c.bf16 %v3914, %v3914
      %v3916 = vld [vmem:[%s9] sm:$0x3]
      %v3918 = vsel %vm1075, %v3915, 0
      %v3921 = vsel %vm1079, %v3916, 0
      %3923 = vmatpush.bf16.msra.mxu0 0
      %3924 = vmatpush.bf16.msra.mxu0 0
      %3925 = vmatpush.bf16.msra.mxu0 0
      %3926 = vmatpush.bf16.msra.mxu0 0
      %3927 = vmatpush.bf16.msra.mxu0 0
      %3928 = vmatpush.bf16.msra.mxu0 0
      %3929 = vmatpush.bf16.msra.mxu0 0
      %3930 = vmatpush.bf16.msra.mxu0 %v3921
      %3931 = vmatmul.bf16.gmra.mxu0 %v3918
      %v3932 = vpop.f32.mrf.mxu0
      %v3933 = vadd.f32 0.0, %v3932
      %v3934 = vpop.f32.mrf.mxu0
      %3935 = vdwg.mxu0
      %v3936 = vpack.c.bf16 %v3933, %v3933
      %s3937 = scalar_lea.vmem %s1, 944
      %v3938 = vld [vmem:[%s3937] sm:$0xf]
      %v3940 = vunpack.c.l.b16 %v3938
      %v3941 = vpack.c.b16 %v3940, %v3940
      %3942 = vrot.lane.b32.xlu0 %v3941, 120
      %v3943 = vpop.permute.xlu0 %3942
      %v3945 = vsel %vm1689, %v3943, 0
      %3947 = vmatpush.bf16.msra.mxu0 0
      %3948 = vmatpush.bf16.msra.mxu0 0
      %3949 = vmatpush.bf16.msra.mxu0 0
      %3950 = vmatpush.bf16.msra.mxu0 0
      %3951 = vmatpush.bf16.msra.mxu0 0
      %3952 = vmatpush.bf16.msra.mxu0 0
      %3953 = vmatpush.bf16.msra.mxu0 0
      %3954 = vmatpush.bf16.msra.mxu0 %v1680
      %3955 = vmatmul.bf16.gmra.mxu0 %v3945
      %v3956 = vpop.f32.mrf.mxu0
      %v3957 = vadd.f32 0.0, %v3956
      %v3958 = vpop.f32.mrf.mxu0
      %3959 = vdwg.mxu0
      %v3961 = vsel %vm1388, %v3938, 0
      %v3964 = vsel %vm1392, %v3936, 0
      %3966 = vmatpush.bf16.msra.mxu0 0
      %3967 = vmatpush.bf16.msra.mxu0 0
      %3968 = vmatpush.bf16.msra.mxu0 0
      %3969 = vmatpush.bf16.msra.mxu0 0
      %3970 = vmatpush.bf16.msra.mxu0 0
      %3971 = vmatpush.bf16.msra.mxu0 0
      %3972 = vmatpush.bf16.msra.mxu0 0
      %3973 = vmatpush.bf16.msra.mxu0 %v3964
      %3974 = vmatmul.bf16.gmra.mxu0 %v3961
      %v3975 = vpop.f32.mrf.mxu0
      %v3976 = vadd.f32 %v3957, %v3975
      %v3977 = vpop.f32.mrf.mxu0
      %3978 = vdwg.mxu0
      %s3979 = scalar_lea.vmem %s2, 352
      %v3980 = vld [vmem:[%s3979] sm:$0xff]
      %3982 = vset.pattern.permute.xlu0 0
      %3983 = vperm.xlu0 %3982, %v3980
      %v3984 = vpop.permute.xlu0 %3983
      %v3986 = vadd.f32 %v3976, %v3984
      %vm3987 = vcmp.gt.f32.partialorder %v3986, 0.0
      %v3988 = vmul.f32 %v3986, 0.1
      %v3989 = vsel %vm3987, %v3986, %v3988
      %v3990 = vpack.c.bf16 %v3989, %v3989
      %v3991 = vld [vmem:[%s7] sm:$0xff]
      %v3992 = vld [vmem:[%s7 + $0x8] sm:$0xff]
      %v3995 = vunpack.c.l.b16 %v3991
      %v3996 = vunpack.c.h.b16 %v3991
      %v3997 = vunpack.c.l.b16 %v3992
      %v3998 = vunpack.c.h.b16 %v3992
      %v3999 = vpack.c.b16 %v3997, %v3995
      %v4000 = vpack.c.b16 %v3998, %v3996
      %v4004 = vsel %vm1689, %v3990, 0
      %4006 = vmatpush.bf16.msra.mxu0 0
      %4007 = vmatpush.bf16.msra.mxu0 0
      %4008 = vmatpush.bf16.msra.mxu0 0
      %4009 = vmatpush.bf16.msra.mxu0 0
      %4010 = vmatpush.bf16.msra.mxu0 0
      %4011 = vmatpush.bf16.msra.mxu0 0
      %4012 = vmatpush.bf16.msra.mxu0 0
      %4013 = vmatpush.bf16.msra.mxu0 %v3999
      %4014 = vmatmul.bf16.gmra.mxu0 %v4004
      %v4015 = vpop.f32.mrf.mxu0
      %v4016 = vadd.f32 0.0, %v4015
      %v4017 = vpop.f32.mrf.mxu0
      %4018 = vdwg.mxu0
      %4019 = vmatpush.bf16.msra.mxu0 0
      %4020 = vmatpush.bf16.msra.mxu0 0
      %4021 = vmatpush.bf16.msra.mxu0 0
      %4022 = vmatpush.bf16.msra.mxu0 0
      %4023 = vmatpush.bf16.msra.mxu0 0
      %4024 = vmatpush.bf16.msra.mxu0 0
      %4025 = vmatpush.bf16.msra.mxu0 0
      %4026 = vmatpush.bf16.msra.mxu0 %v4000
      %4027 = vmatmul.bf16.gmra.mxu0 %v4004
      %v4028 = vpop.f32.mrf.mxu0
      %v4029 = vadd.f32 0.0, %v4028
      %v4030 = vpop.f32.mrf.mxu0
      %4031 = vdwg.mxu0
      %v4032 = vpack.c.bf16 %v4029, %v4016
      %s4033 = scalar_lea.vmem %s1, 960
      %v4034 = vld [vmem:[%s4033] sm:$0xf]
      %v4035 = vld [vmem:[%s4033 + $0x4] sm:$0xf]
      %s4036 = scalar_lea.vmem %s1, 976
      %v4037 = vld [vmem:[%s4036] sm:$0xf]
      %v4038 = vld [vmem:[%s4036 + $0x4] sm:$0xf]
      %v4041 = vunpack.c.l.b16 %v4037
      %v4042 = vunpack.c.l.b16 %v4038
      %v4043 = vpack.c.b16 %v4042, %v4041
      %v4045 = vunpack.c.l.b16 %v4032
      %v4046 = vpack.c.b16 %v4045, %v4045
      %4047 = vrot.lane.b32.xlu0 %v4046, 112
      %v4048 = vpop.permute.xlu0 %4047
      %v4050 = vsel %vm1388, %v4043, 0
      %v4053 = vsel %vm1392, %v4048, 0
      %4055 = vmatpush.bf16.msra.mxu0 0
      %4056 = vmatpush.bf16.msra.mxu0 0
      %4057 = vmatpush.bf16.msra.mxu0 0
      %4058 = vmatpush.bf16.msra.mxu0 0
      %4059 = vmatpush.bf16.msra.mxu0 0
      %4060 = vmatpush.bf16.msra.mxu0 0
      %4061 = vmatpush.bf16.msra.mxu0 0
      %4062 = vmatpush.bf16.msra.mxu0 %v4053
      %4063 = vmatmul.bf16.gmra.mxu0 %v4050
      %v4064 = vpop.f32.mrf.mxu0
      %v4065 = vadd.f32 0.0, %v4064
      %v4066 = vpop.f32.mrf.mxu0
      %v4067 = vadd.f32 0.0, %v4066
      %4068 = vdwg.mxu0
      %v4071 = vunpack.c.l.b16 %v4034
      %v4072 = vunpack.c.l.b16 %v4035
      %v4073 = vpack.c.b16 %v4072, %v4071
      %v4075 = vsel %vm1388, %v4073, 0
      %v4078 = vsel %vm1392, %v4032, 0
      %4080 = vmatpush.bf16.msra.mxu0 0
      %4081 = vmatpush.bf16.msra.mxu0 0
      %4082 = vmatpush.bf16.msra.mxu0 0
      %4083 = vmatpush.bf16.msra.mxu0 0
      %4084 = vmatpush.bf16.msra.mxu0 0
      %4085 = vmatpush.bf16.msra.mxu0 0
      %4086 = vmatpush.bf16.msra.mxu0 0
      %4087 = vmatpush.bf16.msra.mxu0 %v4078
      %4088 = vmatmul.bf16.gmra.mxu0 %v4075
      %v4089 = vpop.f32.mrf.mxu0
      %v4090 = vadd.f32 %v4065, %v4089
      %v4091 = vpop.f32.mrf.mxu0
      %v4092 = vadd.f32 %v4067, %v4091
      %4093 = vdwg.mxu0
      %s4094 = scalar_lea.vmem %s1, 992
      %v4095 = vld [vmem:[%s4094] sm:$0xf]
      %v4096 = vld [vmem:[%s4094 + $0x4] sm:$0xf]
      %v4099 = vunpack.c.l.b16 %v4095
      %v4100 = vunpack.c.l.b16 %v4096
      %v4101 = vpack.c.b16 %v4100, %v4099
      %4102 = vrot.lane.b32.xlu0 %v4046, 96
      %v4103 = vpop.permute.xlu0 %4102
      %v4105 = vsel %vm1388, %v4101, 0
      %v4108 = vsel %vm1392, %v4103, 0
      %4110 = vmatpush.bf16.msra.mxu0 0
      %4111 = vmatpush.bf16.msra.mxu0 0
      %4112 = vmatpush.bf16.msra.mxu0 0
      %4113 = vmatpush.bf16.msra.mxu0 0
      %4114 = vmatpush.bf16.msra.mxu0 0
      %4115 = vmatpush.bf16.msra.mxu0 0
      %4116 = vmatpush.bf16.msra.mxu0 0
      %4117 = vmatpush.bf16.msra.mxu0 %v4108
      %4118 = vmatmul.bf16.gmra.mxu0 %v4105
      %v4119 = vpop.f32.mrf.mxu0
      %v4120 = vadd.f32 0.0, %v4119
      %v4121 = vpop.f32.mrf.mxu0
      %v4122 = vadd.f32 0.0, %v4121
      %4123 = vdwg.mxu0
      %v4124 = vadd.f32 %v4090, %v4120
      %v4125 = vadd.f32 %v4092, %v4122
      %s4126 = scalar_lea.vmem %s1, 1008
      %v4127 = vld [vmem:[%s4126] sm:$0xf]
      %v4128 = vld [vmem:[%s4126 + $0x4] sm:$0xf]
      %v4131 = vunpack.c.l.b16 %v4127
      %v4132 = vunpack.c.l.b16 %v4128
      %v4133 = vpack.c.b16 %v4132, %v4131
      %4134 = vrot.lane.b32.xlu0 %v4046, 80
      %v4135 = vpop.permute.xlu0 %4134
      %v4137 = vsel %vm1388, %v4133, 0
      %v4140 = vsel %vm1392, %v4135, 0
      %4142 = vmatpush.bf16.msra.mxu0 0
      %4143 = vmatpush.bf16.msra.mxu0 0
      %4144 = vmatpush.bf16.msra.mxu0 0
      %4145 = vmatpush.bf16.msra.mxu0 0
      %4146 = vmatpush.bf16.msra.mxu0 0
      %4147 = vmatpush.bf16.msra.mxu0 0
      %4148 = vmatpush.bf16.msra.mxu0 0
      %4149 = vmatpush.bf16.msra.mxu0 %v4140
      %4150 = vmatmul.bf16.gmra.mxu0 %v4137
      %v4151 = vpop.f32.mrf.mxu0
      %v4152 = vadd.f32 0.0, %v4151
      %v4153 = vpop.f32.mrf.mxu0
      %v4154 = vadd.f32 0.0, %v4153
      %4155 = vdwg.mxu0
      %v4156 = vadd.f32 %v4124, %v4152
      %v4157 = vadd.f32 %v4125, %v4154
      %s4158 = scalar_lea.vmem %s1, 1024
      %v4159 = vld [vmem:[%s4158] sm:$0xf]
      %v4160 = vld [vmem:[%s4158 + $0x4] sm:$0xf]
      %v4163 = vunpack.c.l.b16 %v4159
      %v4164 = vunpack.c.l.b16 %v4160
      %v4165 = vpack.c.b16 %v4164, %v4163
      %4166 = vrot.lane.b32.xlu0 %v4046, 64
      %v4167 = vpop.permute.xlu0 %4166
      %v4169 = vsel %vm1388, %v4165, 0
      %v4172 = vsel %vm1392, %v4167, 0
      %4174 = vmatpush.bf16.msra.mxu0 0
      %4175 = vmatpush.bf16.msra.mxu0 0
      %4176 = vmatpush.bf16.msra.mxu0 0
      %4177 = vmatpush.bf16.msra.mxu0 0
      %4178 = vmatpush.bf16.msra.mxu0 0
      %4179 = vmatpush.bf16.msra.mxu0 0
      %4180 = vmatpush.bf16.msra.mxu0 0
      %4181 = vmatpush.bf16.msra.mxu0 %v4172
      %4182 = vmatmul.bf16.gmra.mxu0 %v4169
      %v4183 = vpop.f32.mrf.mxu0
      %v4184 = vadd.f32 0.0, %v4183
      %v4185 = vpop.f32.mrf.mxu0
      %v4186 = vadd.f32 0.0, %v4185
      %4187 = vdwg.mxu0
      %v4188 = vadd.f32 %v4156, %v4184
      %v4189 = vadd.f32 %v4157, %v4186
      %s4190 = scalar_lea.vmem %s1, 1040
      %v4191 = vld [vmem:[%s4190] sm:$0xf]
      %v4192 = vld [vmem:[%s4190 + $0x4] sm:$0xf]
      %v4195 = vunpack.c.l.b16 %v4191
      %v4196 = vunpack.c.l.b16 %v4192
      %v4197 = vpack.c.b16 %v4196, %v4195
      %4198 = vrot.lane.b32.xlu0 %v4046, 48
      %v4199 = vpop.permute.xlu0 %4198
      %v4201 = vsel %vm1388, %v4197, 0
      %v4204 = vsel %vm1392, %v4199, 0
      %4206 = vmatpush.bf16.msra.mxu0 0
      %4207 = vmatpush.bf16.msra.mxu0 0
      %4208 = vmatpush.bf16.msra.mxu0 0
      %4209 = vmatpush.bf16.msra.mxu0 0
      %4210 = vmatpush.bf16.msra.mxu0 0
      %4211 = vmatpush.bf16.msra.mxu0 0
      %4212 = vmatpush.bf16.msra.mxu0 0
      %4213 = vmatpush.bf16.msra.mxu0 %v4204
      %4214 = vmatmul.bf16.gmra.mxu0 %v4201
      %v4215 = vpop.f32.mrf.mxu0
      %v4216 = vadd.f32 0.0, %v4215
      %v4217 = vpop.f32.mrf.mxu0
      %v4218 = vadd.f32 0.0, %v4217
      %4219 = vdwg.mxu0
      %v4220 = vadd.f32 %v4188, %v4216
      %v4221 = vadd.f32 %v4189, %v4218
      %s4222 = scalar_lea.vmem %s1, 1056
      %v4223 = vld [vmem:[%s4222] sm:$0xf]
      %v4224 = vld [vmem:[%s4222 + $0x4] sm:$0xf]
      %v4227 = vunpack.c.l.b16 %v4223
      %v4228 = vunpack.c.l.b16 %v4224
      %v4229 = vpack.c.b16 %v4228, %v4227
      %4230 = vrot.lane.b32.xlu0 %v4046, 32
      %v4231 = vpop.permute.xlu0 %4230
      %v4233 = vsel %vm1388, %v4229, 0
      %v4236 = vsel %vm1392, %v4231, 0
      %4238 = vmatpush.bf16.msra.mxu0 0
      %4239 = vmatpush.bf16.msra.mxu0 0
      %4240 = vmatpush.bf16.msra.mxu0 0
      %4241 = vmatpush.bf16.msra.mxu0 0
      %4242 = vmatpush.bf16.msra.mxu0 0
      %4243 = vmatpush.bf16.msra.mxu0 0
      %4244 = vmatpush.bf16.msra.mxu0 0
      %4245 = vmatpush.bf16.msra.mxu0 %v4236
      %4246 = vmatmul.bf16.gmra.mxu0 %v4233
      %v4247 = vpop.f32.mrf.mxu0
      %v4248 = vadd.f32 0.0, %v4247
      %v4249 = vpop.f32.mrf.mxu0
      %v4250 = vadd.f32 0.0, %v4249
      %4251 = vdwg.mxu0
      %v4252 = vadd.f32 %v4220, %v4248
      %v4253 = vadd.f32 %v4221, %v4250
      %s4254 = scalar_lea.vmem %s1, 1072
      %v4255 = vld [vmem:[%s4254] sm:$0xf]
      %v4256 = vld [vmem:[%s4254 + $0x4] sm:$0xf]
      %v4259 = vunpack.c.l.b16 %v4255
      %v4260 = vunpack.c.l.b16 %v4256
      %v4261 = vpack.c.b16 %v4260, %v4259
      %4262 = vrot.lane.b32.xlu0 %v4046, 16
      %v4263 = vpop.permute.xlu0 %4262
      %v4265 = vsel %vm1388, %v4261, 0
      %v4268 = vsel %vm1392, %v4263, 0
      %4270 = vmatpush.bf16.msra.mxu0 0
      %4271 = vmatpush.bf16.msra.mxu0 0
      %4272 = vmatpush.bf16.msra.mxu0 0
      %4273 = vmatpush.bf16.msra.mxu0 0
      %4274 = vmatpush.bf16.msra.mxu0 0
      %4275 = vmatpush.bf16.msra.mxu0 0
      %4276 = vmatpush.bf16.msra.mxu0 0
      %4277 = vmatpush.bf16.msra.mxu0 %v4268
      %4278 = vmatmul.bf16.gmra.mxu0 %v4265
      %v4279 = vpop.f32.mrf.mxu0
      %v4280 = vadd.f32 0.0, %v4279
      %v4281 = vpop.f32.mrf.mxu0
      %v4282 = vadd.f32 0.0, %v4281
      %4283 = vdwg.mxu0
      %v4284 = vadd.f32 %v4252, %v4280
      %v4285 = vadd.f32 %v4253, %v4282
      %s4286 = scalar_lea.vmem %s1, 1088
      %v4287 = vld [vmem:[%s4286] sm:$0xf]
      %v4288 = vld [vmem:[%s4286 + $0x4] sm:$0xf]
      %v4291 = vunpack.c.l.b16 %v4287
      %v4292 = vunpack.c.l.b16 %v4288
      %v4293 = vpack.c.b16 %v4292, %v4291
      %v4294 = vunpack.c.h.b16 %v4032
      %v4295 = vpack.c.b16 %v4294, %v4294
      %v4297 = vsel %vm1388, %v4293, 0
      %v4300 = vsel %vm1392, %v4295, 0
      %4302 = vmatpush.bf16.msra.mxu0 0
      %4303 = vmatpush.bf16.msra.mxu0 0
      %4304 = vmatpush.bf16.msra.mxu0 0
      %4305 = vmatpush.bf16.msra.mxu0 0
      %4306 = vmatpush.bf16.msra.mxu0 0
      %4307 = vmatpush.bf16.msra.mxu0 0
      %4308 = vmatpush.bf16.msra.mxu0 0
      %4309 = vmatpush.bf16.msra.mxu0 %v4300
      %4310 = vmatmul.bf16.gmra.mxu0 %v4297
      %v4311 = vpop.f32.mrf.mxu0
      %v4312 = vadd.f32 0.0, %v4311
      %v4313 = vpop.f32.mrf.mxu0
      %v4314 = vadd.f32 0.0, %v4313
      %4315 = vdwg.mxu0
      %v4316 = vadd.f32 %v4284, %v4312
      %v4317 = vadd.f32 %v4285, %v4314
      %s4318 = scalar_lea.vmem %s2, 384
      %v4319 = vld [vmem:[%s4318] sm:$0xff]
      %v4320 = vld [vmem:[%s4318 + $0x8] sm:$0xff]
      %4322 = vset.pattern.permute.xlu0 0
      %4323 = vperm.xlu0 %4322, %v4319
      %v4324 = vpop.permute.xlu0 %4323
      %4327 = vset.pattern.permute.xlu0 0
      %4328 = vperm.xlu0 %4327, %v4320
      %v4329 = vpop.permute.xlu0 %4328
      %v4331 = vadd.f32 %v4316, %v4324
      %v4332 = vadd.f32 %v4317, %v4329
      %vm4333 = vcmp.gt.f32.partialorder %v4331, 0.0
      %vm4334 = vcmp.gt.f32.partialorder %v4332, 0.0
      %v4335 = vmul.f32 %v4331, 0.1
      %v4336 = vmul.f32 %v4332, 0.1
      %v4337 = vsel %vm4333, %v4331, %v4335
      %v4338 = vsel %vm4334, %v4332, %v4336
      %v4339 = vpack.c.bf16 %v4338, %v4337
      %s4340 = scalar_lea.vmem %s1, 1104
      %v4341 = vld [vmem:[%s4340] sm:$0xf]
      %s4342 = scalar_lea.vmem %s2, 416
      %v4343 = vld [vmem:[%s4342] sm:$0xff]
      %4345 = vset.pattern.permute.xlu0 0
      %4346 = vperm.xlu0 %4345, %v4343
      %v4347 = vpop.permute.xlu0 %4346
      %v4350 = vsel %vm1689, %v4341, 0
      %4352 = vmatpush.bf16.msra.mxu0 0
      %4353 = vmatpush.bf16.msra.mxu0 0
      %4354 = vmatpush.bf16.msra.mxu0 0
      %4355 = vmatpush.bf16.msra.mxu0 0
      %4356 = vmatpush.bf16.msra.mxu0 0
      %4357 = vmatpush.bf16.msra.mxu0 0
      %4358 = vmatpush.bf16.msra.mxu0 0
      %4359 = vmatpush.bf16.msra.mxu0 %v4339
      %4360 = vmatmul.bf16.gmra.mxu0 %v4350
      %v4361 = vpop.f32.mrf.mxu0
      %v4362 = vadd.f32 %v4347, %v4361
      %v4363 = vpop.f32.mrf.mxu0
      %4364 = vdwg.mxu0
      %vm4365 = vcmp.gt.f32.partialorder %v4362, 0.0
      %v4366 = vmul.f32 %v4362, 0.1
      %v4367 = vsel %vm4365, %v4362, %v4366
      %v4368 = vpack.c.bf16 %v4367, %v4367
      %v4370 = vsel %vm1689, %v4368, 0
      %4372 = vmatpush.bf16.msra.mxu0 0
      %4373 = vmatpush.bf16.msra.mxu0 0
      %4374 = vmatpush.bf16.msra.mxu0 0
      %4375 = vmatpush.bf16.msra.mxu0 0
      %4376 = vmatpush.bf16.msra.mxu0 0
      %4377 = vmatpush.bf16.msra.mxu0 0
      %4378 = vmatpush.bf16.msra.mxu0 0
      %4379 = vmatpush.bf16.msra.mxu0 %v3999
      %4380 = vmatmul.bf16.gmra.mxu0 %v4370
      %v4381 = vpop.f32.mrf.mxu0
      %v4382 = vadd.f32 0.0, %v4381
      %v4383 = vpop.f32.mrf.mxu0
      %4384 = vdwg.mxu0
      %4385 = vmatpush.bf16.msra.mxu0 0
      %4386 = vmatpush.bf16.msra.mxu0 0
      %4387 = vmatpush.bf16.msra.mxu0 0
      %4388 = vmatpush.bf16.msra.mxu0 0
      %4389 = vmatpush.bf16.msra.mxu0 0
      %4390 = vmatpush.bf16.msra.mxu0 0
      %4391 = vmatpush.bf16.msra.mxu0 0
      %4392 = vmatpush.bf16.msra.mxu0 %v4000
      %4393 = vmatmul.bf16.gmra.mxu0 %v4370
      %v4394 = vpop.f32.mrf.mxu0
      %v4395 = vadd.f32 0.0, %v4394
      %v4396 = vpop.f32.mrf.mxu0
      %4397 = vdwg.mxu0
      %v4398 = vpack.c.bf16 %v4395, %v4382
      %s4399 = scalar_lea.vmem %s1, 1120
      %v4400 = vld [vmem:[%s4399] sm:$0xf]
      %v4401 = vld [vmem:[%s4399 + $0x4] sm:$0xf]
      %s4402 = scalar_lea.vmem %s1, 1136
      %v4403 = vld [vmem:[%s4402] sm:$0xf]
      %v4404 = vld [vmem:[%s4402 + $0x4] sm:$0xf]
      %v4407 = vunpack.c.l.b16 %v4403
      %v4408 = vunpack.c.l.b16 %v4404
      %v4409 = vpack.c.b16 %v4408, %v4407
      %v4411 = vunpack.c.l.b16 %v4398
      %v4412 = vpack.c.b16 %v4411, %v4411
      %4413 = vrot.lane.b32.xlu0 %v4412, 112
      %v4414 = vpop.permute.xlu0 %4413
      %v4416 = vsel %vm1388, %v4409, 0
      %v4419 = vsel %vm1392, %v4414, 0
      %4421 = vmatpush.bf16.msra.mxu0 0
      %4422 = vmatpush.bf16.msra.mxu0 0
      %4423 = vmatpush.bf16.msra.mxu0 0
      %4424 = vmatpush.bf16.msra.mxu0 0
      %4425 = vmatpush.bf16.msra.mxu0 0
      %4426 = vmatpush.bf16.msra.mxu0 0
      %4427 = vmatpush.bf16.msra.mxu0 0
      %4428 = vmatpush.bf16.msra.mxu0 %v4419
      %4429 = vmatmul.bf16.gmra.mxu0 %v4416
      %v4430 = vpop.f32.mrf.mxu0
      %v4431 = vadd.f32 0.0, %v4430
      %v4432 = vpop.f32.mrf.mxu0
      %v4433 = vadd.f32 0.0, %v4432
      %4434 = vdwg.mxu0
      %v4437 = vunpack.c.l.b16 %v4400
      %v4438 = vunpack.c.l.b16 %v4401
      %v4439 = vpack.c.b16 %v4438, %v4437
      %v4441 = vsel %vm1388, %v4439, 0
      %v4444 = vsel %vm1392, %v4398, 0
      %4446 = vmatpush.bf16.msra.mxu0 0
      %4447 = vmatpush.bf16.msra.mxu0 0
      %4448 = vmatpush.bf16.msra.mxu0 0
      %4449 = vmatpush.bf16.msra.mxu0 0
      %4450 = vmatpush.bf16.msra.mxu0 0
      %4451 = vmatpush.bf16.msra.mxu0 0
      %4452 = vmatpush.bf16.msra.mxu0 0
      %4453 = vmatpush.bf16.msra.mxu0 %v4444
      %4454 = vmatmul.bf16.gmra.mxu0 %v4441
      %v4455 = vpop.f32.mrf.mxu0
      %v4456 = vadd.f32 %v4431, %v4455
      %v4457 = vpop.f32.mrf.mxu0
      %v4458 = vadd.f32 %v4433, %v4457
      %4459 = vdwg.mxu0
      %s4460 = scalar_lea.vmem %s1, 1152
      %v4461 = vld [vmem:[%s4460] sm:$0xf]
      %v4462 = vld [vmem:[%s4460 + $0x4] sm:$0xf]
      %v4465 = vunpack.c.l.b16 %v4461
      %v4466 = vunpack.c.l.b16 %v4462
      %v4467 = vpack.c.b16 %v4466, %v4465
      %4468 = vrot.lane.b32.xlu0 %v4412, 96
      %v4469 = vpop.permute.xlu0 %4468
      %v4471 = vsel %vm1388, %v4467, 0
      %v4474 = vsel %vm1392, %v4469, 0
      %4476 = vmatpush.bf16.msra.mxu0 0
      %4477 = vmatpush.bf16.msra.mxu0 0
      %4478 = vmatpush.bf16.msra.mxu0 0
      %4479 = vmatpush.bf16.msra.mxu0 0
      %4480 = vmatpush.bf16.msra.mxu0 0
      %4481 = vmatpush.bf16.msra.mxu0 0
      %4482 = vmatpush.bf16.msra.mxu0 0
      %4483 = vmatpush.bf16.msra.mxu0 %v4474
      %4484 = vmatmul.bf16.gmra.mxu0 %v4471
      %v4485 = vpop.f32.mrf.mxu0
      %v4486 = vadd.f32 0.0, %v4485
      %v4487 = vpop.f32.mrf.mxu0
      %v4488 = vadd.f32 0.0, %v4487
      %4489 = vdwg.mxu0
      %v4490 = vadd.f32 %v4456, %v4486
      %v4491 = vadd.f32 %v4458, %v4488
      %s4492 = scalar_lea.vmem %s1, 1168
      %v4493 = vld [vmem:[%s4492] sm:$0xf]
      %v4494 = vld [vmem:[%s4492 + $0x4] sm:$0xf]
      %v4497 = vunpack.c.l.b16 %v4493
      %v4498 = vunpack.c.l.b16 %v4494
      %v4499 = vpack.c.b16 %v4498, %v4497
      %4500 = vrot.lane.b32.xlu0 %v4412, 80
      %v4501 = vpop.permute.xlu0 %4500
      %v4503 = vsel %vm1388, %v4499, 0
      %v4506 = vsel %vm1392, %v4501, 0
      %4508 = vmatpush.bf16.msra.mxu0 0
      %4509 = vmatpush.bf16.msra.mxu0 0
      %4510 = vmatpush.bf16.msra.mxu0 0
      %4511 = vmatpush.bf16.msra.mxu0 0
      %4512 = vmatpush.bf16.msra.mxu0 0
      %4513 = vmatpush.bf16.msra.mxu0 0
      %4514 = vmatpush.bf16.msra.mxu0 0
      %4515 = vmatpush.bf16.msra.mxu0 %v4506
      %4516 = vmatmul.bf16.gmra.mxu0 %v4503
      %v4517 = vpop.f32.mrf.mxu0
      %v4518 = vadd.f32 0.0, %v4517
      %v4519 = vpop.f32.mrf.mxu0
      %v4520 = vadd.f32 0.0, %v4519
      %4521 = vdwg.mxu0
      %v4522 = vadd.f32 %v4490, %v4518
      %v4523 = vadd.f32 %v4491, %v4520
      %s4524 = scalar_lea.vmem %s1, 1184
      %v4525 = vld [vmem:[%s4524] sm:$0xf]
      %v4526 = vld [vmem:[%s4524 + $0x4] sm:$0xf]
      %v4529 = vunpack.c.l.b16 %v4525
      %v4530 = vunpack.c.l.b16 %v4526
      %v4531 = vpack.c.b16 %v4530, %v4529
      %4532 = vrot.lane.b32.xlu0 %v4412, 64
      %v4533 = vpop.permute.xlu0 %4532
      %v4535 = vsel %vm1388, %v4531, 0
      %v4538 = vsel %vm1392, %v4533, 0
      %4540 = vmatpush.bf16.msra.mxu0 0
      %4541 = vmatpush.bf16.msra.mxu0 0
      %4542 = vmatpush.bf16.msra.mxu0 0
      %4543 = vmatpush.bf16.msra.mxu0 0
      %4544 = vmatpush.bf16.msra.mxu0 0
      %4545 = vmatpush.bf16.msra.mxu0 0
      %4546 = vmatpush.bf16.msra.mxu0 0
      %4547 = vmatpush.bf16.msra.mxu0 %v4538
      %4548 = vmatmul.bf16.gmra.mxu0 %v4535
      %v4549 = vpop.f32.mrf.mxu0
      %v4550 = vadd.f32 0.0, %v4549
      %v4551 = vpop.f32.mrf.mxu0
      %v4552 = vadd.f32 0.0, %v4551
      %4553 = vdwg.mxu0
      %v4554 = vadd.f32 %v4522, %v4550
      %v4555 = vadd.f32 %v4523, %v4552
      %s4556 = scalar_lea.vmem %s1, 1200
      %v4557 = vld [vmem:[%s4556] sm:$0xf]
      %v4558 = vld [vmem:[%s4556 + $0x4] sm:$0xf]
      %v4561 = vunpack.c.l.b16 %v4557
      %v4562 = vunpack.c.l.b16 %v4558
      %v4563 = vpack.c.b16 %v4562, %v4561
      %4564 = vrot.lane.b32.xlu0 %v4412, 48
      %v4565 = vpop.permute.xlu0 %4564
      %v4567 = vsel %vm1388, %v4563, 0
      %v4570 = vsel %vm1392, %v4565, 0
      %4572 = vmatpush.bf16.msra.mxu0 0
      %4573 = vmatpush.bf16.msra.mxu0 0
      %4574 = vmatpush.bf16.msra.mxu0 0
      %4575 = vmatpush.bf16.msra.mxu0 0
      %4576 = vmatpush.bf16.msra.mxu0 0
      %4577 = vmatpush.bf16.msra.mxu0 0
      %4578 = vmatpush.bf16.msra.mxu0 0
      %4579 = vmatpush.bf16.msra.mxu0 %v4570
      %4580 = vmatmul.bf16.gmra.mxu0 %v4567
      %v4581 = vpop.f32.mrf.mxu0
      %v4582 = vadd.f32 0.0, %v4581
      %v4583 = vpop.f32.mrf.mxu0
      %v4584 = vadd.f32 0.0, %v4583
      %4585 = vdwg.mxu0
      %v4586 = vadd.f32 %v4554, %v4582
      %v4587 = vadd.f32 %v4555, %v4584
      %s4588 = scalar_lea.vmem %s1, 1216
      %v4589 = vld [vmem:[%s4588] sm:$0xf]
      %v4590 = vld [vmem:[%s4588 + $0x4] sm:$0xf]
      %v4593 = vunpack.c.l.b16 %v4589
      %v4594 = vunpack.c.l.b16 %v4590
      %v4595 = vpack.c.b16 %v4594, %v4593
      %4596 = vrot.lane.b32.xlu0 %v4412, 32
      %v4597 = vpop.permute.xlu0 %4596
      %v4599 = vsel %vm1388, %v4595, 0
      %v4602 = vsel %vm1392, %v4597, 0
      %4604 = vmatpush.bf16.msra.mxu0 0
      %4605 = vmatpush.bf16.msra.mxu0 0
      %4606 = vmatpush.bf16.msra.mxu0 0
      %4607 = vmatpush.bf16.msra.mxu0 0
      %4608 = vmatpush.bf16.msra.mxu0 0
      %4609 = vmatpush.bf16.msra.mxu0 0
      %4610 = vmatpush.bf16.msra.mxu0 0
      %4611 = vmatpush.bf16.msra.mxu0 %v4602
      %4612 = vmatmul.bf16.gmra.mxu0 %v4599
      %v4613 = vpop.f32.mrf.mxu0
      %v4614 = vadd.f32 0.0, %v4613
      %v4615 = vpop.f32.mrf.mxu0
      %v4616 = vadd.f32 0.0, %v4615
      %4617 = vdwg.mxu0
      %v4618 = vadd.f32 %v4586, %v4614
      %v4619 = vadd.f32 %v4587, %v4616
      %s4620 = scalar_lea.vmem %s1, 1232
      %v4621 = vld [vmem:[%s4620] sm:$0xf]
      %v4622 = vld [vmem:[%s4620 + $0x4] sm:$0xf]
      %v4625 = vunpack.c.l.b16 %v4621
      %v4626 = vunpack.c.l.b16 %v4622
      %v4627 = vpack.c.b16 %v4626, %v4625
      %4628 = vrot.lane.b32.xlu0 %v4412, 16
      %v4629 = vpop.permute.xlu0 %4628
      %v4631 = vsel %vm1388, %v4627, 0
      %v4634 = vsel %vm1392, %v4629, 0
      %4636 = vmatpush.bf16.msra.mxu0 0
      %4637 = vmatpush.bf16.msra.mxu0 0
      %4638 = vmatpush.bf16.msra.mxu0 0
      %4639 = vmatpush.bf16.msra.mxu0 0
      %4640 = vmatpush.bf16.msra.mxu0 0
      %4641 = vmatpush.bf16.msra.mxu0 0
      %4642 = vmatpush.bf16.msra.mxu0 0
      %4643 = vmatpush.bf16.msra.mxu0 %v4634
      %4644 = vmatmul.bf16.gmra.mxu0 %v4631
      %v4645 = vpop.f32.mrf.mxu0
      %v4646 = vadd.f32 0.0, %v4645
      %v4647 = vpop.f32.mrf.mxu0
      %v4648 = vadd.f32 0.0, %v4647
      %4649 = vdwg.mxu0
      %v4650 = vadd.f32 %v4618, %v4646
      %v4651 = vadd.f32 %v4619, %v4648
      %s4652 = scalar_lea.vmem %s1, 1248
      %v4653 = vld [vmem:[%s4652] sm:$0xf]
      %v4654 = vld [vmem:[%s4652 + $0x4] sm:$0xf]
      %v4657 = vunpack.c.l.b16 %v4653
      %v4658 = vunpack.c.l.b16 %v4654
      %v4659 = vpack.c.b16 %v4658, %v4657
      %v4660 = vunpack.c.h.b16 %v4398
      %v4661 = vpack.c.b16 %v4660, %v4660
      %v4663 = vsel %vm1388, %v4659, 0
      %v4666 = vsel %vm1392, %v4661, 0
      %4668 = vmatpush.bf16.msra.mxu0 0
      %4669 = vmatpush.bf16.msra.mxu0 0
      %4670 = vmatpush.bf16.msra.mxu0 0
      %4671 = vmatpush.bf16.msra.mxu0 0
      %4672 = vmatpush.bf16.msra.mxu0 0
      %4673 = vmatpush.bf16.msra.mxu0 0
      %4674 = vmatpush.bf16.msra.mxu0 0
      %4675 = vmatpush.bf16.msra.mxu0 %v4666
      %4676 = vmatmul.bf16.gmra.mxu0 %v4663
      %v4677 = vpop.f32.mrf.mxu0
      %v4678 = vadd.f32 0.0, %v4677
      %v4679 = vpop.f32.mrf.mxu0
      %v4680 = vadd.f32 0.0, %v4679
      %4681 = vdwg.mxu0
      %v4682 = vadd.f32 %v4650, %v4678
      %v4683 = vadd.f32 %v4651, %v4680
      %s4684 = scalar_lea.vmem %s2, 448
      %v4685 = vld [vmem:[%s4684] sm:$0xff]
      %v4686 = vld [vmem:[%s4684 + $0x8] sm:$0xff]
      %4688 = vset.pattern.permute.xlu0 0
      %4689 = vperm.xlu0 %4688, %v4685
      %v4690 = vpop.permute.xlu0 %4689
      %4693 = vset.pattern.permute.xlu0 0
      %4694 = vperm.xlu0 %4693, %v4686
      %v4695 = vpop.permute.xlu0 %4694
      %v4697 = vadd.f32 %v4682, %v4690
      %v4698 = vadd.f32 %v4683, %v4695
      %vm4699 = vcmp.gt.f32.partialorder %v4697, 0.0
      %vm4700 = vcmp.gt.f32.partialorder %v4698, 0.0
      %v4701 = vmul.f32 %v4697, 0.1
      %v4702 = vmul.f32 %v4698, 0.1
      %v4703 = vsel %vm4699, %v4697, %v4701
      %v4704 = vsel %vm4700, %v4698, %v4702
      %v4705 = vpack.c.bf16 %v4704, %v4703
      %s4706 = scalar_lea.vmem %s1, 1264
      %v4707 = vld [vmem:[%s4706] sm:$0xf]
      %s4708 = scalar_lea.vmem %s2, 480
      %v4709 = vld [vmem:[%s4708] sm:$0xff]
      %4711 = vset.pattern.permute.xlu0 0
      %4712 = vperm.xlu0 %4711, %v4709
      %v4713 = vpop.permute.xlu0 %4712
      %v4716 = vsel %vm1689, %v4707, 0
      %4718 = vmatpush.bf16.msra.mxu0 0
      %4719 = vmatpush.bf16.msra.mxu0 0
      %4720 = vmatpush.bf16.msra.mxu0 0
      %4721 = vmatpush.bf16.msra.mxu0 0
      %4722 = vmatpush.bf16.msra.mxu0 0
      %4723 = vmatpush.bf16.msra.mxu0 0
      %4724 = vmatpush.bf16.msra.mxu0 0
      %4725 = vmatpush.bf16.msra.mxu0 %v4705
      %4726 = vmatmul.bf16.gmra.mxu0 %v4716
      %v4727 = vpop.f32.mrf.mxu0
      %v4728 = vadd.f32 %v4713, %v4727
      %v4729 = vpop.f32.mrf.mxu0
      %4730 = vdwg.mxu0
      %vm4731 = vcmp.gt.f32.partialorder %v4728, 0.0
      %v4732 = vmul.f32 %v4728, 0.1
      %v4733 = vsel %vm4731, %v4728, %v4732
      %v4734 = vpack.c.bf16 %v4733, %v4733
      %v4736 = vsel %vm1689, %v4734, 0
      %4738 = vmatpush.bf16.msra.mxu0 0
      %4739 = vmatpush.bf16.msra.mxu0 0
      %4740 = vmatpush.bf16.msra.mxu0 0
      %4741 = vmatpush.bf16.msra.mxu0 0
      %4742 = vmatpush.bf16.msra.mxu0 0
      %4743 = vmatpush.bf16.msra.mxu0 0
      %4744 = vmatpush.bf16.msra.mxu0 0
      %4745 = vmatpush.bf16.msra.mxu0 %v3999
      %4746 = vmatmul.bf16.gmra.mxu0 %v4736
      %v4747 = vpop.f32.mrf.mxu0
      %v4748 = vadd.f32 0.0, %v4747
      %v4749 = vpop.f32.mrf.mxu0
      %4750 = vdwg.mxu0
      %4751 = vmatpush.bf16.msra.mxu0 0
      %4752 = vmatpush.bf16.msra.mxu0 0
      %4753 = vmatpush.bf16.msra.mxu0 0
      %4754 = vmatpush.bf16.msra.mxu0 0
      %4755 = vmatpush.bf16.msra.mxu0 0
      %4756 = vmatpush.bf16.msra.mxu0 0
      %4757 = vmatpush.bf16.msra.mxu0 0
      %4758 = vmatpush.bf16.msra.mxu0 %v4000
      %4759 = vmatmul.bf16.gmra.mxu0 %v4736
      %v4760 = vpop.f32.mrf.mxu0
      %v4761 = vadd.f32 0.0, %v4760
      %v4762 = vpop.f32.mrf.mxu0
      %4763 = vdwg.mxu0
      %v4764 = vpack.c.bf16 %v4761, %v4748
      %s4765 = scalar_lea.vmem %s1, 1280
      %v4766 = vld [vmem:[%s4765] sm:$0xf]
      %v4767 = vld [vmem:[%s4765 + $0x4] sm:$0xf]
      %s4768 = scalar_lea.vmem %s1, 1296
      %v4769 = vld [vmem:[%s4768] sm:$0xf]
      %v4770 = vld [vmem:[%s4768 + $0x4] sm:$0xf]
      %v4773 = vunpack.c.l.b16 %v4769
      %v4774 = vunpack.c.l.b16 %v4770
      %v4775 = vpack.c.b16 %v4774, %v4773
      %v4777 = vunpack.c.l.b16 %v4764
      %v4778 = vpack.c.b16 %v4777, %v4777
      %4779 = vrot.lane.b32.xlu0 %v4778, 112
      %v4780 = vpop.permute.xlu0 %4779
      %v4782 = vsel %vm1388, %v4775, 0
      %v4785 = vsel %vm1392, %v4780, 0
      %4787 = vmatpush.bf16.msra.mxu0 0
      %4788 = vmatpush.bf16.msra.mxu0 0
      %4789 = vmatpush.bf16.msra.mxu0 0
      %4790 = vmatpush.bf16.msra.mxu0 0
      %4791 = vmatpush.bf16.msra.mxu0 0
      %4792 = vmatpush.bf16.msra.mxu0 0
      %4793 = vmatpush.bf16.msra.mxu0 0
      %4794 = vmatpush.bf16.msra.mxu0 %v4785
      %4795 = vmatmul.bf16.gmra.mxu0 %v4782
      %v4796 = vpop.f32.mrf.mxu0
      %v4797 = vadd.f32 0.0, %v4796
      %v4798 = vpop.f32.mrf.mxu0
      %v4799 = vadd.f32 0.0, %v4798
      %4800 = vdwg.mxu0
      %v4803 = vunpack.c.l.b16 %v4766
      %v4804 = vunpack.c.l.b16 %v4767
      %v4805 = vpack.c.b16 %v4804, %v4803
      %v4807 = vsel %vm1388, %v4805, 0
      %v4810 = vsel %vm1392, %v4764, 0
      %4812 = vmatpush.bf16.msra.mxu0 0
      %4813 = vmatpush.bf16.msra.mxu0 0
      %4814 = vmatpush.bf16.msra.mxu0 0
      %4815 = vmatpush.bf16.msra.mxu0 0
      %4816 = vmatpush.bf16.msra.mxu0 0
      %4817 = vmatpush.bf16.msra.mxu0 0
      %4818 = vmatpush.bf16.msra.mxu0 0
      %4819 = vmatpush.bf16.msra.mxu0 %v4810
      %4820 = vmatmul.bf16.gmra.mxu0 %v4807
      %v4821 = vpop.f32.mrf.mxu0
      %v4822 = vadd.f32 %v4797, %v4821
      %v4823 = vpop.f32.mrf.mxu0
      %v4824 = vadd.f32 %v4799, %v4823
      %4825 = vdwg.mxu0
      %s4826 = scalar_lea.vmem %s1, 1312
      %v4827 = vld [vmem:[%s4826] sm:$0xf]
      %v4828 = vld [vmem:[%s4826 + $0x4] sm:$0xf]
      %v4831 = vunpack.c.l.b16 %v4827
      %v4832 = vunpack.c.l.b16 %v4828
      %v4833 = vpack.c.b16 %v4832, %v4831
      %4834 = vrot.lane.b32.xlu0 %v4778, 96
      %v4835 = vpop.permute.xlu0 %4834
      %v4837 = vsel %vm1388, %v4833, 0
      %v4840 = vsel %vm1392, %v4835, 0
      %4842 = vmatpush.bf16.msra.mxu0 0
      %4843 = vmatpush.bf16.msra.mxu0 0
      %4844 = vmatpush.bf16.msra.mxu0 0
      %4845 = vmatpush.bf16.msra.mxu0 0
      %4846 = vmatpush.bf16.msra.mxu0 0
      %4847 = vmatpush.bf16.msra.mxu0 0
      %4848 = vmatpush.bf16.msra.mxu0 0
      %4849 = vmatpush.bf16.msra.mxu0 %v4840
      %4850 = vmatmul.bf16.gmra.mxu0 %v4837
      %v4851 = vpop.f32.mrf.mxu0
      %v4852 = vadd.f32 0.0, %v4851
      %v4853 = vpop.f32.mrf.mxu0
      %v4854 = vadd.f32 0.0, %v4853
      %4855 = vdwg.mxu0
      %v4856 = vadd.f32 %v4822, %v4852
      %v4857 = vadd.f32 %v4824, %v4854
      %s4858 = scalar_lea.vmem %s1, 1328
      %v4859 = vld [vmem:[%s4858] sm:$0xf]
      %v4860 = vld [vmem:[%s4858 + $0x4] sm:$0xf]
      %v4863 = vunpack.c.l.b16 %v4859
      %v4864 = vunpack.c.l.b16 %v4860
      %v4865 = vpack.c.b16 %v4864, %v4863
      %4866 = vrot.lane.b32.xlu0 %v4778, 80
      %v4867 = vpop.permute.xlu0 %4866
      %v4869 = vsel %vm1388, %v4865, 0
      %v4872 = vsel %vm1392, %v4867, 0
      %4874 = vmatpush.bf16.msra.mxu0 0
      %4875 = vmatpush.bf16.msra.mxu0 0
      %4876 = vmatpush.bf16.msra.mxu0 0
      %4877 = vmatpush.bf16.msra.mxu0 0
      %4878 = vmatpush.bf16.msra.mxu0 0
      %4879 = vmatpush.bf16.msra.mxu0 0
      %4880 = vmatpush.bf16.msra.mxu0 0
      %4881 = vmatpush.bf16.msra.mxu0 %v4872
      %4882 = vmatmul.bf16.gmra.mxu0 %v4869
      %v4883 = vpop.f32.mrf.mxu0
      %v4884 = vadd.f32 0.0, %v4883
      %v4885 = vpop.f32.mrf.mxu0
      %v4886 = vadd.f32 0.0, %v4885
      %4887 = vdwg.mxu0
      %v4888 = vadd.f32 %v4856, %v4884
      %v4889 = vadd.f32 %v4857, %v4886
      %s4890 = scalar_lea.vmem %s1, 1344
      %v4891 = vld [vmem:[%s4890] sm:$0xf]
      %v4892 = vld [vmem:[%s4890 + $0x4] sm:$0xf]
      %v4895 = vunpack.c.l.b16 %v4891
      %v4896 = vunpack.c.l.b16 %v4892
      %v4897 = vpack.c.b16 %v4896, %v4895
      %4898 = vrot.lane.b32.xlu0 %v4778, 64
      %v4899 = vpop.permute.xlu0 %4898
      %v4901 = vsel %vm1388, %v4897, 0
      %v4904 = vsel %vm1392, %v4899, 0
      %4906 = vmatpush.bf16.msra.mxu0 0
      %4907 = vmatpush.bf16.msra.mxu0 0
      %4908 = vmatpush.bf16.msra.mxu0 0
      %4909 = vmatpush.bf16.msra.mxu0 0
      %4910 = vmatpush.bf16.msra.mxu0 0
      %4911 = vmatpush.bf16.msra.mxu0 0
      %4912 = vmatpush.bf16.msra.mxu0 0
      %4913 = vmatpush.bf16.msra.mxu0 %v4904
      %4914 = vmatmul.bf16.gmra.mxu0 %v4901
      %v4915 = vpop.f32.mrf.mxu0
      %v4916 = vadd.f32 0.0, %v4915
      %v4917 = vpop.f32.mrf.mxu0
      %v4918 = vadd.f32 0.0, %v4917
      %4919 = vdwg.mxu0
      %v4920 = vadd.f32 %v4888, %v4916
      %v4921 = vadd.f32 %v4889, %v4918
      %s4922 = scalar_lea.vmem %s1, 1360
      %v4923 = vld [vmem:[%s4922] sm:$0xf]
      %v4924 = vld [vmem:[%s4922 + $0x4] sm:$0xf]
      %v4927 = vunpack.c.l.b16 %v4923
      %v4928 = vunpack.c.l.b16 %v4924
      %v4929 = vpack.c.b16 %v4928, %v4927
      %4930 = vrot.lane.b32.xlu0 %v4778, 48
      %v4931 = vpop.permute.xlu0 %4930
      %v4933 = vsel %vm1388, %v4929, 0
      %v4936 = vsel %vm1392, %v4931, 0
      %4938 = vmatpush.bf16.msra.mxu0 0
      %4939 = vmatpush.bf16.msra.mxu0 0
      %4940 = vmatpush.bf16.msra.mxu0 0
      %4941 = vmatpush.bf16.msra.mxu0 0
      %4942 = vmatpush.bf16.msra.mxu0 0
      %4943 = vmatpush.bf16.msra.mxu0 0
      %4944 = vmatpush.bf16.msra.mxu0 0
      %4945 = vmatpush.bf16.msra.mxu0 %v4936
      %4946 = vmatmul.bf16.gmra.mxu0 %v4933
      %v4947 = vpop.f32.mrf.mxu0
      %v4948 = vadd.f32 0.0, %v4947
      %v4949 = vpop.f32.mrf.mxu0
      %v4950 = vadd.f32 0.0, %v4949
      %4951 = vdwg.mxu0
      %v4952 = vadd.f32 %v4920, %v4948
      %v4953 = vadd.f32 %v4921, %v4950
      %s4954 = scalar_lea.vmem %s1, 1376
      %v4955 = vld [vmem:[%s4954] sm:$0xf]
      %v4956 = vld [vmem:[%s4954 + $0x4] sm:$0xf]
      %v4959 = vunpack.c.l.b16 %v4955
      %v4960 = vunpack.c.l.b16 %v4956
      %v4961 = vpack.c.b16 %v4960, %v4959
      %4962 = vrot.lane.b32.xlu0 %v4778, 32
      %v4963 = vpop.permute.xlu0 %4962
      %v4965 = vsel %vm1388, %v4961, 0
      %v4968 = vsel %vm1392, %v4963, 0
      %4970 = vmatpush.bf16.msra.mxu0 0
      %4971 = vmatpush.bf16.msra.mxu0 0
      %4972 = vmatpush.bf16.msra.mxu0 0
      %4973 = vmatpush.bf16.msra.mxu0 0
      %4974 = vmatpush.bf16.msra.mxu0 0
      %4975 = vmatpush.bf16.msra.mxu0 0
      %4976 = vmatpush.bf16.msra.mxu0 0
      %4977 = vmatpush.bf16.msra.mxu0 %v4968
      %4978 = vmatmul.bf16.gmra.mxu0 %v4965
      %v4979 = vpop.f32.mrf.mxu0
      %v4980 = vadd.f32 0.0, %v4979
      %v4981 = vpop.f32.mrf.mxu0
      %v4982 = vadd.f32 0.0, %v4981
      %4983 = vdwg.mxu0
      %v4984 = vadd.f32 %v4952, %v4980
      %v4985 = vadd.f32 %v4953, %v4982
      %s4986 = scalar_lea.vmem %s1, 1392
      %v4987 = vld [vmem:[%s4986] sm:$0xf]
      %v4988 = vld [vmem:[%s4986 + $0x4] sm:$0xf]
      %v4991 = vunpack.c.l.b16 %v4987
      %v4992 = vunpack.c.l.b16 %v4988
      %v4993 = vpack.c.b16 %v4992, %v4991
      %4994 = vrot.lane.b32.xlu0 %v4778, 16
      %v4995 = vpop.permute.xlu0 %4994
      %v4997 = vsel %vm1388, %v4993, 0
      %v5000 = vsel %vm1392, %v4995, 0
      %5002 = vmatpush.bf16.msra.mxu0 0
      %5003 = vmatpush.bf16.msra.mxu0 0
      %5004 = vmatpush.bf16.msra.mxu0 0
      %5005 = vmatpush.bf16.msra.mxu0 0
      %5006 = vmatpush.bf16.msra.mxu0 0
      %5007 = vmatpush.bf16.msra.mxu0 0
      %5008 = vmatpush.bf16.msra.mxu0 0
      %5009 = vmatpush.bf16.msra.mxu0 %v5000
      %5010 = vmatmul.bf16.gmra.mxu0 %v4997
      %v5011 = vpop.f32.mrf.mxu0
      %v5012 = vadd.f32 0.0, %v5011
      %v5013 = vpop.f32.mrf.mxu0
      %v5014 = vadd.f32 0.0, %v5013
      %5015 = vdwg.mxu0
      %v5016 = vadd.f32 %v4984, %v5012
      %v5017 = vadd.f32 %v4985, %v5014
      %s5018 = scalar_lea.vmem %s1, 1408
      %v5019 = vld [vmem:[%s5018] sm:$0xf]
      %v5020 = vld [vmem:[%s5018 + $0x4] sm:$0xf]
      %v5023 = vunpack.c.l.b16 %v5019
      %v5024 = vunpack.c.l.b16 %v5020
      %v5025 = vpack.c.b16 %v5024, %v5023
      %v5026 = vunpack.c.h.b16 %v4764
      %v5027 = vpack.c.b16 %v5026, %v5026
      %v5029 = vsel %vm1388, %v5025, 0
      %v5032 = vsel %vm1392, %v5027, 0
      %5034 = vmatpush.bf16.msra.mxu0 0
      %5035 = vmatpush.bf16.msra.mxu0 0
      %5036 = vmatpush.bf16.msra.mxu0 0
      %5037 = vmatpush.bf16.msra.mxu0 0
      %5038 = vmatpush.bf16.msra.mxu0 0
      %5039 = vmatpush.bf16.msra.mxu0 0
      %5040 = vmatpush.bf16.msra.mxu0 0
      %5041 = vmatpush.bf16.msra.mxu0 %v5032
      %5042 = vmatmul.bf16.gmra.mxu0 %v5029
      %v5043 = vpop.f32.mrf.mxu0
      %v5044 = vadd.f32 0.0, %v5043
      %v5045 = vpop.f32.mrf.mxu0
      %v5046 = vadd.f32 0.0, %v5045
      %5047 = vdwg.mxu0
      %v5048 = vadd.f32 %v5016, %v5044
      %v5049 = vadd.f32 %v5017, %v5046
      %s5050 = scalar_lea.vmem %s2, 512
      %v5051 = vld [vmem:[%s5050] sm:$0xff]
      %v5052 = vld [vmem:[%s5050 + $0x8] sm:$0xff]
      %5054 = vset.pattern.permute.xlu0 0
      %5055 = vperm.xlu0 %5054, %v5051
      %v5056 = vpop.permute.xlu0 %5055
      %5059 = vset.pattern.permute.xlu0 0
      %5060 = vperm.xlu0 %5059, %v5052
      %v5061 = vpop.permute.xlu0 %5060
      %v5063 = vadd.f32 %v5048, %v5056
      %v5064 = vadd.f32 %v5049, %v5061
      %vm5065 = vcmp.gt.f32.partialorder %v5063, 0.0
      %vm5066 = vcmp.gt.f32.partialorder %v5064, 0.0
      %v5067 = vmul.f32 %v5063, 0.1
      %v5068 = vmul.f32 %v5064, 0.1
      %v5069 = vsel %vm5065, %v5063, %v5067
      %v5070 = vsel %vm5066, %v5064, %v5068
      %v5071 = vpack.c.bf16 %v5070, %v5069
      %s5072 = scalar_lea.vmem %s1, 1424
      %v5073 = vld [vmem:[%s5072] sm:$0xf]
      %v5074 = vld [vmem:[%s5072 + $0x4] sm:$0xf]
      %v5075 = vld [vmem:[%s5072 + $0x8] sm:$0xf]
      %s5076 = scalar_lea.vmem %s2, 544
      %v5077 = vld [vmem:[%s5076] sm:$0xff]
      %v5078 = vld [vmem:[%s5076 + $0x8] sm:$0xff]
      %v5079 = vld [vmem:[%s5076 + $0x10] sm:$0xff]
      %5081 = vset.pattern.permute.xlu0 0
      %5082 = vperm.xlu0 %5081, %v5077
      %v5083 = vpop.permute.xlu0 %5082
      %5086 = vset.pattern.permute.xlu0 0
      %5087 = vperm.xlu0 %5086, %v5078
      %v5088 = vpop.permute.xlu0 %5087
      %5091 = vset.pattern.permute.xlu0 0
      %5092 = vperm.xlu0 %5091, %v5079
      %v5093 = vpop.permute.xlu0 %5092
      %v5098 = vunpack.c.l.b16 %v5073
      %v5099 = vunpack.c.l.b16 %v5074
      %v5100 = vunpack.c.l.b16 %v5075
      %v5101 = vpack.c.b16 %v5099, %v5098
      %v5102 = vpack.c.b16 %v5100, %v5100
      %v5104 = vsel %vm1689, %v5101, 0
      %v5107 = vsel %vm1689, %v5102, 0
      %5109 = vmatpush.bf16.msra.mxu0 0
      %5110 = vmatpush.bf16.msra.mxu0 0
      %5111 = vmatpush.bf16.msra.mxu0 0
      %5112 = vmatpush.bf16.msra.mxu0 0
      %5113 = vmatpush.bf16.msra.mxu0 0
      %5114 = vmatpush.bf16.msra.mxu0 0
      %5115 = vmatpush.bf16.msra.mxu0 0
      %5116 = vmatpush.bf16.msra.mxu0 %v5071
      %5117 = vmatmul.bf16.gmra.mxu0 %v5104
      %v5118 = vpop.f32.mrf.mxu0
      %v5119 = vadd.f32 %v5083, %v5118
      %v5120 = vpop.f32.mrf.mxu0
      %v5121 = vadd.f32 %v5088, %v5120
      %5122 = vmatmul.bf16.gmra.mxu0 %v5107
      %v5123 = vpop.f32.mrf.mxu0
      %v5124 = vadd.f32 %v5093, %v5123
      %v5125 = vpop.f32.mrf.mxu0
      %5126 = vdwg.mxu0
      %v5127 = vld [vmem:[%s11 + $0x2] sm:$0x1]
      %v5128 = vld [vmem:[%s11 + $0x3] sm:$0x1]
      %v5129 = vmul.f32 %v5119, 0.5
      %v5130 = vtanh.pop %v5129
      %v5131 = vadd.f32 %v5130, 1.0
      %v5132 = vmul.f32 %v5131, 0.5
      %v5133 = vmul.f32 %v5132, 4.0
      %v5134 = vperm.slane %v5127, 0
      %v5135 = vadd.f32 %v5133, %v5134
      %v5136 = vperm.slane %v5128, 0
      %v5137 = vadd.f32 %v5133, %v5136
      %v5138 = vmul.f32 %v5119, 1.442695
      %v5139 = vpow.pop %v5138
      %v5140 = vmul.f32 %v5121, 1.442695
      %v5141 = vpow.pop %v5140
      %v5142 = vmul.f32 %v5121, 0.5
      %v5143 = vtanh.pop %v5142
      %v5144 = vadd.f32 %v5143, 1.0
      %v5145 = vmul.f32 %v5144, 0.5
      %v5146 = vmul.f32 %v5124, 0.5
      %v5147 = vtanh.pop %v5146
      %v5148 = vadd.f32 %v5147, 1.0
      %v5149 = vmul.f32 %v5148, 0.5
      %v5150 = vperm.slane %v5145, 4
      %v5151 = vmul.f32 %v5145, %v5150
      %v5152 = vmul.f32 %v5149, %v5150
      %v5153 = vperm.slane %v5145, 5
      %v5154 = vmul.f32 %v5149, %v5153
      %v5155 = vperm.slane %v5145, 6
      %v5156 = vmul.f32 %v5149, %v5155
      %v5159 = vrot.slane %v5151, 7
      %v5160 = vrot.slane %v5152, 7
      %v5161 = vsel %vm3837, %v5159, %v5160
      %v5164 = vrot.slane %v5154, 7
      %v5167 = vrot.slane %v5156, 7
      %v5169 = vsel %vm3848, %v5161, %v5164
      %v5170 = vsel %vm3850, %v5169, %v5167
      %v5173 = vrot.slane %v5139, 6
      %v5174 = vrot.slane %v5141, 6
      %v5175 = vsel %vm1079, %v5173, %v5174
      %v5177 = vsub.f32 %v5135, %v5175
      %v5179 = vsub.f32 %v5137, %v5174
      %v5180 = vadd.f32 %v5135, %v5175
      %v5181 = vadd.f32 %v5137, %v5174
      %v5183 = vrot.slane %v5180, 2
      %v5186 = vrot.slane %v5181, 2
      %v5189 = vrot.slane %v5170, 4
      %v5190 = vrot.slane %v5167, 4
      %v5191 = vsel %vm1392, %v5189, %v5190
      %v5194 = vsel %vm3848, %v5177, %v5179
      %v5195 = vsel %vm3850, %v5194, %v5183
      %v5196 = vsel %vm3837, %v5183, %v5186
      %v5197 = vsel %vm1392, %v5196, %v5189
      %v5198 = vsel %vm3879, %v5191, 0.0
      %v5199 = vsel %vm1689, %v5195, 0.0
      %v5200 = vsel %vm1689, %v5197, 0.0
      %v5201 = vsel %vm1689, %v5198, 0.0
      %5202 = vst [vmem:[%s413 + $0x18] sm:$0xff] %v5199
      %5203 = vst [vmem:[%s413 + $0x20] sm:$0xff] %v5200
      %5204 = vst [vmem:[%s413 + $0x28] sm:$0xff] %v5201
      %s5205 = scalar_lea.vmem %s1, 1440
      %v5206 = vld [vmem:[%s5205] sm:$0x3]
      %s5207 = scalar_lea.vmem %s2, 576
      %v5208 = vld [vmem:[%s5207] sm:$0xf]
      %5210 = vset.pattern.permute.xlu0 0
      %5211 = vperm.xlu0 %5210, %v5208
      %v5212 = vpop.permute.xlu0 %5211
      %v5215 = vsel %vm1388, %v5206, 0
      %v5217 = vsel %vm1392, %v4734, 0
      %5219 = vmatpush.bf16.msra.mxu0 0
      %5220 = vmatpush.bf16.msra.mxu0 0
      %5221 = vmatpush.bf16.msra.mxu0 0
      %5222 = vmatpush.bf16.msra.mxu0 0
      %5223 = vmatpush.bf16.msra.mxu0 0
      %5224 = vmatpush.bf16.msra.mxu0 0
      %5225 = vmatpush.bf16.msra.mxu0 0
      %5226 = vmatpush.bf16.msra.mxu0 %v5217
      %5227 = vmatmul.bf16.gmra.mxu0 %v5215
      %v5228 = vpop.f32.mrf.mxu0
      %v5229 = vadd.f32 %v5212, %v5228
      %v5230 = vpop.f32.mrf.mxu0
      %5231 = vdwg.mxu0
      %vm5232 = vcmp.gt.f32.partialorder %v5229, 0.0
      %v5233 = vmul.f32 %v5229, 0.1
      %v5234 = vsel %vm5232, %v5229, %v5233
      %v5235 = vpack.c.bf16 %v5234, %v5234
      %v5236 = vld [vmem:[%s10] sm:$0xf]
      %v5237 = vld [vmem:[%s10 + $0x4] sm:$0xf]
      %v5240 = vunpack.c.l.b16 %v5236
      %v5241 = vunpack.c.l.b16 %v5237
      %v5242 = vpack.c.b16 %v5241, %v5240
      %v5245 = vsel %vm1689, %v5235, 0
      %5247 = vmatpush.bf16.msra.mxu0 0
      %5248 = vmatpush.bf16.msra.mxu0 0
      %5249 = vmatpush.bf16.msra.mxu0 0
      %5250 = vmatpush.bf16.msra.mxu0 0
      %5251 = vmatpush.bf16.msra.mxu0 0
      %5252 = vmatpush.bf16.msra.mxu0 0
      %5253 = vmatpush.bf16.msra.mxu0 0
      %5254 = vmatpush.bf16.msra.mxu0 %v5242
      %5255 = vmatmul.bf16.gmra.mxu0 %v5245
      %v5256 = vpop.f32.mrf.mxu0
      %v5257 = vadd.f32 0.0, %v5256
      %v5258 = vpop.f32.mrf.mxu0
      %5259 = vdwg.mxu0
      %v5260 = vpack.c.bf16 %v5257, %v5257
      %s5261 = scalar_lea.vmem %s1, 1456
      %v5262 = vld [vmem:[%s5261] sm:$0x3]
      %v5264 = vunpack.c.l.b16 %v5262
      %v5265 = vpack.c.b16 %v5264, %v5264
      %5266 = vrot.lane.b32.xlu0 %v5265, 124
      %v5267 = vpop.permute.xlu0 %5266
      %v5269 = vsel %vm1388, %v5267, 0
      %v5271 = vsel %vm1392, %v1292, 0
      %5273 = vmatpush.bf16.msra.mxu0 0
      %5274 = vmatpush.bf16.msra.mxu0 0
      %5275 = vmatpush.bf16.msra.mxu0 0
      %5276 = vmatpush.bf16.msra.mxu0 0
      %5277 = vmatpush.bf16.msra.mxu0 0
      %5278 = vmatpush.bf16.msra.mxu0 0
      %5279 = vmatpush.bf16.msra.mxu0 0
      %5280 = vmatpush.bf16.msra.mxu0 %v5271
      %5281 = vmatmul.bf16.gmra.mxu0 %v5269
      %v5282 = vpop.f32.mrf.mxu0
      %v5283 = vadd.f32 0.0, %v5282
      %v5284 = vpop.f32.mrf.mxu0
      %5285 = vdwg.mxu0
      %v5287 = vsel %vm1075, %v5262, 0
      %v5290 = vsel %vm1079, %v5260, 0
      %5292 = vmatpush.bf16.msra.mxu0 0
      %5293 = vmatpush.bf16.msra.mxu0 0
      %5294 = vmatpush.bf16.msra.mxu0 0
      %5295 = vmatpush.bf16.msra.mxu0 0
      %5296 = vmatpush.bf16.msra.mxu0 0
      %5297 = vmatpush.bf16.msra.mxu0 0
      %5298 = vmatpush.bf16.msra.mxu0 0
      %5299 = vmatpush.bf16.msra.mxu0 %v5290
      %5300 = vmatmul.bf16.gmra.mxu0 %v5287
      %v5301 = vpop.f32.mrf.mxu0
      %v5302 = vadd.f32 %v5283, %v5301
      %v5303 = vpop.f32.mrf.mxu0
      %5304 = vdwg.mxu0
      %s5305 = scalar_lea.vmem %s2, 608
      %v5306 = vld [vmem:[%s5305] sm:$0xf]
      %5308 = vset.pattern.permute.xlu0 0
      %5309 = vperm.xlu0 %5308, %v5306
      %v5310 = vpop.permute.xlu0 %5309
      %v5312 = vadd.f32 %v5302, %v5310
      %vm5313 = vcmp.gt.f32.partialorder %v5312, 0.0
      %v5314 = vmul.f32 %v5312, 0.1
      %v5315 = vsel %vm5313, %v5312, %v5314
      %v5316 = vpack.c.bf16 %v5315, %v5315
      %v5317 = vld [vmem:[%s8] sm:$0xff]
      %v5318 = vld [vmem:[%s8 + $0x8] sm:$0xff]
      %v5319 = vld [vmem:[%s8 + $0x10] sm:$0xf]
      %v5320 = vld [vmem:[%s8 + $0x14] sm:$0xff]
      %v5321 = vld [vmem:[%s8 + $0x1c] sm:$0xff]
      %v5322 = vld [vmem:[%s8 + $0x24] sm:$0xf]
      %v5323 = vld [vmem:[%s8 + $0x28] sm:$0xff]
      %v5324 = vld [vmem:[%s8 + $0x30] sm:$0xff]
      %v5325 = vld [vmem:[%s8 + $0x38] sm:$0xf]
      %v5326 = vld [vmem:[%s8 + $0x3c] sm:$0xff]
      %v5327 = vld [vmem:[%s8 + $0x44] sm:$0xff]
      %v5328 = vld [vmem:[%s8 + $0x4c] sm:$0xf]
      %v5329 = vld [vmem:[%s8 + $0x50] sm:$0xff]
      %v5330 = vld [vmem:[%s8 + $0x58] sm:$0xff]
      %v5331 = vld [vmem:[%s8 + $0x60] sm:$0xf]
      %v5332 = vld [vmem:[%s8 + $0x64] sm:$0xff]
      %v5333 = vld [vmem:[%s8 + $0x6c] sm:$0xff]
      %v5334 = vld [vmem:[%s8 + $0x74] sm:$0xf]
      %v5335 = vld [vmem:[%s8 + $0x78] sm:$0xff]
      %v5336 = vld [vmem:[%s8 + $0x80] sm:$0xff]
      %v5337 = vld [vmem:[%s8 + $0x88] sm:$0xf]
      %v5338 = vld [vmem:[%s8 + $0x8c] sm:$0xff]
      %v5339 = vld [vmem:[%s8 + $0x94] sm:$0xff]
      %v5340 = vld [vmem:[%s8 + $0x9c] sm:$0xf]
      %v5365 = vunpack.c.l.b16 %v5317
      %v5366 = vunpack.c.h.b16 %v5317
      %v5367 = vunpack.c.l.b16 %v5318
      %v5368 = vunpack.c.h.b16 %v5318
      %v5369 = vunpack.c.l.b16 %v5319
      %v5370 = vunpack.c.l.b16 %v5320
      %v5371 = vunpack.c.h.b16 %v5320
      %v5372 = vunpack.c.l.b16 %v5321
      %v5373 = vunpack.c.h.b16 %v5321
      %v5374 = vunpack.c.l.b16 %v5322
      %v5375 = vunpack.c.l.b16 %v5323
      %v5376 = vunpack.c.h.b16 %v5323
      %v5377 = vunpack.c.l.b16 %v5324
      %v5378 = vunpack.c.h.b16 %v5324
      %v5379 = vunpack.c.l.b16 %v5325
      %v5380 = vunpack.c.l.b16 %v5326
      %v5381 = vunpack.c.h.b16 %v5326
      %v5382 = vunpack.c.l.b16 %v5327
      %v5383 = vunpack.c.h.b16 %v5327
      %v5384 = vunpack.c.l.b16 %v5328
      %v5385 = vunpack.c.l.b16 %v5329
      %v5386 = vunpack.c.h.b16 %v5329
      %v5387 = vunpack.c.l.b16 %v5330
      %v5388 = vunpack.c.h.b16 %v5330
      %v5389 = vunpack.c.l.b16 %v5331
      %v5390 = vunpack.c.l.b16 %v5332
      %v5391 = vunpack.c.h.b16 %v5332
      %v5392 = vunpack.c.l.b16 %v5333
      %v5393 = vunpack.c.h.b16 %v5333
      %v5394 = vunpack.c.l.b16 %v5334
      %v5395 = vunpack.c.l.b16 %v5335
      %v5396 = vunpack.c.h.b16 %v5335
      %v5397 = vunpack.c.l.b16 %v5336
      %v5398 = vunpack.c.h.b16 %v5336
      %v5399 = vunpack.c.l.b16 %v5337
      %v5400 = vunpack.c.l.b16 %v5338
      %v5401 = vunpack.c.h.b16 %v5338
      %v5402 = vunpack.c.l.b16 %v5339
      %v5403 = vunpack.c.h.b16 %v5339
      %v5404 = vunpack.c.l.b16 %v5340
      %v5405 = vpack.c.b16 %v5370, %v5365
      %v5406 = vpack.c.b16 %v5371, %v5366
      %v5407 = vpack.c.b16 %v5372, %v5367
      %v5408 = vpack.c.b16 %v5373, %v5368
      %v5409 = vpack.c.b16 %v5374, %v5369
      %v5410 = vpack.c.b16 %v5380, %v5375
      %v5411 = vpack.c.b16 %v5381, %v5376
      %v5412 = vpack.c.b16 %v5382, %v5377
      %v5413 = vpack.c.b16 %v5383, %v5378
      %v5414 = vpack.c.b16 %v5384, %v5379
      %v5415 = vpack.c.b16 %v5390, %v5385
      %v5416 = vpack.c.b16 %v5391, %v5386
      %v5417 = vpack.c.b16 %v5392, %v5387
      %v5418 = vpack.c.b16 %v5393, %v5388
      %v5419 = vpack.c.b16 %v5394, %v5389
      %v5420 = vpack.c.b16 %v5400, %v5395
      %v5421 = vpack.c.b16 %v5401, %v5396
      %v5422 = vpack.c.b16 %v5402, %v5397
      %v5423 = vpack.c.b16 %v5403, %v5398
      %v5424 = vpack.c.b16 %v5404, %v5399
      %v5446 = vsel %vm1341, %v5316, 0
      %5448 = vmatpush.bf16.msra.mxu0 0
      %5449 = vmatpush.bf16.msra.mxu0 0
      %5450 = vmatpush.bf16.msra.mxu0 0
      %5451 = vmatpush.bf16.msra.mxu0 0
      %5452 = vmatpush.bf16.msra.mxu0 %v5420
      %5453 = vmatpush.bf16.msra.mxu0 %v5415
      %5454 = vmatpush.bf16.msra.mxu0 %v5410
      %5455 = vmatpush.bf16.msra.mxu0 %v5405
      %5456 = vmatmul.bf16.gmra.mxu0 %v5446
      %v5457 = vpop.f32.mrf.mxu0
      %v5458 = vadd.f32 0.0, %v5457
      %v5459 = vpop.f32.mrf.mxu0
      %5460 = vdwg.mxu0
      %5461 = vmatpush.bf16.msra.mxu0 0
      %5462 = vmatpush.bf16.msra.mxu0 0
      %5463 = vmatpush.bf16.msra.mxu0 0
      %5464 = vmatpush.bf16.msra.mxu0 0
      %5465 = vmatpush.bf16.msra.mxu0 %v5421
      %5466 = vmatpush.bf16.msra.mxu0 %v5416
      %5467 = vmatpush.bf16.msra.mxu0 %v5411
      %5468 = vmatpush.bf16.msra.mxu0 %v5406
      %5469 = vmatmul.bf16.gmra.mxu0 %v5446
      %v5470 = vpop.f32.mrf.mxu0
      %v5471 = vadd.f32 0.0, %v5470
      %v5472 = vpop.f32.mrf.mxu0
      %5473 = vdwg.mxu0
      %5474 = vmatpush.bf16.msra.mxu0 0
      %5475 = vmatpush.bf16.msra.mxu0 0
      %5476 = vmatpush.bf16.msra.mxu0 0
      %5477 = vmatpush.bf16.msra.mxu0 0
      %5478 = vmatpush.bf16.msra.mxu0 %v5422
      %5479 = vmatpush.bf16.msra.mxu0 %v5417
      %5480 = vmatpush.bf16.msra.mxu0 %v5412
      %5481 = vmatpush.bf16.msra.mxu0 %v5407
      %5482 = vmatmul.bf16.gmra.mxu0 %v5446
      %v5483 = vpop.f32.mrf.mxu0
      %v5484 = vadd.f32 0.0, %v5483
      %v5485 = vpop.f32.mrf.mxu0
      %5486 = vdwg.mxu0
      %5487 = vmatpush.bf16.msra.mxu0 0
      %5488 = vmatpush.bf16.msra.mxu0 0
      %5489 = vmatpush.bf16.msra.mxu0 0
      %5490 = vmatpush.bf16.msra.mxu0 0
      %5491 = vmatpush.bf16.msra.mxu0 %v5423
      %5492 = vmatpush.bf16.msra.mxu0 %v5418
      %5493 = vmatpush.bf16.msra.mxu0 %v5413
      %5494 = vmatpush.bf16.msra.mxu0 %v5408
      %5495 = vmatmul.bf16.gmra.mxu0 %v5446
      %v5496 = vpop.f32.mrf.mxu0
      %v5497 = vadd.f32 0.0, %v5496
      %v5498 = vpop.f32.mrf.mxu0
      %5499 = vdwg.mxu0
      %5500 = vmatpush.bf16.msra.mxu0 0
      %5501 = vmatpush.bf16.msra.mxu0 0
      %5502 = vmatpush.bf16.msra.mxu0 0
      %5503 = vmatpush.bf16.msra.mxu0 0
      %5504 = vmatpush.bf16.msra.mxu0 %v5424
      %5505 = vmatpush.bf16.msra.mxu0 %v5419
      %5506 = vmatpush.bf16.msra.mxu0 %v5414
      %5507 = vmatpush.bf16.msra.mxu0 %v5409
      %5508 = vmatmul.bf16.gmra.mxu0 %v5446
      %v5509 = vpop.f32.mrf.mxu0
      %v5510 = vadd.f32 0.0, %v5509
      %v5511 = vpop.f32.mrf.mxu0
      %5512 = vdwg.mxu0
      %v5513 = vpack.c.bf16 %v5471, %v5458
      %v5514 = vpack.c.bf16 %v5497, %v5484
      %v5515 = vpack.c.bf16 %v5510, %v5510
      %s5516 = scalar_lea.vmem %s1, 1472
      %v5517 = vld [vmem:[%s5516] sm:$0xf]
      %s5518 = scalar_lea.vmem %s1, 1488
      %v5519 = vld [vmem:[%s5518] sm:$0xf]
      %v5521 = vunpack.c.l.b16 %v5513
      %v5522 = vpack.c.b16 %v5521, %v5521
      %5523 = vrot.lane.b32.xlu0 %v5522, 64
      %v5524 = vpop.permute.xlu0 %5523
      %v5526 = vsel %vm1075, %v5519, 0
      %v5529 = vsel %vm1079, %v5524, 0
      %5531 = vmatpush.bf16.msra.mxu0 0
      %5532 = vmatpush.bf16.msra.mxu0 0
      %5533 = vmatpush.bf16.msra.mxu0 0
      %5534 = vmatpush.bf16.msra.mxu0 0
      %5535 = vmatpush.bf16.msra.mxu0 0
      %5536 = vmatpush.bf16.msra.mxu0 0
      %5537 = vmatpush.bf16.msra.mxu0 0
      %5538 = vmatpush.bf16.msra.mxu0 %v5529
      %5539 = vmatmul.bf16.gmra.mxu0 %v5526
      %v5540 = vpop.f32.mrf.mxu0
      %v5541 = vadd.f32 0.0, %v5540
      %v5542 = vpop.f32.mrf.mxu0
      %5543 = vdwg.mxu0
      %v5545 = vsel %vm1075, %v5517, 0
      %v5548 = vsel %vm1079, %v5513, 0
      %5550 = vmatpush.bf16.msra.mxu0 0
      %5551 = vmatpush.bf16.msra.mxu0 0
      %5552 = vmatpush.bf16.msra.mxu0 0
      %5553 = vmatpush.bf16.msra.mxu0 0
      %5554 = vmatpush.bf16.msra.mxu0 0
      %5555 = vmatpush.bf16.msra.mxu0 0
      %5556 = vmatpush.bf16.msra.mxu0 0
      %5557 = vmatpush.bf16.msra.mxu0 %v5548
      %5558 = vmatmul.bf16.gmra.mxu0 %v5545
      %v5559 = vpop.f32.mrf.mxu0
      %v5560 = vadd.f32 %v5541, %v5559
      %v5561 = vpop.f32.mrf.mxu0
      %5562 = vdwg.mxu0
      %s5563 = scalar_lea.vmem %s1, 1504
      %v5564 = vld [vmem:[%s5563] sm:$0xf]
      %v5565 = vunpack.c.h.b16 %v5513
      %v5566 = vpack.c.b16 %v5565, %v5565
      %v5568 = vsel %vm1075, %v5564, 0
      %v5571 = vsel %vm1079, %v5566, 0
      %5573 = vmatpush.bf16.msra.mxu0 0
      %5574 = vmatpush.bf16.msra.mxu0 0
      %5575 = vmatpush.bf16.msra.mxu0 0
      %5576 = vmatpush.bf16.msra.mxu0 0
      %5577 = vmatpush.bf16.msra.mxu0 0
      %5578 = vmatpush.bf16.msra.mxu0 0
      %5579 = vmatpush.bf16.msra.mxu0 0
      %5580 = vmatpush.bf16.msra.mxu0 %v5571
      %5581 = vmatmul.bf16.gmra.mxu0 %v5568
      %v5582 = vpop.f32.mrf.mxu0
      %v5583 = vadd.f32 0.0, %v5582
      %v5584 = vpop.f32.mrf.mxu0
      %5585 = vdwg.mxu0
      %v5586 = vadd.f32 %v5560, %v5583
      %s5587 = scalar_lea.vmem %s1, 1520
      %v5588 = vld [vmem:[%s5587] sm:$0xf]
      %5589 = vrot.lane.b32.xlu0 %v5566, 64
      %v5590 = vpop.permute.xlu0 %5589
      %v5592 = vsel %vm1075, %v5588, 0
      %v5595 = vsel %vm1079, %v5590, 0
      %5597 = vmatpush.bf16.msra.mxu0 0
      %5598 = vmatpush.bf16.msra.mxu0 0
      %5599 = vmatpush.bf16.msra.mxu0 0
      %5600 = vmatpush.bf16.msra.mxu0 0
      %5601 = vmatpush.bf16.msra.mxu0 0
      %5602 = vmatpush.bf16.msra.mxu0 0
      %5603 = vmatpush.bf16.msra.mxu0 0
      %5604 = vmatpush.bf16.msra.mxu0 %v5595
      %5605 = vmatmul.bf16.gmra.mxu0 %v5592
      %v5606 = vpop.f32.mrf.mxu0
      %v5607 = vadd.f32 0.0, %v5606
      %v5608 = vpop.f32.mrf.mxu0
      %5609 = vdwg.mxu0
      %v5610 = vadd.f32 %v5586, %v5607
      %s5611 = scalar_lea.vmem %s1, 1536
      %v5612 = vld [vmem:[%s5611] sm:$0xf]
      %v5614 = vsel %vm1075, %v5612, 0
      %v5617 = vsel %vm1079, %v5514, 0
      %5619 = vmatpush.bf16.msra.mxu0 0
      %5620 = vmatpush.bf16.msra.mxu0 0
      %5621 = vmatpush.bf16.msra.mxu0 0
      %5622 = vmatpush.bf16.msra.mxu0 0
      %5623 = vmatpush.bf16.msra.mxu0 0
      %5624 = vmatpush.bf16.msra.mxu0 0
      %5625 = vmatpush.bf16.msra.mxu0 0
      %5626 = vmatpush.bf16.msra.mxu0 %v5617
      %5627 = vmatmul.bf16.gmra.mxu0 %v5614
      %v5628 = vpop.f32.mrf.mxu0
      %v5629 = vadd.f32 0.0, %v5628
      %v5630 = vpop.f32.mrf.mxu0
      %5631 = vdwg.mxu0
      %v5632 = vadd.f32 %v5610, %v5629
      %s5633 = scalar_lea.vmem %s1, 1552
      %v5634 = vld [vmem:[%s5633] sm:$0xf]
      %v5636 = vunpack.c.l.b16 %v5514
      %v5637 = vpack.c.b16 %v5636, %v5636
      %5638 = vrot.lane.b32.xlu0 %v5637, 64
      %v5639 = vpop.permute.xlu0 %5638
      %v5641 = vsel %vm1075, %v5634, 0
      %v5644 = vsel %vm1079, %v5639, 0
      %5646 = vmatpush.bf16.msra.mxu0 0
      %5647 = vmatpush.bf16.msra.mxu0 0
      %5648 = vmatpush.bf16.msra.mxu0 0
      %5649 = vmatpush.bf16.msra.mxu0 0
      %5650 = vmatpush.bf16.msra.mxu0 0
      %5651 = vmatpush.bf16.msra.mxu0 0
      %5652 = vmatpush.bf16.msra.mxu0 0
      %5653 = vmatpush.bf16.msra.mxu0 %v5644
      %5654 = vmatmul.bf16.gmra.mxu0 %v5641
      %v5655 = vpop.f32.mrf.mxu0
      %v5656 = vadd.f32 0.0, %v5655
      %v5657 = vpop.f32.mrf.mxu0
      %5658 = vdwg.mxu0
      %v5659 = vadd.f32 %v5632, %v5656
      %s5660 = scalar_lea.vmem %s1, 1568
      %v5661 = vld [vmem:[%s5660] sm:$0xf]
      %v5662 = vunpack.c.h.b16 %v5514
      %v5663 = vpack.c.b16 %v5662, %v5662
      %v5665 = vsel %vm1075, %v5661, 0
      %v5668 = vsel %vm1079, %v5663, 0
      %5670 = vmatpush.bf16.msra.mxu0 0
      %5671 = vmatpush.bf16.msra.mxu0 0
      %5672 = vmatpush.bf16.msra.mxu0 0
      %5673 = vmatpush.bf16.msra.mxu0 0
      %5674 = vmatpush.bf16.msra.mxu0 0
      %5675 = vmatpush.bf16.msra.mxu0 0
      %5676 = vmatpush.bf16.msra.mxu0 0
      %5677 = vmatpush.bf16.msra.mxu0 %v5668
      %5678 = vmatmul.bf16.gmra.mxu0 %v5665
      %v5679 = vpop.f32.mrf.mxu0
      %v5680 = vadd.f32 0.0, %v5679
      %v5681 = vpop.f32.mrf.mxu0
      %5682 = vdwg.mxu0
      %v5683 = vadd.f32 %v5659, %v5680
      %s5684 = scalar_lea.vmem %s1, 1584
      %v5685 = vld [vmem:[%s5684] sm:$0xf]
      %5686 = vrot.lane.b32.xlu0 %v5663, 64
      %v5687 = vpop.permute.xlu0 %5686
      %v5689 = vsel %vm1075, %v5685, 0
      %v5692 = vsel %vm1079, %v5687, 0
      %5694 = vmatpush.bf16.msra.mxu0 0
      %5695 = vmatpush.bf16.msra.mxu0 0
      %5696 = vmatpush.bf16.msra.mxu0 0
      %5697 = vmatpush.bf16.msra.mxu0 0
      %5698 = vmatpush.bf16.msra.mxu0 0
      %5699 = vmatpush.bf16.msra.mxu0 0
      %5700 = vmatpush.bf16.msra.mxu0 0
      %5701 = vmatpush.bf16.msra.mxu0 %v5692
      %5702 = vmatmul.bf16.gmra.mxu0 %v5689
      %v5703 = vpop.f32.mrf.mxu0
      %v5704 = vadd.f32 0.0, %v5703
      %v5705 = vpop.f32.mrf.mxu0
      %5706 = vdwg.mxu0
      %v5707 = vadd.f32 %v5683, %v5704
      %s5708 = scalar_lea.vmem %s1, 1600
      %v5709 = vld [vmem:[%s5708] sm:$0xf]
      %v5711 = vsel %vm1075, %v5709, 0
      %v5714 = vsel %vm1079, %v5515, 0
      %5716 = vmatpush.bf16.msra.mxu0 0
      %5717 = vmatpush.bf16.msra.mxu0 0
      %5718 = vmatpush.bf16.msra.mxu0 0
      %5719 = vmatpush.bf16.msra.mxu0 0
      %5720 = vmatpush.bf16.msra.mxu0 0
      %5721 = vmatpush.bf16.msra.mxu0 0
      %5722 = vmatpush.bf16.msra.mxu0 0
      %5723 = vmatpush.bf16.msra.mxu0 %v5714
      %5724 = vmatmul.bf16.gmra.mxu0 %v5711
      %v5725 = vpop.f32.mrf.mxu0
      %v5726 = vadd.f32 0.0, %v5725
      %v5727 = vpop.f32.mrf.mxu0
      %5728 = vdwg.mxu0
      %v5729 = vadd.f32 %v5707, %v5726
      %s5730 = scalar_lea.vmem %s2, 640
      %v5731 = vld [vmem:[%s5730] sm:$0xff]
      %5733 = vset.pattern.permute.xlu0 0
      %5734 = vperm.xlu0 %5733, %v5731
      %v5735 = vpop.permute.xlu0 %5734
      %v5737 = vadd.f32 %v5729, %v5735
      %vm5738 = vcmp.gt.f32.partialorder %v5737, 0.0
      %v5739 = vmul.f32 %v5737, 0.1
      %v5740 = vsel %vm5738, %v5737, %v5739
      %v5741 = vpack.c.bf16 %v5740, %v5740
      %s5742 = scalar_lea.vmem %s1, 1616
      %v5743 = vld [vmem:[%s5742] sm:$0x3]
      %s5744 = scalar_lea.vmem %s2, 672
      %v5745 = vld [vmem:[%s5744] sm:$0xf]
      %5747 = vset.pattern.permute.xlu0 0
      %5748 = vperm.xlu0 %5747, %v5745
      %v5749 = vpop.permute.xlu0 %5748
      %v5752 = vsel %vm1388, %v5743, 0
      %v5755 = vsel %vm1392, %v5741, 0
      %5757 = vmatpush.bf16.msra.mxu0 0
      %5758 = vmatpush.bf16.msra.mxu0 0
      %5759 = vmatpush.bf16.msra.mxu0 0
      %5760 = vmatpush.bf16.msra.mxu0 0
      %5761 = vmatpush.bf16.msra.mxu0 0
      %5762 = vmatpush.bf16.msra.mxu0 0
      %5763 = vmatpush.bf16.msra.mxu0 0
      %5764 = vmatpush.bf16.msra.mxu0 %v5755
      %5765 = vmatmul.bf16.gmra.mxu0 %v5752
      %v5766 = vpop.f32.mrf.mxu0
      %v5767 = vadd.f32 %v5749, %v5766
      %v5768 = vpop.f32.mrf.mxu0
      %5769 = vdwg.mxu0
      %vm5770 = vcmp.gt.f32.partialorder %v5767, 0.0
      %v5771 = vmul.f32 %v5767, 0.1
      %v5772 = vsel %vm5770, %v5767, %v5771
      %v5773 = vpack.c.bf16 %v5772, %v5772
      %v5775 = vsel %vm1341, %v5773, 0
      %5777 = vmatpush.bf16.msra.mxu0 0
      %5778 = vmatpush.bf16.msra.mxu0 0
      %5779 = vmatpush.bf16.msra.mxu0 0
      %5780 = vmatpush.bf16.msra.mxu0 0
      %5781 = vmatpush.bf16.msra.mxu0 %v5420
      %5782 = vmatpush.bf16.msra.mxu0 %v5415
      %5783 = vmatpush.bf16.msra.mxu0 %v5410
      %5784 = vmatpush.bf16.msra.mxu0 %v5405
      %5785 = vmatmul.bf16.gmra.mxu0 %v5775
      %v5786 = vpop.f32.mrf.mxu0
      %v5787 = vadd.f32 0.0, %v5786
      %v5788 = vpop.f32.mrf.mxu0
      %5789 = vdwg.mxu0
      %5790 = vmatpush.bf16.msra.mxu0 0
      %5791 = vmatpush.bf16.msra.mxu0 0
      %5792 = vmatpush.bf16.msra.mxu0 0
      %5793 = vmatpush.bf16.msra.mxu0 0
      %5794 = vmatpush.bf16.msra.mxu0 %v5421
      %5795 = vmatpush.bf16.msra.mxu0 %v5416
      %5796 = vmatpush.bf16.msra.mxu0 %v5411
      %5797 = vmatpush.bf16.msra.mxu0 %v5406
      %5798 = vmatmul.bf16.gmra.mxu0 %v5775
      %v5799 = vpop.f32.mrf.mxu0
      %v5800 = vadd.f32 0.0, %v5799
      %v5801 = vpop.f32.mrf.mxu0
      %5802 = vdwg.mxu0
      %5803 = vmatpush.bf16.msra.mxu0 0
      %5804 = vmatpush.bf16.msra.mxu0 0
      %5805 = vmatpush.bf16.msra.mxu0 0
      %5806 = vmatpush.bf16.msra.mxu0 0
      %5807 = vmatpush.bf16.msra.mxu0 %v5422
      %5808 = vmatpush.bf16.msra.mxu0 %v5417
      %5809 = vmatpush.bf16.msra.mxu0 %v5412
      %5810 = vmatpush.bf16.msra.mxu0 %v5407
      %5811 = vmatmul.bf16.gmra.mxu0 %v5775
      %v5812 = vpop.f32.mrf.mxu0
      %v5813 = vadd.f32 0.0, %v5812
      %v5814 = vpop.f32.mrf.mxu0
      %5815 = vdwg.mxu0
      %5816 = vmatpush.bf16.msra.mxu0 0
      %5817 = vmatpush.bf16.msra.mxu0 0
      %5818 = vmatpush.bf16.msra.mxu0 0
      %5819 = vmatpush.bf16.msra.mxu0 0
      %5820 = vmatpush.bf16.msra.mxu0 %v5423
      %5821 = vmatpush.bf16.msra.mxu0 %v5418
      %5822 = vmatpush.bf16.msra.mxu0 %v5413
      %5823 = vmatpush.bf16.msra.mxu0 %v5408
      %5824 = vmatmul.bf16.gmra.mxu0 %v5775
      %v5825 = vpop.f32.mrf.mxu0
      %v5826 = vadd.f32 0.0, %v5825
      %v5827 = vpop.f32.mrf.mxu0
      %5828 = vdwg.mxu0
      %5829 = vmatpush.bf16.msra.mxu0 0
      %5830 = vmatpush.bf16.msra.mxu0 0
      %5831 = vmatpush.bf16.msra.mxu0 0
      %5832 = vmatpush.bf16.msra.mxu0 0
      %5833 = vmatpush.bf16.msra.mxu0 %v5424
      %5834 = vmatpush.bf16.msra.mxu0 %v5419
      %5835 = vmatpush.bf16.msra.mxu0 %v5414
      %5836 = vmatpush.bf16.msra.mxu0 %v5409
      %5837 = vmatmul.bf16.gmra.mxu0 %v5775
      %v5838 = vpop.f32.mrf.mxu0
      %v5839 = vadd.f32 0.0, %v5838
      %v5840 = vpop.f32.mrf.mxu0
      %5841 = vdwg.mxu0
      %v5842 = vpack.c.bf16 %v5800, %v5787
      %v5843 = vpack.c.bf16 %v5826, %v5813
      %v5844 = vpack.c.bf16 %v5839, %v5839
      %s5845 = scalar_lea.vmem %s1, 1632
      %v5846 = vld [vmem:[%s5845] sm:$0xf]
      %s5847 = scalar_lea.vmem %s1, 1648
      %v5848 = vld [vmem:[%s5847] sm:$0xf]
      %v5850 = vunpack.c.l.b16 %v5842
      %v5851 = vpack.c.b16 %v5850, %v5850
      %5852 = vrot.lane.b32.xlu0 %v5851, 64
      %v5853 = vpop.permute.xlu0 %5852
      %v5855 = vsel %vm1075, %v5848, 0
      %v5858 = vsel %vm1079, %v5853, 0
      %5860 = vmatpush.bf16.msra.mxu0 0
      %5861 = vmatpush.bf16.msra.mxu0 0
      %5862 = vmatpush.bf16.msra.mxu0 0
      %5863 = vmatpush.bf16.msra.mxu0 0
      %5864 = vmatpush.bf16.msra.mxu0 0
      %5865 = vmatpush.bf16.msra.mxu0 0
      %5866 = vmatpush.bf16.msra.mxu0 0
      %5867 = vmatpush.bf16.msra.mxu0 %v5858
      %5868 = vmatmul.bf16.gmra.mxu0 %v5855
      %v5869 = vpop.f32.mrf.mxu0
      %v5870 = vadd.f32 0.0, %v5869
      %v5871 = vpop.f32.mrf.mxu0
      %5872 = vdwg.mxu0
      %v5874 = vsel %vm1075, %v5846, 0
      %v5877 = vsel %vm1079, %v5842, 0
      %5879 = vmatpush.bf16.msra.mxu0 0
      %5880 = vmatpush.bf16.msra.mxu0 0
      %5881 = vmatpush.bf16.msra.mxu0 0
      %5882 = vmatpush.bf16.msra.mxu0 0
      %5883 = vmatpush.bf16.msra.mxu0 0
      %5884 = vmatpush.bf16.msra.mxu0 0
      %5885 = vmatpush.bf16.msra.mxu0 0
      %5886 = vmatpush.bf16.msra.mxu0 %v5877
      %5887 = vmatmul.bf16.gmra.mxu0 %v5874
      %v5888 = vpop.f32.mrf.mxu0
      %v5889 = vadd.f32 %v5870, %v5888
      %v5890 = vpop.f32.mrf.mxu0
      %5891 = vdwg.mxu0
      %s5892 = scalar_lea.vmem %s1, 1664
      %v5893 = vld [vmem:[%s5892] sm:$0xf]
      %v5894 = vunpack.c.h.b16 %v5842
      %v5895 = vpack.c.b16 %v5894, %v5894
      %v5897 = vsel %vm1075, %v5893, 0
      %v5900 = vsel %vm1079, %v5895, 0
      %5902 = vmatpush.bf16.msra.mxu0 0
      %5903 = vmatpush.bf16.msra.mxu0 0
      %5904 = vmatpush.bf16.msra.mxu0 0
      %5905 = vmatpush.bf16.msra.mxu0 0
      %5906 = vmatpush.bf16.msra.mxu0 0
      %5907 = vmatpush.bf16.msra.mxu0 0
      %5908 = vmatpush.bf16.msra.mxu0 0
      %5909 = vmatpush.bf16.msra.mxu0 %v5900
      %5910 = vmatmul.bf16.gmra.mxu0 %v5897
      %v5911 = vpop.f32.mrf.mxu0
      %v5912 = vadd.f32 0.0, %v5911
      %v5913 = vpop.f32.mrf.mxu0
      %5914 = vdwg.mxu0
      %v5915 = vadd.f32 %v5889, %v5912
      %s5916 = scalar_lea.vmem %s1, 1680
      %v5917 = vld [vmem:[%s5916] sm:$0xf]
      %5918 = vrot.lane.b32.xlu0 %v5895, 64
      %v5919 = vpop.permute.xlu0 %5918
      %v5921 = vsel %vm1075, %v5917, 0
      %v5924 = vsel %vm1079, %v5919, 0
      %5926 = vmatpush.bf16.msra.mxu0 0
      %5927 = vmatpush.bf16.msra.mxu0 0
      %5928 = vmatpush.bf16.msra.mxu0 0
      %5929 = vmatpush.bf16.msra.mxu0 0
      %5930 = vmatpush.bf16.msra.mxu0 0
      %5931 = vmatpush.bf16.msra.mxu0 0
      %5932 = vmatpush.bf16.msra.mxu0 0
      %5933 = vmatpush.bf16.msra.mxu0 %v5924
      %5934 = vmatmul.bf16.gmra.mxu0 %v5921
      %v5935 = vpop.f32.mrf.mxu0
      %v5936 = vadd.f32 0.0, %v5935
      %v5937 = vpop.f32.mrf.mxu0
      %5938 = vdwg.mxu0
      %v5939 = vadd.f32 %v5915, %v5936
      %s5940 = scalar_lea.vmem %s1, 1696
      %v5941 = vld [vmem:[%s5940] sm:$0xf]
      %v5943 = vsel %vm1075, %v5941, 0
      %v5946 = vsel %vm1079, %v5843, 0
      %5948 = vmatpush.bf16.msra.mxu0 0
      %5949 = vmatpush.bf16.msra.mxu0 0
      %5950 = vmatpush.bf16.msra.mxu0 0
      %5951 = vmatpush.bf16.msra.mxu0 0
      %5952 = vmatpush.bf16.msra.mxu0 0
      %5953 = vmatpush.bf16.msra.mxu0 0
      %5954 = vmatpush.bf16.msra.mxu0 0
      %5955 = vmatpush.bf16.msra.mxu0 %v5946
      %5956 = vmatmul.bf16.gmra.mxu0 %v5943
      %v5957 = vpop.f32.mrf.mxu0
      %v5958 = vadd.f32 0.0, %v5957
      %v5959 = vpop.f32.mrf.mxu0
      %5960 = vdwg.mxu0
      %v5961 = vadd.f32 %v5939, %v5958
      %s5962 = scalar_lea.vmem %s1, 1712
      %v5963 = vld [vmem:[%s5962] sm:$0xf]
      %v5965 = vunpack.c.l.b16 %v5843
      %v5966 = vpack.c.b16 %v5965, %v5965
      %5967 = vrot.lane.b32.xlu0 %v5966, 64
      %v5968 = vpop.permute.xlu0 %5967
      %v5970 = vsel %vm1075, %v5963, 0
      %v5973 = vsel %vm1079, %v5968, 0
      %5975 = vmatpush.bf16.msra.mxu0 0
      %5976 = vmatpush.bf16.msra.mxu0 0
      %5977 = vmatpush.bf16.msra.mxu0 0
      %5978 = vmatpush.bf16.msra.mxu0 0
      %5979 = vmatpush.bf16.msra.mxu0 0
      %5980 = vmatpush.bf16.msra.mxu0 0
      %5981 = vmatpush.bf16.msra.mxu0 0
      %5982 = vmatpush.bf16.msra.mxu0 %v5973
      %5983 = vmatmul.bf16.gmra.mxu0 %v5970
      %v5984 = vpop.f32.mrf.mxu0
      %v5985 = vadd.f32 0.0, %v5984
      %v5986 = vpop.f32.mrf.mxu0
      %5987 = vdwg.mxu0
      %v5988 = vadd.f32 %v5961, %v5985
      %s5989 = scalar_lea.vmem %s1, 1728
      %v5990 = vld [vmem:[%s5989] sm:$0xf]
      %v5991 = vunpack.c.h.b16 %v5843
      %v5992 = vpack.c.b16 %v5991, %v5991
      %v5994 = vsel %vm1075, %v5990, 0
      %v5997 = vsel %vm1079, %v5992, 0
      %5999 = vmatpush.bf16.msra.mxu0 0
      %6000 = vmatpush.bf16.msra.mxu0 0
      %6001 = vmatpush.bf16.msra.mxu0 0
      %6002 = vmatpush.bf16.msra.mxu0 0
      %6003 = vmatpush.bf16.msra.mxu0 0
      %6004 = vmatpush.bf16.msra.mxu0 0
      %6005 = vmatpush.bf16.msra.mxu0 0
      %6006 = vmatpush.bf16.msra.mxu0 %v5997
      %6007 = vmatmul.bf16.gmra.mxu0 %v5994
      %v6008 = vpop.f32.mrf.mxu0
      %v6009 = vadd.f32 0.0, %v6008
      %v6010 = vpop.f32.mrf.mxu0
      %6011 = vdwg.mxu0
      %v6012 = vadd.f32 %v5988, %v6009
      %s6013 = scalar_lea.vmem %s1, 1744
      %v6014 = vld [vmem:[%s6013] sm:$0xf]
      %6015 = vrot.lane.b32.xlu0 %v5992, 64
      %v6016 = vpop.permute.xlu0 %6015
      %v6018 = vsel %vm1075, %v6014, 0
      %v6021 = vsel %vm1079, %v6016, 0
      %6023 = vmatpush.bf16.msra.mxu0 0
      %6024 = vmatpush.bf16.msra.mxu0 0
      %6025 = vmatpush.bf16.msra.mxu0 0
      %6026 = vmatpush.bf16.msra.mxu0 0
      %6027 = vmatpush.bf16.msra.mxu0 0
      %6028 = vmatpush.bf16.msra.mxu0 0
      %6029 = vmatpush.bf16.msra.mxu0 0
      %6030 = vmatpush.bf16.msra.mxu0 %v6021
      %6031 = vmatmul.bf16.gmra.mxu0 %v6018
      %v6032 = vpop.f32.mrf.mxu0
      %v6033 = vadd.f32 0.0, %v6032
      %v6034 = vpop.f32.mrf.mxu0
      %6035 = vdwg.mxu0
      %v6036 = vadd.f32 %v6012, %v6033
      %s6037 = scalar_lea.vmem %s1, 1760
      %v6038 = vld [vmem:[%s6037] sm:$0xf]
      %v6040 = vsel %vm1075, %v6038, 0
      %v6043 = vsel %vm1079, %v5844, 0
      %6045 = vmatpush.bf16.msra.mxu0 0
      %6046 = vmatpush.bf16.msra.mxu0 0
      %6047 = vmatpush.bf16.msra.mxu0 0
      %6048 = vmatpush.bf16.msra.mxu0 0
      %6049 = vmatpush.bf16.msra.mxu0 0
      %6050 = vmatpush.bf16.msra.mxu0 0
      %6051 = vmatpush.bf16.msra.mxu0 0
      %6052 = vmatpush.bf16.msra.mxu0 %v6043
      %6053 = vmatmul.bf16.gmra.mxu0 %v6040
      %v6054 = vpop.f32.mrf.mxu0
      %v6055 = vadd.f32 0.0, %v6054
      %v6056 = vpop.f32.mrf.mxu0
      %6057 = vdwg.mxu0
      %v6058 = vadd.f32 %v6036, %v6055
      %s6059 = scalar_lea.vmem %s2, 704
      %v6060 = vld [vmem:[%s6059] sm:$0xff]
      %6062 = vset.pattern.permute.xlu0 0
      %6063 = vperm.xlu0 %6062, %v6060
      %v6064 = vpop.permute.xlu0 %6063
      %v6066 = vadd.f32 %v6058, %v6064
      %vm6067 = vcmp.gt.f32.partialorder %v6066, 0.0
      %v6068 = vmul.f32 %v6066, 0.1
      %v6069 = vsel %vm6067, %v6066, %v6068
      %v6070 = vpack.c.bf16 %v6069, %v6069
      %s6071 = scalar_lea.vmem %s1, 1776
      %v6072 = vld [vmem:[%s6071] sm:$0x3]
      %s6073 = scalar_lea.vmem %s2, 736
      %v6074 = vld [vmem:[%s6073] sm:$0xf]
      %6076 = vset.pattern.permute.xlu0 0
      %6077 = vperm.xlu0 %6076, %v6074
      %v6078 = vpop.permute.xlu0 %6077
      %v6081 = vsel %vm1388, %v6072, 0
      %v6084 = vsel %vm1392, %v6070, 0
      %6086 = vmatpush.bf16.msra.mxu0 0
      %6087 = vmatpush.bf16.msra.mxu0 0
      %6088 = vmatpush.bf16.msra.mxu0 0
      %6089 = vmatpush.bf16.msra.mxu0 0
      %6090 = vmatpush.bf16.msra.mxu0 0
      %6091 = vmatpush.bf16.msra.mxu0 0
      %6092 = vmatpush.bf16.msra.mxu0 0
      %6093 = vmatpush.bf16.msra.mxu0 %v6084
      %6094 = vmatmul.bf16.gmra.mxu0 %v6081
      %v6095 = vpop.f32.mrf.mxu0
      %v6096 = vadd.f32 %v6078, %v6095
      %v6097 = vpop.f32.mrf.mxu0
      %6098 = vdwg.mxu0
      %vm6099 = vcmp.gt.f32.partialorder %v6096, 0.0
      %v6100 = vmul.f32 %v6096, 0.1
      %v6101 = vsel %vm6099, %v6096, %v6100
      %v6102 = vpack.c.bf16 %v6101, %v6101
      %v6104 = vsel %vm1341, %v6102, 0
      %6106 = vmatpush.bf16.msra.mxu0 0
      %6107 = vmatpush.bf16.msra.mxu0 0
      %6108 = vmatpush.bf16.msra.mxu0 0
      %6109 = vmatpush.bf16.msra.mxu0 0
      %6110 = vmatpush.bf16.msra.mxu0 %v5420
      %6111 = vmatpush.bf16.msra.mxu0 %v5415
      %6112 = vmatpush.bf16.msra.mxu0 %v5410
      %6113 = vmatpush.bf16.msra.mxu0 %v5405
      %6114 = vmatmul.bf16.gmra.mxu0 %v6104
      %v6115 = vpop.f32.mrf.mxu0
      %v6116 = vadd.f32 0.0, %v6115
      %v6117 = vpop.f32.mrf.mxu0
      %6118 = vdwg.mxu0
      %6119 = vmatpush.bf16.msra.mxu0 0
      %6120 = vmatpush.bf16.msra.mxu0 0
      %6121 = vmatpush.bf16.msra.mxu0 0
      %6122 = vmatpush.bf16.msra.mxu0 0
      %6123 = vmatpush.bf16.msra.mxu0 %v5421
      %6124 = vmatpush.bf16.msra.mxu0 %v5416
      %6125 = vmatpush.bf16.msra.mxu0 %v5411
      %6126 = vmatpush.bf16.msra.mxu0 %v5406
      %6127 = vmatmul.bf16.gmra.mxu0 %v6104
      %v6128 = vpop.f32.mrf.mxu0
      %v6129 = vadd.f32 0.0, %v6128
      %v6130 = vpop.f32.mrf.mxu0
      %6131 = vdwg.mxu0
      %6132 = vmatpush.bf16.msra.mxu0 0
      %6133 = vmatpush.bf16.msra.mxu0 0
      %6134 = vmatpush.bf16.msra.mxu0 0
      %6135 = vmatpush.bf16.msra.mxu0 0
      %6136 = vmatpush.bf16.msra.mxu0 %v5422
      %6137 = vmatpush.bf16.msra.mxu0 %v5417
      %6138 = vmatpush.bf16.msra.mxu0 %v5412
      %6139 = vmatpush.bf16.msra.mxu0 %v5407
      %6140 = vmatmul.bf16.gmra.mxu0 %v6104
      %v6141 = vpop.f32.mrf.mxu0
      %v6142 = vadd.f32 0.0, %v6141
      %v6143 = vpop.f32.mrf.mxu0
      %6144 = vdwg.mxu0
      %6145 = vmatpush.bf16.msra.mxu0 0
      %6146 = vmatpush.bf16.msra.mxu0 0
      %6147 = vmatpush.bf16.msra.mxu0 0
      %6148 = vmatpush.bf16.msra.mxu0 0
      %6149 = vmatpush.bf16.msra.mxu0 %v5423
      %6150 = vmatpush.bf16.msra.mxu0 %v5418
      %6151 = vmatpush.bf16.msra.mxu0 %v5413
      %6152 = vmatpush.bf16.msra.mxu0 %v5408
      %6153 = vmatmul.bf16.gmra.mxu0 %v6104
      %v6154 = vpop.f32.mrf.mxu0
      %v6155 = vadd.f32 0.0, %v6154
      %v6156 = vpop.f32.mrf.mxu0
      %6157 = vdwg.mxu0
      %6158 = vmatpush.bf16.msra.mxu0 0
      %6159 = vmatpush.bf16.msra.mxu0 0
      %6160 = vmatpush.bf16.msra.mxu0 0
      %6161 = vmatpush.bf16.msra.mxu0 0
      %6162 = vmatpush.bf16.msra.mxu0 %v5424
      %6163 = vmatpush.bf16.msra.mxu0 %v5419
      %6164 = vmatpush.bf16.msra.mxu0 %v5414
      %6165 = vmatpush.bf16.msra.mxu0 %v5409
      %6166 = vmatmul.bf16.gmra.mxu0 %v6104
      %v6167 = vpop.f32.mrf.mxu0
      %v6168 = vadd.f32 0.0, %v6167
      %v6169 = vpop.f32.mrf.mxu0
      %6170 = vdwg.mxu0
      %v6171 = vpack.c.bf16 %v6129, %v6116
      %v6172 = vpack.c.bf16 %v6155, %v6142
      %v6173 = vpack.c.bf16 %v6168, %v6168
      %s6174 = scalar_lea.vmem %s1, 1792
      %v6175 = vld [vmem:[%s6174] sm:$0xf]
      %s6176 = scalar_lea.vmem %s1, 1808
      %v6177 = vld [vmem:[%s6176] sm:$0xf]
      %v6179 = vunpack.c.l.b16 %v6171
      %v6180 = vpack.c.b16 %v6179, %v6179
      %6181 = vrot.lane.b32.xlu0 %v6180, 64
      %v6182 = vpop.permute.xlu0 %6181
      %v6184 = vsel %vm1075, %v6177, 0
      %v6187 = vsel %vm1079, %v6182, 0
      %6189 = vmatpush.bf16.msra.mxu0 0
      %6190 = vmatpush.bf16.msra.mxu0 0
      %6191 = vmatpush.bf16.msra.mxu0 0
      %6192 = vmatpush.bf16.msra.mxu0 0
      %6193 = vmatpush.bf16.msra.mxu0 0
      %6194 = vmatpush.bf16.msra.mxu0 0
      %6195 = vmatpush.bf16.msra.mxu0 0
      %6196 = vmatpush.bf16.msra.mxu0 %v6187
      %6197 = vmatmul.bf16.gmra.mxu0 %v6184
      %v6198 = vpop.f32.mrf.mxu0
      %v6199 = vadd.f32 0.0, %v6198
      %v6200 = vpop.f32.mrf.mxu0
      %6201 = vdwg.mxu0
      %v6203 = vsel %vm1075, %v6175, 0
      %v6206 = vsel %vm1079, %v6171, 0
      %6208 = vmatpush.bf16.msra.mxu0 0
      %6209 = vmatpush.bf16.msra.mxu0 0
      %6210 = vmatpush.bf16.msra.mxu0 0
      %6211 = vmatpush.bf16.msra.mxu0 0
      %6212 = vmatpush.bf16.msra.mxu0 0
      %6213 = vmatpush.bf16.msra.mxu0 0
      %6214 = vmatpush.bf16.msra.mxu0 0
      %6215 = vmatpush.bf16.msra.mxu0 %v6206
      %6216 = vmatmul.bf16.gmra.mxu0 %v6203
      %v6217 = vpop.f32.mrf.mxu0
      %v6218 = vadd.f32 %v6199, %v6217
      %v6219 = vpop.f32.mrf.mxu0
      %6220 = vdwg.mxu0
      %s6221 = scalar_lea.vmem %s1, 1824
      %v6222 = vld [vmem:[%s6221] sm:$0xf]
      %v6223 = vunpack.c.h.b16 %v6171
      %v6224 = vpack.c.b16 %v6223, %v6223
      %v6226 = vsel %vm1075, %v6222, 0
      %v6229 = vsel %vm1079, %v6224, 0
      %6231 = vmatpush.bf16.msra.mxu0 0
      %6232 = vmatpush.bf16.msra.mxu0 0
      %6233 = vmatpush.bf16.msra.mxu0 0
      %6234 = vmatpush.bf16.msra.mxu0 0
      %6235 = vmatpush.bf16.msra.mxu0 0
      %6236 = vmatpush.bf16.msra.mxu0 0
      %6237 = vmatpush.bf16.msra.mxu0 0
      %6238 = vmatpush.bf16.msra.mxu0 %v6229
      %6239 = vmatmul.bf16.gmra.mxu0 %v6226
      %v6240 = vpop.f32.mrf.mxu0
      %v6241 = vadd.f32 0.0, %v6240
      %v6242 = vpop.f32.mrf.mxu0
      %6243 = vdwg.mxu0
      %v6244 = vadd.f32 %v6218, %v6241
      %s6245 = scalar_lea.vmem %s1, 1840
      %v6246 = vld [vmem:[%s6245] sm:$0xf]
      %6247 = vrot.lane.b32.xlu0 %v6224, 64
      %v6248 = vpop.permute.xlu0 %6247
      %v6250 = vsel %vm1075, %v6246, 0
      %v6253 = vsel %vm1079, %v6248, 0
      %6255 = vmatpush.bf16.msra.mxu0 0
      %6256 = vmatpush.bf16.msra.mxu0 0
      %6257 = vmatpush.bf16.msra.mxu0 0
      %6258 = vmatpush.bf16.msra.mxu0 0
      %6259 = vmatpush.bf16.msra.mxu0 0
      %6260 = vmatpush.bf16.msra.mxu0 0
      %6261 = vmatpush.bf16.msra.mxu0 0
      %6262 = vmatpush.bf16.msra.mxu0 %v6253
      %6263 = vmatmul.bf16.gmra.mxu0 %v6250
      %v6264 = vpop.f32.mrf.mxu0
      %v6265 = vadd.f32 0.0, %v6264
      %v6266 = vpop.f32.mrf.mxu0
      %6267 = vdwg.mxu0
      %v6268 = vadd.f32 %v6244, %v6265
      %s6269 = scalar_lea.vmem %s1, 1856
      %v6270 = vld [vmem:[%s6269] sm:$0xf]
      %v6272 = vsel %vm1075, %v6270, 0
      %v6275 = vsel %vm1079, %v6172, 0
      %6277 = vmatpush.bf16.msra.mxu0 0
      %6278 = vmatpush.bf16.msra.mxu0 0
      %6279 = vmatpush.bf16.msra.mxu0 0
      %6280 = vmatpush.bf16.msra.mxu0 0
      %6281 = vmatpush.bf16.msra.mxu0 0
      %6282 = vmatpush.bf16.msra.mxu0 0
      %6283 = vmatpush.bf16.msra.mxu0 0
      %6284 = vmatpush.bf16.msra.mxu0 %v6275
      %6285 = vmatmul.bf16.gmra.mxu0 %v6272
      %v6286 = vpop.f32.mrf.mxu0
      %v6287 = vadd.f32 0.0, %v6286
      %v6288 = vpop.f32.mrf.mxu0
      %6289 = vdwg.mxu0
      %v6290 = vadd.f32 %v6268, %v6287
      %s6291 = scalar_lea.vmem %s1, 1872
      %v6292 = vld [vmem:[%s6291] sm:$0xf]
      %v6294 = vunpack.c.l.b16 %v6172
      %v6295 = vpack.c.b16 %v6294, %v6294
      %6296 = vrot.lane.b32.xlu0 %v6295, 64
      %v6297 = vpop.permute.xlu0 %6296
      %v6299 = vsel %vm1075, %v6292, 0
      %v6302 = vsel %vm1079, %v6297, 0
      %6304 = vmatpush.bf16.msra.mxu0 0
      %6305 = vmatpush.bf16.msra.mxu0 0
      %6306 = vmatpush.bf16.msra.mxu0 0
      %6307 = vmatpush.bf16.msra.mxu0 0
      %6308 = vmatpush.bf16.msra.mxu0 0
      %6309 = vmatpush.bf16.msra.mxu0 0
      %6310 = vmatpush.bf16.msra.mxu0 0
      %6311 = vmatpush.bf16.msra.mxu0 %v6302
      %6312 = vmatmul.bf16.gmra.mxu0 %v6299
      %v6313 = vpop.f32.mrf.mxu0
      %v6314 = vadd.f32 0.0, %v6313
      %v6315 = vpop.f32.mrf.mxu0
      %6316 = vdwg.mxu0
      %v6317 = vadd.f32 %v6290, %v6314
      %s6318 = scalar_lea.vmem %s1, 1888
      %v6319 = vld [vmem:[%s6318] sm:$0xf]
      %v6320 = vunpack.c.h.b16 %v6172
      %v6321 = vpack.c.b16 %v6320, %v6320
      %v6323 = vsel %vm1075, %v6319, 0
      %v6326 = vsel %vm1079, %v6321, 0
      %6328 = vmatpush.bf16.msra.mxu0 0
      %6329 = vmatpush.bf16.msra.mxu0 0
      %6330 = vmatpush.bf16.msra.mxu0 0
      %6331 = vmatpush.bf16.msra.mxu0 0
      %6332 = vmatpush.bf16.msra.mxu0 0
      %6333 = vmatpush.bf16.msra.mxu0 0
      %6334 = vmatpush.bf16.msra.mxu0 0
      %6335 = vmatpush.bf16.msra.mxu0 %v6326
      %6336 = vmatmul.bf16.gmra.mxu0 %v6323
      %v6337 = vpop.f32.mrf.mxu0
      %v6338 = vadd.f32 0.0, %v6337
      %v6339 = vpop.f32.mrf.mxu0
      %6340 = vdwg.mxu0
      %v6341 = vadd.f32 %v6317, %v6338
      %s6342 = scalar_lea.vmem %s1, 1904
      %v6343 = vld [vmem:[%s6342] sm:$0xf]
      %6344 = vrot.lane.b32.xlu0 %v6321, 64
      %v6345 = vpop.permute.xlu0 %6344
      %v6347 = vsel %vm1075, %v6343, 0
      %v6350 = vsel %vm1079, %v6345, 0
      %6352 = vmatpush.bf16.msra.mxu0 0
      %6353 = vmatpush.bf16.msra.mxu0 0
      %6354 = vmatpush.bf16.msra.mxu0 0
      %6355 = vmatpush.bf16.msra.mxu0 0
      %6356 = vmatpush.bf16.msra.mxu0 0
      %6357 = vmatpush.bf16.msra.mxu0 0
      %6358 = vmatpush.bf16.msra.mxu0 0
      %6359 = vmatpush.bf16.msra.mxu0 %v6350
      %6360 = vmatmul.bf16.gmra.mxu0 %v6347
      %v6361 = vpop.f32.mrf.mxu0
      %v6362 = vadd.f32 0.0, %v6361
      %v6363 = vpop.f32.mrf.mxu0
      %6364 = vdwg.mxu0
      %v6365 = vadd.f32 %v6341, %v6362
      %s6366 = scalar_lea.vmem %s1, 1920
      %v6367 = vld [vmem:[%s6366] sm:$0xf]
      %v6369 = vsel %vm1075, %v6367, 0
      %v6372 = vsel %vm1079, %v6173, 0
      %6374 = vmatpush.bf16.msra.mxu0 0
      %6375 = vmatpush.bf16.msra.mxu0 0
      %6376 = vmatpush.bf16.msra.mxu0 0
      %6377 = vmatpush.bf16.msra.mxu0 0
      %6378 = vmatpush.bf16.msra.mxu0 0
      %6379 = vmatpush.bf16.msra.mxu0 0
      %6380 = vmatpush.bf16.msra.mxu0 0
      %6381 = vmatpush.bf16.msra.mxu0 %v6372
      %6382 = vmatmul.bf16.gmra.mxu0 %v6369
      %v6383 = vpop.f32.mrf.mxu0
      %v6384 = vadd.f32 0.0, %v6383
      %v6385 = vpop.f32.mrf.mxu0
      %6386 = vdwg.mxu0
      %v6387 = vadd.f32 %v6365, %v6384
      %s6388 = scalar_lea.vmem %s2, 768
      %v6389 = vld [vmem:[%s6388] sm:$0xff]
      %6391 = vset.pattern.permute.xlu0 0
      %6392 = vperm.xlu0 %6391, %v6389
      %v6393 = vpop.permute.xlu0 %6392
      %v6395 = vadd.f32 %v6387, %v6393
      %vm6396 = vcmp.gt.f32.partialorder %v6395, 0.0
      %v6397 = vmul.f32 %v6395, 0.1
      %v6398 = vsel %vm6396, %v6395, %v6397
      %v6399 = vpack.c.bf16 %v6398, %v6398
      %s6400 = scalar_lea.vmem %s1, 1936
      %v6401 = vld [vmem:[%s6400] sm:$0xf]
      %v6402 = vld [vmem:[%s6400 + $0x4] sm:$0xf]
      %v6403 = vld [vmem:[%s6400 + $0x8] sm:$0xf]
      %s6404 = scalar_lea.vmem %s2, 800
      %v6405 = vld [vmem:[%s6404] sm:$0xff]
      %v6406 = vld [vmem:[%s6404 + $0x8] sm:$0xff]
      %v6407 = vld [vmem:[%s6404 + $0x10] sm:$0xff]
      %6409 = vset.pattern.permute.xlu0 0
      %6410 = vperm.xlu0 %6409, %v6405
      %v6411 = vpop.permute.xlu0 %6410
      %6414 = vset.pattern.permute.xlu0 0
      %6415 = vperm.xlu0 %6414, %v6406
      %v6416 = vpop.permute.xlu0 %6415
      %6419 = vset.pattern.permute.xlu0 0
      %6420 = vperm.xlu0 %6419, %v6407
      %v6421 = vpop.permute.xlu0 %6420
      %v6426 = vunpack.c.l.b16 %v6401
      %v6427 = vunpack.c.l.b16 %v6402
      %v6428 = vunpack.c.l.b16 %v6403
      %v6429 = vpack.c.b16 %v6427, %v6426
      %v6430 = vpack.c.b16 %v6428, %v6428
      %v6432 = vsel %vm1388, %v6429, 0
      %v6435 = vsel %vm1388, %v6430, 0
      %v6438 = vsel %vm1392, %v6399, 0
      %6440 = vmatpush.bf16.msra.mxu0 0
      %6441 = vmatpush.bf16.msra.mxu0 0
      %6442 = vmatpush.bf16.msra.mxu0 0
      %6443 = vmatpush.bf16.msra.mxu0 0
      %6444 = vmatpush.bf16.msra.mxu0 0
      %6445 = vmatpush.bf16.msra.mxu0 0
      %6446 = vmatpush.bf16.msra.mxu0 0
      %6447 = vmatpush.bf16.msra.mxu0 %v6438
      %6448 = vmatmul.bf16.gmra.mxu0 %v6432
      %v6449 = vpop.f32.mrf.mxu0
      %v6450 = vadd.f32 %v6411, %v6449
      %v6451 = vpop.f32.mrf.mxu0
      %v6452 = vadd.f32 %v6416, %v6451
      %6453 = vmatmul.bf16.gmra.mxu0 %v6435
      %v6454 = vpop.f32.mrf.mxu0
      %v6455 = vadd.f32 %v6421, %v6454
      %v6456 = vpop.f32.mrf.mxu0
      %6457 = vdwg.mxu0
      %v6458 = vld [vmem:[%s11 + $0x4] sm:$0x1]
      %v6459 = vld [vmem:[%s11 + $0x5] sm:$0x1]
      %v6460 = vmul.f32 %v6450, 0.5
      %v6461 = vtanh.pop %v6460
      %v6462 = vadd.f32 %v6461, 1.0
      %v6463 = vmul.f32 %v6462, 0.5
      %v6464 = vmul.f32 %v6463, 2.0
      %v6465 = vperm.slane %v6458, 0
      %v6466 = vadd.f32 %v6464, %v6465
      %v6467 = vperm.slane %v6459, 0
      %v6468 = vadd.f32 %v6464, %v6467
      %v6469 = vmul.f32 %v6450, 1.442695
      %v6470 = vpow.pop %v6469
      %v6471 = vmul.f32 %v6452, 1.442695
      %v6472 = vpow.pop %v6471
      %v6473 = vmul.f32 %v6452, 0.5
      %v6474 = vtanh.pop %v6473
      %v6475 = vadd.f32 %v6474, 1.0
      %v6476 = vmul.f32 %v6475, 0.5
      %v6477 = vmul.f32 %v6455, 0.5
      %v6478 = vtanh.pop %v6477
      %v6479 = vadd.f32 %v6478, 1.0
      %v6480 = vmul.f32 %v6479, 0.5
      %v6481 = vperm.slane %v6476, 4
      %v6482 = vmul.f32 %v6476, %v6481
      %v6483 = vmul.f32 %v6480, %v6481
      %v6484 = vperm.slane %v6476, 5
      %v6485 = vmul.f32 %v6480, %v6484
      %v6486 = vperm.slane %v6476, 6
      %v6487 = vmul.f32 %v6480, %v6486
      %v6490 = vrot.slane %v6482, 7
      %v6491 = vrot.slane %v6483, 7
      %v6492 = vsel %vm3837, %v6490, %v6491
      %v6495 = vrot.slane %v6485, 7
      %v6498 = vrot.slane %v6487, 7
      %v6500 = vsel %vm3848, %v6492, %v6495
      %v6501 = vsel %vm3850, %v6500, %v6498
      %v6504 = vrot.slane %v6470, 6
      %v6505 = vrot.slane %v6472, 6
      %v6506 = vsel %vm1079, %v6504, %v6505
      %v6508 = vsub.f32 %v6466, %v6506
      %v6510 = vsub.f32 %v6468, %v6505
      %v6511 = vadd.f32 %v6466, %v6506
      %v6512 = vadd.f32 %v6468, %v6505
      %v6514 = vrot.slane %v6511, 2
      %v6517 = vrot.slane %v6512, 2
      %v6520 = vrot.slane %v6501, 4
      %v6521 = vrot.slane %v6498, 4
      %v6522 = vsel %vm1392, %v6520, %v6521
      %v6525 = vsel %vm3848, %v6508, %v6510
      %v6526 = vsel %vm3850, %v6525, %v6514
      %v6527 = vsel %vm3837, %v6514, %v6517
      %v6528 = vsel %vm1392, %v6527, %v6520
      %v6529 = vsel %vm3879, %v6522, 0.0
      %v6530 = vsel %vm1341, %v6526, 0.0
      %v6531 = vsel %vm1341, %v6528, 0.0
      %v6532 = vsel %vm1341, %v6529, 0.0
      %6533 = vst [vmem:[%s413 + $0x30] sm:$0xff] %v6530
      %6534 = vst [vmem:[%s413 + $0x38] sm:$0xff] %v6531
      %6535 = vst [vmem:[%s413 + $0x40] sm:$0xff] %v6532
      %p6536 = scmp.lt.s32.totalorder %s23, 1
      %s6537 = scalar_select %p6536, %s23, 1
      %s6538 = smul.addr %s6537, 9
      %s6539 = smul.addr %s6538, 8
      %s6540 = scalar_lea.vmem %s12, %s6539
      // Predicated region
      $region69: #{yolov3_forward.2} parent=67 // pred_check
        %p6541 = pneg %p298
      $region70: #{yolov3_forward.2} parent=67 // pred_check_branch
        %6543 = sbr.rel (%p6541) target = $region72
      $region71: #{yolov3_forward.2} parent=67 // pred_region
        _
      $region72: #{yolov3_forward.2} parent=67 // pred_fallthru
        _
    $region68: #{yolov3_forward.2} parent=5 // pred_fallthru
      _
    %p6544 = scmp.le.s32.totalorder 2, %s18
    // Predicated region
    $region73: #{yolov3_forward.2} parent=5 // pred_check
      %p6545 = pneg %p6544
    $region74: #{yolov3_forward.2} parent=5 // pred_check_branch
      %6547 = sbr.rel (%p6545) target = $region76
    $region75: #{yolov3_forward.2} parent=5 // pred_region
      %s6548 = ssub.s32 %s18, 2
      // Predicated region
      $region77: #{yolov3_forward.2} parent=75 // pred_check
        %p6549 = pneg %p304
      $region78: #{yolov3_forward.2} parent=75 // pred_check_branch
        %6551 = sbr.rel (%p6549) target = $region80
      $region79: #{yolov3_forward.2} parent=75 // pred_region
        %p6552 = scmp.lt.s32.totalorder %s24, 1
        %s6553 = scalar_select %p6552, %s24, 1
        %s6554 = smul.addr %s6553, 9
        %s6555 = smul.addr %s6554, 8
        %s6556 = scalar_lea.vmem %s12, %s6555
      $region80: #{yolov3_forward.2} parent=75 // pred_fallthru
        _
    $region76: #{yolov3_forward.2} parent=5 // pred_fallthru
      _
  $region6: #{yolov3_forward.2} parent=0 // loop_footer
    %s22 = sadd.s32 1, %s18
  $region7: #{yolov3_forward.2} parent=0 // loop_footer_branch
    %17 = sbr.rel target = $region3
  $region8: #{yolov3_forward.2} parent=0 // loop_exit
    _

// kernel: yolov3_forward.3
$region0: #{yolov3_forward.3}
  #allocation0 [shape = 'u32[]', space=smem, size = 0x4, offset = 0x4, fixed_abs, tag = 'smem constant byte address 0x4 - core index']
  #allocation1 [shape = 'u32[72,128]{1,0:T(1,128)}', space=vmem, size = 0x9000, scoped, tag = 'internal scratch']
  %s0 = inlined_call_operand.vmem [shape: f32[2,400,512], index: 0, kind: input, shape index: {}]
  %s1 = inlined_call_operand.vmem [shape: f32[2,1,512], index: 1, kind: input, shape index: {}]
  %s2 = inlined_call_operand.vmem [shape: f32[2,1,512], index: 2, kind: output, shape index: {}]
  %s3 = sld [smem:[#allocation0]]
  $region48: #{yolov3_forward.3} parent=0
    _
  %s5 = ssub.s32 1, %s3
  %s6 = scalar_select 0, %s5, %s3
  loop: start=0, step=1, limit=4
  $region2: #{yolov3_forward.3} parent=0 // loop_pre_header
    _
  $region3: #{yolov3_forward.3} parent=0 // loop_header
    %s8 = sphi 0, %s12
    %p9 = scmp.ge.s32.totalorder %s8, 4
    %s18 = sphi 0, %s20
    %s21 = sphi 0, %s18
    %s22 = sphi 0, %s21
    %s38 = sphi 0, %s22
    %s44 = sphi 0, %s46
    %s47 = sphi 0, %s44
    %s48 = sphi 0, %s47
    %s64 = sphi 0, %s48
    %s70 = sphi 0, %s72
    %s73 = sphi 0, %s70
    %s74 = sphi 0, %s73
    %s90 = sphi 0, %s74
  $region4: #{yolov3_forward.3} parent=0 // loop_header_branch
    %11 = sbr.rel (%p9) target = $region8
  $region5: #{yolov3_forward.3} parent=0 // loop_body
    %s13 = ssub.s32 %s8, 1
    %s14 = ssub.s32 %s8, 2
    %s15 = sadd.s32 %s8, 1
    %s16 = ssub.s32 %s8, %s15
    %p17 = scmp.eq.s32.totalorder %s16, 0
    %s19 = sadd.s32 %s18, 1
    %s20 = scalar_select %p17, %s18, %s19
    %p23 = pneg %p17
    %p24 = scmp.eq.s32.totalorder %s8, 1
    %p25 = por %p23, %p24
    %p26 = scmp.ne.s32.totalorder %s18, %s21
    %p27 = scmp.eq.s32.totalorder %s8, 0
    %p28 = por %p26, %p27
    %p29 = scmp.ne.s32.totalorder %s18, %s21
    %p30 = scmp.eq.s32.totalorder %s13, 1
    %p31 = por %p29, %p30
    %p32 = scmp.ne.s32.totalorder %s21, %s22
    %p33 = scmp.eq.s32.totalorder %s13, 0
    %p34 = por %p32, %p33
    %p35 = scmp.ne.s32.totalorder %s21, %s22
    %p36 = scmp.eq.s32.totalorder %s14, 1
    %p37 = por %p35, %p36
    %p39 = scmp.ne.s32.totalorder %s22, %s38
    %p40 = scmp.eq.s32.totalorder %s14, 0
    %p41 = por %p39, %p40
    %s42 = ssub.s32 %s8, %s15
    %p43 = scmp.eq.s32.totalorder %s42, 0
    %s45 = sadd.s32 %s44, 1
    %s46 = scalar_select %p43, %s44, %s45
    %p49 = pneg %p43
    %p50 = scmp.eq.s32.totalorder %s8, 1
    %p51 = por %p49, %p50
    %p52 = scmp.ne.s32.totalorder %s44, %s47
    %p53 = scmp.eq.s32.totalorder %s8, 0
    %p54 = por %p52, %p53
    %p55 = scmp.ne.s32.totalorder %s44, %s47
    %p56 = scmp.eq.s32.totalorder %s13, 1
    %p57 = por %p55, %p56
    %p58 = scmp.ne.s32.totalorder %s47, %s48
    %p59 = scmp.eq.s32.totalorder %s13, 0
    %p60 = por %p58, %p59
    %p61 = scmp.ne.s32.totalorder %s47, %s48
    %p62 = scmp.eq.s32.totalorder %s14, 1
    %p63 = por %p61, %p62
    %p65 = scmp.ne.s32.totalorder %s48, %s64
    %p66 = scmp.eq.s32.totalorder %s14, 0
    %p67 = por %p65, %p66
    %s68 = ssub.s32 %s8, %s15
    %p69 = scmp.eq.s32.totalorder %s68, 0
    %s71 = sadd.s32 %s70, 1
    %s72 = scalar_select %p69, %s70, %s71
    %p75 = pneg %p69
    %p76 = scmp.eq.s32.totalorder %s8, 1
    %p77 = por %p75, %p76
    %p78 = scmp.ne.s32.totalorder %s70, %s73
    %p79 = scmp.eq.s32.totalorder %s8, 0
    %p80 = por %p78, %p79
    %p81 = scmp.ne.s32.totalorder %s70, %s73
    %p82 = scmp.eq.s32.totalorder %s13, 1
    %p83 = por %p81, %p82
    %p84 = scmp.ne.s32.totalorder %s73, %s74
    %p85 = scmp.eq.s32.totalorder %s13, 0
    %p86 = por %p84, %p85
    %p87 = scmp.ne.s32.totalorder %s73, %s74
    %p88 = scmp.eq.s32.totalorder %s14, 1
    %p89 = por %p87, %p88
    %p91 = scmp.ne.s32.totalorder %s74, %s90
    %p92 = scmp.eq.s32.totalorder %s14, 0
    %p93 = por %p91, %p92
    %p94 = scmp.le.s32.totalorder 1, %s8
    %p95 = scmp.lt.s32.totalorder %s8, 3
    %p96 = pnand %p94, %p95
    %p97 = pneg %p96
    // Predicated region
    $region9: #{yolov3_forward.3} parent=5 // pred_check
      _
    $region10: #{yolov3_forward.3} parent=5 // pred_check_branch
      %99 = sbr.rel (%p96) target = $region12
    $region11: #{yolov3_forward.3} parent=5 // pred_region
      %s100 = ssub.s32 %s8, 1
    $region12: #{yolov3_forward.3} parent=5 // pred_fallthru
      _
    %p101 = scmp.lt.s32.totalorder %s8, 2
    // Predicated region
    $region13: #{yolov3_forward.3} parent=5 // pred_check
      %p102 = pneg %p101
    $region14: #{yolov3_forward.3} parent=5 // pred_check_branch
      %104 = sbr.rel (%p102) target = $region16
    $region15: #{yolov3_forward.3} parent=5 // pred_region
      // Predicated region
      $region17: #{yolov3_forward.3} parent=15 // pred_check
        %p105 = pneg %p28
      $region18: #{yolov3_forward.3} parent=15 // pred_check_branch
        %107 = sbr.rel (%p105) target = $region20
      $region19: #{yolov3_forward.3} parent=15 // pred_region
        %p108 = scmp.lt.s32.totalorder %s8, 1
        %s109 = scalar_select %p108, %s8, 1
        %s110 = smul.addr %s109, 200
        %s111 = smul.addr %s110, 8
        %s112 = scalar_lea.vmem %s0, %s111
      $region20: #{yolov3_forward.3} parent=15 // pred_fallthru
        _
      // Predicated region
      $region21: #{yolov3_forward.3} parent=15 // pred_check
        %p113 = pneg %p54
      $region22: #{yolov3_forward.3} parent=15 // pred_check_branch
        %115 = sbr.rel (%p113) target = $region24
      $region23: #{yolov3_forward.3} parent=15 // pred_region
        %p116 = scmp.lt.s32.totalorder %s8, 1
        %s117 = scalar_select %p116, %s8, 1
        %s118 = smul.addr %s117, 4
        %s119 = scalar_lea.vmem %s1, %s118
      $region24: #{yolov3_forward.3} parent=15 // pred_fallthru
        _
    $region16: #{yolov3_forward.3} parent=5 // pred_fallthru
      _
    %p120 = scmp.le.s32.totalorder 1, %s8
    %p121 = scmp.lt.s32.totalorder %s8, 3
    %p122 = pnand %p120, %p121
    %p123 = pneg %p122
    // Predicated region
    $region25: #{yolov3_forward.3} parent=5 // pred_check
      _
    $region26: #{yolov3_forward.3} parent=5 // pred_check_branch
      %125 = sbr.rel (%p122) target = $region28
    $region27: #{yolov3_forward.3} parent=5 // pred_region
      %s126 = ssub.s32 %s8, 1
      %p127 = scmp.lt.s32.totalorder %s13, 1
      %s128 = scalar_select %p127, %s13, 1
      %s129 = smul.addr %s128, 200
      %s130 = smul.addr %s129, 8
      %s131 = scalar_lea.vmem %s0, %s130
      %p132 = pneg %p34
      %p133 = pneg %p31
      %p134 = scmp.lt.s32.totalorder %s13, 1
      %s135 = scalar_select %p134, %s13, 1
      %s136 = smul.addr %s135, 4
      %s137 = scalar_lea.vmem %s1, %s136
      %p138 = pneg %p60
      %p139 = pneg %p57
      %p140 = pneg %p86
      %p141 = pneg %p83
      %p142 = scmp.lt.s32.totalorder %s13, 1
      %s143 = scalar_select %p142, %s13, 1
      %s144 = smul.addr %s143, 4
      %s145 = scalar_lea.vmem %s2, %s144
      %p146 = scmp.lt.s32.totalorder %s13, 1
      %s147 = scalar_select %p146, %s13, 1
      %s148 = smul.addr %s147, 200
      %s149 = smul.addr %s148, 8
      %s150 = scalar_lea.vmem %s0, %s149
      %p151 = scmp.lt.s32.totalorder %s13, 1
      %s152 = scalar_select %p151, %s13, 1
      %s153 = smul.addr %s152, 4
      %s154 = scalar_lea.vmem %s1, %s153
      %p155 = scmp.lt.s32.totalorder %s13, 1
      %s156 = scalar_select %p155, %s13, 1
      %s157 = smul.addr %s156, 4
      %s158 = scalar_lea.vmem %s2, %s157
      %v159 = vlaneseq
      %v160 = vand.u32 %v159, 127
      %v161 = vadd.s32 %v160, 128
      %v162 = vadd.s32 %v160, 256
      %v163 = vadd.s32 %v160, 384
      %v164 = vld [vmem:[%s154] sm:$0xf]
      loop: start=0, step=1, limit=400
      $region29: #{yolov3_forward.3} parent=27 // loop_pre_header
        _
      $region30: #{yolov3_forward.3} parent=27 // loop_header
        %s166 = sphi 0, %s170
        %p167 = scmp.ge.s32.totalorder %s166, 400
        %v171 = vphi %v164, %v232
      $region31: #{yolov3_forward.3} parent=27 // loop_header_branch
        %169 = sbr.rel (%p167) target = $region35
      $region32: #{yolov3_forward.3} parent=27 // loop_body
        %v172 = vstv %s166
        %vm173 = vcmp.eq.s32.totalorder %v160, %v172
        %vm174 = vcmp.eq.s32.totalorder %v161, %v172
        %vm175 = vcmp.eq.s32.totalorder %v162, %v172
        %vm176 = vcmp.eq.s32.totalorder %v163, %v172
        %v177 = vsel %vm173, 1, 0
        %v178 = vsel %vm174, 1, 0
        %v179 = vsel %vm175, 1, 0
        %v180 = vsel %vm176, 1, 0
        %v181 = vcvt.s32.f32 %v177
        %v182 = vcvt.s32.f32 %v178
        %v183 = vcvt.s32.f32 %v179
        %v184 = vcvt.s32.f32 %v180
        %v189 = vrot.slane %v182, 7
        %v190 = vrot.slane %v183, 6
        %v191 = vrot.slane %v184, 5
        %vm192 = vcmask 1040384
        %v193 = vsel %vm192, %v181, %v189
        %vm194 = vcmask 1042434
        %v195 = vsel %vm194, %v190, %v191
        %vm196 = vcmask 1041408
        %v197 = vsel %vm196, %v193, %v195
        %v199 = vmul.f32 %v171, %v197
        %v201 = vperm.slane %v199, 0
        %v202 = vperm.slane %v199, 1
        %v203 = vperm.slane %v199, 2
        %v204 = vperm.slane %v199, 3
        %v209 = vsel %vm192, %v201, 0.0
        %v210 = vsel %vm192, %v202, 0.0
        %v211 = vadd.f32 %v209, %v210
        %v212 = vsel %vm192, %v203, 0.0
        %v213 = vadd.f32 %v211, %v212
        %v214 = vsel %vm192, %v204, 0.0
        %v215 = vadd.f32 %v213, %v214
        %216 = vadd.xlane.f32.xlu0 %v215
        %v217 = vpop.xlane.xlu0 %216
        %s218 = sshra.s32 %s166, 3
        %s219 = sand.u32 %s166, 7
        %s220 = sshra.s32 %s166, 3
        %s221 = sand.u32 %s166, 7
        %s222 = smul.u32 %s218, 4
        %s223 = smul.u32 %s222, 8
        %s224 = sadd.s32 %s223, %s221
        %s225 = scalar_lea.vmem %s150, %s224
        %v226 = vld [vmem:[%s225] ss:$8 sm:$0xf]
        %v228 = vperm.slane %v217, 0
        %v230 = vmul.f32 %v226, %v228
        %v231 = vsub.f32 1.0, %v230
        %v232 = vmul.f32 %v171, %v231
      $region33: #{yolov3_forward.3} parent=27 // loop_footer
        %s170 = sadd.s32 1, %s166
      $region34: #{yolov3_forward.3} parent=27 // loop_footer_branch
        %165 = sbr.rel target = $region30
      $region35: #{yolov3_forward.3} parent=27 // loop_exit
        _
      %v233 = vlaneseq
      %vm234 = vcmp.ge.s32.totalorder %v233, 0
      %vm235 = vcmp.lt.s32.totalorder %v233, 512
      %vm236 = vmand %vm234, %vm235
      %237 = vst.msk [vmem:[%s158] sm:$0xf] %vm236, %v171
      %p238 = scmp.lt.s32.totalorder %s13, 1
      %s239 = scalar_select %p238, %s13, 1
      %s240 = smul.addr %s239, 4
      %s241 = scalar_lea.vmem %s2, %s240
      // Predicated region
      $region36: #{yolov3_forward.3} parent=27 // pred_check
        %p242 = pneg %p83
      $region37: #{yolov3_forward.3} parent=27 // pred_check_branch
        %244 = sbr.rel (%p242) target = $region39
      $region38: #{yolov3_forward.3} parent=27 // pred_region
        _
      $region39: #{yolov3_forward.3} parent=27 // pred_fallthru
        _
    $region28: #{yolov3_forward.3} parent=5 // pred_fallthru
      _
    %p245 = scmp.le.s32.totalorder 2, %s8
    // Predicated region
    $region40: #{yolov3_forward.3} parent=5 // pred_check
      %p246 = pneg %p245
    $region41: #{yolov3_forward.3} parent=5 // pred_check_branch
      %248 = sbr.rel (%p246) target = $region43
    $region42: #{yolov3_forward.3} parent=5 // pred_region
      %s249 = ssub.s32 %s8, 2
      // Predicated region
      $region44: #{yolov3_forward.3} parent=42 // pred_check
        %p250 = pneg %p89
      $region45: #{yolov3_forward.3} parent=42 // pred_check_branch
        %252 = sbr.rel (%p250) target = $region47
      $region46: #{yolov3_forward.3} parent=42 // pred_region
        %p253 = scmp.lt.s32.totalorder %s14, 1
        %s254 = scalar_select %p253, %s14, 1
        %s255 = smul.addr %s254, 4
        %s256 = scalar_lea.vmem %s2, %s255
      $region47: #{yolov3_forward.3} parent=42 // pred_fallthru
        _
    $region43: #{yolov3_forward.3} parent=5 // pred_fallthru
      _
  $region6: #{yolov3_forward.3} parent=0 // loop_footer
    %s12 = sadd.s32 1, %s8
  $region7: #{yolov3_forward.3} parent=0 // loop_footer_branch
    %7 = sbr.rel target = $region3
  $region8: #{yolov3_forward.3} parent=0 // loop_exit
    _

</llo_original>
